<compile_context>
chip_gen: v7x
topology: tpu7x:2x2x1
jax: 0.10.0
libtpu: 0.0.40
codegen_flags: <defaults>
</compile_context>

<pallas_src>
import functools

import jax
import jax.numpy as jnp
from jax import lax
from jax.experimental import pallas as pl
from jax.experimental.pallas import tpu as pltpu

EPS = 1e-5


def _row_chunk(H, W, P):
    """Largest divisor of H whose per-chunk f32 accumulator stays <= ~16 vregs (64 KiB)."""
    budget = 64 * 1024
    for cand in range(H, 0, -1):
        if H % cand == 0 and cand * W * P * 4 <= budget:
            return cand
    return 1


def _sphere_block_kernel(x_ref, w1_ref, s1_ref, b1_ref, w2_ref, s2_ref, b2_ref,
                         out_ref, xcat_ref, mcat_ref, *, row_chunk):
    # x_ref    : (1, H, W, C)    bf16 input block (also re-read as the residual)
    # w1_ref   : (3, 3*C, P)     bf16 conv1 weights, w1[dh] = [dw0 | dw1 | dw2] along K
    # s*/b*    : (1, P)          f32 folded BN scale / bias
    # w2_ref   : (3, 3*P, P)     bf16 conv2 weights
    # out_ref  : (1, H, W, P)    bf16 output block
    # xcat_ref : (H+2, W, 3*C)   bf16 staging: [x(w-1) | x(w) | x(w+1)] with 1-row halo
    # mcat_ref : (H+2, W, 3*P)   bf16 staging for the mid activation
    _, H, W, P = out_ref.shape
    C = x_ref.shape[-1]
    RH = row_chunk

    def stage(dst_ref, rows, r0, nch):
        # rows: (nrows, W, nch) bf16 in registers.  Build the dw=-1 / dw=+1 shifted taps
        # in registers (zero-column concat == roll + edge mask; XLU/VPU work) and write
        # each lane band with one dense, full-width, lane-aligned store.
        nrows = rows.shape[0]
        zcol = jnp.zeros((nrows, 1, nch), jnp.bfloat16)
        left = jnp.concatenate([zcol, rows[:, :W - 1, :]], axis=1)    # value at w is x[w-1]
        right = jnp.concatenate([rows[:, 1:, :], zcol], axis=1)       # value at w is x[w+1]
        dst_ref[r0 + 1:r0 + 1 + nrows, :, 0:nch] = left
        dst_ref[r0 + 1:r0 + 1 + nrows, :, nch:2 * nch] = rows
        dst_ref[r0 + 1:r0 + 1 + nrows, :, 2 * nch:3 * nch] = right

    # Zero only the 1-row top/bottom halos; the interior is fully rewritten below, so
    # the scheme stays correct when the batch grid axis is sharded across TensorCores.
    xcat_ref[0:1, :, :] = jnp.zeros((1, W, 3 * C), jnp.bfloat16)
    xcat_ref[H + 1:H + 2, :, :] = jnp.zeros((1, W, 3 * C), jnp.bfloat16)
    mcat_ref[0:1, :, :] = jnp.zeros((1, W, 3 * P), jnp.bfloat16)
    mcat_ref[H + 1:H + 2, :, :] = jnp.zeros((1, W, 3 * P), jnp.bfloat16)

    # ---- stage conv1 input (row-chunked to bound register pressure) ----
    for r0 in range(0, H, RH):
        stage(xcat_ref, x_ref[0, r0:r0 + RH], r0, C)

    # ---- conv1 (3 chained MXU matmuls, K=3*C) + bn1 + relu; stage conv2 input ----
    for r0 in range(0, H, RH):
        acc = None
        for dh in range(3):
            patch = xcat_ref[r0 + dh:r0 + dh + RH, :, :].reshape(RH * W, 3 * C)
            d = jnp.dot(patch, w1_ref[dh], preferred_element_type=jnp.float32)
            acc = d if acc is None else acc + d
        mid = jnp.maximum(acc * s1_ref[...] + b1_ref[...], 0.0)          # f32 epilogue
        stage(mcat_ref, mid.astype(jnp.bfloat16).reshape(RH, W, P), r0, P)

    # ---- conv2 (K=3*P) + bn2 + residual add + relu, bf16 lane-dense stores ----
    for r0 in range(0, H, RH):
        acc = None
        for dh in range(3):
            patch = mcat_ref[r0 + dh:r0 + dh + RH, :, :].reshape(RH * W, 3 * P)
            d = jnp.dot(patch, w2_ref[dh], preferred_element_type=jnp.float32)
            acc = d if acc is None else acc + d
        res = x_ref[0, r0:r0 + RH].reshape(RH * W, C).astype(jnp.float32)
        out = jnp.maximum(acc * s2_ref[...] + b2_ref[...] + res, 0.0)
        out_ref[0, r0:r0 + RH] = out.reshape(RH, W, P).astype(out_ref.dtype)


def _fold_bn(bn):
    g, b, m, v = [jnp.asarray(p, jnp.float32) for p in bn]
    s = g / jnp.sqrt(v + EPS)
    return s.reshape(1, -1), (b - m * s).reshape(1, -1)


def sphere_basic_block(x_nhwc, w1_hwio, bn1, w2_hwio, bn2):
    """Fused SphereBasicBlock forward (stride=1, downsample=None).

    x_nhwc : (B, H, W, C)       activations, NHWC (kept NHWC end-to-end across blocks;
                                 upstream blocks would already hand over bf16).
    w*_hwio: (3, 3, Cin, Cout)  conv weights (PyTorch OIHW -> HWIO: transpose(2, 3, 1, 0)).
    bn*    : (gamma, beta, running_mean, running_var), each (Cout,).
    Returns (B, H, W, Cout) bf16.
    """
    B, H, W, C = x_nhwc.shape
    P = w1_hwio.shape[-1]
    assert C == P, "residual add requires inplanes == planes (downsample=None, stride=1)"
    assert C % 128 == 0, "channels must be lane-dense (multiple of 128); pad if needed"
    # W should be a multiple of 16 (bf16 sublane packing) so the in-kernel reshapes are free.

    x = x_nhwc.astype(jnp.bfloat16)
    s1, b1 = _fold_bn(bn1)
    s2, b2 = _fold_bn(bn2)
    # (kh, kw, cin, cout) -> (kh, kw*cin, cout): the 3 dw taps are folded into the
    # contraction axis, matching the [left | center | right] lane layout of the staging.
    w1k = jnp.asarray(w1_hwio, jnp.bfloat16).reshape(3, 3 * C, P)
    w2k = jnp.asarray(w2_hwio, jnp.bfloat16).reshape(3, 3 * P, P)

    rh = _row_chunk(H, W, P)

    # VMEM footprint: double-buffered pipeline blocks + scratch staging, with headroom.
    bpe = 2  # bf16
    footprint = (2 * H * W * C * bpe                       # input block x2
                 + 2 * H * W * P * bpe                     # bf16 output block x2
                 + 2 * (w1k.size + w2k.size) * bpe         # weights x2
                 + 2 * 4 * (P * 4)                         # folded BN scale/bias x2
                 + (H + 2) * W * 3 * C * bpe               # conv1 staging
                 + (H + 2) * W * 3 * P * bpe)              # conv2 staging
    vmem_limit = int(min(64 * 2 ** 20, max(4 * 2 ** 20, 2 * footprint)))

    flops = 2 * B * H * W * 9 * (C * P + P * P)
    bytes_accessed = (B * H * W * C * bpe                  # bf16 input
                      + (w1k.size + w2k.size) * bpe        # bf16 weights
                      + 4 * P * 4                          # folded BN params
                      + B * H * W * P * bpe)               # bf16 output

    kernel = functools.partial(_sphere_block_kernel, row_chunk=rh)
    return pl.pallas_call(
        kernel,
        out_shape=jax.ShapeDtypeStruct((B, H, W, P), jnp.bfloat16),
        grid_spec=pltpu.PrefetchScalarGridSpec(
            num_scalar_prefetch=0,
            grid=(B,),
            in_specs=[
                pl.BlockSpec((1, H, W, C), lambda b: (b, 0, 0, 0)),
                pl.BlockSpec((3, 3 * C, P), lambda b: (0, 0, 0)),
                pl.BlockSpec((1, P), lambda b: (0, 0)),
                pl.BlockSpec((1, P), lambda b: (0, 0)),
                pl.BlockSpec((3, 3 * P, P), lambda b: (0, 0, 0)),
                pl.BlockSpec((1, P), lambda b: (0, 0)),
                pl.BlockSpec((1, P), lambda b: (0, 0)),
            ],
            out_specs=pl.BlockSpec((1, H, W, P), lambda b: (b, 0, 0, 0)),
            scratch_shapes=[
                pltpu.VMEM((H + 2, W, 3 * C), jnp.bfloat16),   # conv1 staging
                pltpu.VMEM((H + 2, W, 3 * P), jnp.bfloat16),   # conv2 staging
            ],
        ),
        compiler_params=pltpu.CompilerParams(
            dimension_semantics=("parallel",),
            vmem_limit_bytes=vmem_limit,
        ),
        cost_estimate=pl.CostEstimate(flops=flops, transcendentals=0,
                                      bytes_accessed=bytes_accessed),
    )(x, w1k, s1, b1, w2k, s2, b2)


def _reference(x_nhwc, w1, bn1, w2, bn2):
    """Plain-JAX NHWC reference (lax conv, HIGHEST precision) matching the kernel's
    bf16 rounding of input, weights, mid activation and output."""
    x = x_nhwc.astype(jnp.bfloat16).astype(jnp.float32)
    w1f = jnp.asarray(w1, jnp.bfloat16).astype(jnp.float32)
    w2f = jnp.asarray(w2, jnp.bfloat16).astype(jnp.float32)
    dn = ('NHWC', 'HWIO', 'NHWC')

    def conv(a, w):
        return lax.conv_general_dilated(a, w, (1, 1), ((1, 1), (1, 1)),
                                        dimension_numbers=dn,
                                        precision=lax.Precision.HIGHEST)

    def bn(a, p):
        g, b, m, v = [jnp.asarray(t, jnp.float32) for t in p]
        return (a - m) / jnp.sqrt(v + EPS) * g + b

    mid = jax.nn.relu(bn(conv(x, w1f), bn1))
    mid = mid.astype(jnp.bfloat16).astype(jnp.float32)
    out = jax.nn.relu(bn(conv(mid, w2f), bn2) + x)
    return out.astype(jnp.bfloat16)


if __name__ == "__main__":
    # inplanes = planes = 128 (lane-dense channel axis), stride = 1, downsample = None
    B, H, W, C = 2, 16, 16, 128
    P = C

    key = jax.random.PRNGKey(0)
    ks = jax.random.split(key, 11)
    x = jax.random.normal(ks[0], (B, H, W, C), jnp.float32)
    w1 = jax.random.normal(ks[1], (3, 3, C, P), jnp.float32) * 0.1
    w2 = jax.random.normal(ks[2], (3, 3, P, P), jnp.float32) * 0.1
    bn1 = (1.0 + 0.1 * jax.random.normal(ks[3], (P,)),
           0.1 * jax.random.normal(ks[4], (P,)),
           0.1 * jax.random.normal(ks[5], (P,)),
           1.0 + 0.1 * jax.random.uniform(ks[6], (P,)))
    bn2 = (1.0 + 0.1 * jax.random.normal(ks[7], (P,)),
           0.1 * jax.random.normal(ks[8], (P,)),
           0.1 * jax.random.normal(ks[9], (P,)),
           1.0 + 0.1 * jax.random.uniform(ks[10], (P,)))

    out = jax.block_until_ready(sphere_basic_block(x, w1, bn1, w2, bn2))
    ref = jax.block_until_ready(_reference(x, w1, bn1, w2, bn2))

    assert out.shape == (B, H, W, P) and out.dtype == jnp.bfloat16
    out_f = out.astype(jnp.float32)
    ref_f = ref.astype(jnp.float32)
    max_err = float(jnp.max(jnp.abs(out_f - ref_f)))
    assert jnp.allclose(out_f, ref_f, atol=5e-2, rtol=5e-2), max_err

    print("KERNEL_OK")
</pallas_src>

<mosaic_0001>
module attributes {stable_mosaic.version = 11 : i64} {
  func.func @_sphere_block_kernel(%arg0: i32, %arg1: memref<1x16x16x128xbf16, #tpu.memory_space<vmem>>, %arg2: memref<3x384x128xbf16, #tpu.memory_space<vmem>>, %arg3: memref<1x128xf32, #tpu.memory_space<vmem>>, %arg4: memref<1x128xf32, #tpu.memory_space<vmem>>, %arg5: memref<3x384x128xbf16, #tpu.memory_space<vmem>>, %arg6: memref<1x128xf32, #tpu.memory_space<vmem>>, %arg7: memref<1x128xf32, #tpu.memory_space<vmem>>, %arg8: memref<1x16x16x128xbf16, #tpu.memory_space<vmem>>, %arg9: memref<18x16x384xbf16, #tpu.memory_space<vmem>>, %arg10: memref<18x16x384xbf16, #tpu.memory_space<vmem>>) attributes {dimension_semantics = [#tpu.dimension_semantics<parallel>], iteration_bounds = array<i64: 2>, scalar_prefetch = 0 : i64, scratch_operands = 2 : i64, tpu.core_type = #tpu.core_type<tc>, window_params = [{transform_indices = @transform_0, window_bounds = array<i64: 1, 16, 16, 128>}, {pipeline_mode = #tpu.pipeline_mode<synchronous>, transform_indices = @transform_1, window_bounds = array<i64: 3, 384, 128>}, {pipeline_mode = #tpu.pipeline_mode<synchronous>, transform_indices = @transform_2, window_bounds = array<i64: 1, 128>}, {pipeline_mode = #tpu.pipeline_mode<synchronous>, transform_indices = @transform_3, window_bounds = array<i64: 1, 128>}, {pipeline_mode = #tpu.pipeline_mode<synchronous>, transform_indices = @transform_4, window_bounds = array<i64: 3, 384, 128>}, {pipeline_mode = #tpu.pipeline_mode<synchronous>, transform_indices = @transform_5, window_bounds = array<i64: 1, 128>}, {pipeline_mode = #tpu.pipeline_mode<synchronous>, transform_indices = @transform_6, window_bounds = array<i64: 1, 128>}, {transform_indices = @transform_7, window_bounds = array<i64: 1, 16, 16, 128>}]} {
    %cst = arith.constant 0.000000e+00 : bf16
    %0 = vector.broadcast %cst : bf16 to vector<1x16x384xbf16>
    %c0 = arith.constant 0 : index
    %c0_0 = arith.constant 0 : index
    %c0_1 = arith.constant 0 : index
    %1 = vector.load %arg9[%c0, %c0_0, %c0_1] : memref<18x16x384xbf16, #tpu.memory_space<vmem>>, vector<1x16x384xbf16>
    tpu.vector_store %arg9[%c0, %c0_0, %c0_1], %0 {strides = array<i32>} : memref<18x16x384xbf16, #tpu.memory_space<vmem>>, vector<1x16x384xbf16>,
    %cst_2 = arith.constant 0.000000e+00 : bf16
    %2 = vector.broadcast %cst_2 : bf16 to vector<1x16x384xbf16>
    %c17 = arith.constant 17 : index
    %c0_3 = arith.constant 0 : index
    %c0_4 = arith.constant 0 : index
    %3 = vector.load %arg9[%c17, %c0_3, %c0_4] : memref<18x16x384xbf16, #tpu.memory_space<vmem>>, vector<1x16x384xbf16>
    tpu.vector_store %arg9[%c17, %c0_3, %c0_4], %2 {strides = array<i32>} : memref<18x16x384xbf16, #tpu.memory_space<vmem>>, vector<1x16x384xbf16>,
    %cst_5 = arith.constant 0.000000e+00 : bf16
    %4 = vector.broadcast %cst_5 : bf16 to vector<1x16x384xbf16>
    %c0_6 = arith.constant 0 : index
    %c0_7 = arith.constant 0 : index
    %c0_8 = arith.constant 0 : index
    %5 = vector.load %arg10[%c0_6, %c0_7, %c0_8] : memref<18x16x384xbf16, #tpu.memory_space<vmem>>, vector<1x16x384xbf16>
    tpu.vector_store %arg10[%c0_6, %c0_7, %c0_8], %4 {strides = array<i32>} : memref<18x16x384xbf16, #tpu.memory_space<vmem>>, vector<1x16x384xbf16>,
    %cst_9 = arith.constant 0.000000e+00 : bf16
    %6 = vector.broadcast %cst_9 : bf16 to vector<1x16x384xbf16>
    %c17_10 = arith.constant 17 : index
    %c0_11 = arith.constant 0 : index
    %c0_12 = arith.constant 0 : index
    %7 = vector.load %arg10[%c17_10, %c0_11, %c0_12] : memref<18x16x384xbf16, #tpu.memory_space<vmem>>, vector<1x16x384xbf16>
    tpu.vector_store %arg10[%c17_10, %c0_11, %c0_12], %6 {strides = array<i32>} : memref<18x16x384xbf16, #tpu.memory_space<vmem>>, vector<1x16x384xbf16>,
    %c0_13 = arith.constant 0 : index
    %c0_14 = arith.constant 0 : index
    %c0_15 = arith.constant 0 : index
    %c0_16 = arith.constant 0 : index
    %8 = vector.load %arg1[%c0_13, %c0_14, %c0_15, %c0_16] : memref<1x16x16x128xbf16, #tpu.memory_space<vmem>>, vector<1x8x16x128xbf16>
    %9 = vector.shape_cast %8 : vector<1x8x16x128xbf16> to vector<8x16x128xbf16>
    %cst_17 = arith.constant 0.000000e+00 : bf16
    %10 = vector.broadcast %cst_17 : bf16 to vector<8x1x128xbf16>
    %11 = vector.extract_strided_slice %9 {offsets = [0, 0, 0], sizes = [8, 15, 128], strides = [1, 1, 1]} : vector<8x16x128xbf16> to vector<8x15x128xbf16>
    %12 = tpu.concatenate %10, %11 in 1 : vector<8x1x128xbf16>, vector<8x15x128xbf16> -> vector<8x16x128xbf16>
    %13 = vector.extract_strided_slice %9 {offsets = [0, 1, 0], sizes = [8, 15, 128], strides = [1, 1, 1]} : vector<8x16x128xbf16> to vector<8x15x128xbf16>
    %14 = tpu.concatenate %13, %10 in 1 : vector<8x15x128xbf16>, vector<8x1x128xbf16> -> vector<8x16x128xbf16>
    %c1 = arith.constant 1 : index
    %c0_18 = arith.constant 0 : index
    %c0_19 = arith.constant 0 : index
    %15 = vector.load %arg9[%c1, %c0_18, %c0_19] : memref<18x16x384xbf16, #tpu.memory_space<vmem>>, vector<8x16x128xbf16>
    tpu.vector_store %arg9[%c1, %c0_18, %c0_19], %12 {strides = array<i32>} : memref<18x16x384xbf16, #tpu.memory_space<vmem>>, vector<8x16x128xbf16>,
    %c1_20 = arith.constant 1 : index
    %c0_21 = arith.constant 0 : index
    %c128 = arith.constant 128 : index
    %16 = vector.load %arg9[%c1_20, %c0_21, %c128] : memref<18x16x384xbf16, #tpu.memory_space<vmem>>, vector<8x16x128xbf16>
    tpu.vector_store %arg9[%c1_20, %c0_21, %c128], %9 {strides = array<i32>} : memref<18x16x384xbf16, #tpu.memory_space<vmem>>, vector<8x16x128xbf16>,
    %c1_22 = arith.constant 1 : index
    %c0_23 = arith.constant 0 : index
    %c256 = arith.constant 256 : index
    %17 = vector.load %arg9[%c1_22, %c0_23, %c256] : memref<18x16x384xbf16, #tpu.memory_space<vmem>>, vector<8x16x128xbf16>
    tpu.vector_store %arg9[%c1_22, %c0_23, %c256], %14 {strides = array<i32>} : memref<18x16x384xbf16, #tpu.memory_space<vmem>>, vector<8x16x128xbf16>,
    %c0_24 = arith.constant 0 : index
    %c8 = arith.constant 8 : index
    %c0_25 = arith.constant 0 : index
    %c0_26 = arith.constant 0 : index
    %18 = vector.load %arg1[%c0_24, %c8, %c0_25, %c0_26] : memref<1x16x16x128xbf16, #tpu.memory_space<vmem>>, vector<1x8x16x128xbf16>
    %19 = vector.shape_cast %18 : vector<1x8x16x128xbf16> to vector<8x16x128xbf16>
    %cst_27 = arith.constant 0.000000e+00 : bf16
    %20 = vector.broadcast %cst_27 : bf16 to vector<8x1x128xbf16>
    %21 = vector.extract_strided_slice %19 {offsets = [0, 0, 0], sizes = [8, 15, 128], strides = [1, 1, 1]} : vector<8x16x128xbf16> to vector<8x15x128xbf16>
    %22 = tpu.concatenate %20, %21 in 1 : vector<8x1x128xbf16>, vector<8x15x128xbf16> -> vector<8x16x128xbf16>
    %23 = vector.extract_strided_slice %19 {offsets = [0, 1, 0], sizes = [8, 15, 128], strides = [1, 1, 1]} : vector<8x16x128xbf16> to vector<8x15x128xbf16>
    %24 = tpu.concatenate %23, %20 in 1 : vector<8x15x128xbf16>, vector<8x1x128xbf16> -> vector<8x16x128xbf16>
    %c9 = arith.constant 9 : index
    %c0_28 = arith.constant 0 : index
    %c0_29 = arith.constant 0 : index
    %25 = vector.load %arg9[%c9, %c0_28, %c0_29] : memref<18x16x384xbf16, #tpu.memory_space<vmem>>, vector<8x16x128xbf16>
    tpu.vector_store %arg9[%c9, %c0_28, %c0_29], %22 {strides = array<i32>} : memref<18x16x384xbf16, #tpu.memory_space<vmem>>, vector<8x16x128xbf16>,
    %c9_30 = arith.constant 9 : index
    %c0_31 = arith.constant 0 : index
    %c128_32 = arith.constant 128 : index
    %26 = vector.load %arg9[%c9_30, %c0_31, %c128_32] : memref<18x16x384xbf16, #tpu.memory_space<vmem>>, vector<8x16x128xbf16>
    tpu.vector_store %arg9[%c9_30, %c0_31, %c128_32], %19 {strides = array<i32>} : memref<18x16x384xbf16, #tpu.memory_space<vmem>>, vector<8x16x128xbf16>,
    %c9_33 = arith.constant 9 : index
    %c0_34 = arith.constant 0 : index
    %c256_35 = arith.constant 256 : index
    %27 = vector.load %arg9[%c9_33, %c0_34, %c256_35] : memref<18x16x384xbf16, #tpu.memory_space<vmem>>, vector<8x16x128xbf16>
    tpu.vector_store %arg9[%c9_33, %c0_34, %c256_35], %24 {strides = array<i32>} : memref<18x16x384xbf16, #tpu.memory_space<vmem>>, vector<8x16x128xbf16>,
    %c0_36 = arith.constant 0 : index
    %c0_37 = arith.constant 0 : index
    %c0_38 = arith.constant 0 : index
    %28 = vector.load %arg9[%c0_36, %c0_37, %c0_38] : memref<18x16x384xbf16, #tpu.memory_space<vmem>>, vector<8x16x384xbf16>
    %29 = vector.shape_cast %28 : vector<8x16x384xbf16> to vector<128x384xbf16>
    %c0_39 = arith.constant 0 : index
    %c0_40 = arith.constant 0 : index
    %c0_41 = arith.constant 0 : index
    %30 = vector.load %arg2[%c0_39, %c0_40, %c0_41] : memref<3x384x128xbf16, #tpu.memory_space<vmem>>, vector<1x384x128xbf16>
    %31 = vector.shape_cast %30 : vector<1x384x128xbf16> to vector<384x128xbf16>
    %cst_42 = arith.constant dense<0.000000e+00> : vector<128x128xf32>
    %32 = tpu.matmul %29, %31, %cst_42 {dimension_numbers = #tpu.dot_dimension_numbers<[1], [0], [0], [1], [0, 0, 1, 1], [], []>} : vector<128x384xbf16>, vector<384x128xbf16>, vector<128x128xf32> -> vector<128x128xf32>
    %c1_43 = arith.constant 1 : index
    %c0_44 = arith.constant 0 : index
    %c0_45 = arith.constant 0 : index
    %33 = vector.load %arg9[%c1_43, %c0_44, %c0_45] : memref<18x16x384xbf16, #tpu.memory_space<vmem>>, vector<8x16x384xbf16>
    %34 = vector.shape_cast %33 : vector<8x16x384xbf16> to vector<128x384xbf16>
    %c1_46 = arith.constant 1 : index
    %c0_47 = arith.constant 0 : index
    %c0_48 = arith.constant 0 : index
    %35 = vector.load %arg2[%c1_46, %c0_47, %c0_48] : memref<3x384x128xbf16, #tpu.memory_space<vmem>>, vector<1x384x128xbf16>
    %36 = vector.shape_cast %35 : vector<1x384x128xbf16> to vector<384x128xbf16>
    %cst_49 = arith.constant dense<0.000000e+00> : vector<128x128xf32>
    %37 = tpu.matmul %34, %36, %cst_49 {dimension_numbers = #tpu.dot_dimension_numbers<[1], [0], [0], [1], [0, 0, 1, 1], [], []>} : vector<128x384xbf16>, vector<384x128xbf16>, vector<128x128xf32> -> vector<128x128xf32>
    %38 = arith.addf %32, %37 : vector<128x128xf32>
    %c2 = arith.constant 2 : index
    %c0_50 = arith.constant 0 : index
    %c0_51 = arith.constant 0 : index
    %39 = vector.load %arg9[%c2, %c0_50, %c0_51] : memref<18x16x384xbf16, #tpu.memory_space<vmem>>, vector<8x16x384xbf16>
    %40 = vector.shape_cast %39 : vector<8x16x384xbf16> to vector<128x384xbf16>
    %c2_52 = arith.constant 2 : index
    %c0_53 = arith.constant 0 : index
    %c0_54 = arith.constant 0 : index
    %41 = vector.load %arg2[%c2_52, %c0_53, %c0_54] : memref<3x384x128xbf16, #tpu.memory_space<vmem>>, vector<1x384x128xbf16>
    %42 = vector.shape_cast %41 : vector<1x384x128xbf16> to vector<384x128xbf16>
    %cst_55 = arith.constant dense<0.000000e+00> : vector<128x128xf32>
    %43 = tpu.matmul %40, %42, %cst_55 {dimension_numbers = #tpu.dot_dimension_numbers<[1], [0], [0], [1], [0, 0, 1, 1], [], []>} : vector<128x384xbf16>, vector<384x128xbf16>, vector<128x128xf32> -> vector<128x128xf32>
    %44 = arith.addf %38, %43 : vector<128x128xf32>
    %c0_56 = arith.constant 0 : index
    %c0_57 = arith.constant 0 : index
    %45 = vector.load %arg3[%c0_56, %c0_57] : memref<1x128xf32, #tpu.memory_space<vmem>>, vector<1x128xf32>
    %46 = vector.broadcast %45 : vector<1x128xf32> to vector<128x128xf32>
    %47 = arith.mulf %44, %46 : vector<128x128xf32>
    %c0_58 = arith.constant 0 : index
    %c0_59 = arith.constant 0 : index
    %48 = vector.load %arg4[%c0_58, %c0_59] : memref<1x128xf32, #tpu.memory_space<vmem>>, vector<1x128xf32>
    %49 = vector.broadcast %48 : vector<1x128xf32> to vector<128x128xf32>
    %50 = arith.addf %47, %49 : vector<128x128xf32>
    %cst_60 = arith.constant 0.000000e+00 : f32
    %51 = vector.broadcast %cst_60 : f32 to vector<128x128xf32>
    %52 = arith.maximumf %50, %51 : vector<128x128xf32>
    %53 = arith.truncf %52 : vector<128x128xf32> to vector<128x128xbf16>
    %54 = vector.shape_cast %53 : vector<128x128xbf16> to vector<8x16x128xbf16>
    %cst_61 = arith.constant 0.000000e+00 : bf16
    %55 = vector.broadcast %cst_61 : bf16 to vector<8x1x128xbf16>
    %56 = vector.extract_strided_slice %54 {offsets = [0, 0, 0], sizes = [8, 15, 128], strides = [1, 1, 1]} : vector<8x16x128xbf16> to vector<8x15x128xbf16>
    %57 = tpu.concatenate %55, %56 in 1 : vector<8x1x128xbf16>, vector<8x15x128xbf16> -> vector<8x16x128xbf16>
    %58 = vector.extract_strided_slice %54 {offsets = [0, 1, 0], sizes = [8, 15, 128], strides = [1, 1, 1]} : vector<8x16x128xbf16> to vector<8x15x128xbf16>
    %59 = tpu.concatenate %58, %55 in 1 : vector<8x15x128xbf16>, vector<8x1x128xbf16> -> vector<8x16x128xbf16>
    %c1_62 = arith.constant 1 : index
    %c0_63 = arith.constant 0 : index
    %c0_64 = arith.constant 0 : index
    %60 = vector.load %arg10[%c1_62, %c0_63, %c0_64] : memref<18x16x384xbf16, #tpu.memory_space<vmem>>, vector<8x16x128xbf16>
    tpu.vector_store %arg10[%c1_62, %c0_63, %c0_64], %57 {strides = array<i32>} : memref<18x16x384xbf16, #tpu.memory_space<vmem>>, vector<8x16x128xbf16>,
    %c1_65 = arith.constant 1 : index
    %c0_66 = arith.constant 0 : index
    %c128_67 = arith.constant 128 : index
    %61 = vector.load %arg10[%c1_65, %c0_66, %c128_67] : memref<18x16x384xbf16, #tpu.memory_space<vmem>>, vector<8x16x128xbf16>
    tpu.vector_store %arg10[%c1_65, %c0_66, %c128_67], %54 {strides = array<i32>} : memref<18x16x384xbf16, #tpu.memory_space<vmem>>, vector<8x16x128xbf16>,
    %c1_68 = arith.constant 1 : index
    %c0_69 = arith.constant 0 : index
    %c256_70 = arith.constant 256 : index
    %62 = vector.load %arg10[%c1_68, %c0_69, %c256_70] : memref<18x16x384xbf16, #tpu.memory_space<vmem>>, vector<8x16x128xbf16>
    tpu.vector_store %arg10[%c1_68, %c0_69, %c256_70], %59 {strides = array<i32>} : memref<18x16x384xbf16, #tpu.memory_space<vmem>>, vector<8x16x128xbf16>,
    %c8_71 = arith.constant 8 : index
    %c0_72 = arith.constant 0 : index
    %c0_73 = arith.constant 0 : index
    %63 = vector.load %arg9[%c8_71, %c0_72, %c0_73] : memref<18x16x384xbf16, #tpu.memory_space<vmem>>, vector<8x16x384xbf16>
    %64 = vector.shape_cast %63 : vector<8x16x384xbf16> to vector<128x384xbf16>
    %c0_74 = arith.constant 0 : index
    %c0_75 = arith.constant 0 : index
    %c0_76 = arith.constant 0 : index
    %65 = vector.load %arg2[%c0_74, %c0_75, %c0_76] : memref<3x384x128xbf16, #tpu.memory_space<vmem>>, vector<1x384x128xbf16>
    %66 = vector.shape_cast %65 : vector<1x384x128xbf16> to vector<384x128xbf16>
    %cst_77 = arith.constant dense<0.000000e+00> : vector<128x128xf32>
    %67 = tpu.matmul %64, %66, %cst_77 {dimension_numbers = #tpu.dot_dimension_numbers<[1], [0], [0], [1], [0, 0, 1, 1], [], []>} : vector<128x384xbf16>, vector<384x128xbf16>, vector<128x128xf32> -> vector<128x128xf32>
    %c9_78 = arith.constant 9 : index
    %c0_79 = arith.constant 0 : index
    %c0_80 = arith.constant 0 : index
    %68 = vector.load %arg9[%c9_78, %c0_79, %c0_80] : memref<18x16x384xbf16, #tpu.memory_space<vmem>>, vector<8x16x384xbf16>
    %69 = vector.shape_cast %68 : vector<8x16x384xbf16> to vector<128x384xbf16>
    %c1_81 = arith.constant 1 : index
    %c0_82 = arith.constant 0 : index
    %c0_83 = arith.constant 0 : index
    %70 = vector.load %arg2[%c1_81, %c0_82, %c0_83] : memref<3x384x128xbf16, #tpu.memory_space<vmem>>, vector<1x384x128xbf16>
    %71 = vector.shape_cast %70 : vector<1x384x128xbf16> to vector<384x128xbf16>
    %cst_84 = arith.constant dense<0.000000e+00> : vector<128x128xf32>
    %72 = tpu.matmul %69, %71, %cst_84 {dimension_numbers = #tpu.dot_dimension_numbers<[1], [0], [0], [1], [0, 0, 1, 1], [], []>} : vector<128x384xbf16>, vector<384x128xbf16>, vector<128x128xf32> -> vector<128x128xf32>
    %73 = arith.addf %67, %72 : vector<128x128xf32>
    %c10 = arith.constant 10 : index
    %c0_85 = arith.constant 0 : index
    %c0_86 = arith.constant 0 : index
    %74 = vector.load %arg9[%c10, %c0_85, %c0_86] : memref<18x16x384xbf16, #tpu.memory_space<vmem>>, vector<8x16x384xbf16>
    %75 = vector.shape_cast %74 : vector<8x16x384xbf16> to vector<128x384xbf16>
    %c2_87 = arith.constant 2 : index
    %c0_88 = arith.constant 0 : index
    %c0_89 = arith.constant 0 : index
    %76 = vector.load %arg2[%c2_87, %c0_88, %c0_89] : memref<3x384x128xbf16, #tpu.memory_space<vmem>>, vector<1x384x128xbf16>
    %77 = vector.shape_cast %76 : vector<1x384x128xbf16> to vector<384x128xbf16>
    %cst_90 = arith.constant dense<0.000000e+00> : vector<128x128xf32>
    %78 = tpu.matmul %75, %77, %cst_90 {dimension_numbers = #tpu.dot_dimension_numbers<[1], [0], [0], [1], [0, 0, 1, 1], [], []>} : vector<128x384xbf16>, vector<384x128xbf16>, vector<128x128xf32> -> vector<128x128xf32>
    %79 = arith.addf %73, %78 : vector<128x128xf32>
    %c0_91 = arith.constant 0 : index
    %c0_92 = arith.constant 0 : index
    %80 = vector.load %arg3[%c0_91, %c0_92] : memref<1x128xf32, #tpu.memory_space<vmem>>, vector<1x128xf32>
    %81 = vector.broadcast %80 : vector<1x128xf32> to vector<128x128xf32>
    %82 = arith.mulf %79, %81 : vector<128x128xf32>
    %c0_93 = arith.constant 0 : index
    %c0_94 = arith.constant 0 : index
    %83 = vector.load %arg4[%c0_93, %c0_94] : memref<1x128xf32, #tpu.memory_space<vmem>>, vector<1x128xf32>
    %84 = vector.broadcast %83 : vector<1x128xf32> to vector<128x128xf32>
    %85 = arith.addf %82, %84 : vector<128x128xf32>
    %cst_95 = arith.constant 0.000000e+00 : f32
    %86 = vector.broadcast %cst_95 : f32 to vector<128x128xf32>
    %87 = arith.maximumf %85, %86 : vector<128x128xf32>
    %88 = arith.truncf %87 : vector<128x128xf32> to vector<128x128xbf16>
    %89 = vector.shape_cast %88 : vector<128x128xbf16> to vector<8x16x128xbf16>
    %cst_96 = arith.constant 0.000000e+00 : bf16
    %90 = vector.broadcast %cst_96 : bf16 to vector<8x1x128xbf16>
    %91 = vector.extract_strided_slice %89 {offsets = [0, 0, 0], sizes = [8, 15, 128], strides = [1, 1, 1]} : vector<8x16x128xbf16> to vector<8x15x128xbf16>
    %92 = tpu.concatenate %90, %91 in 1 : vector<8x1x128xbf16>, vector<8x15x128xbf16> -> vector<8x16x128xbf16>
    %93 = vector.extract_strided_slice %89 {offsets = [0, 1, 0], sizes = [8, 15, 128], strides = [1, 1, 1]} : vector<8x16x128xbf16> to vector<8x15x128xbf16>
    %94 = tpu.concatenate %93, %90 in 1 : vector<8x15x128xbf16>, vector<8x1x128xbf16> -> vector<8x16x128xbf16>
    %c9_97 = arith.constant 9 : index
    %c0_98 = arith.constant 0 : index
    %c0_99 = arith.constant 0 : index
    %95 = vector.load %arg10[%c9_97, %c0_98, %c0_99] : memref<18x16x384xbf16, #tpu.memory_space<vmem>>, vector<8x16x128xbf16>
    tpu.vector_store %arg10[%c9_97, %c0_98, %c0_99], %92 {strides = array<i32>} : memref<18x16x384xbf16, #tpu.memory_space<vmem>>, vector<8x16x128xbf16>,
    %c9_100 = arith.constant 9 : index
    %c0_101 = arith.constant 0 : index
    %c128_102 = arith.constant 128 : index
    %96 = vector.load %arg10[%c9_100, %c0_101, %c128_102] : memref<18x16x384xbf16, #tpu.memory_space<vmem>>, vector<8x16x128xbf16>
    tpu.vector_store %arg10[%c9_100, %c0_101, %c128_102], %89 {strides = array<i32>} : memref<18x16x384xbf16, #tpu.memory_space<vmem>>, vector<8x16x128xbf16>,
    %c9_103 = arith.constant 9 : index
    %c0_104 = arith.constant 0 : index
    %c256_105 = arith.constant 256 : index
    %97 = vector.load %arg10[%c9_103, %c0_104, %c256_105] : memref<18x16x384xbf16, #tpu.memory_space<vmem>>, vector<8x16x128xbf16>
    tpu.vector_store %arg10[%c9_103, %c0_104, %c256_105], %94 {strides = array<i32>} : memref<18x16x384xbf16, #tpu.memory_space<vmem>>, vector<8x16x128xbf16>,
    %c0_106 = arith.constant 0 : index
    %c0_107 = arith.constant 0 : index
    %c0_108 = arith.constant 0 : index
    %98 = vector.load %arg10[%c0_106, %c0_107, %c0_108] : memref<18x16x384xbf16, #tpu.memory_space<vmem>>, vector<8x16x384xbf16>
    %99 = vector.shape_cast %98 : vector<8x16x384xbf16> to vector<128x384xbf16>
    %c0_109 = arith.constant 0 : index
    %c0_110 = arith.constant 0 : index
    %c0_111 = arith.constant 0 : index
    %100 = vector.load %arg5[%c0_109, %c0_110, %c0_111] : memref<3x384x128xbf16, #tpu.memory_space<vmem>>, vector<1x384x128xbf16>
    %101 = vector.shape_cast %100 : vector<1x384x128xbf16> to vector<384x128xbf16>
    %cst_112 = arith.constant dense<0.000000e+00> : vector<128x128xf32>
    %102 = tpu.matmul %99, %101, %cst_112 {dimension_numbers = #tpu.dot_dimension_numbers<[1], [0], [0], [1], [0, 0, 1, 1], [], []>} : vector<128x384xbf16>, vector<384x128xbf16>, vector<128x128xf32> -> vector<128x128xf32>
    %c1_113 = arith.constant 1 : index
    %c0_114 = arith.constant 0 : index
    %c0_115 = arith.constant 0 : index
    %103 = vector.load %arg10[%c1_113, %c0_114, %c0_115] : memref<18x16x384xbf16, #tpu.memory_space<vmem>>, vector<8x16x384xbf16>
    %104 = vector.shape_cast %103 : vector<8x16x384xbf16> to vector<128x384xbf16>
    %c1_116 = arith.constant 1 : index
    %c0_117 = arith.constant 0 : index
    %c0_118 = arith.constant 0 : index
    %105 = vector.load %arg5[%c1_116, %c0_117, %c0_118] : memref<3x384x128xbf16, #tpu.memory_space<vmem>>, vector<1x384x128xbf16>
    %106 = vector.shape_cast %105 : vector<1x384x128xbf16> to vector<384x128xbf16>
    %cst_119 = arith.constant dense<0.000000e+00> : vector<128x128xf32>
    %107 = tpu.matmul %104, %106, %cst_119 {dimension_numbers = #tpu.dot_dimension_numbers<[1], [0], [0], [1], [0, 0, 1, 1], [], []>} : vector<128x384xbf16>, vector<384x128xbf16>, vector<128x128xf32> -> vector<128x128xf32>
    %108 = arith.addf %102, %107 : vector<128x128xf32>
    %c2_120 = arith.constant 2 : index
    %c0_121 = arith.constant 0 : index
    %c0_122 = arith.constant 0 : index
    %109 = vector.load %arg10[%c2_120, %c0_121, %c0_122] : memref<18x16x384xbf16, #tpu.memory_space<vmem>>, vector<8x16x384xbf16>
    %110 = vector.shape_cast %109 : vector<8x16x384xbf16> to vector<128x384xbf16>
    %c2_123 = arith.constant 2 : index
    %c0_124 = arith.constant 0 : index
    %c0_125 = arith.constant 0 : index
    %111 = vector.load %arg5[%c2_123, %c0_124, %c0_125] : memref<3x384x128xbf16, #tpu.memory_space<vmem>>, vector<1x384x128xbf16>
    %112 = vector.shape_cast %111 : vector<1x384x128xbf16> to vector<384x128xbf16>
    %cst_126 = arith.constant dense<0.000000e+00> : vector<128x128xf32>
    %113 = tpu.matmul %110, %112, %cst_126 {dimension_numbers = #tpu.dot_dimension_numbers<[1], [0], [0], [1], [0, 0, 1, 1], [], []>} : vector<128x384xbf16>, vector<384x128xbf16>, vector<128x128xf32> -> vector<128x128xf32>
    %114 = arith.addf %108, %113 : vector<128x128xf32>
    %c0_127 = arith.constant 0 : index
    %c0_128 = arith.constant 0 : index
    %c0_129 = arith.constant 0 : index
    %c0_130 = arith.constant 0 : index
    %115 = vector.load %arg1[%c0_127, %c0_128, %c0_129, %c0_130] : memref<1x16x16x128xbf16, #tpu.memory_space<vmem>>, vector<1x8x16x128xbf16>
    %116 = vector.shape_cast %115 : vector<1x8x16x128xbf16> to vector<8x16x128xbf16>
    %117 = vector.shape_cast %116 : vector<8x16x128xbf16> to vector<128x128xbf16>
    %118 = arith.extf %117 : vector<128x128xbf16> to vector<128x128xf32>
    %c0_131 = arith.constant 0 : index
    %c0_132 = arith.constant 0 : index
    %119 = vector.load %arg6[%c0_131, %c0_132] : memref<1x128xf32, #tpu.memory_space<vmem>>, vector<1x128xf32>
    %120 = vector.broadcast %119 : vector<1x128xf32> to vector<128x128xf32>
    %121 = arith.mulf %114, %120 : vector<128x128xf32>
    %c0_133 = arith.constant 0 : index
    %c0_134 = arith.constant 0 : index
    %122 = vector.load %arg7[%c0_133, %c0_134] : memref<1x128xf32, #tpu.memory_space<vmem>>, vector<1x128xf32>
    %123 = vector.broadcast %122 : vector<1x128xf32> to vector<128x128xf32>
    %124 = arith.addf %121, %123 : vector<128x128xf32>
    %125 = arith.addf %124, %118 : vector<128x128xf32>
    %cst_135 = arith.constant 0.000000e+00 : f32
    %126 = vector.broadcast %cst_135 : f32 to vector<128x128xf32>
    %127 = arith.maximumf %125, %126 : vector<128x128xf32>
    %128 = vector.shape_cast %127 : vector<128x128xf32> to vector<8x16x128xf32>
    %129 = arith.truncf %128 : vector<8x16x128xf32> to vector<8x16x128xbf16>
    %c0_136 = arith.constant 0 : index
    %c0_137 = arith.constant 0 : index
    %c0_138 = arith.constant 0 : index
    %c0_139 = arith.constant 0 : index
    %130 = vector.load %arg8[%c0_136, %c0_137, %c0_138, %c0_139] : memref<1x16x16x128xbf16, #tpu.memory_space<vmem>>, vector<1x8x16x128xbf16>
    %131 = vector.shape_cast %130 : vector<1x8x16x128xbf16> to vector<8x16x128xbf16>
    %132 = vector.shape_cast %129 : vector<8x16x128xbf16> to vector<1x8x16x128xbf16>
    tpu.vector_store %arg8[%c0_136, %c0_137, %c0_138, %c0_139], %132 {strides = array<i32>} : memref<1x16x16x128xbf16, #tpu.memory_space<vmem>>, vector<1x8x16x128xbf16>,
    %c8_140 = arith.constant 8 : index
    %c0_141 = arith.constant 0 : index
    %c0_142 = arith.constant 0 : index
    %133 = vector.load %arg10[%c8_140, %c0_141, %c0_142] : memref<18x16x384xbf16, #tpu.memory_space<vmem>>, vector<8x16x384xbf16>
    %134 = vector.shape_cast %133 : vector<8x16x384xbf16> to vector<128x384xbf16>
    %c0_143 = arith.constant 0 : index
    %c0_144 = arith.constant 0 : index
    %c0_145 = arith.constant 0 : index
    %135 = vector.load %arg5[%c0_143, %c0_144, %c0_145] : memref<3x384x128xbf16, #tpu.memory_space<vmem>>, vector<1x384x128xbf16>
    %136 = vector.shape_cast %135 : vector<1x384x128xbf16> to vector<384x128xbf16>
    %cst_146 = arith.constant dense<0.000000e+00> : vector<128x128xf32>
    %137 = tpu.matmul %134, %136, %cst_146 {dimension_numbers = #tpu.dot_dimension_numbers<[1], [0], [0], [1], [0, 0, 1, 1], [], []>} : vector<128x384xbf16>, vector<384x128xbf16>, vector<128x128xf32> -> vector<128x128xf32>
    %c9_147 = arith.constant 9 : index
    %c0_148 = arith.constant 0 : index
    %c0_149 = arith.constant 0 : index
    %138 = vector.load %arg10[%c9_147, %c0_148, %c0_149] : memref<18x16x384xbf16, #tpu.memory_space<vmem>>, vector<8x16x384xbf16>
    %139 = vector.shape_cast %138 : vector<8x16x384xbf16> to vector<128x384xbf16>
    %c1_150 = arith.constant 1 : index
    %c0_151 = arith.constant 0 : index
    %c0_152 = arith.constant 0 : index
    %140 = vector.load %arg5[%c1_150, %c0_151, %c0_152] : memref<3x384x128xbf16, #tpu.memory_space<vmem>>, vector<1x384x128xbf16>
    %141 = vector.shape_cast %140 : vector<1x384x128xbf16> to vector<384x128xbf16>
    %cst_153 = arith.constant dense<0.000000e+00> : vector<128x128xf32>
    %142 = tpu.matmul %139, %141, %cst_153 {dimension_numbers = #tpu.dot_dimension_numbers<[1], [0], [0], [1], [0, 0, 1, 1], [], []>} : vector<128x384xbf16>, vector<384x128xbf16>, vector<128x128xf32> -> vector<128x128xf32>
    %143 = arith.addf %137, %142 : vector<128x128xf32>
    %c10_154 = arith.constant 10 : index
    %c0_155 = arith.constant 0 : index
    %c0_156 = arith.constant 0 : index
    %144 = vector.load %arg10[%c10_154, %c0_155, %c0_156] : memref<18x16x384xbf16, #tpu.memory_space<vmem>>, vector<8x16x384xbf16>
    %145 = vector.shape_cast %144 : vector<8x16x384xbf16> to vector<128x384xbf16>
    %c2_157 = arith.constant 2 : index
    %c0_158 = arith.constant 0 : index
    %c0_159 = arith.constant 0 : index
    %146 = vector.load %arg5[%c2_157, %c0_158, %c0_159] : memref<3x384x128xbf16, #tpu.memory_space<vmem>>, vector<1x384x128xbf16>
    %147 = vector.shape_cast %146 : vector<1x384x128xbf16> to vector<384x128xbf16>
    %cst_160 = arith.constant dense<0.000000e+00> : vector<128x128xf32>
    %148 = tpu.matmul %145, %147, %cst_160 {dimension_numbers = #tpu.dot_dimension_numbers<[1], [0], [0], [1], [0, 0, 1, 1], [], []>} : vector<128x384xbf16>, vector<384x128xbf16>, vector<128x128xf32> -> vector<128x128xf32>
    %149 = arith.addf %143, %148 : vector<128x128xf32>
    %c0_161 = arith.constant 0 : index
    %c8_162 = arith.constant 8 : index
    %c0_163 = arith.constant 0 : index
    %c0_164 = arith.constant 0 : index
    %150 = vector.load %arg1[%c0_161, %c8_162, %c0_163, %c0_164] : memref<1x16x16x128xbf16, #tpu.memory_space<vmem>>, vector<1x8x16x128xbf16>
    %151 = vector.shape_cast %150 : vector<1x8x16x128xbf16> to vector<8x16x128xbf16>
    %152 = vector.shape_cast %151 : vector<8x16x128xbf16> to vector<128x128xbf16>
    %153 = arith.extf %152 : vector<128x128xbf16> to vector<128x128xf32>
    %c0_165 = arith.constant 0 : index
    %c0_166 = arith.constant 0 : index
    %154 = vector.load %arg6[%c0_165, %c0_166] : memref<1x128xf32, #tpu.memory_space<vmem>>, vector<1x128xf32>
    %155 = vector.broadcast %154 : vector<1x128xf32> to vector<128x128xf32>
    %156 = arith.mulf %149, %155 : vector<128x128xf32>
    %c0_167 = arith.constant 0 : index
    %c0_168 = arith.constant 0 : index
    %157 = vector.load %arg7[%c0_167, %c0_168] : memref<1x128xf32, #tpu.memory_space<vmem>>, vector<1x128xf32>
    %158 = vector.broadcast %157 : vector<1x128xf32> to vector<128x128xf32>
    %159 = arith.addf %156, %158 : vector<128x128xf32>
    %160 = arith.addf %159, %153 : vector<128x128xf32>
    %cst_169 = arith.constant 0.000000e+00 : f32
    %161 = vector.broadcast %cst_169 : f32 to vector<128x128xf32>
    %162 = arith.maximumf %160, %161 : vector<128x128xf32>
    %163 = vector.shape_cast %162 : vector<128x128xf32> to vector<8x16x128xf32>
    %164 = arith.truncf %163 : vector<8x16x128xf32> to vector<8x16x128xbf16>
    %c0_170 = arith.constant 0 : index
    %c8_171 = arith.constant 8 : index
    %c0_172 = arith.constant 0 : index
    %c0_173 = arith.constant 0 : index
    %165 = vector.load %arg8[%c0_170, %c8_171, %c0_172, %c0_173] : memref<1x16x16x128xbf16, #tpu.memory_space<vmem>>, vector<1x8x16x128xbf16>
    %166 = vector.shape_cast %165 : vector<1x8x16x128xbf16> to vector<8x16x128xbf16>
    %167 = vector.shape_cast %164 : vector<8x16x128xbf16> to vector<1x8x16x128xbf16>
    tpu.vector_store %arg8[%c0_170, %c8_171, %c0_172, %c0_173], %167 {strides = array<i32>} : memref<1x16x16x128xbf16, #tpu.memory_space<vmem>>, vector<1x8x16x128xbf16>,
    return
  }
  func.func @transform_0(%arg0: i32) -> (i32, i32, i32, i32) {
    %c0_i32 = arith.constant 0 : i32
    %c0_i32_0 = arith.constant 0 : i32
    %c0_i32_1 = arith.constant 0 : i32
    %c0_i32_2 = arith.constant 0 : i32
    return %arg0, %c0_i32, %c0_i32_0, %c0_i32_1 : i32, i32, i32, i32
  }
  func.func @transform_1(%arg0: i32) -> (i32, i32, i32) {
    %c0_i32 = arith.constant 0 : i32
    %c0_i32_0 = arith.constant 0 : i32
    %c0_i32_1 = arith.constant 0 : i32
    %c0_i32_2 = arith.constant 0 : i32
    return %c0_i32, %c0_i32_0, %c0_i32_1 : i32, i32, i32
  }
  func.func @transform_2(%arg0: i32) -> (i32, i32) {
    %c0_i32 = arith.constant 0 : i32
    %c0_i32_0 = arith.constant 0 : i32
    %c0_i32_1 = arith.constant 0 : i32
    return %c0_i32, %c0_i32_0 : i32, i32
  }
  func.func @transform_3(%arg0: i32) -> (i32, i32) {
    %c0_i32 = arith.constant 0 : i32
    %c0_i32_0 = arith.constant 0 : i32
    %c0_i32_1 = arith.constant 0 : i32
    return %c0_i32, %c0_i32_0 : i32, i32
  }
  func.func @transform_4(%arg0: i32) -> (i32, i32, i32) {
    %c0_i32 = arith.constant 0 : i32
    %c0_i32_0 = arith.constant 0 : i32
    %c0_i32_1 = arith.constant 0 : i32
    %c0_i32_2 = arith.constant 0 : i32
    return %c0_i32, %c0_i32_0, %c0_i32_1 : i32, i32, i32
  }
  func.func @transform_5(%arg0: i32) -> (i32, i32) {
    %c0_i32 = arith.constant 0 : i32
    %c0_i32_0 = arith.constant 0 : i32
    %c0_i32_1 = arith.constant 0 : i32
    return %c0_i32, %c0_i32_0 : i32, i32
  }
  func.func @transform_6(%arg0: i32) -> (i32, i32) {
    %c0_i32 = arith.constant 0 : i32
    %c0_i32_0 = arith.constant 0 : i32
    %c0_i32_1 = arith.constant 0 : i32
    return %c0_i32, %c0_i32_0 : i32, i32
  }
  func.func @transform_7(%arg0: i32) -> (i32, i32, i32, i32) {
    %c0_i32 = arith.constant 0 : i32
    %c0_i32_0 = arith.constant 0 : i32
    %c0_i32_1 = arith.constant 0 : i32
    %c0_i32_2 = arith.constant 0 : i32
    return %arg0, %c0_i32, %c0_i32_0, %c0_i32_1 : i32, i32, i32, i32
  }
}

</mosaic_0001>

<llo_original>
// kernel: tpu_custom_call.1
$region0: #{tpu_custom_call.1}
  #allocation0 [shape = 'u32[]', space=smem, size = 0x4, offset = 0x4, fixed_abs, tag = 'smem constant byte address 0x4 - core index']
  #allocation1 [shape = 'u32[144,128]{1,0:T(1,128)}', space=vmem, size = 0x12000, scoped, tag = 'internal scratch']
  #allocation2 [shape = 'bf16[18,16,384]{2,1,0:T(16,128)(2,1)}', space=vmem, size = 0x36000, scoped, tag = 'scratch operand']
  #allocation3 [shape = 'bf16[18,16,384]{2,1,0:T(16,128)(2,1)}', space=vmem, size = 0x36000, scoped, tag = 'scratch operand']
  %s0 = inlined_call_operand.hbm [shape: bf16[2,16,16,128], index: 0, kind: input, shape index: {}]
  %s1 = inlined_call_operand.hbm [shape: bf16[3,384,128], index: 1, kind: input, shape index: {}]
  %s2 = inlined_call_operand.vmem [shape: f32[1,128], index: 2, kind: input, shape index: {}]
  %s3 = inlined_call_operand.vmem [shape: f32[1,128], index: 3, kind: input, shape index: {}]
  %s4 = inlined_call_operand.hbm [shape: bf16[3,384,128], index: 4, kind: input, shape index: {}]
  %s5 = inlined_call_operand.vmem [shape: f32[1,128], index: 5, kind: input, shape index: {}]
  %s6 = inlined_call_operand.vmem [shape: f32[1,128], index: 6, kind: input, shape index: {}]
  %s7 = inlined_call_operand.hbm [shape: bf16[2,16,16,128], index: 7, kind: output, shape index: {}]
  %s8 = sld [smem:[#allocation0]]
  $region73: #{tpu_custom_call.1} parent=0
    _
  %s10 = ssub.s32 1, %s8
  %s11 = scalar_select 0, %s10, %s8
  $region1: #{tpu_custom_call.1} parent=0
    #allocation4 [shape = 'u8[131072]{0}', space=vmem, size = 0x20000, scoped, tag = 'input window, operand 0']
    #allocation5 [shape = 's32[2]{0}', space=sflag, size = 0x8, scoped, tag = 'scoped memory for tpu_custom_call.1']
    #allocation6 [shape = 's32[2]{0}', space=sflag, size = 0x8, scoped, tag = 'scoped memory for tpu_custom_call.1']
    #allocation7 [shape = 'u8[294912]{0}', space=vmem, size = 0x48000, scoped, tag = 'input window, operand 1, single buffered']
    #allocation8 [shape = 's32[1]{0}', space=sflag, size = 0x4, scoped, tag = 'scoped memory for tpu_custom_call.1']
    #allocation9 [shape = 'u8[294912]{0}', space=vmem, size = 0x48000, scoped, tag = 'input window, operand 4, single buffered']
    #allocation10 [shape = 'u8[131072]{0}', space=vmem, size = 0x20000, scoped, tag = 'output window, operand 0']
    %12 = vsyncpa [#allocation5], 0
    %s13 = scalar_lea.sflag [#allocation5], 1
    %14 = vsyncpa %s13, 0
    %15 = vsyncpa [#allocation8], 0
    %16 = vsyncpa [#allocation6], 0
    %s17 = scalar_lea.sflag [#allocation6], 1
    %18 = vsyncpa %s17, 0
    loop: start=0, step=1, limit=4
    $region2: #{tpu_custom_call.1} parent=1 // loop_pre_header
      _
    $region3: #{tpu_custom_call.1} parent=1 // loop_header
      %s20 = sphi 0, %s24
      %p21 = scmp.ge.s32.totalorder %s20, 4
      %s30 = sphi 0, %s32
      %s33 = sphi 0, %s30
      %s34 = sphi 0, %s33
      %s50 = sphi 0, %s34
      %s54 = sphi 0, %s54
      %s56 = sphi 0, %s54
      %s57 = sphi 0, %s56
      %s71 = sphi 0, %s57
      %s75 = sphi 0, %s75
      %s77 = sphi 0, %s75
      %s78 = sphi 0, %s77
      %s92 = sphi 0, %s78
      %s96 = sphi 0, %s96
      %s98 = sphi 0, %s96
      %s99 = sphi 0, %s98
      %s113 = sphi 0, %s99
      %s117 = sphi 0, %s117
      %s119 = sphi 0, %s117
      %s120 = sphi 0, %s119
      %s134 = sphi 0, %s120
      %s138 = sphi 0, %s138
      %s140 = sphi 0, %s138
      %s141 = sphi 0, %s140
      %s155 = sphi 0, %s141
      %s159 = sphi 0, %s159
      %s161 = sphi 0, %s159
      %s162 = sphi 0, %s161
      %s176 = sphi 0, %s162
      %s182 = sphi 0, %s184
      %s185 = sphi 0, %s182
      %s186 = sphi 0, %s185
      %s202 = sphi 0, %s186
    $region4: #{tpu_custom_call.1} parent=1 // loop_header_branch
      %23 = sbr.rel (%p21) target = $region8
    $region5: #{tpu_custom_call.1} parent=1 // loop_body
      %s25 = ssub.s32 %s20, 1
      %s26 = ssub.s32 %s20, 2
      %s27 = sadd.s32 %s20, 1
      %s28 = ssub.s32 %s20, %s27
      %p29 = scmp.eq.s32.totalorder %s28, 0
      %s31 = sadd.s32 %s30, 1
      %s32 = scalar_select %p29, %s30, %s31
      %p35 = pneg %p29
      %p36 = scmp.eq.s32.totalorder %s20, 1
      %p37 = por %p35, %p36
      %p38 = scmp.ne.s32.totalorder %s30, %s33
      %p39 = scmp.eq.s32.totalorder %s20, 0
      %p40 = por %p38, %p39
      %p41 = scmp.ne.s32.totalorder %s30, %s33
      %p42 = scmp.eq.s32.totalorder %s25, 1
      %p43 = por %p41, %p42
      %p44 = scmp.ne.s32.totalorder %s33, %s34
      %p45 = scmp.eq.s32.totalorder %s25, 0
      %p46 = por %p44, %p45
      %p47 = scmp.ne.s32.totalorder %s33, %s34
      %p48 = scmp.eq.s32.totalorder %s26, 1
      %p49 = por %p47, %p48
      %p51 = scmp.ne.s32.totalorder %s34, %s50
      %p52 = scmp.eq.s32.totalorder %s26, 0
      %p53 = por %p51, %p52
      %s55 = sadd.s32 %s54, 1
      %p58 = scmp.eq.s32.totalorder %s20, 1
      %p59 = scmp.ne.s32.totalorder %s54, %s56
      %p60 = scmp.eq.s32.totalorder %s20, 0
      %p61 = por %p59, %p60
      %p62 = scmp.ne.s32.totalorder %s54, %s56
      %p63 = scmp.eq.s32.totalorder %s25, 1
      %p64 = por %p62, %p63
      %p65 = scmp.ne.s32.totalorder %s56, %s57
      %p66 = scmp.eq.s32.totalorder %s25, 0
      %p67 = por %p65, %p66
      %p68 = scmp.ne.s32.totalorder %s56, %s57
      %p69 = scmp.eq.s32.totalorder %s26, 1
      %p70 = por %p68, %p69
      %p72 = scmp.ne.s32.totalorder %s57, %s71
      %p73 = scmp.eq.s32.totalorder %s26, 0
      %p74 = por %p72, %p73
      %s76 = sadd.s32 %s75, 1
      %p79 = scmp.eq.s32.totalorder %s20, 1
      %p80 = scmp.ne.s32.totalorder %s75, %s77
      %p81 = scmp.eq.s32.totalorder %s20, 0
      %p82 = por %p80, %p81
      %p83 = scmp.ne.s32.totalorder %s75, %s77
      %p84 = scmp.eq.s32.totalorder %s25, 1
      %p85 = por %p83, %p84
      %p86 = scmp.ne.s32.totalorder %s77, %s78
      %p87 = scmp.eq.s32.totalorder %s25, 0
      %p88 = por %p86, %p87
      %p89 = scmp.ne.s32.totalorder %s77, %s78
      %p90 = scmp.eq.s32.totalorder %s26, 1
      %p91 = por %p89, %p90
      %p93 = scmp.ne.s32.totalorder %s78, %s92
      %p94 = scmp.eq.s32.totalorder %s26, 0
      %p95 = por %p93, %p94
      %s97 = sadd.s32 %s96, 1
      %p100 = scmp.eq.s32.totalorder %s20, 1
      %p101 = scmp.ne.s32.totalorder %s96, %s98
      %p102 = scmp.eq.s32.totalorder %s20, 0
      %p103 = por %p101, %p102
      %p104 = scmp.ne.s32.totalorder %s96, %s98
      %p105 = scmp.eq.s32.totalorder %s25, 1
      %p106 = por %p104, %p105
      %p107 = scmp.ne.s32.totalorder %s98, %s99
      %p108 = scmp.eq.s32.totalorder %s25, 0
      %p109 = por %p107, %p108
      %p110 = scmp.ne.s32.totalorder %s98, %s99
      %p111 = scmp.eq.s32.totalorder %s26, 1
      %p112 = por %p110, %p111
      %p114 = scmp.ne.s32.totalorder %s99, %s113
      %p115 = scmp.eq.s32.totalorder %s26, 0
      %p116 = por %p114, %p115
      %s118 = sadd.s32 %s117, 1
      %p121 = scmp.eq.s32.totalorder %s20, 1
      %p122 = scmp.ne.s32.totalorder %s117, %s119
      %p123 = scmp.eq.s32.totalorder %s20, 0
      %p124 = por %p122, %p123
      %p125 = scmp.ne.s32.totalorder %s117, %s119
      %p126 = scmp.eq.s32.totalorder %s25, 1
      %p127 = por %p125, %p126
      %p128 = scmp.ne.s32.totalorder %s119, %s120
      %p129 = scmp.eq.s32.totalorder %s25, 0
      %p130 = por %p128, %p129
      %p131 = scmp.ne.s32.totalorder %s119, %s120
      %p132 = scmp.eq.s32.totalorder %s26, 1
      %p133 = por %p131, %p132
      %p135 = scmp.ne.s32.totalorder %s120, %s134
      %p136 = scmp.eq.s32.totalorder %s26, 0
      %p137 = por %p135, %p136
      %s139 = sadd.s32 %s138, 1
      %p142 = scmp.eq.s32.totalorder %s20, 1
      %p143 = scmp.ne.s32.totalorder %s138, %s140
      %p144 = scmp.eq.s32.totalorder %s20, 0
      %p145 = por %p143, %p144
      %p146 = scmp.ne.s32.totalorder %s138, %s140
      %p147 = scmp.eq.s32.totalorder %s25, 1
      %p148 = por %p146, %p147
      %p149 = scmp.ne.s32.totalorder %s140, %s141
      %p150 = scmp.eq.s32.totalorder %s25, 0
      %p151 = por %p149, %p150
      %p152 = scmp.ne.s32.totalorder %s140, %s141
      %p153 = scmp.eq.s32.totalorder %s26, 1
      %p154 = por %p152, %p153
      %p156 = scmp.ne.s32.totalorder %s141, %s155
      %p157 = scmp.eq.s32.totalorder %s26, 0
      %p158 = por %p156, %p157
      %s160 = sadd.s32 %s159, 1
      %p163 = scmp.eq.s32.totalorder %s20, 1
      %p164 = scmp.ne.s32.totalorder %s159, %s161
      %p165 = scmp.eq.s32.totalorder %s20, 0
      %p166 = por %p164, %p165
      %p167 = scmp.ne.s32.totalorder %s159, %s161
      %p168 = scmp.eq.s32.totalorder %s25, 1
      %p169 = por %p167, %p168
      %p170 = scmp.ne.s32.totalorder %s161, %s162
      %p171 = scmp.eq.s32.totalorder %s25, 0
      %p172 = por %p170, %p171
      %p173 = scmp.ne.s32.totalorder %s161, %s162
      %p174 = scmp.eq.s32.totalorder %s26, 1
      %p175 = por %p173, %p174
      %p177 = scmp.ne.s32.totalorder %s162, %s176
      %p178 = scmp.eq.s32.totalorder %s26, 0
      %p179 = por %p177, %p178
      %s180 = ssub.s32 %s20, %s27
      %p181 = scmp.eq.s32.totalorder %s180, 0
      %s183 = sadd.s32 %s182, 1
      %s184 = scalar_select %p181, %s182, %s183
      %p187 = pneg %p181
      %p188 = scmp.eq.s32.totalorder %s20, 1
      %p189 = por %p187, %p188
      %p190 = scmp.ne.s32.totalorder %s182, %s185
      %p191 = scmp.eq.s32.totalorder %s20, 0
      %p192 = por %p190, %p191
      %p193 = scmp.ne.s32.totalorder %s182, %s185
      %p194 = scmp.eq.s32.totalorder %s25, 1
      %p195 = por %p193, %p194
      %p196 = scmp.ne.s32.totalorder %s185, %s186
      %p197 = scmp.eq.s32.totalorder %s25, 0
      %p198 = por %p196, %p197
      %p199 = scmp.ne.s32.totalorder %s185, %s186
      %p200 = scmp.eq.s32.totalorder %s26, 1
      %p201 = por %p199, %p200
      %p203 = scmp.ne.s32.totalorder %s186, %s202
      %p204 = scmp.eq.s32.totalorder %s26, 0
      %p205 = por %p203, %p204
      %p206 = scmp.le.s32.totalorder 1, %s20
      %p207 = scmp.lt.s32.totalorder %s20, 3
      %p208 = pnand %p206, %p207
      %p209 = pneg %p208
      // Predicated region
      $region9: #{tpu_custom_call.1} parent=5 // pred_check
        _
      $region10: #{tpu_custom_call.1} parent=5 // pred_check_branch
        %211 = sbr.rel (%p208) target = $region12
      $region11: #{tpu_custom_call.1} parent=5 // pred_region
        %s212 = ssub.s32 %s20, 1
        // Predicated region
        $region13: #{tpu_custom_call.1} parent=11 // pred_check
          %p213 = pneg %p67
        $region14: #{tpu_custom_call.1} parent=11 // pred_check_branch
          %215 = sbr.rel (%p213) target = $region16
        $region15: #{tpu_custom_call.1} parent=11 // pred_region
          %s217 = ssub.s32 9216, 9216
          %218 = vsyncadd [#allocation8], %s217
          %s219 = sshll.u32 [#allocation7], 4
          %s220 = int_to_ptr.vmem [resolvable:$true] %s219
          %225 = dma.hbm_to_vmem [thread:$0]  %s1, 9216, %s220, [#allocation8], 64, 64, 4
        $region16: #{tpu_custom_call.1} parent=11 // pred_fallthru
          _
        // Predicated region
        $region17: #{tpu_custom_call.1} parent=11 // pred_check
          %p226 = pneg %p88
        $region18: #{tpu_custom_call.1} parent=11 // pred_check_branch
          %228 = sbr.rel (%p226) target = $region20
        $region19: #{tpu_custom_call.1} parent=11 // pred_region
          _
        $region20: #{tpu_custom_call.1} parent=11 // pred_fallthru
          _
        // Predicated region
        $region21: #{tpu_custom_call.1} parent=11 // pred_check
          %p229 = pneg %p109
        $region22: #{tpu_custom_call.1} parent=11 // pred_check_branch
          %231 = sbr.rel (%p229) target = $region24
        $region23: #{tpu_custom_call.1} parent=11 // pred_region
          _
        $region24: #{tpu_custom_call.1} parent=11 // pred_fallthru
          _
        // Predicated region
        $region25: #{tpu_custom_call.1} parent=11 // pred_check
          %p232 = pneg %p130
        $region26: #{tpu_custom_call.1} parent=11 // pred_check_branch
          %234 = sbr.rel (%p232) target = $region28
        $region27: #{tpu_custom_call.1} parent=11 // pred_region
          %s236 = ssub.s32 9216, 9216
          %237 = vsyncadd [#allocation8], %s236
          %s238 = sshll.u32 [#allocation9], 4
          %s239 = int_to_ptr.vmem [resolvable:$true] %s238
          %244 = dma.hbm_to_vmem [thread:$0]  %s4, 9216, %s239, [#allocation8], 64, 64, 4
        $region28: #{tpu_custom_call.1} parent=11 // pred_fallthru
          _
        // Predicated region
        $region29: #{tpu_custom_call.1} parent=11 // pred_check
          %p245 = pneg %p151
        $region30: #{tpu_custom_call.1} parent=11 // pred_check_branch
          %247 = sbr.rel (%p245) target = $region32
        $region31: #{tpu_custom_call.1} parent=11 // pred_region
          _
        $region32: #{tpu_custom_call.1} parent=11 // pred_fallthru
          _
        // Predicated region
        $region33: #{tpu_custom_call.1} parent=11 // pred_check
          %p248 = pneg %p172
        $region34: #{tpu_custom_call.1} parent=11 // pred_check_branch
          %250 = sbr.rel (%p248) target = $region36
        $region35: #{tpu_custom_call.1} parent=11 // pred_region
          _
        $region36: #{tpu_custom_call.1} parent=11 // pred_fallthru
          _
      $region12: #{tpu_custom_call.1} parent=5 // pred_fallthru
        _
      %p251 = scmp.lt.s32.totalorder %s20, 2
      // Predicated region
      $region37: #{tpu_custom_call.1} parent=5 // pred_check
        %p252 = pneg %p251
      $region38: #{tpu_custom_call.1} parent=5 // pred_check_branch
        %254 = sbr.rel (%p252) target = $region40
      $region39: #{tpu_custom_call.1} parent=5 // pred_region
        // Predicated region
        $region41: #{tpu_custom_call.1} parent=39 // pred_check
          %p255 = pneg %p40
        $region42: #{tpu_custom_call.1} parent=39 // pred_check_branch
          %257 = sbr.rel (%p255) target = $region44
        $region43: #{tpu_custom_call.1} parent=39 // pred_region
          %s258 = sand.u32 %s30, 1
          %s259 = scalar_lea.sflag [#allocation5], %s258
          %s260 = sand.u32 %s30, 1
          %s261 = smul.addr %s260, 128
          %s262 = scalar_lea.vmem [#allocation4], %s261
          %s264 = ssub.s32 2048, 2048
          %265 = vsyncadd %s259, %s264
          %s266 = smul.addr %s20, 32
          %s267 = smul.addr %s266, 64
          %s268 = scalar_lea.hbm %s0, %s267
          %s269 = sshll.u32 %s262, 4
          %s270 = int_to_ptr.vmem [resolvable:$true] %s269
          %275 = dma.hbm_to_vmem [thread:$0]  %s268, 2048, %s270, %s259, 64, 64, 4
        $region44: #{tpu_custom_call.1} parent=39 // pred_fallthru
          _
      $region40: #{tpu_custom_call.1} parent=5 // pred_fallthru
        _
      %p276 = scmp.le.s32.totalorder 1, %s20
      %p277 = scmp.lt.s32.totalorder %s20, 3
      %p278 = pnand %p276, %p277
      %p279 = pneg %p278
      // Predicated region
      $region45: #{tpu_custom_call.1} parent=5 // pred_check
        _
      $region46: #{tpu_custom_call.1} parent=5 // pred_check_branch
        %281 = sbr.rel (%p278) target = $region48
      $region47: #{tpu_custom_call.1} parent=5 // pred_region
        %s282 = ssub.s32 %s20, 1
        %s283 = sand.u32 %s33, 1
        %s284 = scalar_lea.sflag [#allocation5], %s283
        %s285 = sand.u32 %s33, 1
        %s286 = smul.addr %s285, 128
        %s287 = scalar_lea.vmem [#allocation4], %s286
        // Predicated region
        $region49: #{tpu_custom_call.1} parent=47 // pred_check
          %p288 = pneg %p46
        $region50: #{tpu_custom_call.1} parent=47 // pred_check_branch
          %290 = sbr.rel (%p288) target = $region52
        $region51: #{tpu_custom_call.1} parent=47 // pred_region
          %291 = dma.done %s284, 2048
        $region52: #{tpu_custom_call.1} parent=47 // pred_fallthru
          _
        // Predicated region
        $region53: #{tpu_custom_call.1} parent=47 // pred_check
          %p292 = pneg %p67
        $region54: #{tpu_custom_call.1} parent=47 // pred_check_branch
          %294 = sbr.rel (%p292) target = $region56
        $region55: #{tpu_custom_call.1} parent=47 // pred_region
          %295 = dma.done [#allocation8], 9216
        $region56: #{tpu_custom_call.1} parent=47 // pred_fallthru
          _
        // Predicated region
        $region57: #{tpu_custom_call.1} parent=47 // pred_check
          %p296 = pneg %p130
        $region58: #{tpu_custom_call.1} parent=47 // pred_check_branch
          %298 = sbr.rel (%p296) target = $region60
        $region59: #{tpu_custom_call.1} parent=47 // pred_region
          %299 = dma.done [#allocation8], 9216
        $region60: #{tpu_custom_call.1} parent=47 // pred_fallthru
          _
        %s300 = sand.u32 %s33, 1
        %s301 = scalar_lea.sflag [#allocation5], %s300
        %s302 = sand.u32 %s33, 1
        %s303 = smul.addr %s302, 128
        %s304 = scalar_lea.vmem [#allocation4], %s303
        %p305 = pneg %p46
        %p306 = pneg %p43
        %p307 = pneg %p67
        %p308 = pneg %p64
        %p309 = pneg %p88
        %p310 = pneg %p85
        %p311 = pneg %p109
        %p312 = pneg %p106
        %p313 = pneg %p130
        %p314 = pneg %p127
        %p315 = pneg %p151
        %p316 = pneg %p148
        %p317 = pneg %p172
        %p318 = pneg %p169
        %p319 = pneg %p198
        %p320 = pneg %p195
        %s321 = sand.u32 %s185, 1
        %s322 = scalar_lea.sflag [#allocation6], %s321
        %s323 = sand.u32 %s185, 1
        %s324 = smul.addr %s323, 128
        %s325 = scalar_lea.vmem [#allocation10], %s324
        %327 = vst [vmem:[#allocation2] sm:$0xff] 0
        %328 = vst [vmem:[#allocation2 + $0x8] sm:$0xff] 0
        %329 = vst [vmem:[#allocation2 + $0x10] sm:$0xff] 0
        %s330 = scalar_lea.vmem [#allocation2], 408
        %331 = vst [vmem:[%s330] sm:$0xff] 0
        %332 = vst [vmem:[%s330 + $0x8] sm:$0xff] 0
        %333 = vst [vmem:[%s330 + $0x10] sm:$0xff] 0
        %334 = vst [vmem:[#allocation3] sm:$0xff] 0
        %335 = vst [vmem:[#allocation3 + $0x8] sm:$0xff] 0
        %336 = vst [vmem:[#allocation3 + $0x10] sm:$0xff] 0
        %s337 = scalar_lea.vmem [#allocation3], 408
        %338 = vst [vmem:[%s337] sm:$0xff] 0
        %339 = vst [vmem:[%s337 + $0x8] sm:$0xff] 0
        %340 = vst [vmem:[%s337 + $0x10] sm:$0xff] 0
        %v341 = vld [vmem:[%s287] sm:$0xf]
        %v342 = vld [vmem:[%s287 + $0x4] sm:$0xf]
        %v343 = vld [vmem:[%s287 + $0x8] sm:$0xf]
        %v344 = vld [vmem:[%s287 + $0xc] sm:$0xf]
        %v345 = vld [vmem:[%s287 + $0x10] sm:$0xf]
        %v346 = vld [vmem:[%s287 + $0x14] sm:$0xf]
        %v347 = vld [vmem:[%s287 + $0x18] sm:$0xf]
        %v348 = vld [vmem:[%s287 + $0x1c] sm:$0xf]
        %v349 = vld [vmem:[%s287 + $0x20] sm:$0xf]
        %v350 = vld [vmem:[%s287 + $0x24] sm:$0xf]
        %v351 = vld [vmem:[%s287 + $0x28] sm:$0xf]
        %v352 = vld [vmem:[%s287 + $0x2c] sm:$0xf]
        %v353 = vld [vmem:[%s287 + $0x30] sm:$0xf]
        %v354 = vld [vmem:[%s287 + $0x34] sm:$0xf]
        %v355 = vld [vmem:[%s287 + $0x38] sm:$0xf]
        %v356 = vld [vmem:[%s287 + $0x3c] sm:$0xf]
        %v373 = vunpack.c.l.b16 %v341
        %v374 = vunpack.c.l.b16 %v342
        %v375 = vunpack.c.l.b16 %v343
        %v376 = vunpack.c.l.b16 %v344
        %v377 = vunpack.c.l.b16 %v345
        %v378 = vunpack.c.l.b16 %v346
        %v379 = vunpack.c.l.b16 %v347
        %v380 = vunpack.c.l.b16 %v348
        %v381 = vunpack.c.l.b16 %v349
        %v382 = vunpack.c.l.b16 %v350
        %v383 = vunpack.c.l.b16 %v351
        %v384 = vunpack.c.l.b16 %v352
        %v385 = vunpack.c.l.b16 %v353
        %v386 = vunpack.c.l.b16 %v354
        %v387 = vunpack.c.l.b16 %v355
        %v388 = vunpack.c.l.b16 %v356
        %v389 = vpack.c.b16 %v374, %v373
        %v390 = vpack.c.b16 %v376, %v375
        %v391 = vpack.c.b16 %v378, %v377
        %v392 = vpack.c.b16 %v380, %v379
        %v393 = vpack.c.b16 %v382, %v381
        %v394 = vpack.c.b16 %v384, %v383
        %v395 = vpack.c.b16 %v386, %v385
        %v396 = vpack.c.b16 %v388, %v387
        %v398 = vshrl.u32 %v389, 16
        %v400 = vrot.slane %v398, 7
        %v401 = vshll.u32 %v389, 16
        %v403 = vor.u32 %v400, %v401
        %v405 = vshrl.u32 %v390, 16
        %v407 = vrot.slane %v405, 7
        %v408 = vshll.u32 %v390, 16
        %v410 = vor.u32 %v407, %v408
        %v412 = vshrl.u32 %v391, 16
        %v414 = vrot.slane %v412, 7
        %v415 = vshll.u32 %v391, 16
        %v417 = vor.u32 %v414, %v415
        %v419 = vshrl.u32 %v392, 16
        %v421 = vrot.slane %v419, 7
        %v422 = vshll.u32 %v392, 16
        %v424 = vor.u32 %v421, %v422
        %v426 = vshrl.u32 %v393, 16
        %v428 = vrot.slane %v426, 7
        %v429 = vshll.u32 %v393, 16
        %v431 = vor.u32 %v428, %v429
        %v433 = vshrl.u32 %v394, 16
        %v435 = vrot.slane %v433, 7
        %v436 = vshll.u32 %v394, 16
        %v438 = vor.u32 %v435, %v436
        %v440 = vshrl.u32 %v395, 16
        %v442 = vrot.slane %v440, 7
        %v443 = vshll.u32 %v395, 16
        %v445 = vor.u32 %v442, %v443
        %v447 = vshrl.u32 %v396, 16
        %v449 = vrot.slane %v447, 7
        %v450 = vshll.u32 %v396, 16
        %v452 = vor.u32 %v449, %v450
        %vm461 = vcmask 1040384
        %vm462 = vsmask.f32 256
        %vm463 = vmand %vm461, %vm462
        %v464 = vsel %vm463, 0, %v403
        %v465 = vsel %vm463, 0, %v410
        %v466 = vsel %vm463, 0, %v417
        %v467 = vsel %vm463, 0, %v424
        %v468 = vsel %vm463, 0, %v431
        %v469 = vsel %vm463, 0, %v438
        %v470 = vsel %vm463, 0, %v445
        %v471 = vsel %vm463, 0, %v452
        %v472 = vrot.slane %v401, 1
        %v473 = vor.u32 %v398, %v472
        %v474 = vrot.slane %v408, 1
        %v475 = vor.u32 %v405, %v474
        %v476 = vrot.slane %v415, 1
        %v477 = vor.u32 %v412, %v476
        %v478 = vrot.slane %v422, 1
        %v479 = vor.u32 %v419, %v478
        %v480 = vrot.slane %v429, 1
        %v481 = vor.u32 %v426, %v480
        %v482 = vrot.slane %v436, 1
        %v483 = vor.u32 %v433, %v482
        %v484 = vrot.slane %v443, 1
        %v485 = vor.u32 %v440, %v484
        %v486 = vrot.slane %v450, 1
        %v487 = vor.u32 %v447, %v486
        %vm496 = vcmask 1047552
        %vm497 = vsmask.f32 7424
        %vm498 = vmand %vm496, %vm497
        %v499 = vsel %vm498, %v473, 0
        %v500 = vsel %vm498, %v475, 0
        %v501 = vsel %vm498, %v477, 0
        %v502 = vsel %vm498, %v479, 0
        %v503 = vsel %vm498, %v481, 0
        %v504 = vsel %vm498, %v483, 0
        %v505 = vsel %vm498, %v485, 0
        %v506 = vsel %vm498, %v487, 0
        %s507 = scalar_lea.vmem [#allocation2], 24
        %508 = vst [vmem:[%s507] sm:$0xff] %v464
        %509 = vst [vmem:[%s507 + $0x18] sm:$0xff] %v465
        %510 = vst [vmem:[%s507 + $0x30] sm:$0xff] %v466
        %511 = vst [vmem:[%s507 + $0x48] sm:$0xff] %v467
        %512 = vst [vmem:[%s507 + $0x60] sm:$0xff] %v468
        %513 = vst [vmem:[%s507 + $0x78] sm:$0xff] %v469
        %514 = vst [vmem:[%s507 + $0x90] sm:$0xff] %v470
        %515 = vst [vmem:[%s507 + $0xa8] sm:$0xff] %v471
        %524 = vst [vmem:[%s507 + $0x8] sm:$0xff] %v389
        %525 = vst [vmem:[%s507 + $0x20] sm:$0xff] %v390
        %526 = vst [vmem:[%s507 + $0x38] sm:$0xff] %v391
        %527 = vst [vmem:[%s507 + $0x50] sm:$0xff] %v392
        %528 = vst [vmem:[%s507 + $0x68] sm:$0xff] %v393
        %529 = vst [vmem:[%s507 + $0x80] sm:$0xff] %v394
        %530 = vst [vmem:[%s507 + $0x98] sm:$0xff] %v395
        %531 = vst [vmem:[%s507 + $0xb0] sm:$0xff] %v396
        %532 = vst [vmem:[%s507 + $0x10] sm:$0xff] %v499
        %533 = vst [vmem:[%s507 + $0x28] sm:$0xff] %v500
        %534 = vst [vmem:[%s507 + $0x40] sm:$0xff] %v501
        %535 = vst [vmem:[%s507 + $0x58] sm:$0xff] %v502
        %536 = vst [vmem:[%s507 + $0x70] sm:$0xff] %v503
        %537 = vst [vmem:[%s507 + $0x88] sm:$0xff] %v504
        %538 = vst [vmem:[%s507 + $0xa0] sm:$0xff] %v505
        %539 = vst [vmem:[%s507 + $0xb8] sm:$0xff] %v506
        %s540 = scalar_lea.vmem %s287, 64 [#allocation4]
        %v541 = vld [vmem:[%s540] sm:$0xf]
        %v542 = vld [vmem:[%s540 + $0x4] sm:$0xf]
        %v543 = vld [vmem:[%s540 + $0x8] sm:$0xf]
        %v544 = vld [vmem:[%s540 + $0xc] sm:$0xf]
        %v545 = vld [vmem:[%s540 + $0x10] sm:$0xf]
        %v546 = vld [vmem:[%s540 + $0x14] sm:$0xf]
        %v547 = vld [vmem:[%s540 + $0x18] sm:$0xf]
        %v548 = vld [vmem:[%s540 + $0x1c] sm:$0xf]
        %v549 = vld [vmem:[%s540 + $0x20] sm:$0xf]
        %v550 = vld [vmem:[%s540 + $0x24] sm:$0xf]
        %v551 = vld [vmem:[%s540 + $0x28] sm:$0xf]
        %v552 = vld [vmem:[%s540 + $0x2c] sm:$0xf]
        %v553 = vld [vmem:[%s540 + $0x30] sm:$0xf]
        %v554 = vld [vmem:[%s540 + $0x34] sm:$0xf]
        %v555 = vld [vmem:[%s540 + $0x38] sm:$0xf]
        %v556 = vld [vmem:[%s540 + $0x3c] sm:$0xf]
        %v573 = vunpack.c.l.b16 %v541
        %v574 = vunpack.c.l.b16 %v542
        %v575 = vunpack.c.l.b16 %v543
        %v576 = vunpack.c.l.b16 %v544
        %v577 = vunpack.c.l.b16 %v545
        %v578 = vunpack.c.l.b16 %v546
        %v579 = vunpack.c.l.b16 %v547
        %v580 = vunpack.c.l.b16 %v548
        %v581 = vunpack.c.l.b16 %v549
        %v582 = vunpack.c.l.b16 %v550
        %v583 = vunpack.c.l.b16 %v551
        %v584 = vunpack.c.l.b16 %v552
        %v585 = vunpack.c.l.b16 %v553
        %v586 = vunpack.c.l.b16 %v554
        %v587 = vunpack.c.l.b16 %v555
        %v588 = vunpack.c.l.b16 %v556
        %v589 = vpack.c.b16 %v574, %v573
        %v590 = vpack.c.b16 %v576, %v575
        %v591 = vpack.c.b16 %v578, %v577
        %v592 = vpack.c.b16 %v580, %v579
        %v593 = vpack.c.b16 %v582, %v581
        %v594 = vpack.c.b16 %v584, %v583
        %v595 = vpack.c.b16 %v586, %v585
        %v596 = vpack.c.b16 %v588, %v587
        %v598 = vshrl.u32 %v589, 16
        %v600 = vrot.slane %v598, 7
        %v601 = vshll.u32 %v589, 16
        %v603 = vor.u32 %v600, %v601
        %v605 = vshrl.u32 %v590, 16
        %v607 = vrot.slane %v605, 7
        %v608 = vshll.u32 %v590, 16
        %v610 = vor.u32 %v607, %v608
        %v612 = vshrl.u32 %v591, 16
        %v614 = vrot.slane %v612, 7
        %v615 = vshll.u32 %v591, 16
        %v617 = vor.u32 %v614, %v615
        %v619 = vshrl.u32 %v592, 16
        %v621 = vrot.slane %v619, 7
        %v622 = vshll.u32 %v592, 16
        %v624 = vor.u32 %v621, %v622
        %v626 = vshrl.u32 %v593, 16
        %v628 = vrot.slane %v626, 7
        %v629 = vshll.u32 %v593, 16
        %v631 = vor.u32 %v628, %v629
        %v633 = vshrl.u32 %v594, 16
        %v635 = vrot.slane %v633, 7
        %v636 = vshll.u32 %v594, 16
        %v638 = vor.u32 %v635, %v636
        %v640 = vshrl.u32 %v595, 16
        %v642 = vrot.slane %v640, 7
        %v643 = vshll.u32 %v595, 16
        %v645 = vor.u32 %v642, %v643
        %v647 = vshrl.u32 %v596, 16
        %v649 = vrot.slane %v647, 7
        %v650 = vshll.u32 %v596, 16
        %v652 = vor.u32 %v649, %v650
        %v661 = vsel %vm463, 0, %v603
        %v662 = vsel %vm463, 0, %v610
        %v663 = vsel %vm463, 0, %v617
        %v664 = vsel %vm463, 0, %v624
        %v665 = vsel %vm463, 0, %v631
        %v666 = vsel %vm463, 0, %v638
        %v667 = vsel %vm463, 0, %v645
        %v668 = vsel %vm463, 0, %v652
        %v669 = vrot.slane %v601, 1
        %v670 = vor.u32 %v598, %v669
        %v671 = vrot.slane %v608, 1
        %v672 = vor.u32 %v605, %v671
        %v673 = vrot.slane %v615, 1
        %v674 = vor.u32 %v612, %v673
        %v675 = vrot.slane %v622, 1
        %v676 = vor.u32 %v619, %v675
        %v677 = vrot.slane %v629, 1
        %v678 = vor.u32 %v626, %v677
        %v679 = vrot.slane %v636, 1
        %v680 = vor.u32 %v633, %v679
        %v681 = vrot.slane %v643, 1
        %v682 = vor.u32 %v640, %v681
        %v683 = vrot.slane %v650, 1
        %v684 = vor.u32 %v647, %v683
        %v693 = vsel %vm498, %v670, 0
        %v694 = vsel %vm498, %v672, 0
        %v695 = vsel %vm498, %v674, 0
        %v696 = vsel %vm498, %v676, 0
        %v697 = vsel %vm498, %v678, 0
        %v698 = vsel %vm498, %v680, 0
        %v699 = vsel %vm498, %v682, 0
        %v700 = vsel %vm498, %v684, 0
        %s701 = scalar_lea.vmem [#allocation2], 216
        %702 = vst [vmem:[%s701] sm:$0xff] %v661
        %703 = vst [vmem:[%s701 + $0x18] sm:$0xff] %v662
        %704 = vst [vmem:[%s701 + $0x30] sm:$0xff] %v663
        %705 = vst [vmem:[%s701 + $0x48] sm:$0xff] %v664
        %706 = vst [vmem:[%s701 + $0x60] sm:$0xff] %v665
        %707 = vst [vmem:[%s701 + $0x78] sm:$0xff] %v666
        %708 = vst [vmem:[%s701 + $0x90] sm:$0xff] %v667
        %709 = vst [vmem:[%s701 + $0xa8] sm:$0xff] %v668
        %718 = vst [vmem:[%s701 + $0x8] sm:$0xff] %v589
        %719 = vst [vmem:[%s701 + $0x20] sm:$0xff] %v590
        %720 = vst [vmem:[%s701 + $0x38] sm:$0xff] %v591
        %721 = vst [vmem:[%s701 + $0x50] sm:$0xff] %v592
        %722 = vst [vmem:[%s701 + $0x68] sm:$0xff] %v593
        %723 = vst [vmem:[%s701 + $0x80] sm:$0xff] %v594
        %724 = vst [vmem:[%s701 + $0x98] sm:$0xff] %v595
        %725 = vst [vmem:[%s701 + $0xb0] sm:$0xff] %v596
        %726 = vst [vmem:[%s701 + $0x10] sm:$0xff] %v693
        %727 = vst [vmem:[%s701 + $0x28] sm:$0xff] %v694
        %728 = vst [vmem:[%s701 + $0x40] sm:$0xff] %v695
        %729 = vst [vmem:[%s701 + $0x58] sm:$0xff] %v696
        %730 = vst [vmem:[%s701 + $0x70] sm:$0xff] %v697
        %731 = vst [vmem:[%s701 + $0x88] sm:$0xff] %v698
        %732 = vst [vmem:[%s701 + $0xa0] sm:$0xff] %v699
        %733 = vst [vmem:[%s701 + $0xb8] sm:$0xff] %v700
        %v734 = vld [vmem:[#allocation2] sm:$0xff]
        %v735 = vld [vmem:[#allocation2 + $0x8] sm:$0xff]
        %v736 = vld [vmem:[#allocation2 + $0x10] sm:$0xff]
        %v737 = vld [vmem:[#allocation2 + $0x18] sm:$0xff]
        %v738 = vld [vmem:[#allocation2 + $0x20] sm:$0xff]
        %v739 = vld [vmem:[#allocation2 + $0x28] sm:$0xff]
        %v740 = vld [vmem:[#allocation2 + $0x30] sm:$0xff]
        %v741 = vld [vmem:[#allocation2 + $0x38] sm:$0xff]
        %v742 = vld [vmem:[#allocation2 + $0x40] sm:$0xff]
        %v743 = vld [vmem:[#allocation2 + $0x48] sm:$0xff]
        %v744 = vld [vmem:[#allocation2 + $0x50] sm:$0xff]
        %v745 = vld [vmem:[#allocation2 + $0x58] sm:$0xff]
        %v746 = vld [vmem:[#allocation2 + $0x60] sm:$0xff]
        %v747 = vld [vmem:[#allocation2 + $0x68] sm:$0xff]
        %v748 = vld [vmem:[#allocation2 + $0x70] sm:$0xff]
        %v749 = vld [vmem:[#allocation2 + $0x78] sm:$0xff]
        %v750 = vld [vmem:[#allocation2 + $0x80] sm:$0xff]
        %v751 = vld [vmem:[#allocation2 + $0x88] sm:$0xff]
        %v752 = vld [vmem:[#allocation2 + $0x90] sm:$0xff]
        %v753 = vld [vmem:[#allocation2 + $0x98] sm:$0xff]
        %v754 = vld [vmem:[#allocation2 + $0xa0] sm:$0xff]
        %v755 = vld [vmem:[#allocation2 + $0xa8] sm:$0xff]
        %v756 = vld [vmem:[#allocation2 + $0xb0] sm:$0xff]
        %v757 = vld [vmem:[#allocation2 + $0xb8] sm:$0xff]
        %v758 = vld [vmem:[#allocation7] sm:$0xf]
        %v759 = vld [vmem:[#allocation7 + $0x4] sm:$0xf]
        %v760 = vld [vmem:[#allocation7 + $0x8] sm:$0xf]
        %v761 = vld [vmem:[#allocation7 + $0xc] sm:$0xf]
        %v762 = vld [vmem:[#allocation7 + $0x10] sm:$0xf]
        %v763 = vld [vmem:[#allocation7 + $0x14] sm:$0xf]
        %v764 = vld [vmem:[#allocation7 + $0x18] sm:$0xf]
        %v765 = vld [vmem:[#allocation7 + $0x1c] sm:$0xf]
        %v766 = vld [vmem:[#allocation7 + $0x20] sm:$0xf]
        %v767 = vld [vmem:[#allocation7 + $0x24] sm:$0xf]
        %v768 = vld [vmem:[#allocation7 + $0x28] sm:$0xf]
        %v769 = vld [vmem:[#allocation7 + $0x2c] sm:$0xf]
        %v770 = vld [vmem:[#allocation7 + $0x30] sm:$0xf]
        %v771 = vld [vmem:[#allocation7 + $0x34] sm:$0xf]
        %v772 = vld [vmem:[#allocation7 + $0x38] sm:$0xf]
        %v773 = vld [vmem:[#allocation7 + $0x3c] sm:$0xf]
        %v774 = vld [vmem:[#allocation7 + $0x40] sm:$0xf]
        %v775 = vld [vmem:[#allocation7 + $0x44] sm:$0xf]
        %v776 = vld [vmem:[#allocation7 + $0x48] sm:$0xf]
        %v777 = vld [vmem:[#allocation7 + $0x4c] sm:$0xf]
        %v778 = vld [vmem:[#allocation7 + $0x50] sm:$0xf]
        %v779 = vld [vmem:[#allocation7 + $0x54] sm:$0xf]
        %v780 = vld [vmem:[#allocation7 + $0x58] sm:$0xf]
        %v781 = vld [vmem:[#allocation7 + $0x5c] sm:$0xf]
        %v782 = vld [vmem:[#allocation7 + $0x60] sm:$0xf]
        %v783 = vld [vmem:[#allocation7 + $0x64] sm:$0xf]
        %v784 = vld [vmem:[#allocation7 + $0x68] sm:$0xf]
        %v785 = vld [vmem:[#allocation7 + $0x6c] sm:$0xf]
        %v786 = vld [vmem:[#allocation7 + $0x70] sm:$0xf]
        %v787 = vld [vmem:[#allocation7 + $0x74] sm:$0xf]
        %v788 = vld [vmem:[#allocation7 + $0x78] sm:$0xf]
        %v789 = vld [vmem:[#allocation7 + $0x7c] sm:$0xf]
        %v790 = vld [vmem:[#allocation7 + $0x80] sm:$0xf]
        %v791 = vld [vmem:[#allocation7 + $0x84] sm:$0xf]
        %v792 = vld [vmem:[#allocation7 + $0x88] sm:$0xf]
        %v793 = vld [vmem:[#allocation7 + $0x8c] sm:$0xf]
        %v794 = vld [vmem:[#allocation7 + $0x90] sm:$0xf]
        %v795 = vld [vmem:[#allocation7 + $0x94] sm:$0xf]
        %v796 = vld [vmem:[#allocation7 + $0x98] sm:$0xf]
        %v797 = vld [vmem:[#allocation7 + $0x9c] sm:$0xf]
        %v798 = vld [vmem:[#allocation7 + $0xa0] sm:$0xf]
        %v799 = vld [vmem:[#allocation7 + $0xa4] sm:$0xf]
        %v800 = vld [vmem:[#allocation7 + $0xa8] sm:$0xf]
        %v801 = vld [vmem:[#allocation7 + $0xac] sm:$0xf]
        %v802 = vld [vmem:[#allocation7 + $0xb0] sm:$0xf]
        %v803 = vld [vmem:[#allocation7 + $0xb4] sm:$0xf]
        %v804 = vld [vmem:[#allocation7 + $0xb8] sm:$0xf]
        %v805 = vld [vmem:[#allocation7 + $0xbc] sm:$0xf]
        %v806 = vld [vmem:[%s507] sm:$0xff]
        %v807 = vld [vmem:[%s507 + $0x8] sm:$0xff]
        %v808 = vld [vmem:[%s507 + $0x10] sm:$0xff]
        %v809 = vld [vmem:[%s507 + $0x18] sm:$0xff]
        %v810 = vld [vmem:[%s507 + $0x20] sm:$0xff]
        %v811 = vld [vmem:[%s507 + $0x28] sm:$0xff]
        %v812 = vld [vmem:[%s507 + $0x30] sm:$0xff]
        %v813 = vld [vmem:[%s507 + $0x38] sm:$0xff]
        %v814 = vld [vmem:[%s507 + $0x40] sm:$0xff]
        %v815 = vld [vmem:[%s507 + $0x48] sm:$0xff]
        %v816 = vld [vmem:[%s507 + $0x50] sm:$0xff]
        %v817 = vld [vmem:[%s507 + $0x58] sm:$0xff]
        %v818 = vld [vmem:[%s507 + $0x60] sm:$0xff]
        %v819 = vld [vmem:[%s507 + $0x68] sm:$0xff]
        %v820 = vld [vmem:[%s507 + $0x70] sm:$0xff]
        %v821 = vld [vmem:[%s507 + $0x78] sm:$0xff]
        %v822 = vld [vmem:[%s507 + $0x80] sm:$0xff]
        %v823 = vld [vmem:[%s507 + $0x88] sm:$0xff]
        %v824 = vld [vmem:[%s507 + $0x90] sm:$0xff]
        %v825 = vld [vmem:[%s507 + $0x98] sm:$0xff]
        %v826 = vld [vmem:[%s507 + $0xa0] sm:$0xff]
        %v827 = vld [vmem:[%s507 + $0xa8] sm:$0xff]
        %v828 = vld [vmem:[%s507 + $0xb0] sm:$0xff]
        %v829 = vld [vmem:[%s507 + $0xb8] sm:$0xff]
        %s830 = scalar_lea.vmem [#allocation7], 192
        %v831 = vld [vmem:[%s830] sm:$0xf]
        %v832 = vld [vmem:[%s830 + $0x4] sm:$0xf]
        %v833 = vld [vmem:[%s830 + $0x8] sm:$0xf]
        %v834 = vld [vmem:[%s830 + $0xc] sm:$0xf]
        %v835 = vld [vmem:[%s830 + $0x10] sm:$0xf]
        %v836 = vld [vmem:[%s830 + $0x14] sm:$0xf]
        %v837 = vld [vmem:[%s830 + $0x18] sm:$0xf]
        %v838 = vld [vmem:[%s830 + $0x1c] sm:$0xf]
        %v839 = vld [vmem:[%s830 + $0x20] sm:$0xf]
        %v840 = vld [vmem:[%s830 + $0x24] sm:$0xf]
        %v841 = vld [vmem:[%s830 + $0x28] sm:$0xf]
        %v842 = vld [vmem:[%s830 + $0x2c] sm:$0xf]
        %v843 = vld [vmem:[%s830 + $0x30] sm:$0xf]
        %v844 = vld [vmem:[%s830 + $0x34] sm:$0xf]
        %v845 = vld [vmem:[%s830 + $0x38] sm:$0xf]
        %v846 = vld [vmem:[%s830 + $0x3c] sm:$0xf]
        %v847 = vld [vmem:[%s830 + $0x40] sm:$0xf]
        %v848 = vld [vmem:[%s830 + $0x44] sm:$0xf]
        %v849 = vld [vmem:[%s830 + $0x48] sm:$0xf]
        %v850 = vld [vmem:[%s830 + $0x4c] sm:$0xf]
        %v851 = vld [vmem:[%s830 + $0x50] sm:$0xf]
        %v852 = vld [vmem:[%s830 + $0x54] sm:$0xf]
        %v853 = vld [vmem:[%s830 + $0x58] sm:$0xf]
        %v854 = vld [vmem:[%s830 + $0x5c] sm:$0xf]
        %v855 = vld [vmem:[%s830 + $0x60] sm:$0xf]
        %v856 = vld [vmem:[%s830 + $0x64] sm:$0xf]
        %v857 = vld [vmem:[%s830 + $0x68] sm:$0xf]
        %v858 = vld [vmem:[%s830 + $0x6c] sm:$0xf]
        %v859 = vld [vmem:[%s830 + $0x70] sm:$0xf]
        %v860 = vld [vmem:[%s830 + $0x74] sm:$0xf]
        %v861 = vld [vmem:[%s830 + $0x78] sm:$0xf]
        %v862 = vld [vmem:[%s830 + $0x7c] sm:$0xf]
        %v863 = vld [vmem:[%s830 + $0x80] sm:$0xf]
        %v864 = vld [vmem:[%s830 + $0x84] sm:$0xf]
        %v865 = vld [vmem:[%s830 + $0x88] sm:$0xf]
        %v866 = vld [vmem:[%s830 + $0x8c] sm:$0xf]
        %v867 = vld [vmem:[%s830 + $0x90] sm:$0xf]
        %v868 = vld [vmem:[%s830 + $0x94] sm:$0xf]
        %v869 = vld [vmem:[%s830 + $0x98] sm:$0xf]
        %v870 = vld [vmem:[%s830 + $0x9c] sm:$0xf]
        %v871 = vld [vmem:[%s830 + $0xa0] sm:$0xf]
        %v872 = vld [vmem:[%s830 + $0xa4] sm:$0xf]
        %v873 = vld [vmem:[%s830 + $0xa8] sm:$0xf]
        %v874 = vld [vmem:[%s830 + $0xac] sm:$0xf]
        %v875 = vld [vmem:[%s830 + $0xb0] sm:$0xf]
        %v876 = vld [vmem:[%s830 + $0xb4] sm:$0xf]
        %v877 = vld [vmem:[%s830 + $0xb8] sm:$0xf]
        %v878 = vld [vmem:[%s830 + $0xbc] sm:$0xf]
        %v927 = vunpack.c.l.b16 %v831
        %v928 = vunpack.c.l.b16 %v832
        %v929 = vunpack.c.l.b16 %v833
        %v930 = vunpack.c.l.b16 %v834
        %v931 = vunpack.c.l.b16 %v835
        %v932 = vunpack.c.l.b16 %v836
        %v933 = vunpack.c.l.b16 %v837
        %v934 = vunpack.c.l.b16 %v838
        %v935 = vunpack.c.l.b16 %v839
        %v936 = vunpack.c.l.b16 %v840
        %v937 = vunpack.c.l.b16 %v841
        %v938 = vunpack.c.l.b16 %v842
        %v939 = vunpack.c.l.b16 %v843
        %v940 = vunpack.c.l.b16 %v844
        %v941 = vunpack.c.l.b16 %v845
        %v942 = vunpack.c.l.b16 %v846
        %v943 = vunpack.c.l.b16 %v847
        %v944 = vunpack.c.l.b16 %v848
        %v945 = vunpack.c.l.b16 %v849
        %v946 = vunpack.c.l.b16 %v850
        %v947 = vunpack.c.l.b16 %v851
        %v948 = vunpack.c.l.b16 %v852
        %v949 = vunpack.c.l.b16 %v853
        %v950 = vunpack.c.l.b16 %v854
        %v951 = vunpack.c.l.b16 %v855
        %v952 = vunpack.c.l.b16 %v856
        %v953 = vunpack.c.l.b16 %v857
        %v954 = vunpack.c.l.b16 %v858
        %v955 = vunpack.c.l.b16 %v859
        %v956 = vunpack.c.l.b16 %v860
        %v957 = vunpack.c.l.b16 %v861
        %v958 = vunpack.c.l.b16 %v862
        %v959 = vunpack.c.l.b16 %v863
        %v960 = vunpack.c.l.b16 %v864
        %v961 = vunpack.c.l.b16 %v865
        %v962 = vunpack.c.l.b16 %v866
        %v963 = vunpack.c.l.b16 %v867
        %v964 = vunpack.c.l.b16 %v868
        %v965 = vunpack.c.l.b16 %v869
        %v966 = vunpack.c.l.b16 %v870
        %v967 = vunpack.c.l.b16 %v871
        %v968 = vunpack.c.l.b16 %v872
        %v969 = vunpack.c.l.b16 %v873
        %v970 = vunpack.c.l.b16 %v874
        %v971 = vunpack.c.l.b16 %v875
        %v972 = vunpack.c.l.b16 %v876
        %v973 = vunpack.c.l.b16 %v877
        %v974 = vunpack.c.l.b16 %v878
        %v975 = vpack.c.b16 %v928, %v927
        %v976 = vpack.c.b16 %v930, %v929
        %v977 = vpack.c.b16 %v932, %v931
        %v978 = vpack.c.b16 %v934, %v933
        %v979 = vpack.c.b16 %v936, %v935
        %v980 = vpack.c.b16 %v938, %v937
        %v981 = vpack.c.b16 %v940, %v939
        %v982 = vpack.c.b16 %v942, %v941
        %v983 = vpack.c.b16 %v944, %v943
        %v984 = vpack.c.b16 %v946, %v945
        %v985 = vpack.c.b16 %v948, %v947
        %v986 = vpack.c.b16 %v950, %v949
        %v987 = vpack.c.b16 %v952, %v951
        %v988 = vpack.c.b16 %v954, %v953
        %v989 = vpack.c.b16 %v956, %v955
        %v990 = vpack.c.b16 %v958, %v957
        %v991 = vpack.c.b16 %v960, %v959
        %v992 = vpack.c.b16 %v962, %v961
        %v993 = vpack.c.b16 %v964, %v963
        %v994 = vpack.c.b16 %v966, %v965
        %v995 = vpack.c.b16 %v968, %v967
        %v996 = vpack.c.b16 %v970, %v969
        %v997 = vpack.c.b16 %v972, %v971
        %v998 = vpack.c.b16 %v974, %v973
        %1023 = vmatprep.subr.bf16.mxu0 0
        %1024 = vmatpush1.bf16.msra.mxu0 %v975
        %1025 = vmatprep.subr.bf16.mxu0 0
        %1026 = vmatpush1.bf16.msra.mxu0 %v976
        %1027 = vmatprep.subr.bf16.mxu0 0
        %1028 = vmatpush1.bf16.msra.mxu0 %v977
        %1029 = vmatprep.subr.bf16.mxu0 0
        %1030 = vmatpush1.bf16.msra.mxu0 %v978
        %1031 = vmatprep.subr.bf16.mxu0 0
        %1032 = vmatpush1.bf16.msra.mxu0 %v979
        %1033 = vmatprep.subr.bf16.mxu0 0
        %1034 = vmatpush1.bf16.msra.mxu0 %v980
        %1035 = vmatprep.subr.bf16.mxu0 0
        %1036 = vmatpush1.bf16.msra.mxu0 %v981
        %1037 = vmatprep.subr.bf16.mxu0 0
        %1038 = vmatpush1.bf16.msra.mxu0 %v982
        %1039 = vmatprep.subr.bf16.mxu0 0
        %1040 = vmatpush1.bf16.msra.mxu0 %v983
        %1041 = vmatprep.subr.bf16.mxu0 0
        %1042 = vmatpush1.bf16.msra.mxu0 %v984
        %1043 = vmatprep.subr.bf16.mxu0 0
        %1044 = vmatpush1.bf16.msra.mxu0 %v985
        %1045 = vmatprep.subr.bf16.mxu0 0
        %1046 = vmatpush1.bf16.msra.mxu0 %v986
        %1047 = vmatprep.subr.bf16.mxu0 0
        %1048 = vmatpush1.bf16.msra.mxu0 %v987
        %1049 = vmatprep.subr.bf16.mxu0 0
        %1050 = vmatpush1.bf16.msra.mxu0 %v988
        %1051 = vmatprep.subr.bf16.mxu0 0
        %1052 = vmatpush1.bf16.msra.mxu0 %v989
        %1053 = vmatprep.subr.bf16.mxu0 0
        %1054 = vmatpush1.bf16.msra.mxu0 %v990
        %1055 = vmatprep.mubr.bf16.mxu0 %v807
        %1056 = vmatmul.mubr.bf16.gmra.mrb[0].mxu0 %v806
        %v1057 = vpop.f32.mrb[0].mxu0
        %v1058 = vadd.f32 0.0, %v1057
        %v1059 = vpop.f32.mrb[0].mxu0
        %v1060 = vpop.f32.mrb[0].mxu0
        %v1061 = vadd.f32 0.0, %v1060
        %v1062 = vpop.f32.mrb[0].mxu0
        %1063 = vmatprep.mubr.bf16.mxu0 %v810
        %1064 = vmatmul.mubr.bf16.gmra.mrb[0].mxu0 %v809
        %v1065 = vpop.f32.mrb[0].mxu0
        %v1066 = vadd.f32 0.0, %v1065
        %v1067 = vpop.f32.mrb[0].mxu0
        %v1068 = vpop.f32.mrb[0].mxu0
        %v1069 = vadd.f32 0.0, %v1068
        %v1070 = vpop.f32.mrb[0].mxu0
        %1071 = vmatprep.mubr.bf16.mxu0 %v813
        %1072 = vmatmul.mubr.bf16.gmra.mrb[0].mxu0 %v812
        %v1073 = vpop.f32.mrb[0].mxu0
        %v1074 = vadd.f32 0.0, %v1073
        %v1075 = vpop.f32.mrb[0].mxu0
        %v1076 = vpop.f32.mrb[0].mxu0
        %v1077 = vadd.f32 0.0, %v1076
        %v1078 = vpop.f32.mrb[0].mxu0
        %1079 = vmatprep.mubr.bf16.mxu0 %v816
        %1080 = vmatmul.mubr.bf16.gmra.mrb[0].mxu0 %v815
        %v1081 = vpop.f32.mrb[0].mxu0
        %v1082 = vadd.f32 0.0, %v1081
        %v1083 = vpop.f32.mrb[0].mxu0
        %v1084 = vpop.f32.mrb[0].mxu0
        %v1085 = vadd.f32 0.0, %v1084
        %v1086 = vpop.f32.mrb[0].mxu0
        %1087 = vmatprep.mubr.bf16.mxu0 %v819
        %1088 = vmatmul.mubr.bf16.gmra.mrb[0].mxu0 %v818
        %v1089 = vpop.f32.mrb[0].mxu0
        %v1090 = vadd.f32 0.0, %v1089
        %v1091 = vpop.f32.mrb[0].mxu0
        %v1092 = vpop.f32.mrb[0].mxu0
        %v1093 = vadd.f32 0.0, %v1092
        %v1094 = vpop.f32.mrb[0].mxu0
        %1095 = vmatprep.mubr.bf16.mxu0 %v822
        %1096 = vmatmul.mubr.bf16.gmra.mrb[0].mxu0 %v821
        %v1097 = vpop.f32.mrb[0].mxu0
        %v1098 = vadd.f32 0.0, %v1097
        %v1099 = vpop.f32.mrb[0].mxu0
        %v1100 = vpop.f32.mrb[0].mxu0
        %v1101 = vadd.f32 0.0, %v1100
        %v1102 = vpop.f32.mrb[0].mxu0
        %1103 = vmatprep.mubr.bf16.mxu0 %v825
        %1104 = vmatmul.mubr.bf16.gmra.mrb[0].mxu0 %v824
        %v1105 = vpop.f32.mrb[0].mxu0
        %v1106 = vadd.f32 0.0, %v1105
        %v1107 = vpop.f32.mrb[0].mxu0
        %v1108 = vpop.f32.mrb[0].mxu0
        %v1109 = vadd.f32 0.0, %v1108
        %v1110 = vpop.f32.mrb[0].mxu0
        %1111 = vmatprep.mubr.bf16.mxu0 %v828
        %1112 = vmatmul.mubr.bf16.gmra.mrb[0].mxu0 %v827
        %v1113 = vpop.f32.mrb[0].mxu0
        %v1114 = vadd.f32 0.0, %v1113
        %v1115 = vpop.f32.mrb[0].mxu0
        %v1116 = vpop.f32.mrb[0].mxu0
        %v1117 = vadd.f32 0.0, %v1116
        %v1118 = vpop.f32.mrb[0].mxu0
        %1119 = vdwg.mxu0
        %1120 = vmatprep.subr.bf16.mxu0 0
        %1121 = vmatpush1.bf16.msra.mxu0 %v991
        %1122 = vmatprep.subr.bf16.mxu0 0
        %1123 = vmatpush1.bf16.msra.mxu0 %v992
        %1124 = vmatprep.subr.bf16.mxu0 0
        %1125 = vmatpush1.bf16.msra.mxu0 %v993
        %1126 = vmatprep.subr.bf16.mxu0 0
        %1127 = vmatpush1.bf16.msra.mxu0 %v994
        %1128 = vmatprep.subr.bf16.mxu0 0
        %1129 = vmatpush1.bf16.msra.mxu0 %v995
        %1130 = vmatprep.subr.bf16.mxu0 0
        %1131 = vmatpush1.bf16.msra.mxu0 %v996
        %1132 = vmatprep.subr.bf16.mxu0 0
        %1133 = vmatpush1.bf16.msra.mxu0 %v997
        %1134 = vmatprep.subr.bf16.mxu0 0
        %1135 = vmatpush1.bf16.msra.mxu0 %v998
        %1136 = vmatprep.subr.bf16.mxu0 0
        %1137 = vmatpush1.bf16.msra.mxu0 0
        %1138 = vmatprep.subr.bf16.mxu0 0
        %1139 = vmatpush1.bf16.msra.mxu0 0
        %1140 = vmatprep.subr.bf16.mxu0 0
        %1141 = vmatpush1.bf16.msra.mxu0 0
        %1142 = vmatprep.subr.bf16.mxu0 0
        %1143 = vmatpush1.bf16.msra.mxu0 0
        %1144 = vmatprep.subr.bf16.mxu0 0
        %1145 = vmatpush1.bf16.msra.mxu0 0
        %1146 = vmatprep.subr.bf16.mxu0 0
        %1147 = vmatpush1.bf16.msra.mxu0 0
        %1148 = vmatprep.subr.bf16.mxu0 0
        %1149 = vmatpush1.bf16.msra.mxu0 0
        %1150 = vmatprep.subr.bf16.mxu0 0
        %1151 = vmatpush1.bf16.msra.mxu0 0
        %1152 = vmatprep.mubr.bf16.mxu0 0
        %1153 = vmatmul.mubr.bf16.gmra.mrb[0].mxu0 %v808
        %v1154 = vpop.f32.mrb[0].mxu0
        %v1155 = vadd.f32 %v1058, %v1154
        %v1156 = vpop.f32.mrb[0].mxu0
        %v1157 = vpop.f32.mrb[0].mxu0
        %v1158 = vadd.f32 %v1061, %v1157
        %v1159 = vpop.f32.mrb[0].mxu0
        %1160 = vmatprep.mubr.bf16.mxu0 0
        %1161 = vmatmul.mubr.bf16.gmra.mrb[0].mxu0 %v811
        %v1162 = vpop.f32.mrb[0].mxu0
        %v1163 = vadd.f32 %v1066, %v1162
        %v1164 = vpop.f32.mrb[0].mxu0
        %v1165 = vpop.f32.mrb[0].mxu0
        %v1166 = vadd.f32 %v1069, %v1165
        %v1167 = vpop.f32.mrb[0].mxu0
        %1168 = vmatprep.mubr.bf16.mxu0 0
        %1169 = vmatmul.mubr.bf16.gmra.mrb[0].mxu0 %v814
        %v1170 = vpop.f32.mrb[0].mxu0
        %v1171 = vadd.f32 %v1074, %v1170
        %v1172 = vpop.f32.mrb[0].mxu0
        %v1173 = vpop.f32.mrb[0].mxu0
        %v1174 = vadd.f32 %v1077, %v1173
        %v1175 = vpop.f32.mrb[0].mxu0
        %1176 = vmatprep.mubr.bf16.mxu0 0
        %1177 = vmatmul.mubr.bf16.gmra.mrb[0].mxu0 %v817
        %v1178 = vpop.f32.mrb[0].mxu0
        %v1179 = vadd.f32 %v1082, %v1178
        %v1180 = vpop.f32.mrb[0].mxu0
        %v1181 = vpop.f32.mrb[0].mxu0
        %v1182 = vadd.f32 %v1085, %v1181
        %v1183 = vpop.f32.mrb[0].mxu0
        %1184 = vmatprep.mubr.bf16.mxu0 0
        %1185 = vmatmul.mubr.bf16.gmra.mrb[0].mxu0 %v820
        %v1186 = vpop.f32.mrb[0].mxu0
        %v1187 = vadd.f32 %v1090, %v1186
        %v1188 = vpop.f32.mrb[0].mxu0
        %v1189 = vpop.f32.mrb[0].mxu0
        %v1190 = vadd.f32 %v1093, %v1189
        %v1191 = vpop.f32.mrb[0].mxu0
        %1192 = vmatprep.mubr.bf16.mxu0 0
        %1193 = vmatmul.mubr.bf16.gmra.mrb[0].mxu0 %v823
        %v1194 = vpop.f32.mrb[0].mxu0
        %v1195 = vadd.f32 %v1098, %v1194
        %v1196 = vpop.f32.mrb[0].mxu0
        %v1197 = vpop.f32.mrb[0].mxu0
        %v1198 = vadd.f32 %v1101, %v1197
        %v1199 = vpop.f32.mrb[0].mxu0
        %1200 = vmatprep.mubr.bf16.mxu0 0
        %1201 = vmatmul.mubr.bf16.gmra.mrb[0].mxu0 %v826
        %v1202 = vpop.f32.mrb[0].mxu0
        %v1203 = vadd.f32 %v1106, %v1202
        %v1204 = vpop.f32.mrb[0].mxu0
        %v1205 = vpop.f32.mrb[0].mxu0
        %v1206 = vadd.f32 %v1109, %v1205
        %v1207 = vpop.f32.mrb[0].mxu0
        %1208 = vmatprep.mubr.bf16.mxu0 0
        %1209 = vmatmul.mubr.bf16.gmra.mrb[0].mxu0 %v829
        %v1210 = vpop.f32.mrb[0].mxu0
        %v1211 = vadd.f32 %v1114, %v1210
        %v1212 = vpop.f32.mrb[0].mxu0
        %v1213 = vpop.f32.mrb[0].mxu0
        %v1214 = vadd.f32 %v1117, %v1213
        %v1215 = vpop.f32.mrb[0].mxu0
        %1216 = vdwg.mxu0
        %v1265 = vunpack.c.l.b16 %v758
        %v1266 = vunpack.c.l.b16 %v759
        %v1267 = vunpack.c.l.b16 %v760
        %v1268 = vunpack.c.l.b16 %v761
        %v1269 = vunpack.c.l.b16 %v762
        %v1270 = vunpack.c.l.b16 %v763
        %v1271 = vunpack.c.l.b16 %v764
        %v1272 = vunpack.c.l.b16 %v765
        %v1273 = vunpack.c.l.b16 %v766
        %v1274 = vunpack.c.l.b16 %v767
        %v1275 = vunpack.c.l.b16 %v768
        %v1276 = vunpack.c.l.b16 %v769
        %v1277 = vunpack.c.l.b16 %v770
        %v1278 = vunpack.c.l.b16 %v771
        %v1279 = vunpack.c.l.b16 %v772
        %v1280 = vunpack.c.l.b16 %v773
        %v1281 = vunpack.c.l.b16 %v774
        %v1282 = vunpack.c.l.b16 %v775
        %v1283 = vunpack.c.l.b16 %v776
        %v1284 = vunpack.c.l.b16 %v777
        %v1285 = vunpack.c.l.b16 %v778
        %v1286 = vunpack.c.l.b16 %v779
        %v1287 = vunpack.c.l.b16 %v780
        %v1288 = vunpack.c.l.b16 %v781
        %v1289 = vunpack.c.l.b16 %v782
        %v1290 = vunpack.c.l.b16 %v783
        %v1291 = vunpack.c.l.b16 %v784
        %v1292 = vunpack.c.l.b16 %v785
        %v1293 = vunpack.c.l.b16 %v786
        %v1294 = vunpack.c.l.b16 %v787
        %v1295 = vunpack.c.l.b16 %v788
        %v1296 = vunpack.c.l.b16 %v789
        %v1297 = vunpack.c.l.b16 %v790
        %v1298 = vunpack.c.l.b16 %v791
        %v1299 = vunpack.c.l.b16 %v792
        %v1300 = vunpack.c.l.b16 %v793
        %v1301 = vunpack.c.l.b16 %v794
        %v1302 = vunpack.c.l.b16 %v795
        %v1303 = vunpack.c.l.b16 %v796
        %v1304 = vunpack.c.l.b16 %v797
        %v1305 = vunpack.c.l.b16 %v798
        %v1306 = vunpack.c.l.b16 %v799
        %v1307 = vunpack.c.l.b16 %v800
        %v1308 = vunpack.c.l.b16 %v801
        %v1309 = vunpack.c.l.b16 %v802
        %v1310 = vunpack.c.l.b16 %v803
        %v1311 = vunpack.c.l.b16 %v804
        %v1312 = vunpack.c.l.b16 %v805
        %v1313 = vpack.c.b16 %v1266, %v1265
        %v1314 = vpack.c.b16 %v1268, %v1267
        %v1315 = vpack.c.b16 %v1270, %v1269
        %v1316 = vpack.c.b16 %v1272, %v1271
        %v1317 = vpack.c.b16 %v1274, %v1273
        %v1318 = vpack.c.b16 %v1276, %v1275
        %v1319 = vpack.c.b16 %v1278, %v1277
        %v1320 = vpack.c.b16 %v1280, %v1279
        %v1321 = vpack.c.b16 %v1282, %v1281
        %v1322 = vpack.c.b16 %v1284, %v1283
        %v1323 = vpack.c.b16 %v1286, %v1285
        %v1324 = vpack.c.b16 %v1288, %v1287
        %v1325 = vpack.c.b16 %v1290, %v1289
        %v1326 = vpack.c.b16 %v1292, %v1291
        %v1327 = vpack.c.b16 %v1294, %v1293
        %v1328 = vpack.c.b16 %v1296, %v1295
        %v1329 = vpack.c.b16 %v1298, %v1297
        %v1330 = vpack.c.b16 %v1300, %v1299
        %v1331 = vpack.c.b16 %v1302, %v1301
        %v1332 = vpack.c.b16 %v1304, %v1303
        %v1333 = vpack.c.b16 %v1306, %v1305
        %v1334 = vpack.c.b16 %v1308, %v1307
        %v1335 = vpack.c.b16 %v1310, %v1309
        %v1336 = vpack.c.b16 %v1312, %v1311
        %1361 = vmatprep.subr.bf16.mxu0 0
        %1362 = vmatpush1.bf16.msra.mxu0 %v1313
        %1363 = vmatprep.subr.bf16.mxu0 0
        %1364 = vmatpush1.bf16.msra.mxu0 %v1314
        %1365 = vmatprep.subr.bf16.mxu0 0
        %1366 = vmatpush1.bf16.msra.mxu0 %v1315
        %1367 = vmatprep.subr.bf16.mxu0 0
        %1368 = vmatpush1.bf16.msra.mxu0 %v1316
        %1369 = vmatprep.subr.bf16.mxu0 0
        %1370 = vmatpush1.bf16.msra.mxu0 %v1317
        %1371 = vmatprep.subr.bf16.mxu0 0
        %1372 = vmatpush1.bf16.msra.mxu0 %v1318
        %1373 = vmatprep.subr.bf16.mxu0 0
        %1374 = vmatpush1.bf16.msra.mxu0 %v1319
        %1375 = vmatprep.subr.bf16.mxu0 0
        %1376 = vmatpush1.bf16.msra.mxu0 %v1320
        %1377 = vmatprep.subr.bf16.mxu0 0
        %1378 = vmatpush1.bf16.msra.mxu0 %v1321
        %1379 = vmatprep.subr.bf16.mxu0 0
        %1380 = vmatpush1.bf16.msra.mxu0 %v1322
        %1381 = vmatprep.subr.bf16.mxu0 0
        %1382 = vmatpush1.bf16.msra.mxu0 %v1323
        %1383 = vmatprep.subr.bf16.mxu0 0
        %1384 = vmatpush1.bf16.msra.mxu0 %v1324
        %1385 = vmatprep.subr.bf16.mxu0 0
        %1386 = vmatpush1.bf16.msra.mxu0 %v1325
        %1387 = vmatprep.subr.bf16.mxu0 0
        %1388 = vmatpush1.bf16.msra.mxu0 %v1326
        %1389 = vmatprep.subr.bf16.mxu0 0
        %1390 = vmatpush1.bf16.msra.mxu0 %v1327
        %1391 = vmatprep.subr.bf16.mxu0 0
        %1392 = vmatpush1.bf16.msra.mxu0 %v1328
        %1393 = vmatprep.mubr.bf16.mxu0 %v735
        %1394 = vmatmul.mubr.bf16.gmra.mrb[0].mxu0 %v734
        %v1395 = vpop.f32.mrb[0].mxu0
        %v1396 = vadd.f32 %v1155, %v1395
        %v1397 = vpop.f32.mrb[0].mxu0
        %v1398 = vpop.f32.mrb[0].mxu0
        %v1399 = vadd.f32 %v1158, %v1398
        %v1400 = vpop.f32.mrb[0].mxu0
        %1401 = vmatprep.mubr.bf16.mxu0 %v738
        %1402 = vmatmul.mubr.bf16.gmra.mrb[0].mxu0 %v737
        %v1403 = vpop.f32.mrb[0].mxu0
        %v1404 = vadd.f32 %v1163, %v1403
        %v1405 = vpop.f32.mrb[0].mxu0
        %v1406 = vpop.f32.mrb[0].mxu0
        %v1407 = vadd.f32 %v1166, %v1406
        %v1408 = vpop.f32.mrb[0].mxu0
        %1409 = vmatprep.mubr.bf16.mxu0 %v741
        %1410 = vmatmul.mubr.bf16.gmra.mrb[0].mxu0 %v740
        %v1411 = vpop.f32.mrb[0].mxu0
        %v1412 = vadd.f32 %v1171, %v1411
        %v1413 = vpop.f32.mrb[0].mxu0
        %v1414 = vpop.f32.mrb[0].mxu0
        %v1415 = vadd.f32 %v1174, %v1414
        %v1416 = vpop.f32.mrb[0].mxu0
        %1417 = vmatprep.mubr.bf16.mxu0 %v744
        %1418 = vmatmul.mubr.bf16.gmra.mrb[0].mxu0 %v743
        %v1419 = vpop.f32.mrb[0].mxu0
        %v1420 = vadd.f32 %v1179, %v1419
        %v1421 = vpop.f32.mrb[0].mxu0
        %v1422 = vpop.f32.mrb[0].mxu0
        %v1423 = vadd.f32 %v1182, %v1422
        %v1424 = vpop.f32.mrb[0].mxu0
        %1425 = vmatprep.mubr.bf16.mxu0 %v747
        %1426 = vmatmul.mubr.bf16.gmra.mrb[0].mxu0 %v746
        %v1427 = vpop.f32.mrb[0].mxu0
        %v1428 = vadd.f32 %v1187, %v1427
        %v1429 = vpop.f32.mrb[0].mxu0
        %v1430 = vpop.f32.mrb[0].mxu0
        %v1431 = vadd.f32 %v1190, %v1430
        %v1432 = vpop.f32.mrb[0].mxu0
        %1433 = vmatprep.mubr.bf16.mxu0 %v750
        %1434 = vmatmul.mubr.bf16.gmra.mrb[0].mxu0 %v749
        %v1435 = vpop.f32.mrb[0].mxu0
        %v1436 = vadd.f32 %v1195, %v1435
        %v1437 = vpop.f32.mrb[0].mxu0
        %v1438 = vpop.f32.mrb[0].mxu0
        %v1439 = vadd.f32 %v1198, %v1438
        %v1440 = vpop.f32.mrb[0].mxu0
        %1441 = vmatprep.mubr.bf16.mxu0 %v753
        %1442 = vmatmul.mubr.bf16.gmra.mrb[0].mxu0 %v752
        %v1443 = vpop.f32.mrb[0].mxu0
        %v1444 = vadd.f32 %v1203, %v1443
        %v1445 = vpop.f32.mrb[0].mxu0
        %v1446 = vpop.f32.mrb[0].mxu0
        %v1447 = vadd.f32 %v1206, %v1446
        %v1448 = vpop.f32.mrb[0].mxu0
        %1449 = vmatprep.mubr.bf16.mxu0 %v756
        %1450 = vmatmul.mubr.bf16.gmra.mrb[0].mxu0 %v755
        %v1451 = vpop.f32.mrb[0].mxu0
        %v1452 = vadd.f32 %v1211, %v1451
        %v1453 = vpop.f32.mrb[0].mxu0
        %v1454 = vpop.f32.mrb[0].mxu0
        %v1455 = vadd.f32 %v1214, %v1454
        %v1456 = vpop.f32.mrb[0].mxu0
        %1457 = vdwg.mxu0
        %1458 = vmatprep.subr.bf16.mxu0 0
        %1459 = vmatpush1.bf16.msra.mxu0 %v1329
        %1460 = vmatprep.subr.bf16.mxu0 0
        %1461 = vmatpush1.bf16.msra.mxu0 %v1330
        %1462 = vmatprep.subr.bf16.mxu0 0
        %1463 = vmatpush1.bf16.msra.mxu0 %v1331
        %1464 = vmatprep.subr.bf16.mxu0 0
        %1465 = vmatpush1.bf16.msra.mxu0 %v1332
        %1466 = vmatprep.subr.bf16.mxu0 0
        %1467 = vmatpush1.bf16.msra.mxu0 %v1333
        %1468 = vmatprep.subr.bf16.mxu0 0
        %1469 = vmatpush1.bf16.msra.mxu0 %v1334
        %1470 = vmatprep.subr.bf16.mxu0 0
        %1471 = vmatpush1.bf16.msra.mxu0 %v1335
        %1472 = vmatprep.subr.bf16.mxu0 0
        %1473 = vmatpush1.bf16.msra.mxu0 %v1336
        %1474 = vmatprep.subr.bf16.mxu0 0
        %1475 = vmatpush1.bf16.msra.mxu0 0
        %1476 = vmatprep.subr.bf16.mxu0 0
        %1477 = vmatpush1.bf16.msra.mxu0 0
        %1478 = vmatprep.subr.bf16.mxu0 0
        %1479 = vmatpush1.bf16.msra.mxu0 0
        %1480 = vmatprep.subr.bf16.mxu0 0
        %1481 = vmatpush1.bf16.msra.mxu0 0
        %1482 = vmatprep.subr.bf16.mxu0 0
        %1483 = vmatpush1.bf16.msra.mxu0 0
        %1484 = vmatprep.subr.bf16.mxu0 0
        %1485 = vmatpush1.bf16.msra.mxu0 0
        %1486 = vmatprep.subr.bf16.mxu0 0
        %1487 = vmatpush1.bf16.msra.mxu0 0
        %1488 = vmatprep.subr.bf16.mxu0 0
        %1489 = vmatpush1.bf16.msra.mxu0 0
        %1490 = vmatprep.mubr.bf16.mxu0 0
        %1491 = vmatmul.mubr.bf16.gmra.mrb[0].mxu0 %v736
        %v1492 = vpop.f32.mrb[0].mxu0
        %v1493 = vadd.f32 %v1396, %v1492
        %v1494 = vpop.f32.mrb[0].mxu0
        %v1495 = vpop.f32.mrb[0].mxu0
        %v1496 = vadd.f32 %v1399, %v1495
        %v1497 = vpop.f32.mrb[0].mxu0
        %1498 = vmatprep.mubr.bf16.mxu0 0
        %1499 = vmatmul.mubr.bf16.gmra.mrb[0].mxu0 %v739
        %v1500 = vpop.f32.mrb[0].mxu0
        %v1501 = vadd.f32 %v1404, %v1500
        %v1502 = vpop.f32.mrb[0].mxu0
        %v1503 = vpop.f32.mrb[0].mxu0
        %v1504 = vadd.f32 %v1407, %v1503
        %v1505 = vpop.f32.mrb[0].mxu0
        %1506 = vmatprep.mubr.bf16.mxu0 0
        %1507 = vmatmul.mubr.bf16.gmra.mrb[0].mxu0 %v742
        %v1508 = vpop.f32.mrb[0].mxu0
        %v1509 = vadd.f32 %v1412, %v1508
        %v1510 = vpop.f32.mrb[0].mxu0
        %v1511 = vpop.f32.mrb[0].mxu0
        %v1512 = vadd.f32 %v1415, %v1511
        %v1513 = vpop.f32.mrb[0].mxu0
        %1514 = vmatprep.mubr.bf16.mxu0 0
        %1515 = vmatmul.mubr.bf16.gmra.mrb[0].mxu0 %v745
        %v1516 = vpop.f32.mrb[0].mxu0
        %v1517 = vadd.f32 %v1420, %v1516
        %v1518 = vpop.f32.mrb[0].mxu0
        %v1519 = vpop.f32.mrb[0].mxu0
        %v1520 = vadd.f32 %v1423, %v1519
        %v1521 = vpop.f32.mrb[0].mxu0
        %1522 = vmatprep.mubr.bf16.mxu0 0
        %1523 = vmatmul.mubr.bf16.gmra.mrb[0].mxu0 %v748
        %v1524 = vpop.f32.mrb[0].mxu0
        %v1525 = vadd.f32 %v1428, %v1524
        %v1526 = vpop.f32.mrb[0].mxu0
        %v1527 = vpop.f32.mrb[0].mxu0
        %v1528 = vadd.f32 %v1431, %v1527
        %v1529 = vpop.f32.mrb[0].mxu0
        %1530 = vmatprep.mubr.bf16.mxu0 0
        %1531 = vmatmul.mubr.bf16.gmra.mrb[0].mxu0 %v751
        %v1532 = vpop.f32.mrb[0].mxu0
        %v1533 = vadd.f32 %v1436, %v1532
        %v1534 = vpop.f32.mrb[0].mxu0
        %v1535 = vpop.f32.mrb[0].mxu0
        %v1536 = vadd.f32 %v1439, %v1535
        %v1537 = vpop.f32.mrb[0].mxu0
        %1538 = vmatprep.mubr.bf16.mxu0 0
        %1539 = vmatmul.mubr.bf16.gmra.mrb[0].mxu0 %v754
        %v1540 = vpop.f32.mrb[0].mxu0
        %v1541 = vadd.f32 %v1444, %v1540
        %v1542 = vpop.f32.mrb[0].mxu0
        %v1543 = vpop.f32.mrb[0].mxu0
        %v1544 = vadd.f32 %v1447, %v1543
        %v1545 = vpop.f32.mrb[0].mxu0
        %1546 = vmatprep.mubr.bf16.mxu0 0
        %1547 = vmatmul.mubr.bf16.gmra.mrb[0].mxu0 %v757
        %v1548 = vpop.f32.mrb[0].mxu0
        %v1549 = vadd.f32 %v1452, %v1548
        %v1550 = vpop.f32.mrb[0].mxu0
        %v1551 = vpop.f32.mrb[0].mxu0
        %v1552 = vadd.f32 %v1455, %v1551
        %v1553 = vpop.f32.mrb[0].mxu0
        %1554 = vdwg.mxu0
        %s1555 = scalar_lea.vmem [#allocation2], 48
        %v1556 = vld [vmem:[%s1555] sm:$0xff]
        %v1557 = vld [vmem:[%s1555 + $0x8] sm:$0xff]
        %v1558 = vld [vmem:[%s1555 + $0x10] sm:$0xff]
        %v1559 = vld [vmem:[%s1555 + $0x18] sm:$0xff]
        %v1560 = vld [vmem:[%s1555 + $0x20] sm:$0xff]
        %v1561 = vld [vmem:[%s1555 + $0x28] sm:$0xff]
        %v1562 = vld [vmem:[%s1555 + $0x30] sm:$0xff]
        %v1563 = vld [vmem:[%s1555 + $0x38] sm:$0xff]
        %v1564 = vld [vmem:[%s1555 + $0x40] sm:$0xff]
        %v1565 = vld [vmem:[%s1555 + $0x48] sm:$0xff]
        %v1566 = vld [vmem:[%s1555 + $0x50] sm:$0xff]
        %v1567 = vld [vmem:[%s1555 + $0x58] sm:$0xff]
        %v1568 = vld [vmem:[%s1555 + $0x60] sm:$0xff]
        %v1569 = vld [vmem:[%s1555 + $0x68] sm:$0xff]
        %v1570 = vld [vmem:[%s1555 + $0x70] sm:$0xff]
        %v1571 = vld [vmem:[%s1555 + $0x78] sm:$0xff]
        %v1572 = vld [vmem:[%s1555 + $0x80] sm:$0xff]
        %v1573 = vld [vmem:[%s1555 + $0x88] sm:$0xff]
        %v1574 = vld [vmem:[%s1555 + $0x90] sm:$0xff]
        %v1575 = vld [vmem:[%s1555 + $0x98] sm:$0xff]
        %v1576 = vld [vmem:[%s1555 + $0xa0] sm:$0xff]
        %v1577 = vld [vmem:[%s1555 + $0xa8] sm:$0xff]
        %v1578 = vld [vmem:[%s1555 + $0xb0] sm:$0xff]
        %v1579 = vld [vmem:[%s1555 + $0xb8] sm:$0xff]
        %s1580 = scalar_lea.vmem [#allocation7], 384
        %v1581 = vld [vmem:[%s1580] sm:$0xf]
        %v1582 = vld [vmem:[%s1580 + $0x4] sm:$0xf]
        %v1583 = vld [vmem:[%s1580 + $0x8] sm:$0xf]
        %v1584 = vld [vmem:[%s1580 + $0xc] sm:$0xf]
        %v1585 = vld [vmem:[%s1580 + $0x10] sm:$0xf]
        %v1586 = vld [vmem:[%s1580 + $0x14] sm:$0xf]
        %v1587 = vld [vmem:[%s1580 + $0x18] sm:$0xf]
        %v1588 = vld [vmem:[%s1580 + $0x1c] sm:$0xf]
        %v1589 = vld [vmem:[%s1580 + $0x20] sm:$0xf]
        %v1590 = vld [vmem:[%s1580 + $0x24] sm:$0xf]
        %v1591 = vld [vmem:[%s1580 + $0x28] sm:$0xf]
        %v1592 = vld [vmem:[%s1580 + $0x2c] sm:$0xf]
        %v1593 = vld [vmem:[%s1580 + $0x30] sm:$0xf]
        %v1594 = vld [vmem:[%s1580 + $0x34] sm:$0xf]
        %v1595 = vld [vmem:[%s1580 + $0x38] sm:$0xf]
        %v1596 = vld [vmem:[%s1580 + $0x3c] sm:$0xf]
        %v1597 = vld [vmem:[%s1580 + $0x40] sm:$0xf]
        %v1598 = vld [vmem:[%s1580 + $0x44] sm:$0xf]
        %v1599 = vld [vmem:[%s1580 + $0x48] sm:$0xf]
        %v1600 = vld [vmem:[%s1580 + $0x4c] sm:$0xf]
        %v1601 = vld [vmem:[%s1580 + $0x50] sm:$0xf]
        %v1602 = vld [vmem:[%s1580 + $0x54] sm:$0xf]
        %v1603 = vld [vmem:[%s1580 + $0x58] sm:$0xf]
        %v1604 = vld [vmem:[%s1580 + $0x5c] sm:$0xf]
        %v1605 = vld [vmem:[%s1580 + $0x60] sm:$0xf]
        %v1606 = vld [vmem:[%s1580 + $0x64] sm:$0xf]
        %v1607 = vld [vmem:[%s1580 + $0x68] sm:$0xf]
        %v1608 = vld [vmem:[%s1580 + $0x6c] sm:$0xf]
        %v1609 = vld [vmem:[%s1580 + $0x70] sm:$0xf]
        %v1610 = vld [vmem:[%s1580 + $0x74] sm:$0xf]
        %v1611 = vld [vmem:[%s1580 + $0x78] sm:$0xf]
        %v1612 = vld [vmem:[%s1580 + $0x7c] sm:$0xf]
        %v1613 = vld [vmem:[%s1580 + $0x80] sm:$0xf]
        %v1614 = vld [vmem:[%s1580 + $0x84] sm:$0xf]
        %v1615 = vld [vmem:[%s1580 + $0x88] sm:$0xf]
        %v1616 = vld [vmem:[%s1580 + $0x8c] sm:$0xf]
        %v1617 = vld [vmem:[%s1580 + $0x90] sm:$0xf]
        %v1618 = vld [vmem:[%s1580 + $0x94] sm:$0xf]
        %v1619 = vld [vmem:[%s1580 + $0x98] sm:$0xf]
        %v1620 = vld [vmem:[%s1580 + $0x9c] sm:$0xf]
        %v1621 = vld [vmem:[%s1580 + $0xa0] sm:$0xf]
        %v1622 = vld [vmem:[%s1580 + $0xa4] sm:$0xf]
        %v1623 = vld [vmem:[%s1580 + $0xa8] sm:$0xf]
        %v1624 = vld [vmem:[%s1580 + $0xac] sm:$0xf]
        %v1625 = vld [vmem:[%s1580 + $0xb0] sm:$0xf]
        %v1626 = vld [vmem:[%s1580 + $0xb4] sm:$0xf]
        %v1627 = vld [vmem:[%s1580 + $0xb8] sm:$0xf]
        %v1628 = vld [vmem:[%s1580 + $0xbc] sm:$0xf]
        %v1677 = vunpack.c.l.b16 %v1581
        %v1678 = vunpack.c.l.b16 %v1582
        %v1679 = vunpack.c.l.b16 %v1583
        %v1680 = vunpack.c.l.b16 %v1584
        %v1681 = vunpack.c.l.b16 %v1585
        %v1682 = vunpack.c.l.b16 %v1586
        %v1683 = vunpack.c.l.b16 %v1587
        %v1684 = vunpack.c.l.b16 %v1588
        %v1685 = vunpack.c.l.b16 %v1589
        %v1686 = vunpack.c.l.b16 %v1590
        %v1687 = vunpack.c.l.b16 %v1591
        %v1688 = vunpack.c.l.b16 %v1592
        %v1689 = vunpack.c.l.b16 %v1593
        %v1690 = vunpack.c.l.b16 %v1594
        %v1691 = vunpack.c.l.b16 %v1595
        %v1692 = vunpack.c.l.b16 %v1596
        %v1693 = vunpack.c.l.b16 %v1597
        %v1694 = vunpack.c.l.b16 %v1598
        %v1695 = vunpack.c.l.b16 %v1599
        %v1696 = vunpack.c.l.b16 %v1600
        %v1697 = vunpack.c.l.b16 %v1601
        %v1698 = vunpack.c.l.b16 %v1602
        %v1699 = vunpack.c.l.b16 %v1603
        %v1700 = vunpack.c.l.b16 %v1604
        %v1701 = vunpack.c.l.b16 %v1605
        %v1702 = vunpack.c.l.b16 %v1606
        %v1703 = vunpack.c.l.b16 %v1607
        %v1704 = vunpack.c.l.b16 %v1608
        %v1705 = vunpack.c.l.b16 %v1609
        %v1706 = vunpack.c.l.b16 %v1610
        %v1707 = vunpack.c.l.b16 %v1611
        %v1708 = vunpack.c.l.b16 %v1612
        %v1709 = vunpack.c.l.b16 %v1613
        %v1710 = vunpack.c.l.b16 %v1614
        %v1711 = vunpack.c.l.b16 %v1615
        %v1712 = vunpack.c.l.b16 %v1616
        %v1713 = vunpack.c.l.b16 %v1617
        %v1714 = vunpack.c.l.b16 %v1618
        %v1715 = vunpack.c.l.b16 %v1619
        %v1716 = vunpack.c.l.b16 %v1620
        %v1717 = vunpack.c.l.b16 %v1621
        %v1718 = vunpack.c.l.b16 %v1622
        %v1719 = vunpack.c.l.b16 %v1623
        %v1720 = vunpack.c.l.b16 %v1624
        %v1721 = vunpack.c.l.b16 %v1625
        %v1722 = vunpack.c.l.b16 %v1626
        %v1723 = vunpack.c.l.b16 %v1627
        %v1724 = vunpack.c.l.b16 %v1628
        %v1725 = vpack.c.b16 %v1678, %v1677
        %v1726 = vpack.c.b16 %v1680, %v1679
        %v1727 = vpack.c.b16 %v1682, %v1681
        %v1728 = vpack.c.b16 %v1684, %v1683
        %v1729 = vpack.c.b16 %v1686, %v1685
        %v1730 = vpack.c.b16 %v1688, %v1687
        %v1731 = vpack.c.b16 %v1690, %v1689
        %v1732 = vpack.c.b16 %v1692, %v1691
        %v1733 = vpack.c.b16 %v1694, %v1693
        %v1734 = vpack.c.b16 %v1696, %v1695
        %v1735 = vpack.c.b16 %v1698, %v1697
        %v1736 = vpack.c.b16 %v1700, %v1699
        %v1737 = vpack.c.b16 %v1702, %v1701
        %v1738 = vpack.c.b16 %v1704, %v1703
        %v1739 = vpack.c.b16 %v1706, %v1705
        %v1740 = vpack.c.b16 %v1708, %v1707
        %v1741 = vpack.c.b16 %v1710, %v1709
        %v1742 = vpack.c.b16 %v1712, %v1711
        %v1743 = vpack.c.b16 %v1714, %v1713
        %v1744 = vpack.c.b16 %v1716, %v1715
        %v1745 = vpack.c.b16 %v1718, %v1717
        %v1746 = vpack.c.b16 %v1720, %v1719
        %v1747 = vpack.c.b16 %v1722, %v1721
        %v1748 = vpack.c.b16 %v1724, %v1723
        %1773 = vmatprep.subr.bf16.mxu0 0
        %1774 = vmatpush1.bf16.msra.mxu0 %v1725
        %1775 = vmatprep.subr.bf16.mxu0 0
        %1776 = vmatpush1.bf16.msra.mxu0 %v1726
        %1777 = vmatprep.subr.bf16.mxu0 0
        %1778 = vmatpush1.bf16.msra.mxu0 %v1727
        %1779 = vmatprep.subr.bf16.mxu0 0
        %1780 = vmatpush1.bf16.msra.mxu0 %v1728
        %1781 = vmatprep.subr.bf16.mxu0 0
        %1782 = vmatpush1.bf16.msra.mxu0 %v1729
        %1783 = vmatprep.subr.bf16.mxu0 0
        %1784 = vmatpush1.bf16.msra.mxu0 %v1730
        %1785 = vmatprep.subr.bf16.mxu0 0
        %1786 = vmatpush1.bf16.msra.mxu0 %v1731
        %1787 = vmatprep.subr.bf16.mxu0 0
        %1788 = vmatpush1.bf16.msra.mxu0 %v1732
        %1789 = vmatprep.subr.bf16.mxu0 0
        %1790 = vmatpush1.bf16.msra.mxu0 %v1733
        %1791 = vmatprep.subr.bf16.mxu0 0
        %1792 = vmatpush1.bf16.msra.mxu0 %v1734
        %1793 = vmatprep.subr.bf16.mxu0 0
        %1794 = vmatpush1.bf16.msra.mxu0 %v1735
        %1795 = vmatprep.subr.bf16.mxu0 0
        %1796 = vmatpush1.bf16.msra.mxu0 %v1736
        %1797 = vmatprep.subr.bf16.mxu0 0
        %1798 = vmatpush1.bf16.msra.mxu0 %v1737
        %1799 = vmatprep.subr.bf16.mxu0 0
        %1800 = vmatpush1.bf16.msra.mxu0 %v1738
        %1801 = vmatprep.subr.bf16.mxu0 0
        %1802 = vmatpush1.bf16.msra.mxu0 %v1739
        %1803 = vmatprep.subr.bf16.mxu0 0
        %1804 = vmatpush1.bf16.msra.mxu0 %v1740
        %1805 = vmatprep.mubr.bf16.mxu0 %v1557
        %1806 = vmatmul.mubr.bf16.gmra.mrb[0].mxu0 %v1556
        %v1807 = vpop.f32.mrb[0].mxu0
        %v1808 = vadd.f32 0.0, %v1807
        %v1809 = vpop.f32.mrb[0].mxu0
        %v1810 = vpop.f32.mrb[0].mxu0
        %v1811 = vadd.f32 0.0, %v1810
        %v1812 = vpop.f32.mrb[0].mxu0
        %1813 = vmatprep.mubr.bf16.mxu0 %v1560
        %1814 = vmatmul.mubr.bf16.gmra.mrb[0].mxu0 %v1559
        %v1815 = vpop.f32.mrb[0].mxu0
        %v1816 = vadd.f32 0.0, %v1815
        %v1817 = vpop.f32.mrb[0].mxu0
        %v1818 = vpop.f32.mrb[0].mxu0
        %v1819 = vadd.f32 0.0, %v1818
        %v1820 = vpop.f32.mrb[0].mxu0
        %1821 = vmatprep.mubr.bf16.mxu0 %v1563
        %1822 = vmatmul.mubr.bf16.gmra.mrb[0].mxu0 %v1562
        %v1823 = vpop.f32.mrb[0].mxu0
        %v1824 = vadd.f32 0.0, %v1823
        %v1825 = vpop.f32.mrb[0].mxu0
        %v1826 = vpop.f32.mrb[0].mxu0
        %v1827 = vadd.f32 0.0, %v1826
        %v1828 = vpop.f32.mrb[0].mxu0
        %1829 = vmatprep.mubr.bf16.mxu0 %v1566
        %1830 = vmatmul.mubr.bf16.gmra.mrb[0].mxu0 %v1565
        %v1831 = vpop.f32.mrb[0].mxu0
        %v1832 = vadd.f32 0.0, %v1831
        %v1833 = vpop.f32.mrb[0].mxu0
        %v1834 = vpop.f32.mrb[0].mxu0
        %v1835 = vadd.f32 0.0, %v1834
        %v1836 = vpop.f32.mrb[0].mxu0
        %1837 = vmatprep.mubr.bf16.mxu0 %v1569
        %1838 = vmatmul.mubr.bf16.gmra.mrb[0].mxu0 %v1568
        %v1839 = vpop.f32.mrb[0].mxu0
        %v1840 = vadd.f32 0.0, %v1839
        %v1841 = vpop.f32.mrb[0].mxu0
        %v1842 = vpop.f32.mrb[0].mxu0
        %v1843 = vadd.f32 0.0, %v1842
        %v1844 = vpop.f32.mrb[0].mxu0
        %1845 = vmatprep.mubr.bf16.mxu0 %v1572
        %1846 = vmatmul.mubr.bf16.gmra.mrb[0].mxu0 %v1571
        %v1847 = vpop.f32.mrb[0].mxu0
        %v1848 = vadd.f32 0.0, %v1847
        %v1849 = vpop.f32.mrb[0].mxu0
        %v1850 = vpop.f32.mrb[0].mxu0
        %v1851 = vadd.f32 0.0, %v1850
        %v1852 = vpop.f32.mrb[0].mxu0
        %1853 = vmatprep.mubr.bf16.mxu0 %v1575
        %1854 = vmatmul.mubr.bf16.gmra.mrb[0].mxu0 %v1574
        %v1855 = vpop.f32.mrb[0].mxu0
        %v1856 = vadd.f32 0.0, %v1855
        %v1857 = vpop.f32.mrb[0].mxu0
        %v1858 = vpop.f32.mrb[0].mxu0
        %v1859 = vadd.f32 0.0, %v1858
        %v1860 = vpop.f32.mrb[0].mxu0
        %1861 = vmatprep.mubr.bf16.mxu0 %v1578
        %1862 = vmatmul.mubr.bf16.gmra.mrb[0].mxu0 %v1577
        %v1863 = vpop.f32.mrb[0].mxu0
        %v1864 = vadd.f32 0.0, %v1863
        %v1865 = vpop.f32.mrb[0].mxu0
        %v1866 = vpop.f32.mrb[0].mxu0
        %v1867 = vadd.f32 0.0, %v1866
        %v1868 = vpop.f32.mrb[0].mxu0
        %1869 = vdwg.mxu0
        %1870 = vmatprep.subr.bf16.mxu0 0
        %1871 = vmatpush1.bf16.msra.mxu0 %v1741
        %1872 = vmatprep.subr.bf16.mxu0 0
        %1873 = vmatpush1.bf16.msra.mxu0 %v1742
        %1874 = vmatprep.subr.bf16.mxu0 0
        %1875 = vmatpush1.bf16.msra.mxu0 %v1743
        %1876 = vmatprep.subr.bf16.mxu0 0
        %1877 = vmatpush1.bf16.msra.mxu0 %v1744
        %1878 = vmatprep.subr.bf16.mxu0 0
        %1879 = vmatpush1.bf16.msra.mxu0 %v1745
        %1880 = vmatprep.subr.bf16.mxu0 0
        %1881 = vmatpush1.bf16.msra.mxu0 %v1746
        %1882 = vmatprep.subr.bf16.mxu0 0
        %1883 = vmatpush1.bf16.msra.mxu0 %v1747
        %1884 = vmatprep.subr.bf16.mxu0 0
        %1885 = vmatpush1.bf16.msra.mxu0 %v1748
        %1886 = vmatprep.subr.bf16.mxu0 0
        %1887 = vmatpush1.bf16.msra.mxu0 0
        %1888 = vmatprep.subr.bf16.mxu0 0
        %1889 = vmatpush1.bf16.msra.mxu0 0
        %1890 = vmatprep.subr.bf16.mxu0 0
        %1891 = vmatpush1.bf16.msra.mxu0 0
        %1892 = vmatprep.subr.bf16.mxu0 0
        %1893 = vmatpush1.bf16.msra.mxu0 0
        %1894 = vmatprep.subr.bf16.mxu0 0
        %1895 = vmatpush1.bf16.msra.mxu0 0
        %1896 = vmatprep.subr.bf16.mxu0 0
        %1897 = vmatpush1.bf16.msra.mxu0 0
        %1898 = vmatprep.subr.bf16.mxu0 0
        %1899 = vmatpush1.bf16.msra.mxu0 0
        %1900 = vmatprep.subr.bf16.mxu0 0
        %1901 = vmatpush1.bf16.msra.mxu0 0
        %1902 = vmatprep.mubr.bf16.mxu0 0
        %1903 = vmatmul.mubr.bf16.gmra.mrb[0].mxu0 %v1558
        %v1904 = vpop.f32.mrb[0].mxu0
        %v1905 = vadd.f32 %v1808, %v1904
        %v1906 = vpop.f32.mrb[0].mxu0
        %v1907 = vpop.f32.mrb[0].mxu0
        %v1908 = vadd.f32 %v1811, %v1907
        %v1909 = vpop.f32.mrb[0].mxu0
        %1910 = vmatprep.mubr.bf16.mxu0 0
        %1911 = vmatmul.mubr.bf16.gmra.mrb[0].mxu0 %v1561
        %v1912 = vpop.f32.mrb[0].mxu0
        %v1913 = vadd.f32 %v1816, %v1912
        %v1914 = vpop.f32.mrb[0].mxu0
        %v1915 = vpop.f32.mrb[0].mxu0
        %v1916 = vadd.f32 %v1819, %v1915
        %v1917 = vpop.f32.mrb[0].mxu0
        %1918 = vmatprep.mubr.bf16.mxu0 0
        %1919 = vmatmul.mubr.bf16.gmra.mrb[0].mxu0 %v1564
        %v1920 = vpop.f32.mrb[0].mxu0
        %v1921 = vadd.f32 %v1824, %v1920
        %v1922 = vpop.f32.mrb[0].mxu0
        %v1923 = vpop.f32.mrb[0].mxu0
        %v1924 = vadd.f32 %v1827, %v1923
        %v1925 = vpop.f32.mrb[0].mxu0
        %1926 = vmatprep.mubr.bf16.mxu0 0
        %1927 = vmatmul.mubr.bf16.gmra.mrb[0].mxu0 %v1567
        %v1928 = vpop.f32.mrb[0].mxu0
        %v1929 = vadd.f32 %v1832, %v1928
        %v1930 = vpop.f32.mrb[0].mxu0
        %v1931 = vpop.f32.mrb[0].mxu0
        %v1932 = vadd.f32 %v1835, %v1931
        %v1933 = vpop.f32.mrb[0].mxu0
        %1934 = vmatprep.mubr.bf16.mxu0 0
        %1935 = vmatmul.mubr.bf16.gmra.mrb[0].mxu0 %v1570
        %v1936 = vpop.f32.mrb[0].mxu0
        %v1937 = vadd.f32 %v1840, %v1936
        %v1938 = vpop.f32.mrb[0].mxu0
        %v1939 = vpop.f32.mrb[0].mxu0
        %v1940 = vadd.f32 %v1843, %v1939
        %v1941 = vpop.f32.mrb[0].mxu0
        %1942 = vmatprep.mubr.bf16.mxu0 0
        %1943 = vmatmul.mubr.bf16.gmra.mrb[0].mxu0 %v1573
        %v1944 = vpop.f32.mrb[0].mxu0
        %v1945 = vadd.f32 %v1848, %v1944
        %v1946 = vpop.f32.mrb[0].mxu0
        %v1947 = vpop.f32.mrb[0].mxu0
        %v1948 = vadd.f32 %v1851, %v1947
        %v1949 = vpop.f32.mrb[0].mxu0
        %1950 = vmatprep.mubr.bf16.mxu0 0
        %1951 = vmatmul.mubr.bf16.gmra.mrb[0].mxu0 %v1576
        %v1952 = vpop.f32.mrb[0].mxu0
        %v1953 = vadd.f32 %v1856, %v1952
        %v1954 = vpop.f32.mrb[0].mxu0
        %v1955 = vpop.f32.mrb[0].mxu0
        %v1956 = vadd.f32 %v1859, %v1955
        %v1957 = vpop.f32.mrb[0].mxu0
        %1958 = vmatprep.mubr.bf16.mxu0 0
        %1959 = vmatmul.mubr.bf16.gmra.mrb[0].mxu0 %v1579
        %v1960 = vpop.f32.mrb[0].mxu0
        %v1961 = vadd.f32 %v1864, %v1960
        %v1962 = vpop.f32.mrb[0].mxu0
        %v1963 = vpop.f32.mrb[0].mxu0
        %v1964 = vadd.f32 %v1867, %v1963
        %v1965 = vpop.f32.mrb[0].mxu0
        %1966 = vdwg.mxu0
        %v1967 = vadd.f32 %v1493, %v1905
        %v1968 = vadd.f32 %v1496, %v1908
        %v1969 = vadd.f32 %v1501, %v1913
        %v1970 = vadd.f32 %v1504, %v1916
        %v1971 = vadd.f32 %v1509, %v1921
        %v1972 = vadd.f32 %v1512, %v1924
        %v1973 = vadd.f32 %v1517, %v1929
        %v1974 = vadd.f32 %v1520, %v1932
        %v1975 = vadd.f32 %v1525, %v1937
        %v1976 = vadd.f32 %v1528, %v1940
        %v1977 = vadd.f32 %v1533, %v1945
        %v1978 = vadd.f32 %v1536, %v1948
        %v1979 = vadd.f32 %v1541, %v1953
        %v1980 = vadd.f32 %v1544, %v1956
        %v1981 = vadd.f32 %v1549, %v1961
        %v1982 = vadd.f32 %v1552, %v1964
        %v1983 = vld [vmem:[%s2] sm:$0x1]
        %v1985 = vlaneseq
        %v1986 = vshrl.u32 %v1985, 7
        %v1987 = vsub.s32 0, %v1986
        %v1988 = vrot.slane %v1983, %v1987
        %v1990 = vmul.f32 %v1967, %v1988
        %v1991 = vmul.f32 %v1968, %v1988
        %v1992 = vmul.f32 %v1969, %v1988
        %v1993 = vmul.f32 %v1970, %v1988
        %v1994 = vmul.f32 %v1971, %v1988
        %v1995 = vmul.f32 %v1972, %v1988
        %v1996 = vmul.f32 %v1973, %v1988
        %v1997 = vmul.f32 %v1974, %v1988
        %v1998 = vmul.f32 %v1975, %v1988
        %v1999 = vmul.f32 %v1976, %v1988
        %v2000 = vmul.f32 %v1977, %v1988
        %v2001 = vmul.f32 %v1978, %v1988
        %v2002 = vmul.f32 %v1979, %v1988
        %v2003 = vmul.f32 %v1980, %v1988
        %v2004 = vmul.f32 %v1981, %v1988
        %v2005 = vmul.f32 %v1982, %v1988
        %v2006 = vld [vmem:[%s3] sm:$0x1]
        %v2008 = vlaneseq
        %v2009 = vshrl.u32 %v2008, 7
        %v2010 = vsub.s32 0, %v2009
        %v2011 = vrot.slane %v2006, %v2010
        %v2013 = vadd.f32 %v1990, %v2011
        %v2014 = vadd.f32 %v1991, %v2011
        %v2015 = vadd.f32 %v1992, %v2011
        %v2016 = vadd.f32 %v1993, %v2011
        %v2017 = vadd.f32 %v1994, %v2011
        %v2018 = vadd.f32 %v1995, %v2011
        %v2019 = vadd.f32 %v1996, %v2011
        %v2020 = vadd.f32 %v1997, %v2011
        %v2021 = vadd.f32 %v1998, %v2011
        %v2022 = vadd.f32 %v1999, %v2011
        %v2023 = vadd.f32 %v2000, %v2011
        %v2024 = vadd.f32 %v2001, %v2011
        %v2025 = vadd.f32 %v2002, %v2011
        %v2026 = vadd.f32 %v2003, %v2011
        %v2027 = vadd.f32 %v2004, %v2011
        %v2028 = vadd.f32 %v2005, %v2011
        %v2029 = vmax.f32 %v2013, 0.0
        %v2030 = vmax.f32 %v2014, 0.0
        %v2031 = vmax.f32 %v2015, 0.0
        %v2032 = vmax.f32 %v2016, 0.0
        %v2033 = vmax.f32 %v2017, 0.0
        %v2034 = vmax.f32 %v2018, 0.0
        %v2035 = vmax.f32 %v2019, 0.0
        %v2036 = vmax.f32 %v2020, 0.0
        %v2037 = vmax.f32 %v2021, 0.0
        %v2038 = vmax.f32 %v2022, 0.0
        %v2039 = vmax.f32 %v2023, 0.0
        %v2040 = vmax.f32 %v2024, 0.0
        %v2041 = vmax.f32 %v2025, 0.0
        %v2042 = vmax.f32 %v2026, 0.0
        %v2043 = vmax.f32 %v2027, 0.0
        %v2044 = vmax.f32 %v2028, 0.0
        %v2045 = vpack.c.bf16 %v2030, %v2029
        %v2046 = vpack.c.bf16 %v2032, %v2031
        %v2047 = vpack.c.bf16 %v2034, %v2033
        %v2048 = vpack.c.bf16 %v2036, %v2035
        %v2049 = vpack.c.bf16 %v2038, %v2037
        %v2050 = vpack.c.bf16 %v2040, %v2039
        %v2051 = vpack.c.bf16 %v2042, %v2041
        %v2052 = vpack.c.bf16 %v2044, %v2043
        %v2054 = vshrl.u32 %v2045, 16
        %v2056 = vrot.slane %v2054, 7
        %v2057 = vshll.u32 %v2045, 16
        %v2059 = vor.u32 %v2056, %v2057
        %v2061 = vshrl.u32 %v2046, 16
        %v2063 = vrot.slane %v2061, 7
        %v2064 = vshll.u32 %v2046, 16
        %v2066 = vor.u32 %v2063, %v2064
        %v2068 = vshrl.u32 %v2047, 16
        %v2070 = vrot.slane %v2068, 7
        %v2071 = vshll.u32 %v2047, 16
        %v2073 = vor.u32 %v2070, %v2071
        %v2075 = vshrl.u32 %v2048, 16
        %v2077 = vrot.slane %v2075, 7
        %v2078 = vshll.u32 %v2048, 16
        %v2080 = vor.u32 %v2077, %v2078
        %v2082 = vshrl.u32 %v2049, 16
        %v2084 = vrot.slane %v2082, 7
        %v2085 = vshll.u32 %v2049, 16
        %v2087 = vor.u32 %v2084, %v2085
        %v2089 = vshrl.u32 %v2050, 16
        %v2091 = vrot.slane %v2089, 7
        %v2092 = vshll.u32 %v2050, 16
        %v2094 = vor.u32 %v2091, %v2092
        %v2096 = vshrl.u32 %v2051, 16
        %v2098 = vrot.slane %v2096, 7
        %v2099 = vshll.u32 %v2051, 16
        %v2101 = vor.u32 %v2098, %v2099
        %v2103 = vshrl.u32 %v2052, 16
        %v2105 = vrot.slane %v2103, 7
        %v2106 = vshll.u32 %v2052, 16
        %v2108 = vor.u32 %v2105, %v2106
        %v2117 = vsel %vm463, 0, %v2059
        %v2118 = vsel %vm463, 0, %v2066
        %v2119 = vsel %vm463, 0, %v2073
        %v2120 = vsel %vm463, 0, %v2080
        %v2121 = vsel %vm463, 0, %v2087
        %v2122 = vsel %vm463, 0, %v2094
        %v2123 = vsel %vm463, 0, %v2101
        %v2124 = vsel %vm463, 0, %v2108
        %v2125 = vrot.slane %v2057, 1
        %v2126 = vor.u32 %v2054, %v2125
        %v2127 = vrot.slane %v2064, 1
        %v2128 = vor.u32 %v2061, %v2127
        %v2129 = vrot.slane %v2071, 1
        %v2130 = vor.u32 %v2068, %v2129
        %v2131 = vrot.slane %v2078, 1
        %v2132 = vor.u32 %v2075, %v2131
        %v2133 = vrot.slane %v2085, 1
        %v2134 = vor.u32 %v2082, %v2133
        %v2135 = vrot.slane %v2092, 1
        %v2136 = vor.u32 %v2089, %v2135
        %v2137 = vrot.slane %v2099, 1
        %v2138 = vor.u32 %v2096, %v2137
        %v2139 = vrot.slane %v2106, 1
        %v2140 = vor.u32 %v2103, %v2139
        %v2149 = vsel %vm498, %v2126, 0
        %v2150 = vsel %vm498, %v2128, 0
        %v2151 = vsel %vm498, %v2130, 0
        %v2152 = vsel %vm498, %v2132, 0
        %v2153 = vsel %vm498, %v2134, 0
        %v2154 = vsel %vm498, %v2136, 0
        %v2155 = vsel %vm498, %v2138, 0
        %v2156 = vsel %vm498, %v2140, 0
        %s2157 = scalar_lea.vmem [#allocation3], 24
        %2158 = vst [vmem:[%s2157] sm:$0xff] %v2117
        %2159 = vst [vmem:[%s2157 + $0x18] sm:$0xff] %v2118
        %2160 = vst [vmem:[%s2157 + $0x30] sm:$0xff] %v2119
        %2161 = vst [vmem:[%s2157 + $0x48] sm:$0xff] %v2120
        %2162 = vst [vmem:[%s2157 + $0x60] sm:$0xff] %v2121
        %2163 = vst [vmem:[%s2157 + $0x78] sm:$0xff] %v2122
        %2164 = vst [vmem:[%s2157 + $0x90] sm:$0xff] %v2123
        %2165 = vst [vmem:[%s2157 + $0xa8] sm:$0xff] %v2124
        %2166 = vst [vmem:[%s2157 + $0x8] sm:$0xff] %v2045
        %2167 = vst [vmem:[%s2157 + $0x20] sm:$0xff] %v2046
        %2168 = vst [vmem:[%s2157 + $0x38] sm:$0xff] %v2047
        %2169 = vst [vmem:[%s2157 + $0x50] sm:$0xff] %v2048
        %2170 = vst [vmem:[%s2157 + $0x68] sm:$0xff] %v2049
        %2171 = vst [vmem:[%s2157 + $0x80] sm:$0xff] %v2050
        %2172 = vst [vmem:[%s2157 + $0x98] sm:$0xff] %v2051
        %2173 = vst [vmem:[%s2157 + $0xb0] sm:$0xff] %v2052
        %2174 = vst [vmem:[%s2157 + $0x10] sm:$0xff] %v2149
        %2175 = vst [vmem:[%s2157 + $0x28] sm:$0xff] %v2150
        %2176 = vst [vmem:[%s2157 + $0x40] sm:$0xff] %v2151
        %2177 = vst [vmem:[%s2157 + $0x58] sm:$0xff] %v2152
        %2178 = vst [vmem:[%s2157 + $0x70] sm:$0xff] %v2153
        %2179 = vst [vmem:[%s2157 + $0x88] sm:$0xff] %v2154
        %2180 = vst [vmem:[%s2157 + $0xa0] sm:$0xff] %v2155
        %2181 = vst [vmem:[%s2157 + $0xb8] sm:$0xff] %v2156
        %s2182 = scalar_lea.vmem [#allocation2], 192
        %v2183 = vld [vmem:[%s2182] sm:$0xff]
        %v2184 = vld [vmem:[%s2182 + $0x8] sm:$0xff]
        %v2185 = vld [vmem:[%s2182 + $0x10] sm:$0xff]
        %v2186 = vld [vmem:[%s2182 + $0x18] sm:$0xff]
        %v2187 = vld [vmem:[%s2182 + $0x20] sm:$0xff]
        %v2188 = vld [vmem:[%s2182 + $0x28] sm:$0xff]
        %v2189 = vld [vmem:[%s2182 + $0x30] sm:$0xff]
        %v2190 = vld [vmem:[%s2182 + $0x38] sm:$0xff]
        %v2191 = vld [vmem:[%s2182 + $0x40] sm:$0xff]
        %v2192 = vld [vmem:[%s2182 + $0x48] sm:$0xff]
        %v2193 = vld [vmem:[%s2182 + $0x50] sm:$0xff]
        %v2194 = vld [vmem:[%s2182 + $0x58] sm:$0xff]
        %v2195 = vld [vmem:[%s2182 + $0x60] sm:$0xff]
        %v2196 = vld [vmem:[%s2182 + $0x68] sm:$0xff]
        %v2197 = vld [vmem:[%s2182 + $0x70] sm:$0xff]
        %v2198 = vld [vmem:[%s2182 + $0x78] sm:$0xff]
        %v2199 = vld [vmem:[%s2182 + $0x80] sm:$0xff]
        %v2200 = vld [vmem:[%s2182 + $0x88] sm:$0xff]
        %v2201 = vld [vmem:[%s2182 + $0x90] sm:$0xff]
        %v2202 = vld [vmem:[%s2182 + $0x98] sm:$0xff]
        %v2203 = vld [vmem:[%s2182 + $0xa0] sm:$0xff]
        %v2204 = vld [vmem:[%s2182 + $0xa8] sm:$0xff]
        %v2205 = vld [vmem:[%s2182 + $0xb0] sm:$0xff]
        %v2206 = vld [vmem:[%s2182 + $0xb8] sm:$0xff]
        %v2207 = vld [vmem:[#allocation7] sm:$0xf]
        %v2208 = vld [vmem:[#allocation7 + $0x4] sm:$0xf]
        %v2209 = vld [vmem:[#allocation7 + $0x8] sm:$0xf]
        %v2210 = vld [vmem:[#allocation7 + $0xc] sm:$0xf]
        %v2211 = vld [vmem:[#allocation7 + $0x10] sm:$0xf]
        %v2212 = vld [vmem:[#allocation7 + $0x14] sm:$0xf]
        %v2213 = vld [vmem:[#allocation7 + $0x18] sm:$0xf]
        %v2214 = vld [vmem:[#allocation7 + $0x1c] sm:$0xf]
        %v2215 = vld [vmem:[#allocation7 + $0x20] sm:$0xf]
        %v2216 = vld [vmem:[#allocation7 + $0x24] sm:$0xf]
        %v2217 = vld [vmem:[#allocation7 + $0x28] sm:$0xf]
        %v2218 = vld [vmem:[#allocation7 + $0x2c] sm:$0xf]
        %v2219 = vld [vmem:[#allocation7 + $0x30] sm:$0xf]
        %v2220 = vld [vmem:[#allocation7 + $0x34] sm:$0xf]
        %v2221 = vld [vmem:[#allocation7 + $0x38] sm:$0xf]
        %v2222 = vld [vmem:[#allocation7 + $0x3c] sm:$0xf]
        %v2223 = vld [vmem:[#allocation7 + $0x40] sm:$0xf]
        %v2224 = vld [vmem:[#allocation7 + $0x44] sm:$0xf]
        %v2225 = vld [vmem:[#allocation7 + $0x48] sm:$0xf]
        %v2226 = vld [vmem:[#allocation7 + $0x4c] sm:$0xf]
        %v2227 = vld [vmem:[#allocation7 + $0x50] sm:$0xf]
        %v2228 = vld [vmem:[#allocation7 + $0x54] sm:$0xf]
        %v2229 = vld [vmem:[#allocation7 + $0x58] sm:$0xf]
        %v2230 = vld [vmem:[#allocation7 + $0x5c] sm:$0xf]
        %v2231 = vld [vmem:[#allocation7 + $0x60] sm:$0xf]
        %v2232 = vld [vmem:[#allocation7 + $0x64] sm:$0xf]
        %v2233 = vld [vmem:[#allocation7 + $0x68] sm:$0xf]
        %v2234 = vld [vmem:[#allocation7 + $0x6c] sm:$0xf]
        %v2235 = vld [vmem:[#allocation7 + $0x70] sm:$0xf]
        %v2236 = vld [vmem:[#allocation7 + $0x74] sm:$0xf]
        %v2237 = vld [vmem:[#allocation7 + $0x78] sm:$0xf]
        %v2238 = vld [vmem:[#allocation7 + $0x7c] sm:$0xf]
        %v2239 = vld [vmem:[#allocation7 + $0x80] sm:$0xf]
        %v2240 = vld [vmem:[#allocation7 + $0x84] sm:$0xf]
        %v2241 = vld [vmem:[#allocation7 + $0x88] sm:$0xf]
        %v2242 = vld [vmem:[#allocation7 + $0x8c] sm:$0xf]
        %v2243 = vld [vmem:[#allocation7 + $0x90] sm:$0xf]
        %v2244 = vld [vmem:[#allocation7 + $0x94] sm:$0xf]
        %v2245 = vld [vmem:[#allocation7 + $0x98] sm:$0xf]
        %v2246 = vld [vmem:[#allocation7 + $0x9c] sm:$0xf]
        %v2247 = vld [vmem:[#allocation7 + $0xa0] sm:$0xf]
        %v2248 = vld [vmem:[#allocation7 + $0xa4] sm:$0xf]
        %v2249 = vld [vmem:[#allocation7 + $0xa8] sm:$0xf]
        %v2250 = vld [vmem:[#allocation7 + $0xac] sm:$0xf]
        %v2251 = vld [vmem:[#allocation7 + $0xb0] sm:$0xf]
        %v2252 = vld [vmem:[#allocation7 + $0xb4] sm:$0xf]
        %v2253 = vld [vmem:[#allocation7 + $0xb8] sm:$0xf]
        %v2254 = vld [vmem:[#allocation7 + $0xbc] sm:$0xf]
        %v2255 = vld [vmem:[%s701] sm:$0xff]
        %v2256 = vld [vmem:[%s701 + $0x8] sm:$0xff]
        %v2257 = vld [vmem:[%s701 + $0x10] sm:$0xff]
        %v2258 = vld [vmem:[%s701 + $0x18] sm:$0xff]
        %v2259 = vld [vmem:[%s701 + $0x20] sm:$0xff]
        %v2260 = vld [vmem:[%s701 + $0x28] sm:$0xff]
        %v2261 = vld [vmem:[%s701 + $0x30] sm:$0xff]
        %v2262 = vld [vmem:[%s701 + $0x38] sm:$0xff]
        %v2263 = vld [vmem:[%s701 + $0x40] sm:$0xff]
        %v2264 = vld [vmem:[%s701 + $0x48] sm:$0xff]
        %v2265 = vld [vmem:[%s701 + $0x50] sm:$0xff]
        %v2266 = vld [vmem:[%s701 + $0x58] sm:$0xff]
        %v2267 = vld [vmem:[%s701 + $0x60] sm:$0xff]
        %v2268 = vld [vmem:[%s701 + $0x68] sm:$0xff]
        %v2269 = vld [vmem:[%s701 + $0x70] sm:$0xff]
        %v2270 = vld [vmem:[%s701 + $0x78] sm:$0xff]
        %v2271 = vld [vmem:[%s701 + $0x80] sm:$0xff]
        %v2272 = vld [vmem:[%s701 + $0x88] sm:$0xff]
        %v2273 = vld [vmem:[%s701 + $0x90] sm:$0xff]
        %v2274 = vld [vmem:[%s701 + $0x98] sm:$0xff]
        %v2275 = vld [vmem:[%s701 + $0xa0] sm:$0xff]
        %v2276 = vld [vmem:[%s701 + $0xa8] sm:$0xff]
        %v2277 = vld [vmem:[%s701 + $0xb0] sm:$0xff]
        %v2278 = vld [vmem:[%s701 + $0xb8] sm:$0xff]
        %v2279 = vld [vmem:[%s830] sm:$0xf]
        %v2280 = vld [vmem:[%s830 + $0x4] sm:$0xf]
        %v2281 = vld [vmem:[%s830 + $0x8] sm:$0xf]
        %v2282 = vld [vmem:[%s830 + $0xc] sm:$0xf]
        %v2283 = vld [vmem:[%s830 + $0x10] sm:$0xf]
        %v2284 = vld [vmem:[%s830 + $0x14] sm:$0xf]
        %v2285 = vld [vmem:[%s830 + $0x18] sm:$0xf]
        %v2286 = vld [vmem:[%s830 + $0x1c] sm:$0xf]
        %v2287 = vld [vmem:[%s830 + $0x20] sm:$0xf]
        %v2288 = vld [vmem:[%s830 + $0x24] sm:$0xf]
        %v2289 = vld [vmem:[%s830 + $0x28] sm:$0xf]
        %v2290 = vld [vmem:[%s830 + $0x2c] sm:$0xf]
        %v2291 = vld [vmem:[%s830 + $0x30] sm:$0xf]
        %v2292 = vld [vmem:[%s830 + $0x34] sm:$0xf]
        %v2293 = vld [vmem:[%s830 + $0x38] sm:$0xf]
        %v2294 = vld [vmem:[%s830 + $0x3c] sm:$0xf]
        %v2295 = vld [vmem:[%s830 + $0x40] sm:$0xf]
        %v2296 = vld [vmem:[%s830 + $0x44] sm:$0xf]
        %v2297 = vld [vmem:[%s830 + $0x48] sm:$0xf]
        %v2298 = vld [vmem:[%s830 + $0x4c] sm:$0xf]
        %v2299 = vld [vmem:[%s830 + $0x50] sm:$0xf]
        %v2300 = vld [vmem:[%s830 + $0x54] sm:$0xf]
        %v2301 = vld [vmem:[%s830 + $0x58] sm:$0xf]
        %v2302 = vld [vmem:[%s830 + $0x5c] sm:$0xf]
        %v2303 = vld [vmem:[%s830 + $0x60] sm:$0xf]
        %v2304 = vld [vmem:[%s830 + $0x64] sm:$0xf]
        %v2305 = vld [vmem:[%s830 + $0x68] sm:$0xf]
        %v2306 = vld [vmem:[%s830 + $0x6c] sm:$0xf]
        %v2307 = vld [vmem:[%s830 + $0x70] sm:$0xf]
        %v2308 = vld [vmem:[%s830 + $0x74] sm:$0xf]
        %v2309 = vld [vmem:[%s830 + $0x78] sm:$0xf]
        %v2310 = vld [vmem:[%s830 + $0x7c] sm:$0xf]
        %v2311 = vld [vmem:[%s830 + $0x80] sm:$0xf]
        %v2312 = vld [vmem:[%s830 + $0x84] sm:$0xf]
        %v2313 = vld [vmem:[%s830 + $0x88] sm:$0xf]
        %v2314 = vld [vmem:[%s830 + $0x8c] sm:$0xf]
        %v2315 = vld [vmem:[%s830 + $0x90] sm:$0xf]
        %v2316 = vld [vmem:[%s830 + $0x94] sm:$0xf]
        %v2317 = vld [vmem:[%s830 + $0x98] sm:$0xf]
        %v2318 = vld [vmem:[%s830 + $0x9c] sm:$0xf]
        %v2319 = vld [vmem:[%s830 + $0xa0] sm:$0xf]
        %v2320 = vld [vmem:[%s830 + $0xa4] sm:$0xf]
        %v2321 = vld [vmem:[%s830 + $0xa8] sm:$0xf]
        %v2322 = vld [vmem:[%s830 + $0xac] sm:$0xf]
        %v2323 = vld [vmem:[%s830 + $0xb0] sm:$0xf]
        %v2324 = vld [vmem:[%s830 + $0xb4] sm:$0xf]
        %v2325 = vld [vmem:[%s830 + $0xb8] sm:$0xf]
        %v2326 = vld [vmem:[%s830 + $0xbc] sm:$0xf]
        %v2375 = vunpack.c.l.b16 %v2279
        %v2376 = vunpack.c.l.b16 %v2280
        %v2377 = vunpack.c.l.b16 %v2281
        %v2378 = vunpack.c.l.b16 %v2282
        %v2379 = vunpack.c.l.b16 %v2283
        %v2380 = vunpack.c.l.b16 %v2284
        %v2381 = vunpack.c.l.b16 %v2285
        %v2382 = vunpack.c.l.b16 %v2286
        %v2383 = vunpack.c.l.b16 %v2287
        %v2384 = vunpack.c.l.b16 %v2288
        %v2385 = vunpack.c.l.b16 %v2289
        %v2386 = vunpack.c.l.b16 %v2290
        %v2387 = vunpack.c.l.b16 %v2291
        %v2388 = vunpack.c.l.b16 %v2292
        %v2389 = vunpack.c.l.b16 %v2293
        %v2390 = vunpack.c.l.b16 %v2294
        %v2391 = vunpack.c.l.b16 %v2295
        %v2392 = vunpack.c.l.b16 %v2296
        %v2393 = vunpack.c.l.b16 %v2297
        %v2394 = vunpack.c.l.b16 %v2298
        %v2395 = vunpack.c.l.b16 %v2299
        %v2396 = vunpack.c.l.b16 %v2300
        %v2397 = vunpack.c.l.b16 %v2301
        %v2398 = vunpack.c.l.b16 %v2302
        %v2399 = vunpack.c.l.b16 %v2303
        %v2400 = vunpack.c.l.b16 %v2304
        %v2401 = vunpack.c.l.b16 %v2305
        %v2402 = vunpack.c.l.b16 %v2306
        %v2403 = vunpack.c.l.b16 %v2307
        %v2404 = vunpack.c.l.b16 %v2308
        %v2405 = vunpack.c.l.b16 %v2309
        %v2406 = vunpack.c.l.b16 %v2310
        %v2407 = vunpack.c.l.b16 %v2311
        %v2408 = vunpack.c.l.b16 %v2312
        %v2409 = vunpack.c.l.b16 %v2313
        %v2410 = vunpack.c.l.b16 %v2314
        %v2411 = vunpack.c.l.b16 %v2315
        %v2412 = vunpack.c.l.b16 %v2316
        %v2413 = vunpack.c.l.b16 %v2317
        %v2414 = vunpack.c.l.b16 %v2318
        %v2415 = vunpack.c.l.b16 %v2319
        %v2416 = vunpack.c.l.b16 %v2320
        %v2417 = vunpack.c.l.b16 %v2321
        %v2418 = vunpack.c.l.b16 %v2322
        %v2419 = vunpack.c.l.b16 %v2323
        %v2420 = vunpack.c.l.b16 %v2324
        %v2421 = vunpack.c.l.b16 %v2325
        %v2422 = vunpack.c.l.b16 %v2326
        %v2423 = vpack.c.b16 %v2376, %v2375
        %v2424 = vpack.c.b16 %v2378, %v2377
        %v2425 = vpack.c.b16 %v2380, %v2379
        %v2426 = vpack.c.b16 %v2382, %v2381
        %v2427 = vpack.c.b16 %v2384, %v2383
        %v2428 = vpack.c.b16 %v2386, %v2385
        %v2429 = vpack.c.b16 %v2388, %v2387
        %v2430 = vpack.c.b16 %v2390, %v2389
        %v2431 = vpack.c.b16 %v2392, %v2391
        %v2432 = vpack.c.b16 %v2394, %v2393
        %v2433 = vpack.c.b16 %v2396, %v2395
        %v2434 = vpack.c.b16 %v2398, %v2397
        %v2435 = vpack.c.b16 %v2400, %v2399
        %v2436 = vpack.c.b16 %v2402, %v2401
        %v2437 = vpack.c.b16 %v2404, %v2403
        %v2438 = vpack.c.b16 %v2406, %v2405
        %v2439 = vpack.c.b16 %v2408, %v2407
        %v2440 = vpack.c.b16 %v2410, %v2409
        %v2441 = vpack.c.b16 %v2412, %v2411
        %v2442 = vpack.c.b16 %v2414, %v2413
        %v2443 = vpack.c.b16 %v2416, %v2415
        %v2444 = vpack.c.b16 %v2418, %v2417
        %v2445 = vpack.c.b16 %v2420, %v2419
        %v2446 = vpack.c.b16 %v2422, %v2421
        %2471 = vmatprep.subr.bf16.mxu0 0
        %2472 = vmatpush1.bf16.msra.mxu0 %v2423
        %2473 = vmatprep.subr.bf16.mxu0 0
        %2474 = vmatpush1.bf16.msra.mxu0 %v2424
        %2475 = vmatprep.subr.bf16.mxu0 0
        %2476 = vmatpush1.bf16.msra.mxu0 %v2425
        %2477 = vmatprep.subr.bf16.mxu0 0
        %2478 = vmatpush1.bf16.msra.mxu0 %v2426
        %2479 = vmatprep.subr.bf16.mxu0 0
        %2480 = vmatpush1.bf16.msra.mxu0 %v2427
        %2481 = vmatprep.subr.bf16.mxu0 0
        %2482 = vmatpush1.bf16.msra.mxu0 %v2428
        %2483 = vmatprep.subr.bf16.mxu0 0
        %2484 = vmatpush1.bf16.msra.mxu0 %v2429
        %2485 = vmatprep.subr.bf16.mxu0 0
        %2486 = vmatpush1.bf16.msra.mxu0 %v2430
        %2487 = vmatprep.subr.bf16.mxu0 0
        %2488 = vmatpush1.bf16.msra.mxu0 %v2431
        %2489 = vmatprep.subr.bf16.mxu0 0
        %2490 = vmatpush1.bf16.msra.mxu0 %v2432
        %2491 = vmatprep.subr.bf16.mxu0 0
        %2492 = vmatpush1.bf16.msra.mxu0 %v2433
        %2493 = vmatprep.subr.bf16.mxu0 0
        %2494 = vmatpush1.bf16.msra.mxu0 %v2434
        %2495 = vmatprep.subr.bf16.mxu0 0
        %2496 = vmatpush1.bf16.msra.mxu0 %v2435
        %2497 = vmatprep.subr.bf16.mxu0 0
        %2498 = vmatpush1.bf16.msra.mxu0 %v2436
        %2499 = vmatprep.subr.bf16.mxu0 0
        %2500 = vmatpush1.bf16.msra.mxu0 %v2437
        %2501 = vmatprep.subr.bf16.mxu0 0
        %2502 = vmatpush1.bf16.msra.mxu0 %v2438
        %2503 = vmatprep.mubr.bf16.mxu0 %v2256
        %2504 = vmatmul.mubr.bf16.gmra.mrb[0].mxu0 %v2255
        %v2505 = vpop.f32.mrb[0].mxu0
        %v2506 = vadd.f32 0.0, %v2505
        %v2507 = vpop.f32.mrb[0].mxu0
        %v2508 = vpop.f32.mrb[0].mxu0
        %v2509 = vadd.f32 0.0, %v2508
        %v2510 = vpop.f32.mrb[0].mxu0
        %2511 = vmatprep.mubr.bf16.mxu0 %v2259
        %2512 = vmatmul.mubr.bf16.gmra.mrb[0].mxu0 %v2258
        %v2513 = vpop.f32.mrb[0].mxu0
        %v2514 = vadd.f32 0.0, %v2513
        %v2515 = vpop.f32.mrb[0].mxu0
        %v2516 = vpop.f32.mrb[0].mxu0
        %v2517 = vadd.f32 0.0, %v2516
        %v2518 = vpop.f32.mrb[0].mxu0
        %2519 = vmatprep.mubr.bf16.mxu0 %v2262
        %2520 = vmatmul.mubr.bf16.gmra.mrb[0].mxu0 %v2261
        %v2521 = vpop.f32.mrb[0].mxu0
        %v2522 = vadd.f32 0.0, %v2521
        %v2523 = vpop.f32.mrb[0].mxu0
        %v2524 = vpop.f32.mrb[0].mxu0
        %v2525 = vadd.f32 0.0, %v2524
        %v2526 = vpop.f32.mrb[0].mxu0
        %2527 = vmatprep.mubr.bf16.mxu0 %v2265
        %2528 = vmatmul.mubr.bf16.gmra.mrb[0].mxu0 %v2264
        %v2529 = vpop.f32.mrb[0].mxu0
        %v2530 = vadd.f32 0.0, %v2529
        %v2531 = vpop.f32.mrb[0].mxu0
        %v2532 = vpop.f32.mrb[0].mxu0
        %v2533 = vadd.f32 0.0, %v2532
        %v2534 = vpop.f32.mrb[0].mxu0
        %2535 = vmatprep.mubr.bf16.mxu0 %v2268
        %2536 = vmatmul.mubr.bf16.gmra.mrb[0].mxu0 %v2267
        %v2537 = vpop.f32.mrb[0].mxu0
        %v2538 = vadd.f32 0.0, %v2537
        %v2539 = vpop.f32.mrb[0].mxu0
        %v2540 = vpop.f32.mrb[0].mxu0
        %v2541 = vadd.f32 0.0, %v2540
        %v2542 = vpop.f32.mrb[0].mxu0
        %2543 = vmatprep.mubr.bf16.mxu0 %v2271
        %2544 = vmatmul.mubr.bf16.gmra.mrb[0].mxu0 %v2270
        %v2545 = vpop.f32.mrb[0].mxu0
        %v2546 = vadd.f32 0.0, %v2545
        %v2547 = vpop.f32.mrb[0].mxu0
        %v2548 = vpop.f32.mrb[0].mxu0
        %v2549 = vadd.f32 0.0, %v2548
        %v2550 = vpop.f32.mrb[0].mxu0
        %2551 = vmatprep.mubr.bf16.mxu0 %v2274
        %2552 = vmatmul.mubr.bf16.gmra.mrb[0].mxu0 %v2273
        %v2553 = vpop.f32.mrb[0].mxu0
        %v2554 = vadd.f32 0.0, %v2553
        %v2555 = vpop.f32.mrb[0].mxu0
        %v2556 = vpop.f32.mrb[0].mxu0
        %v2557 = vadd.f32 0.0, %v2556
        %v2558 = vpop.f32.mrb[0].mxu0
        %2559 = vmatprep.mubr.bf16.mxu0 %v2277
        %2560 = vmatmul.mubr.bf16.gmra.mrb[0].mxu0 %v2276
        %v2561 = vpop.f32.mrb[0].mxu0
        %v2562 = vadd.f32 0.0, %v2561
        %v2563 = vpop.f32.mrb[0].mxu0
        %v2564 = vpop.f32.mrb[0].mxu0
        %v2565 = vadd.f32 0.0, %v2564
        %v2566 = vpop.f32.mrb[0].mxu0
        %2567 = vdwg.mxu0
        %2568 = vmatprep.subr.bf16.mxu0 0
        %2569 = vmatpush1.bf16.msra.mxu0 %v2439
        %2570 = vmatprep.subr.bf16.mxu0 0
        %2571 = vmatpush1.bf16.msra.mxu0 %v2440
        %2572 = vmatprep.subr.bf16.mxu0 0
        %2573 = vmatpush1.bf16.msra.mxu0 %v2441
        %2574 = vmatprep.subr.bf16.mxu0 0
        %2575 = vmatpush1.bf16.msra.mxu0 %v2442
        %2576 = vmatprep.subr.bf16.mxu0 0
        %2577 = vmatpush1.bf16.msra.mxu0 %v2443
        %2578 = vmatprep.subr.bf16.mxu0 0
        %2579 = vmatpush1.bf16.msra.mxu0 %v2444
        %2580 = vmatprep.subr.bf16.mxu0 0
        %2581 = vmatpush1.bf16.msra.mxu0 %v2445
        %2582 = vmatprep.subr.bf16.mxu0 0
        %2583 = vmatpush1.bf16.msra.mxu0 %v2446
        %2584 = vmatprep.subr.bf16.mxu0 0
        %2585 = vmatpush1.bf16.msra.mxu0 0
        %2586 = vmatprep.subr.bf16.mxu0 0
        %2587 = vmatpush1.bf16.msra.mxu0 0
        %2588 = vmatprep.subr.bf16.mxu0 0
        %2589 = vmatpush1.bf16.msra.mxu0 0
        %2590 = vmatprep.subr.bf16.mxu0 0
        %2591 = vmatpush1.bf16.msra.mxu0 0
        %2592 = vmatprep.subr.bf16.mxu0 0
        %2593 = vmatpush1.bf16.msra.mxu0 0
        %2594 = vmatprep.subr.bf16.mxu0 0
        %2595 = vmatpush1.bf16.msra.mxu0 0
        %2596 = vmatprep.subr.bf16.mxu0 0
        %2597 = vmatpush1.bf16.msra.mxu0 0
        %2598 = vmatprep.subr.bf16.mxu0 0
        %2599 = vmatpush1.bf16.msra.mxu0 0
        %2600 = vmatprep.mubr.bf16.mxu0 0
        %2601 = vmatmul.mubr.bf16.gmra.mrb[0].mxu0 %v2257
        %v2602 = vpop.f32.mrb[0].mxu0
        %v2603 = vadd.f32 %v2506, %v2602
        %v2604 = vpop.f32.mrb[0].mxu0
        %v2605 = vpop.f32.mrb[0].mxu0
        %v2606 = vadd.f32 %v2509, %v2605
        %v2607 = vpop.f32.mrb[0].mxu0
        %2608 = vmatprep.mubr.bf16.mxu0 0
        %2609 = vmatmul.mubr.bf16.gmra.mrb[0].mxu0 %v2260
        %v2610 = vpop.f32.mrb[0].mxu0
        %v2611 = vadd.f32 %v2514, %v2610
        %v2612 = vpop.f32.mrb[0].mxu0
        %v2613 = vpop.f32.mrb[0].mxu0
        %v2614 = vadd.f32 %v2517, %v2613
        %v2615 = vpop.f32.mrb[0].mxu0
        %2616 = vmatprep.mubr.bf16.mxu0 0
        %2617 = vmatmul.mubr.bf16.gmra.mrb[0].mxu0 %v2263
        %v2618 = vpop.f32.mrb[0].mxu0
        %v2619 = vadd.f32 %v2522, %v2618
        %v2620 = vpop.f32.mrb[0].mxu0
        %v2621 = vpop.f32.mrb[0].mxu0
        %v2622 = vadd.f32 %v2525, %v2621
        %v2623 = vpop.f32.mrb[0].mxu0
        %2624 = vmatprep.mubr.bf16.mxu0 0
        %2625 = vmatmul.mubr.bf16.gmra.mrb[0].mxu0 %v2266
        %v2626 = vpop.f32.mrb[0].mxu0
        %v2627 = vadd.f32 %v2530, %v2626
        %v2628 = vpop.f32.mrb[0].mxu0
        %v2629 = vpop.f32.mrb[0].mxu0
        %v2630 = vadd.f32 %v2533, %v2629
        %v2631 = vpop.f32.mrb[0].mxu0
        %2632 = vmatprep.mubr.bf16.mxu0 0
        %2633 = vmatmul.mubr.bf16.gmra.mrb[0].mxu0 %v2269
        %v2634 = vpop.f32.mrb[0].mxu0
        %v2635 = vadd.f32 %v2538, %v2634
        %v2636 = vpop.f32.mrb[0].mxu0
        %v2637 = vpop.f32.mrb[0].mxu0
        %v2638 = vadd.f32 %v2541, %v2637
        %v2639 = vpop.f32.mrb[0].mxu0
        %2640 = vmatprep.mubr.bf16.mxu0 0
        %2641 = vmatmul.mubr.bf16.gmra.mrb[0].mxu0 %v2272
        %v2642 = vpop.f32.mrb[0].mxu0
        %v2643 = vadd.f32 %v2546, %v2642
        %v2644 = vpop.f32.mrb[0].mxu0
        %v2645 = vpop.f32.mrb[0].mxu0
        %v2646 = vadd.f32 %v2549, %v2645
        %v2647 = vpop.f32.mrb[0].mxu0
        %2648 = vmatprep.mubr.bf16.mxu0 0
        %2649 = vmatmul.mubr.bf16.gmra.mrb[0].mxu0 %v2275
        %v2650 = vpop.f32.mrb[0].mxu0
        %v2651 = vadd.f32 %v2554, %v2650
        %v2652 = vpop.f32.mrb[0].mxu0
        %v2653 = vpop.f32.mrb[0].mxu0
        %v2654 = vadd.f32 %v2557, %v2653
        %v2655 = vpop.f32.mrb[0].mxu0
        %2656 = vmatprep.mubr.bf16.mxu0 0
        %2657 = vmatmul.mubr.bf16.gmra.mrb[0].mxu0 %v2278
        %v2658 = vpop.f32.mrb[0].mxu0
        %v2659 = vadd.f32 %v2562, %v2658
        %v2660 = vpop.f32.mrb[0].mxu0
        %v2661 = vpop.f32.mrb[0].mxu0
        %v2662 = vadd.f32 %v2565, %v2661
        %v2663 = vpop.f32.mrb[0].mxu0
        %2664 = vdwg.mxu0
        %v2713 = vunpack.c.l.b16 %v2207
        %v2714 = vunpack.c.l.b16 %v2208
        %v2715 = vunpack.c.l.b16 %v2209
        %v2716 = vunpack.c.l.b16 %v2210
        %v2717 = vunpack.c.l.b16 %v2211
        %v2718 = vunpack.c.l.b16 %v2212
        %v2719 = vunpack.c.l.b16 %v2213
        %v2720 = vunpack.c.l.b16 %v2214
        %v2721 = vunpack.c.l.b16 %v2215
        %v2722 = vunpack.c.l.b16 %v2216
        %v2723 = vunpack.c.l.b16 %v2217
        %v2724 = vunpack.c.l.b16 %v2218
        %v2725 = vunpack.c.l.b16 %v2219
        %v2726 = vunpack.c.l.b16 %v2220
        %v2727 = vunpack.c.l.b16 %v2221
        %v2728 = vunpack.c.l.b16 %v2222
        %v2729 = vunpack.c.l.b16 %v2223
        %v2730 = vunpack.c.l.b16 %v2224
        %v2731 = vunpack.c.l.b16 %v2225
        %v2732 = vunpack.c.l.b16 %v2226
        %v2733 = vunpack.c.l.b16 %v2227
        %v2734 = vunpack.c.l.b16 %v2228
        %v2735 = vunpack.c.l.b16 %v2229
        %v2736 = vunpack.c.l.b16 %v2230
        %v2737 = vunpack.c.l.b16 %v2231
        %v2738 = vunpack.c.l.b16 %v2232
        %v2739 = vunpack.c.l.b16 %v2233
        %v2740 = vunpack.c.l.b16 %v2234
        %v2741 = vunpack.c.l.b16 %v2235
        %v2742 = vunpack.c.l.b16 %v2236
        %v2743 = vunpack.c.l.b16 %v2237
        %v2744 = vunpack.c.l.b16 %v2238
        %v2745 = vunpack.c.l.b16 %v2239
        %v2746 = vunpack.c.l.b16 %v2240
        %v2747 = vunpack.c.l.b16 %v2241
        %v2748 = vunpack.c.l.b16 %v2242
        %v2749 = vunpack.c.l.b16 %v2243
        %v2750 = vunpack.c.l.b16 %v2244
        %v2751 = vunpack.c.l.b16 %v2245
        %v2752 = vunpack.c.l.b16 %v2246
        %v2753 = vunpack.c.l.b16 %v2247
        %v2754 = vunpack.c.l.b16 %v2248
        %v2755 = vunpack.c.l.b16 %v2249
        %v2756 = vunpack.c.l.b16 %v2250
        %v2757 = vunpack.c.l.b16 %v2251
        %v2758 = vunpack.c.l.b16 %v2252
        %v2759 = vunpack.c.l.b16 %v2253
        %v2760 = vunpack.c.l.b16 %v2254
        %v2761 = vpack.c.b16 %v2714, %v2713
        %v2762 = vpack.c.b16 %v2716, %v2715
        %v2763 = vpack.c.b16 %v2718, %v2717
        %v2764 = vpack.c.b16 %v2720, %v2719
        %v2765 = vpack.c.b16 %v2722, %v2721
        %v2766 = vpack.c.b16 %v2724, %v2723
        %v2767 = vpack.c.b16 %v2726, %v2725
        %v2768 = vpack.c.b16 %v2728, %v2727
        %v2769 = vpack.c.b16 %v2730, %v2729
        %v2770 = vpack.c.b16 %v2732, %v2731
        %v2771 = vpack.c.b16 %v2734, %v2733
        %v2772 = vpack.c.b16 %v2736, %v2735
        %v2773 = vpack.c.b16 %v2738, %v2737
        %v2774 = vpack.c.b16 %v2740, %v2739
        %v2775 = vpack.c.b16 %v2742, %v2741
        %v2776 = vpack.c.b16 %v2744, %v2743
        %v2777 = vpack.c.b16 %v2746, %v2745
        %v2778 = vpack.c.b16 %v2748, %v2747
        %v2779 = vpack.c.b16 %v2750, %v2749
        %v2780 = vpack.c.b16 %v2752, %v2751
        %v2781 = vpack.c.b16 %v2754, %v2753
        %v2782 = vpack.c.b16 %v2756, %v2755
        %v2783 = vpack.c.b16 %v2758, %v2757
        %v2784 = vpack.c.b16 %v2760, %v2759
        %2809 = vmatprep.subr.bf16.mxu0 0
        %2810 = vmatpush1.bf16.msra.mxu0 %v2761
        %2811 = vmatprep.subr.bf16.mxu0 0
        %2812 = vmatpush1.bf16.msra.mxu0 %v2762
        %2813 = vmatprep.subr.bf16.mxu0 0
        %2814 = vmatpush1.bf16.msra.mxu0 %v2763
        %2815 = vmatprep.subr.bf16.mxu0 0
        %2816 = vmatpush1.bf16.msra.mxu0 %v2764
        %2817 = vmatprep.subr.bf16.mxu0 0
        %2818 = vmatpush1.bf16.msra.mxu0 %v2765
        %2819 = vmatprep.subr.bf16.mxu0 0
        %2820 = vmatpush1.bf16.msra.mxu0 %v2766
        %2821 = vmatprep.subr.bf16.mxu0 0
        %2822 = vmatpush1.bf16.msra.mxu0 %v2767
        %2823 = vmatprep.subr.bf16.mxu0 0
        %2824 = vmatpush1.bf16.msra.mxu0 %v2768
        %2825 = vmatprep.subr.bf16.mxu0 0
        %2826 = vmatpush1.bf16.msra.mxu0 %v2769
        %2827 = vmatprep.subr.bf16.mxu0 0
        %2828 = vmatpush1.bf16.msra.mxu0 %v2770
        %2829 = vmatprep.subr.bf16.mxu0 0
        %2830 = vmatpush1.bf16.msra.mxu0 %v2771
        %2831 = vmatprep.subr.bf16.mxu0 0
        %2832 = vmatpush1.bf16.msra.mxu0 %v2772
        %2833 = vmatprep.subr.bf16.mxu0 0
        %2834 = vmatpush1.bf16.msra.mxu0 %v2773
        %2835 = vmatprep.subr.bf16.mxu0 0
        %2836 = vmatpush1.bf16.msra.mxu0 %v2774
        %2837 = vmatprep.subr.bf16.mxu0 0
        %2838 = vmatpush1.bf16.msra.mxu0 %v2775
        %2839 = vmatprep.subr.bf16.mxu0 0
        %2840 = vmatpush1.bf16.msra.mxu0 %v2776
        %2841 = vmatprep.mubr.bf16.mxu0 %v2184
        %2842 = vmatmul.mubr.bf16.gmra.mrb[0].mxu0 %v2183
        %v2843 = vpop.f32.mrb[0].mxu0
        %v2844 = vadd.f32 %v2603, %v2843
        %v2845 = vpop.f32.mrb[0].mxu0
        %v2846 = vpop.f32.mrb[0].mxu0
        %v2847 = vadd.f32 %v2606, %v2846
        %v2848 = vpop.f32.mrb[0].mxu0
        %2849 = vmatprep.mubr.bf16.mxu0 %v2187
        %2850 = vmatmul.mubr.bf16.gmra.mrb[0].mxu0 %v2186
        %v2851 = vpop.f32.mrb[0].mxu0
        %v2852 = vadd.f32 %v2611, %v2851
        %v2853 = vpop.f32.mrb[0].mxu0
        %v2854 = vpop.f32.mrb[0].mxu0
        %v2855 = vadd.f32 %v2614, %v2854
        %v2856 = vpop.f32.mrb[0].mxu0
        %2857 = vmatprep.mubr.bf16.mxu0 %v2190
        %2858 = vmatmul.mubr.bf16.gmra.mrb[0].mxu0 %v2189
        %v2859 = vpop.f32.mrb[0].mxu0
        %v2860 = vadd.f32 %v2619, %v2859
        %v2861 = vpop.f32.mrb[0].mxu0
        %v2862 = vpop.f32.mrb[0].mxu0
        %v2863 = vadd.f32 %v2622, %v2862
        %v2864 = vpop.f32.mrb[0].mxu0
        %2865 = vmatprep.mubr.bf16.mxu0 %v2193
        %2866 = vmatmul.mubr.bf16.gmra.mrb[0].mxu0 %v2192
        %v2867 = vpop.f32.mrb[0].mxu0
        %v2868 = vadd.f32 %v2627, %v2867
        %v2869 = vpop.f32.mrb[0].mxu0
        %v2870 = vpop.f32.mrb[0].mxu0
        %v2871 = vadd.f32 %v2630, %v2870
        %v2872 = vpop.f32.mrb[0].mxu0
        %2873 = vmatprep.mubr.bf16.mxu0 %v2196
        %2874 = vmatmul.mubr.bf16.gmra.mrb[0].mxu0 %v2195
        %v2875 = vpop.f32.mrb[0].mxu0
        %v2876 = vadd.f32 %v2635, %v2875
        %v2877 = vpop.f32.mrb[0].mxu0
        %v2878 = vpop.f32.mrb[0].mxu0
        %v2879 = vadd.f32 %v2638, %v2878
        %v2880 = vpop.f32.mrb[0].mxu0
        %2881 = vmatprep.mubr.bf16.mxu0 %v2199
        %2882 = vmatmul.mubr.bf16.gmra.mrb[0].mxu0 %v2198
        %v2883 = vpop.f32.mrb[0].mxu0
        %v2884 = vadd.f32 %v2643, %v2883
        %v2885 = vpop.f32.mrb[0].mxu0
        %v2886 = vpop.f32.mrb[0].mxu0
        %v2887 = vadd.f32 %v2646, %v2886
        %v2888 = vpop.f32.mrb[0].mxu0
        %2889 = vmatprep.mubr.bf16.mxu0 %v2202
        %2890 = vmatmul.mubr.bf16.gmra.mrb[0].mxu0 %v2201
        %v2891 = vpop.f32.mrb[0].mxu0
        %v2892 = vadd.f32 %v2651, %v2891
        %v2893 = vpop.f32.mrb[0].mxu0
        %v2894 = vpop.f32.mrb[0].mxu0
        %v2895 = vadd.f32 %v2654, %v2894
        %v2896 = vpop.f32.mrb[0].mxu0
        %2897 = vmatprep.mubr.bf16.mxu0 %v2205
        %2898 = vmatmul.mubr.bf16.gmra.mrb[0].mxu0 %v2204
        %v2899 = vpop.f32.mrb[0].mxu0
        %v2900 = vadd.f32 %v2659, %v2899
        %v2901 = vpop.f32.mrb[0].mxu0
        %v2902 = vpop.f32.mrb[0].mxu0
        %v2903 = vadd.f32 %v2662, %v2902
        %v2904 = vpop.f32.mrb[0].mxu0
        %2905 = vdwg.mxu0
        %2906 = vmatprep.subr.bf16.mxu0 0
        %2907 = vmatpush1.bf16.msra.mxu0 %v2777
        %2908 = vmatprep.subr.bf16.mxu0 0
        %2909 = vmatpush1.bf16.msra.mxu0 %v2778
        %2910 = vmatprep.subr.bf16.mxu0 0
        %2911 = vmatpush1.bf16.msra.mxu0 %v2779
        %2912 = vmatprep.subr.bf16.mxu0 0
        %2913 = vmatpush1.bf16.msra.mxu0 %v2780
        %2914 = vmatprep.subr.bf16.mxu0 0
        %2915 = vmatpush1.bf16.msra.mxu0 %v2781
        %2916 = vmatprep.subr.bf16.mxu0 0
        %2917 = vmatpush1.bf16.msra.mxu0 %v2782
        %2918 = vmatprep.subr.bf16.mxu0 0
        %2919 = vmatpush1.bf16.msra.mxu0 %v2783
        %2920 = vmatprep.subr.bf16.mxu0 0
        %2921 = vmatpush1.bf16.msra.mxu0 %v2784
        %2922 = vmatprep.subr.bf16.mxu0 0
        %2923 = vmatpush1.bf16.msra.mxu0 0
        %2924 = vmatprep.subr.bf16.mxu0 0
        %2925 = vmatpush1.bf16.msra.mxu0 0
        %2926 = vmatprep.subr.bf16.mxu0 0
        %2927 = vmatpush1.bf16.msra.mxu0 0
        %2928 = vmatprep.subr.bf16.mxu0 0
        %2929 = vmatpush1.bf16.msra.mxu0 0
        %2930 = vmatprep.subr.bf16.mxu0 0
        %2931 = vmatpush1.bf16.msra.mxu0 0
        %2932 = vmatprep.subr.bf16.mxu0 0
        %2933 = vmatpush1.bf16.msra.mxu0 0
        %2934 = vmatprep.subr.bf16.mxu0 0
        %2935 = vmatpush1.bf16.msra.mxu0 0
        %2936 = vmatprep.subr.bf16.mxu0 0
        %2937 = vmatpush1.bf16.msra.mxu0 0
        %2938 = vmatprep.mubr.bf16.mxu0 0
        %2939 = vmatmul.mubr.bf16.gmra.mrb[0].mxu0 %v2185
        %v2940 = vpop.f32.mrb[0].mxu0
        %v2941 = vadd.f32 %v2844, %v2940
        %v2942 = vpop.f32.mrb[0].mxu0
        %v2943 = vpop.f32.mrb[0].mxu0
        %v2944 = vadd.f32 %v2847, %v2943
        %v2945 = vpop.f32.mrb[0].mxu0
        %2946 = vmatprep.mubr.bf16.mxu0 0
        %2947 = vmatmul.mubr.bf16.gmra.mrb[0].mxu0 %v2188
        %v2948 = vpop.f32.mrb[0].mxu0
        %v2949 = vadd.f32 %v2852, %v2948
        %v2950 = vpop.f32.mrb[0].mxu0
        %v2951 = vpop.f32.mrb[0].mxu0
        %v2952 = vadd.f32 %v2855, %v2951
        %v2953 = vpop.f32.mrb[0].mxu0
        %2954 = vmatprep.mubr.bf16.mxu0 0
        %2955 = vmatmul.mubr.bf16.gmra.mrb[0].mxu0 %v2191
        %v2956 = vpop.f32.mrb[0].mxu0
        %v2957 = vadd.f32 %v2860, %v2956
        %v2958 = vpop.f32.mrb[0].mxu0
        %v2959 = vpop.f32.mrb[0].mxu0
        %v2960 = vadd.f32 %v2863, %v2959
        %v2961 = vpop.f32.mrb[0].mxu0
        %2962 = vmatprep.mubr.bf16.mxu0 0
        %2963 = vmatmul.mubr.bf16.gmra.mrb[0].mxu0 %v2194
        %v2964 = vpop.f32.mrb[0].mxu0
        %v2965 = vadd.f32 %v2868, %v2964
        %v2966 = vpop.f32.mrb[0].mxu0
        %v2967 = vpop.f32.mrb[0].mxu0
        %v2968 = vadd.f32 %v2871, %v2967
        %v2969 = vpop.f32.mrb[0].mxu0
        %2970 = vmatprep.mubr.bf16.mxu0 0
        %2971 = vmatmul.mubr.bf16.gmra.mrb[0].mxu0 %v2197
        %v2972 = vpop.f32.mrb[0].mxu0
        %v2973 = vadd.f32 %v2876, %v2972
        %v2974 = vpop.f32.mrb[0].mxu0
        %v2975 = vpop.f32.mrb[0].mxu0
        %v2976 = vadd.f32 %v2879, %v2975
        %v2977 = vpop.f32.mrb[0].mxu0
        %2978 = vmatprep.mubr.bf16.mxu0 0
        %2979 = vmatmul.mubr.bf16.gmra.mrb[0].mxu0 %v2200
        %v2980 = vpop.f32.mrb[0].mxu0
        %v2981 = vadd.f32 %v2884, %v2980
        %v2982 = vpop.f32.mrb[0].mxu0
        %v2983 = vpop.f32.mrb[0].mxu0
        %v2984 = vadd.f32 %v2887, %v2983
        %v2985 = vpop.f32.mrb[0].mxu0
        %2986 = vmatprep.mubr.bf16.mxu0 0
        %2987 = vmatmul.mubr.bf16.gmra.mrb[0].mxu0 %v2203
        %v2988 = vpop.f32.mrb[0].mxu0
        %v2989 = vadd.f32 %v2892, %v2988
        %v2990 = vpop.f32.mrb[0].mxu0
        %v2991 = vpop.f32.mrb[0].mxu0
        %v2992 = vadd.f32 %v2895, %v2991
        %v2993 = vpop.f32.mrb[0].mxu0
        %2994 = vmatprep.mubr.bf16.mxu0 0
        %2995 = vmatmul.mubr.bf16.gmra.mrb[0].mxu0 %v2206
        %v2996 = vpop.f32.mrb[0].mxu0
        %v2997 = vadd.f32 %v2900, %v2996
        %v2998 = vpop.f32.mrb[0].mxu0
        %v2999 = vpop.f32.mrb[0].mxu0
        %v3000 = vadd.f32 %v2903, %v2999
        %v3001 = vpop.f32.mrb[0].mxu0
        %3002 = vdwg.mxu0
        %s3003 = scalar_lea.vmem [#allocation2], 240
        %v3004 = vld [vmem:[%s3003] sm:$0xff]
        %v3005 = vld [vmem:[%s3003 + $0x8] sm:$0xff]
        %v3006 = vld [vmem:[%s3003 + $0x10] sm:$0xff]
        %v3007 = vld [vmem:[%s3003 + $0x18] sm:$0xff]
        %v3008 = vld [vmem:[%s3003 + $0x20] sm:$0xff]
        %v3009 = vld [vmem:[%s3003 + $0x28] sm:$0xff]
        %v3010 = vld [vmem:[%s3003 + $0x30] sm:$0xff]
        %v3011 = vld [vmem:[%s3003 + $0x38] sm:$0xff]
        %v3012 = vld [vmem:[%s3003 + $0x40] sm:$0xff]
        %v3013 = vld [vmem:[%s3003 + $0x48] sm:$0xff]
        %v3014 = vld [vmem:[%s3003 + $0x50] sm:$0xff]
        %v3015 = vld [vmem:[%s3003 + $0x58] sm:$0xff]
        %v3016 = vld [vmem:[%s3003 + $0x60] sm:$0xff]
        %v3017 = vld [vmem:[%s3003 + $0x68] sm:$0xff]
        %v3018 = vld [vmem:[%s3003 + $0x70] sm:$0xff]
        %v3019 = vld [vmem:[%s3003 + $0x78] sm:$0xff]
        %v3020 = vld [vmem:[%s3003 + $0x80] sm:$0xff]
        %v3021 = vld [vmem:[%s3003 + $0x88] sm:$0xff]
        %v3022 = vld [vmem:[%s3003 + $0x90] sm:$0xff]
        %v3023 = vld [vmem:[%s3003 + $0x98] sm:$0xff]
        %v3024 = vld [vmem:[%s3003 + $0xa0] sm:$0xff]
        %v3025 = vld [vmem:[%s3003 + $0xa8] sm:$0xff]
        %v3026 = vld [vmem:[%s3003 + $0xb0] sm:$0xff]
        %v3027 = vld [vmem:[%s3003 + $0xb8] sm:$0xff]
        %v3028 = vld [vmem:[%s1580] sm:$0xf]
        %v3029 = vld [vmem:[%s1580 + $0x4] sm:$0xf]
        %v3030 = vld [vmem:[%s1580 + $0x8] sm:$0xf]
        %v3031 = vld [vmem:[%s1580 + $0xc] sm:$0xf]
        %v3032 = vld [vmem:[%s1580 + $0x10] sm:$0xf]
        %v3033 = vld [vmem:[%s1580 + $0x14] sm:$0xf]
        %v3034 = vld [vmem:[%s1580 + $0x18] sm:$0xf]
        %v3035 = vld [vmem:[%s1580 + $0x1c] sm:$0xf]
        %v3036 = vld [vmem:[%s1580 + $0x20] sm:$0xf]
        %v3037 = vld [vmem:[%s1580 + $0x24] sm:$0xf]
        %v3038 = vld [vmem:[%s1580 + $0x28] sm:$0xf]
        %v3039 = vld [vmem:[%s1580 + $0x2c] sm:$0xf]
        %v3040 = vld [vmem:[%s1580 + $0x30] sm:$0xf]
        %v3041 = vld [vmem:[%s1580 + $0x34] sm:$0xf]
        %v3042 = vld [vmem:[%s1580 + $0x38] sm:$0xf]
        %v3043 = vld [vmem:[%s1580 + $0x3c] sm:$0xf]
        %v3044 = vld [vmem:[%s1580 + $0x40] sm:$0xf]
        %v3045 = vld [vmem:[%s1580 + $0x44] sm:$0xf]
        %v3046 = vld [vmem:[%s1580 + $0x48] sm:$0xf]
        %v3047 = vld [vmem:[%s1580 + $0x4c] sm:$0xf]
        %v3048 = vld [vmem:[%s1580 + $0x50] sm:$0xf]
        %v3049 = vld [vmem:[%s1580 + $0x54] sm:$0xf]
        %v3050 = vld [vmem:[%s1580 + $0x58] sm:$0xf]
        %v3051 = vld [vmem:[%s1580 + $0x5c] sm:$0xf]
        %v3052 = vld [vmem:[%s1580 + $0x60] sm:$0xf]
        %v3053 = vld [vmem:[%s1580 + $0x64] sm:$0xf]
        %v3054 = vld [vmem:[%s1580 + $0x68] sm:$0xf]
        %v3055 = vld [vmem:[%s1580 + $0x6c] sm:$0xf]
        %v3056 = vld [vmem:[%s1580 + $0x70] sm:$0xf]
        %v3057 = vld [vmem:[%s1580 + $0x74] sm:$0xf]
        %v3058 = vld [vmem:[%s1580 + $0x78] sm:$0xf]
        %v3059 = vld [vmem:[%s1580 + $0x7c] sm:$0xf]
        %v3060 = vld [vmem:[%s1580 + $0x80] sm:$0xf]
        %v3061 = vld [vmem:[%s1580 + $0x84] sm:$0xf]
        %v3062 = vld [vmem:[%s1580 + $0x88] sm:$0xf]
        %v3063 = vld [vmem:[%s1580 + $0x8c] sm:$0xf]
        %v3064 = vld [vmem:[%s1580 + $0x90] sm:$0xf]
        %v3065 = vld [vmem:[%s1580 + $0x94] sm:$0xf]
        %v3066 = vld [vmem:[%s1580 + $0x98] sm:$0xf]
        %v3067 = vld [vmem:[%s1580 + $0x9c] sm:$0xf]
        %v3068 = vld [vmem:[%s1580 + $0xa0] sm:$0xf]
        %v3069 = vld [vmem:[%s1580 + $0xa4] sm:$0xf]
        %v3070 = vld [vmem:[%s1580 + $0xa8] sm:$0xf]
        %v3071 = vld [vmem:[%s1580 + $0xac] sm:$0xf]
        %v3072 = vld [vmem:[%s1580 + $0xb0] sm:$0xf]
        %v3073 = vld [vmem:[%s1580 + $0xb4] sm:$0xf]
        %v3074 = vld [vmem:[%s1580 + $0xb8] sm:$0xf]
        %v3075 = vld [vmem:[%s1580 + $0xbc] sm:$0xf]
        %v3124 = vunpack.c.l.b16 %v3028
        %v3125 = vunpack.c.l.b16 %v3029
        %v3126 = vunpack.c.l.b16 %v3030
        %v3127 = vunpack.c.l.b16 %v3031
        %v3128 = vunpack.c.l.b16 %v3032
        %v3129 = vunpack.c.l.b16 %v3033
        %v3130 = vunpack.c.l.b16 %v3034
        %v3131 = vunpack.c.l.b16 %v3035
        %v3132 = vunpack.c.l.b16 %v3036
        %v3133 = vunpack.c.l.b16 %v3037
        %v3134 = vunpack.c.l.b16 %v3038
        %v3135 = vunpack.c.l.b16 %v3039
        %v3136 = vunpack.c.l.b16 %v3040
        %v3137 = vunpack.c.l.b16 %v3041
        %v3138 = vunpack.c.l.b16 %v3042
        %v3139 = vunpack.c.l.b16 %v3043
        %v3140 = vunpack.c.l.b16 %v3044
        %v3141 = vunpack.c.l.b16 %v3045
        %v3142 = vunpack.c.l.b16 %v3046
        %v3143 = vunpack.c.l.b16 %v3047
        %v3144 = vunpack.c.l.b16 %v3048
        %v3145 = vunpack.c.l.b16 %v3049
        %v3146 = vunpack.c.l.b16 %v3050
        %v3147 = vunpack.c.l.b16 %v3051
        %v3148 = vunpack.c.l.b16 %v3052
        %v3149 = vunpack.c.l.b16 %v3053
        %v3150 = vunpack.c.l.b16 %v3054
        %v3151 = vunpack.c.l.b16 %v3055
        %v3152 = vunpack.c.l.b16 %v3056
        %v3153 = vunpack.c.l.b16 %v3057
        %v3154 = vunpack.c.l.b16 %v3058
        %v3155 = vunpack.c.l.b16 %v3059
        %v3156 = vunpack.c.l.b16 %v3060
        %v3157 = vunpack.c.l.b16 %v3061
        %v3158 = vunpack.c.l.b16 %v3062
        %v3159 = vunpack.c.l.b16 %v3063
        %v3160 = vunpack.c.l.b16 %v3064
        %v3161 = vunpack.c.l.b16 %v3065
        %v3162 = vunpack.c.l.b16 %v3066
        %v3163 = vunpack.c.l.b16 %v3067
        %v3164 = vunpack.c.l.b16 %v3068
        %v3165 = vunpack.c.l.b16 %v3069
        %v3166 = vunpack.c.l.b16 %v3070
        %v3167 = vunpack.c.l.b16 %v3071
        %v3168 = vunpack.c.l.b16 %v3072
        %v3169 = vunpack.c.l.b16 %v3073
        %v3170 = vunpack.c.l.b16 %v3074
        %v3171 = vunpack.c.l.b16 %v3075
        %v3172 = vpack.c.b16 %v3125, %v3124
        %v3173 = vpack.c.b16 %v3127, %v3126
        %v3174 = vpack.c.b16 %v3129, %v3128
        %v3175 = vpack.c.b16 %v3131, %v3130
        %v3176 = vpack.c.b16 %v3133, %v3132
        %v3177 = vpack.c.b16 %v3135, %v3134
        %v3178 = vpack.c.b16 %v3137, %v3136
        %v3179 = vpack.c.b16 %v3139, %v3138
        %v3180 = vpack.c.b16 %v3141, %v3140
        %v3181 = vpack.c.b16 %v3143, %v3142
        %v3182 = vpack.c.b16 %v3145, %v3144
        %v3183 = vpack.c.b16 %v3147, %v3146
        %v3184 = vpack.c.b16 %v3149, %v3148
        %v3185 = vpack.c.b16 %v3151, %v3150
        %v3186 = vpack.c.b16 %v3153, %v3152
        %v3187 = vpack.c.b16 %v3155, %v3154
        %v3188 = vpack.c.b16 %v3157, %v3156
        %v3189 = vpack.c.b16 %v3159, %v3158
        %v3190 = vpack.c.b16 %v3161, %v3160
        %v3191 = vpack.c.b16 %v3163, %v3162
        %v3192 = vpack.c.b16 %v3165, %v3164
        %v3193 = vpack.c.b16 %v3167, %v3166
        %v3194 = vpack.c.b16 %v3169, %v3168
        %v3195 = vpack.c.b16 %v3171, %v3170
        %3220 = vmatprep.subr.bf16.mxu0 0
        %3221 = vmatpush1.bf16.msra.mxu0 %v3172
        %3222 = vmatprep.subr.bf16.mxu0 0
        %3223 = vmatpush1.bf16.msra.mxu0 %v3173
        %3224 = vmatprep.subr.bf16.mxu0 0
        %3225 = vmatpush1.bf16.msra.mxu0 %v3174
        %3226 = vmatprep.subr.bf16.mxu0 0
        %3227 = vmatpush1.bf16.msra.mxu0 %v3175
        %3228 = vmatprep.subr.bf16.mxu0 0
        %3229 = vmatpush1.bf16.msra.mxu0 %v3176
        %3230 = vmatprep.subr.bf16.mxu0 0
        %3231 = vmatpush1.bf16.msra.mxu0 %v3177
        %3232 = vmatprep.subr.bf16.mxu0 0
        %3233 = vmatpush1.bf16.msra.mxu0 %v3178
        %3234 = vmatprep.subr.bf16.mxu0 0
        %3235 = vmatpush1.bf16.msra.mxu0 %v3179
        %3236 = vmatprep.subr.bf16.mxu0 0
        %3237 = vmatpush1.bf16.msra.mxu0 %v3180
        %3238 = vmatprep.subr.bf16.mxu0 0
        %3239 = vmatpush1.bf16.msra.mxu0 %v3181
        %3240 = vmatprep.subr.bf16.mxu0 0
        %3241 = vmatpush1.bf16.msra.mxu0 %v3182
        %3242 = vmatprep.subr.bf16.mxu0 0
        %3243 = vmatpush1.bf16.msra.mxu0 %v3183
        %3244 = vmatprep.subr.bf16.mxu0 0
        %3245 = vmatpush1.bf16.msra.mxu0 %v3184
        %3246 = vmatprep.subr.bf16.mxu0 0
        %3247 = vmatpush1.bf16.msra.mxu0 %v3185
        %3248 = vmatprep.subr.bf16.mxu0 0
        %3249 = vmatpush1.bf16.msra.mxu0 %v3186
        %3250 = vmatprep.subr.bf16.mxu0 0
        %3251 = vmatpush1.bf16.msra.mxu0 %v3187
        %3252 = vmatprep.mubr.bf16.mxu0 %v3005
        %3253 = vmatmul.mubr.bf16.gmra.mrb[0].mxu0 %v3004
        %v3254 = vpop.f32.mrb[0].mxu0
        %v3255 = vadd.f32 0.0, %v3254
        %v3256 = vpop.f32.mrb[0].mxu0
        %v3257 = vpop.f32.mrb[0].mxu0
        %v3258 = vadd.f32 0.0, %v3257
        %v3259 = vpop.f32.mrb[0].mxu0
        %3260 = vmatprep.mubr.bf16.mxu0 %v3008
        %3261 = vmatmul.mubr.bf16.gmra.mrb[0].mxu0 %v3007
        %v3262 = vpop.f32.mrb[0].mxu0
        %v3263 = vadd.f32 0.0, %v3262
        %v3264 = vpop.f32.mrb[0].mxu0
        %v3265 = vpop.f32.mrb[0].mxu0
        %v3266 = vadd.f32 0.0, %v3265
        %v3267 = vpop.f32.mrb[0].mxu0
        %3268 = vmatprep.mubr.bf16.mxu0 %v3011
        %3269 = vmatmul.mubr.bf16.gmra.mrb[0].mxu0 %v3010
        %v3270 = vpop.f32.mrb[0].mxu0
        %v3271 = vadd.f32 0.0, %v3270
        %v3272 = vpop.f32.mrb[0].mxu0
        %v3273 = vpop.f32.mrb[0].mxu0
        %v3274 = vadd.f32 0.0, %v3273
        %v3275 = vpop.f32.mrb[0].mxu0
        %3276 = vmatprep.mubr.bf16.mxu0 %v3014
        %3277 = vmatmul.mubr.bf16.gmra.mrb[0].mxu0 %v3013
        %v3278 = vpop.f32.mrb[0].mxu0
        %v3279 = vadd.f32 0.0, %v3278
        %v3280 = vpop.f32.mrb[0].mxu0
        %v3281 = vpop.f32.mrb[0].mxu0
        %v3282 = vadd.f32 0.0, %v3281
        %v3283 = vpop.f32.mrb[0].mxu0
        %3284 = vmatprep.mubr.bf16.mxu0 %v3017
        %3285 = vmatmul.mubr.bf16.gmra.mrb[0].mxu0 %v3016
        %v3286 = vpop.f32.mrb[0].mxu0
        %v3287 = vadd.f32 0.0, %v3286
        %v3288 = vpop.f32.mrb[0].mxu0
        %v3289 = vpop.f32.mrb[0].mxu0
        %v3290 = vadd.f32 0.0, %v3289
        %v3291 = vpop.f32.mrb[0].mxu0
        %3292 = vmatprep.mubr.bf16.mxu0 %v3020
        %3293 = vmatmul.mubr.bf16.gmra.mrb[0].mxu0 %v3019
        %v3294 = vpop.f32.mrb[0].mxu0
        %v3295 = vadd.f32 0.0, %v3294
        %v3296 = vpop.f32.mrb[0].mxu0
        %v3297 = vpop.f32.mrb[0].mxu0
        %v3298 = vadd.f32 0.0, %v3297
        %v3299 = vpop.f32.mrb[0].mxu0
        %3300 = vmatprep.mubr.bf16.mxu0 %v3023
        %3301 = vmatmul.mubr.bf16.gmra.mrb[0].mxu0 %v3022
        %v3302 = vpop.f32.mrb[0].mxu0
        %v3303 = vadd.f32 0.0, %v3302
        %v3304 = vpop.f32.mrb[0].mxu0
        %v3305 = vpop.f32.mrb[0].mxu0
        %v3306 = vadd.f32 0.0, %v3305
        %v3307 = vpop.f32.mrb[0].mxu0
        %3308 = vmatprep.mubr.bf16.mxu0 %v3026
        %3309 = vmatmul.mubr.bf16.gmra.mrb[0].mxu0 %v3025
        %v3310 = vpop.f32.mrb[0].mxu0
        %v3311 = vadd.f32 0.0, %v3310
        %v3312 = vpop.f32.mrb[0].mxu0
        %v3313 = vpop.f32.mrb[0].mxu0
        %v3314 = vadd.f32 0.0, %v3313
        %v3315 = vpop.f32.mrb[0].mxu0
        %3316 = vdwg.mxu0
        %3317 = vmatprep.subr.bf16.mxu0 0
        %3318 = vmatpush1.bf16.msra.mxu0 %v3188
        %3319 = vmatprep.subr.bf16.mxu0 0
        %3320 = vmatpush1.bf16.msra.mxu0 %v3189
        %3321 = vmatprep.subr.bf16.mxu0 0
        %3322 = vmatpush1.bf16.msra.mxu0 %v3190
        %3323 = vmatprep.subr.bf16.mxu0 0
        %3324 = vmatpush1.bf16.msra.mxu0 %v3191
        %3325 = vmatprep.subr.bf16.mxu0 0
        %3326 = vmatpush1.bf16.msra.mxu0 %v3192
        %3327 = vmatprep.subr.bf16.mxu0 0
        %3328 = vmatpush1.bf16.msra.mxu0 %v3193
        %3329 = vmatprep.subr.bf16.mxu0 0
        %3330 = vmatpush1.bf16.msra.mxu0 %v3194
        %3331 = vmatprep.subr.bf16.mxu0 0
        %3332 = vmatpush1.bf16.msra.mxu0 %v3195
        %3333 = vmatprep.subr.bf16.mxu0 0
        %3334 = vmatpush1.bf16.msra.mxu0 0
        %3335 = vmatprep.subr.bf16.mxu0 0
        %3336 = vmatpush1.bf16.msra.mxu0 0
        %3337 = vmatprep.subr.bf16.mxu0 0
        %3338 = vmatpush1.bf16.msra.mxu0 0
        %3339 = vmatprep.subr.bf16.mxu0 0
        %3340 = vmatpush1.bf16.msra.mxu0 0
        %3341 = vmatprep.subr.bf16.mxu0 0
        %3342 = vmatpush1.bf16.msra.mxu0 0
        %3343 = vmatprep.subr.bf16.mxu0 0
        %3344 = vmatpush1.bf16.msra.mxu0 0
        %3345 = vmatprep.subr.bf16.mxu0 0
        %3346 = vmatpush1.bf16.msra.mxu0 0
        %3347 = vmatprep.subr.bf16.mxu0 0
        %3348 = vmatpush1.bf16.msra.mxu0 0
        %3349 = vmatprep.mubr.bf16.mxu0 0
        %3350 = vmatmul.mubr.bf16.gmra.mrb[0].mxu0 %v3006
        %v3351 = vpop.f32.mrb[0].mxu0
        %v3352 = vadd.f32 %v3255, %v3351
        %v3353 = vpop.f32.mrb[0].mxu0
        %v3354 = vpop.f32.mrb[0].mxu0
        %v3355 = vadd.f32 %v3258, %v3354
        %v3356 = vpop.f32.mrb[0].mxu0
        %3357 = vmatprep.mubr.bf16.mxu0 0
        %3358 = vmatmul.mubr.bf16.gmra.mrb[0].mxu0 %v3009
        %v3359 = vpop.f32.mrb[0].mxu0
        %v3360 = vadd.f32 %v3263, %v3359
        %v3361 = vpop.f32.mrb[0].mxu0
        %v3362 = vpop.f32.mrb[0].mxu0
        %v3363 = vadd.f32 %v3266, %v3362
        %v3364 = vpop.f32.mrb[0].mxu0
        %3365 = vmatprep.mubr.bf16.mxu0 0
        %3366 = vmatmul.mubr.bf16.gmra.mrb[0].mxu0 %v3012
        %v3367 = vpop.f32.mrb[0].mxu0
        %v3368 = vadd.f32 %v3271, %v3367
        %v3369 = vpop.f32.mrb[0].mxu0
        %v3370 = vpop.f32.mrb[0].mxu0
        %v3371 = vadd.f32 %v3274, %v3370
        %v3372 = vpop.f32.mrb[0].mxu0
        %3373 = vmatprep.mubr.bf16.mxu0 0
        %3374 = vmatmul.mubr.bf16.gmra.mrb[0].mxu0 %v3015
        %v3375 = vpop.f32.mrb[0].mxu0
        %v3376 = vadd.f32 %v3279, %v3375
        %v3377 = vpop.f32.mrb[0].mxu0
        %v3378 = vpop.f32.mrb[0].mxu0
        %v3379 = vadd.f32 %v3282, %v3378
        %v3380 = vpop.f32.mrb[0].mxu0
        %3381 = vmatprep.mubr.bf16.mxu0 0
        %3382 = vmatmul.mubr.bf16.gmra.mrb[0].mxu0 %v3018
        %v3383 = vpop.f32.mrb[0].mxu0
        %v3384 = vadd.f32 %v3287, %v3383
        %v3385 = vpop.f32.mrb[0].mxu0
        %v3386 = vpop.f32.mrb[0].mxu0
        %v3387 = vadd.f32 %v3290, %v3386
        %v3388 = vpop.f32.mrb[0].mxu0
        %3389 = vmatprep.mubr.bf16.mxu0 0
        %3390 = vmatmul.mubr.bf16.gmra.mrb[0].mxu0 %v3021
        %v3391 = vpop.f32.mrb[0].mxu0
        %v3392 = vadd.f32 %v3295, %v3391
        %v3393 = vpop.f32.mrb[0].mxu0
        %v3394 = vpop.f32.mrb[0].mxu0
        %v3395 = vadd.f32 %v3298, %v3394
        %v3396 = vpop.f32.mrb[0].mxu0
        %3397 = vmatprep.mubr.bf16.mxu0 0
        %3398 = vmatmul.mubr.bf16.gmra.mrb[0].mxu0 %v3024
        %v3399 = vpop.f32.mrb[0].mxu0
        %v3400 = vadd.f32 %v3303, %v3399
        %v3401 = vpop.f32.mrb[0].mxu0
        %v3402 = vpop.f32.mrb[0].mxu0
        %v3403 = vadd.f32 %v3306, %v3402
        %v3404 = vpop.f32.mrb[0].mxu0
        %3405 = vmatprep.mubr.bf16.mxu0 0
        %3406 = vmatmul.mubr.bf16.gmra.mrb[0].mxu0 %v3027
        %v3407 = vpop.f32.mrb[0].mxu0
        %v3408 = vadd.f32 %v3311, %v3407
        %v3409 = vpop.f32.mrb[0].mxu0
        %v3410 = vpop.f32.mrb[0].mxu0
        %v3411 = vadd.f32 %v3314, %v3410
        %v3412 = vpop.f32.mrb[0].mxu0
        %3413 = vdwg.mxu0
        %v3414 = vadd.f32 %v2941, %v3352
        %v3415 = vadd.f32 %v2944, %v3355
        %v3416 = vadd.f32 %v2949, %v3360
        %v3417 = vadd.f32 %v2952, %v3363
        %v3418 = vadd.f32 %v2957, %v3368
        %v3419 = vadd.f32 %v2960, %v3371
        %v3420 = vadd.f32 %v2965, %v3376
        %v3421 = vadd.f32 %v2968, %v3379
        %v3422 = vadd.f32 %v2973, %v3384
        %v3423 = vadd.f32 %v2976, %v3387
        %v3424 = vadd.f32 %v2981, %v3392
        %v3425 = vadd.f32 %v2984, %v3395
        %v3426 = vadd.f32 %v2989, %v3400
        %v3427 = vadd.f32 %v2992, %v3403
        %v3428 = vadd.f32 %v2997, %v3408
        %v3429 = vadd.f32 %v3000, %v3411
        %v3430 = vld [vmem:[%s2] sm:$0x1]
        %v3432 = vlaneseq
        %v3433 = vshrl.u32 %v3432, 7
        %v3434 = vsub.s32 0, %v3433
        %v3435 = vrot.slane %v3430, %v3434
        %v3437 = vmul.f32 %v3414, %v3435
        %v3438 = vmul.f32 %v3415, %v3435
        %v3439 = vmul.f32 %v3416, %v3435
        %v3440 = vmul.f32 %v3417, %v3435
        %v3441 = vmul.f32 %v3418, %v3435
        %v3442 = vmul.f32 %v3419, %v3435
        %v3443 = vmul.f32 %v3420, %v3435
        %v3444 = vmul.f32 %v3421, %v3435
        %v3445 = vmul.f32 %v3422, %v3435
        %v3446 = vmul.f32 %v3423, %v3435
        %v3447 = vmul.f32 %v3424, %v3435
        %v3448 = vmul.f32 %v3425, %v3435
        %v3449 = vmul.f32 %v3426, %v3435
        %v3450 = vmul.f32 %v3427, %v3435
        %v3451 = vmul.f32 %v3428, %v3435
        %v3452 = vmul.f32 %v3429, %v3435
        %v3453 = vld [vmem:[%s3] sm:$0x1]
        %v3455 = vlaneseq
        %v3456 = vshrl.u32 %v3455, 7
        %v3457 = vsub.s32 0, %v3456
        %v3458 = vrot.slane %v3453, %v3457
        %v3460 = vadd.f32 %v3437, %v3458
        %v3461 = vadd.f32 %v3438, %v3458
        %v3462 = vadd.f32 %v3439, %v3458
        %v3463 = vadd.f32 %v3440, %v3458
        %v3464 = vadd.f32 %v3441, %v3458
        %v3465 = vadd.f32 %v3442, %v3458
        %v3466 = vadd.f32 %v3443, %v3458
        %v3467 = vadd.f32 %v3444, %v3458
        %v3468 = vadd.f32 %v3445, %v3458
        %v3469 = vadd.f32 %v3446, %v3458
        %v3470 = vadd.f32 %v3447, %v3458
        %v3471 = vadd.f32 %v3448, %v3458
        %v3472 = vadd.f32 %v3449, %v3458
        %v3473 = vadd.f32 %v3450, %v3458
        %v3474 = vadd.f32 %v3451, %v3458
        %v3475 = vadd.f32 %v3452, %v3458
        %v3476 = vmax.f32 %v3460, 0.0
        %v3477 = vmax.f32 %v3461, 0.0
        %v3478 = vmax.f32 %v3462, 0.0
        %v3479 = vmax.f32 %v3463, 0.0
        %v3480 = vmax.f32 %v3464, 0.0
        %v3481 = vmax.f32 %v3465, 0.0
        %v3482 = vmax.f32 %v3466, 0.0
        %v3483 = vmax.f32 %v3467, 0.0
        %v3484 = vmax.f32 %v3468, 0.0
        %v3485 = vmax.f32 %v3469, 0.0
        %v3486 = vmax.f32 %v3470, 0.0
        %v3487 = vmax.f32 %v3471, 0.0
        %v3488 = vmax.f32 %v3472, 0.0
        %v3489 = vmax.f32 %v3473, 0.0
        %v3490 = vmax.f32 %v3474, 0.0
        %v3491 = vmax.f32 %v3475, 0.0
        %v3492 = vpack.c.bf16 %v3477, %v3476
        %v3493 = vpack.c.bf16 %v3479, %v3478
        %v3494 = vpack.c.bf16 %v3481, %v3480
        %v3495 = vpack.c.bf16 %v3483, %v3482
        %v3496 = vpack.c.bf16 %v3485, %v3484
        %v3497 = vpack.c.bf16 %v3487, %v3486
        %v3498 = vpack.c.bf16 %v3489, %v3488
        %v3499 = vpack.c.bf16 %v3491, %v3490
        %v3501 = vshrl.u32 %v3492, 16
        %v3503 = vrot.slane %v3501, 7
        %v3504 = vshll.u32 %v3492, 16
        %v3506 = vor.u32 %v3503, %v3504
        %v3508 = vshrl.u32 %v3493, 16
        %v3510 = vrot.slane %v3508, 7
        %v3511 = vshll.u32 %v3493, 16
        %v3513 = vor.u32 %v3510, %v3511
        %v3515 = vshrl.u32 %v3494, 16
        %v3517 = vrot.slane %v3515, 7
        %v3518 = vshll.u32 %v3494, 16
        %v3520 = vor.u32 %v3517, %v3518
        %v3522 = vshrl.u32 %v3495, 16
        %v3524 = vrot.slane %v3522, 7
        %v3525 = vshll.u32 %v3495, 16
        %v3527 = vor.u32 %v3524, %v3525
        %v3529 = vshrl.u32 %v3496, 16
        %v3531 = vrot.slane %v3529, 7
        %v3532 = vshll.u32 %v3496, 16
        %v3534 = vor.u32 %v3531, %v3532
        %v3536 = vshrl.u32 %v3497, 16
        %v3538 = vrot.slane %v3536, 7
        %v3539 = vshll.u32 %v3497, 16
        %v3541 = vor.u32 %v3538, %v3539
        %v3543 = vshrl.u32 %v3498, 16
        %v3545 = vrot.slane %v3543, 7
        %v3546 = vshll.u32 %v3498, 16
        %v3548 = vor.u32 %v3545, %v3546
        %v3550 = vshrl.u32 %v3499, 16
        %v3552 = vrot.slane %v3550, 7
        %v3553 = vshll.u32 %v3499, 16
        %v3555 = vor.u32 %v3552, %v3553
        %v3564 = vsel %vm463, 0, %v3506
        %v3565 = vsel %vm463, 0, %v3513
        %v3566 = vsel %vm463, 0, %v3520
        %v3567 = vsel %vm463, 0, %v3527
        %v3568 = vsel %vm463, 0, %v3534
        %v3569 = vsel %vm463, 0, %v3541
        %v3570 = vsel %vm463, 0, %v3548
        %v3571 = vsel %vm463, 0, %v3555
        %v3572 = vrot.slane %v3504, 1
        %v3573 = vor.u32 %v3501, %v3572
        %v3574 = vrot.slane %v3511, 1
        %v3575 = vor.u32 %v3508, %v3574
        %v3576 = vrot.slane %v3518, 1
        %v3577 = vor.u32 %v3515, %v3576
        %v3578 = vrot.slane %v3525, 1
        %v3579 = vor.u32 %v3522, %v3578
        %v3580 = vrot.slane %v3532, 1
        %v3581 = vor.u32 %v3529, %v3580
        %v3582 = vrot.slane %v3539, 1
        %v3583 = vor.u32 %v3536, %v3582
        %v3584 = vrot.slane %v3546, 1
        %v3585 = vor.u32 %v3543, %v3584
        %v3586 = vrot.slane %v3553, 1
        %v3587 = vor.u32 %v3550, %v3586
        %v3596 = vsel %vm498, %v3573, 0
        %v3597 = vsel %vm498, %v3575, 0
        %v3598 = vsel %vm498, %v3577, 0
        %v3599 = vsel %vm498, %v3579, 0
        %v3600 = vsel %vm498, %v3581, 0
        %v3601 = vsel %vm498, %v3583, 0
        %v3602 = vsel %vm498, %v3585, 0
        %v3603 = vsel %vm498, %v3587, 0
        %s3604 = scalar_lea.vmem [#allocation3], 216
        %3605 = vst [vmem:[%s3604] sm:$0xff] %v3564
        %3606 = vst [vmem:[%s3604 + $0x18] sm:$0xff] %v3565
        %3607 = vst [vmem:[%s3604 + $0x30] sm:$0xff] %v3566
        %3608 = vst [vmem:[%s3604 + $0x48] sm:$0xff] %v3567
        %3609 = vst [vmem:[%s3604 + $0x60] sm:$0xff] %v3568
        %3610 = vst [vmem:[%s3604 + $0x78] sm:$0xff] %v3569
        %3611 = vst [vmem:[%s3604 + $0x90] sm:$0xff] %v3570
        %3612 = vst [vmem:[%s3604 + $0xa8] sm:$0xff] %v3571
        %3613 = vst [vmem:[%s3604 + $0x8] sm:$0xff] %v3492
        %3614 = vst [vmem:[%s3604 + $0x20] sm:$0xff] %v3493
        %3615 = vst [vmem:[%s3604 + $0x38] sm:$0xff] %v3494
        %3616 = vst [vmem:[%s3604 + $0x50] sm:$0xff] %v3495
        %3617 = vst [vmem:[%s3604 + $0x68] sm:$0xff] %v3496
        %3618 = vst [vmem:[%s3604 + $0x80] sm:$0xff] %v3497
        %3619 = vst [vmem:[%s3604 + $0x98] sm:$0xff] %v3498
        %3620 = vst [vmem:[%s3604 + $0xb0] sm:$0xff] %v3499
        %3621 = vst [vmem:[%s3604 + $0x10] sm:$0xff] %v3596
        %3622 = vst [vmem:[%s3604 + $0x28] sm:$0xff] %v3597
        %3623 = vst [vmem:[%s3604 + $0x40] sm:$0xff] %v3598
        %3624 = vst [vmem:[%s3604 + $0x58] sm:$0xff] %v3599
        %3625 = vst [vmem:[%s3604 + $0x70] sm:$0xff] %v3600
        %3626 = vst [vmem:[%s3604 + $0x88] sm:$0xff] %v3601
        %3627 = vst [vmem:[%s3604 + $0xa0] sm:$0xff] %v3602
        %3628 = vst [vmem:[%s3604 + $0xb8] sm:$0xff] %v3603
        %v3629 = vld [vmem:[#allocation3] sm:$0xff]
        %v3630 = vld [vmem:[#allocation3 + $0x8] sm:$0xff]
        %v3631 = vld [vmem:[#allocation3 + $0x10] sm:$0xff]
        %v3632 = vld [vmem:[#allocation3 + $0x18] sm:$0xff]
        %v3633 = vld [vmem:[#allocation3 + $0x20] sm:$0xff]
        %v3634 = vld [vmem:[#allocation3 + $0x28] sm:$0xff]
        %v3635 = vld [vmem:[#allocation3 + $0x30] sm:$0xff]
        %v3636 = vld [vmem:[#allocation3 + $0x38] sm:$0xff]
        %v3637 = vld [vmem:[#allocation3 + $0x40] sm:$0xff]
        %v3638 = vld [vmem:[#allocation3 + $0x48] sm:$0xff]
        %v3639 = vld [vmem:[#allocation3 + $0x50] sm:$0xff]
        %v3640 = vld [vmem:[#allocation3 + $0x58] sm:$0xff]
        %v3641 = vld [vmem:[#allocation3 + $0x60] sm:$0xff]
        %v3642 = vld [vmem:[#allocation3 + $0x68] sm:$0xff]
        %v3643 = vld [vmem:[#allocation3 + $0x70] sm:$0xff]
        %v3644 = vld [vmem:[#allocation3 + $0x78] sm:$0xff]
        %v3645 = vld [vmem:[#allocation3 + $0x80] sm:$0xff]
        %v3646 = vld [vmem:[#allocation3 + $0x88] sm:$0xff]
        %v3647 = vld [vmem:[#allocation3 + $0x90] sm:$0xff]
        %v3648 = vld [vmem:[#allocation3 + $0x98] sm:$0xff]
        %v3649 = vld [vmem:[#allocation3 + $0xa0] sm:$0xff]
        %v3650 = vld [vmem:[#allocation3 + $0xa8] sm:$0xff]
        %v3651 = vld [vmem:[#allocation3 + $0xb0] sm:$0xff]
        %v3652 = vld [vmem:[#allocation3 + $0xb8] sm:$0xff]
        %v3653 = vld [vmem:[#allocation9] sm:$0xf]
        %v3654 = vld [vmem:[#allocation9 + $0x4] sm:$0xf]
        %v3655 = vld [vmem:[#allocation9 + $0x8] sm:$0xf]
        %v3656 = vld [vmem:[#allocation9 + $0xc] sm:$0xf]
        %v3657 = vld [vmem:[#allocation9 + $0x10] sm:$0xf]
        %v3658 = vld [vmem:[#allocation9 + $0x14] sm:$0xf]
        %v3659 = vld [vmem:[#allocation9 + $0x18] sm:$0xf]
        %v3660 = vld [vmem:[#allocation9 + $0x1c] sm:$0xf]
        %v3661 = vld [vmem:[#allocation9 + $0x20] sm:$0xf]
        %v3662 = vld [vmem:[#allocation9 + $0x24] sm:$0xf]
        %v3663 = vld [vmem:[#allocation9 + $0x28] sm:$0xf]
        %v3664 = vld [vmem:[#allocation9 + $0x2c] sm:$0xf]
        %v3665 = vld [vmem:[#allocation9 + $0x30] sm:$0xf]
        %v3666 = vld [vmem:[#allocation9 + $0x34] sm:$0xf]
        %v3667 = vld [vmem:[#allocation9 + $0x38] sm:$0xf]
        %v3668 = vld [vmem:[#allocation9 + $0x3c] sm:$0xf]
        %v3669 = vld [vmem:[#allocation9 + $0x40] sm:$0xf]
        %v3670 = vld [vmem:[#allocation9 + $0x44] sm:$0xf]
        %v3671 = vld [vmem:[#allocation9 + $0x48] sm:$0xf]
        %v3672 = vld [vmem:[#allocation9 + $0x4c] sm:$0xf]
        %v3673 = vld [vmem:[#allocation9 + $0x50] sm:$0xf]
        %v3674 = vld [vmem:[#allocation9 + $0x54] sm:$0xf]
        %v3675 = vld [vmem:[#allocation9 + $0x58] sm:$0xf]
        %v3676 = vld [vmem:[#allocation9 + $0x5c] sm:$0xf]
        %v3677 = vld [vmem:[#allocation9 + $0x60] sm:$0xf]
        %v3678 = vld [vmem:[#allocation9 + $0x64] sm:$0xf]
        %v3679 = vld [vmem:[#allocation9 + $0x68] sm:$0xf]
        %v3680 = vld [vmem:[#allocation9 + $0x6c] sm:$0xf]
        %v3681 = vld [vmem:[#allocation9 + $0x70] sm:$0xf]
        %v3682 = vld [vmem:[#allocation9 + $0x74] sm:$0xf]
        %v3683 = vld [vmem:[#allocation9 + $0x78] sm:$0xf]
        %v3684 = vld [vmem:[#allocation9 + $0x7c] sm:$0xf]
        %v3685 = vld [vmem:[#allocation9 + $0x80] sm:$0xf]
        %v3686 = vld [vmem:[#allocation9 + $0x84] sm:$0xf]
        %v3687 = vld [vmem:[#allocation9 + $0x88] sm:$0xf]
        %v3688 = vld [vmem:[#allocation9 + $0x8c] sm:$0xf]
        %v3689 = vld [vmem:[#allocation9 + $0x90] sm:$0xf]
        %v3690 = vld [vmem:[#allocation9 + $0x94] sm:$0xf]
        %v3691 = vld [vmem:[#allocation9 + $0x98] sm:$0xf]
        %v3692 = vld [vmem:[#allocation9 + $0x9c] sm:$0xf]
        %v3693 = vld [vmem:[#allocation9 + $0xa0] sm:$0xf]
        %v3694 = vld [vmem:[#allocation9 + $0xa4] sm:$0xf]
        %v3695 = vld [vmem:[#allocation9 + $0xa8] sm:$0xf]
        %v3696 = vld [vmem:[#allocation9 + $0xac] sm:$0xf]
        %v3697 = vld [vmem:[#allocation9 + $0xb0] sm:$0xf]
        %v3698 = vld [vmem:[#allocation9 + $0xb4] sm:$0xf]
        %v3699 = vld [vmem:[#allocation9 + $0xb8] sm:$0xf]
        %v3700 = vld [vmem:[#allocation9 + $0xbc] sm:$0xf]
        %v3701 = vld [vmem:[%s2157] sm:$0xff]
        %v3702 = vld [vmem:[%s2157 + $0x8] sm:$0xff]
        %v3703 = vld [vmem:[%s2157 + $0x10] sm:$0xff]
        %v3704 = vld [vmem:[%s2157 + $0x18] sm:$0xff]
        %v3705 = vld [vmem:[%s2157 + $0x20] sm:$0xff]
        %v3706 = vld [vmem:[%s2157 + $0x28] sm:$0xff]
        %v3707 = vld [vmem:[%s2157 + $0x30] sm:$0xff]
        %v3708 = vld [vmem:[%s2157 + $0x38] sm:$0xff]
        %v3709 = vld [vmem:[%s2157 + $0x40] sm:$0xff]
        %v3710 = vld [vmem:[%s2157 + $0x48] sm:$0xff]
        %v3711 = vld [vmem:[%s2157 + $0x50] sm:$0xff]
        %v3712 = vld [vmem:[%s2157 + $0x58] sm:$0xff]
        %v3713 = vld [vmem:[%s2157 + $0x60] sm:$0xff]
        %v3714 = vld [vmem:[%s2157 + $0x68] sm:$0xff]
        %v3715 = vld [vmem:[%s2157 + $0x70] sm:$0xff]
        %v3716 = vld [vmem:[%s2157 + $0x78] sm:$0xff]
        %v3717 = vld [vmem:[%s2157 + $0x80] sm:$0xff]
        %v3718 = vld [vmem:[%s2157 + $0x88] sm:$0xff]
        %v3719 = vld [vmem:[%s2157 + $0x90] sm:$0xff]
        %v3720 = vld [vmem:[%s2157 + $0x98] sm:$0xff]
        %v3721 = vld [vmem:[%s2157 + $0xa0] sm:$0xff]
        %v3722 = vld [vmem:[%s2157 + $0xa8] sm:$0xff]
        %v3723 = vld [vmem:[%s2157 + $0xb0] sm:$0xff]
        %v3724 = vld [vmem:[%s2157 + $0xb8] sm:$0xff]
        %s3725 = scalar_lea.vmem [#allocation9], 192
        %v3726 = vld [vmem:[%s3725] sm:$0xf]
        %v3727 = vld [vmem:[%s3725 + $0x4] sm:$0xf]
        %v3728 = vld [vmem:[%s3725 + $0x8] sm:$0xf]
        %v3729 = vld [vmem:[%s3725 + $0xc] sm:$0xf]
        %v3730 = vld [vmem:[%s3725 + $0x10] sm:$0xf]
        %v3731 = vld [vmem:[%s3725 + $0x14] sm:$0xf]
        %v3732 = vld [vmem:[%s3725 + $0x18] sm:$0xf]
        %v3733 = vld [vmem:[%s3725 + $0x1c] sm:$0xf]
        %v3734 = vld [vmem:[%s3725 + $0x20] sm:$0xf]
        %v3735 = vld [vmem:[%s3725 + $0x24] sm:$0xf]
        %v3736 = vld [vmem:[%s3725 + $0x28] sm:$0xf]
        %v3737 = vld [vmem:[%s3725 + $0x2c] sm:$0xf]
        %v3738 = vld [vmem:[%s3725 + $0x30] sm:$0xf]
        %v3739 = vld [vmem:[%s3725 + $0x34] sm:$0xf]
        %v3740 = vld [vmem:[%s3725 + $0x38] sm:$0xf]
        %v3741 = vld [vmem:[%s3725 + $0x3c] sm:$0xf]
        %v3742 = vld [vmem:[%s3725 + $0x40] sm:$0xf]
        %v3743 = vld [vmem:[%s3725 + $0x44] sm:$0xf]
        %v3744 = vld [vmem:[%s3725 + $0x48] sm:$0xf]
        %v3745 = vld [vmem:[%s3725 + $0x4c] sm:$0xf]
        %v3746 = vld [vmem:[%s3725 + $0x50] sm:$0xf]
        %v3747 = vld [vmem:[%s3725 + $0x54] sm:$0xf]
        %v3748 = vld [vmem:[%s3725 + $0x58] sm:$0xf]
        %v3749 = vld [vmem:[%s3725 + $0x5c] sm:$0xf]
        %v3750 = vld [vmem:[%s3725 + $0x60] sm:$0xf]
        %v3751 = vld [vmem:[%s3725 + $0x64] sm:$0xf]
        %v3752 = vld [vmem:[%s3725 + $0x68] sm:$0xf]
        %v3753 = vld [vmem:[%s3725 + $0x6c] sm:$0xf]
        %v3754 = vld [vmem:[%s3725 + $0x70] sm:$0xf]
        %v3755 = vld [vmem:[%s3725 + $0x74] sm:$0xf]
        %v3756 = vld [vmem:[%s3725 + $0x78] sm:$0xf]
        %v3757 = vld [vmem:[%s3725 + $0x7c] sm:$0xf]
        %v3758 = vld [vmem:[%s3725 + $0x80] sm:$0xf]
        %v3759 = vld [vmem:[%s3725 + $0x84] sm:$0xf]
        %v3760 = vld [vmem:[%s3725 + $0x88] sm:$0xf]
        %v3761 = vld [vmem:[%s3725 + $0x8c] sm:$0xf]
        %v3762 = vld [vmem:[%s3725 + $0x90] sm:$0xf]
        %v3763 = vld [vmem:[%s3725 + $0x94] sm:$0xf]
        %v3764 = vld [vmem:[%s3725 + $0x98] sm:$0xf]
        %v3765 = vld [vmem:[%s3725 + $0x9c] sm:$0xf]
        %v3766 = vld [vmem:[%s3725 + $0xa0] sm:$0xf]
        %v3767 = vld [vmem:[%s3725 + $0xa4] sm:$0xf]
        %v3768 = vld [vmem:[%s3725 + $0xa8] sm:$0xf]
        %v3769 = vld [vmem:[%s3725 + $0xac] sm:$0xf]
        %v3770 = vld [vmem:[%s3725 + $0xb0] sm:$0xf]
        %v3771 = vld [vmem:[%s3725 + $0xb4] sm:$0xf]
        %v3772 = vld [vmem:[%s3725 + $0xb8] sm:$0xf]
        %v3773 = vld [vmem:[%s3725 + $0xbc] sm:$0xf]
        %v3822 = vunpack.c.l.b16 %v3726
        %v3823 = vunpack.c.l.b16 %v3727
        %v3824 = vunpack.c.l.b16 %v3728
        %v3825 = vunpack.c.l.b16 %v3729
        %v3826 = vunpack.c.l.b16 %v3730
        %v3827 = vunpack.c.l.b16 %v3731
        %v3828 = vunpack.c.l.b16 %v3732
        %v3829 = vunpack.c.l.b16 %v3733
        %v3830 = vunpack.c.l.b16 %v3734
        %v3831 = vunpack.c.l.b16 %v3735
        %v3832 = vunpack.c.l.b16 %v3736
        %v3833 = vunpack.c.l.b16 %v3737
        %v3834 = vunpack.c.l.b16 %v3738
        %v3835 = vunpack.c.l.b16 %v3739
        %v3836 = vunpack.c.l.b16 %v3740
        %v3837 = vunpack.c.l.b16 %v3741
        %v3838 = vunpack.c.l.b16 %v3742
        %v3839 = vunpack.c.l.b16 %v3743
        %v3840 = vunpack.c.l.b16 %v3744
        %v3841 = vunpack.c.l.b16 %v3745
        %v3842 = vunpack.c.l.b16 %v3746
        %v3843 = vunpack.c.l.b16 %v3747
        %v3844 = vunpack.c.l.b16 %v3748
        %v3845 = vunpack.c.l.b16 %v3749
        %v3846 = vunpack.c.l.b16 %v3750
        %v3847 = vunpack.c.l.b16 %v3751
        %v3848 = vunpack.c.l.b16 %v3752
        %v3849 = vunpack.c.l.b16 %v3753
        %v3850 = vunpack.c.l.b16 %v3754
        %v3851 = vunpack.c.l.b16 %v3755
        %v3852 = vunpack.c.l.b16 %v3756
        %v3853 = vunpack.c.l.b16 %v3757
        %v3854 = vunpack.c.l.b16 %v3758
        %v3855 = vunpack.c.l.b16 %v3759
        %v3856 = vunpack.c.l.b16 %v3760
        %v3857 = vunpack.c.l.b16 %v3761
        %v3858 = vunpack.c.l.b16 %v3762
        %v3859 = vunpack.c.l.b16 %v3763
        %v3860 = vunpack.c.l.b16 %v3764
        %v3861 = vunpack.c.l.b16 %v3765
        %v3862 = vunpack.c.l.b16 %v3766
        %v3863 = vunpack.c.l.b16 %v3767
        %v3864 = vunpack.c.l.b16 %v3768
        %v3865 = vunpack.c.l.b16 %v3769
        %v3866 = vunpack.c.l.b16 %v3770
        %v3867 = vunpack.c.l.b16 %v3771
        %v3868 = vunpack.c.l.b16 %v3772
        %v3869 = vunpack.c.l.b16 %v3773
        %v3870 = vpack.c.b16 %v3823, %v3822
        %v3871 = vpack.c.b16 %v3825, %v3824
        %v3872 = vpack.c.b16 %v3827, %v3826
        %v3873 = vpack.c.b16 %v3829, %v3828
        %v3874 = vpack.c.b16 %v3831, %v3830
        %v3875 = vpack.c.b16 %v3833, %v3832
        %v3876 = vpack.c.b16 %v3835, %v3834
        %v3877 = vpack.c.b16 %v3837, %v3836
        %v3878 = vpack.c.b16 %v3839, %v3838
        %v3879 = vpack.c.b16 %v3841, %v3840
        %v3880 = vpack.c.b16 %v3843, %v3842
        %v3881 = vpack.c.b16 %v3845, %v3844
        %v3882 = vpack.c.b16 %v3847, %v3846
        %v3883 = vpack.c.b16 %v3849, %v3848
        %v3884 = vpack.c.b16 %v3851, %v3850
        %v3885 = vpack.c.b16 %v3853, %v3852
        %v3886 = vpack.c.b16 %v3855, %v3854
        %v3887 = vpack.c.b16 %v3857, %v3856
        %v3888 = vpack.c.b16 %v3859, %v3858
        %v3889 = vpack.c.b16 %v3861, %v3860
        %v3890 = vpack.c.b16 %v3863, %v3862
        %v3891 = vpack.c.b16 %v3865, %v3864
        %v3892 = vpack.c.b16 %v3867, %v3866
        %v3893 = vpack.c.b16 %v3869, %v3868
        %3918 = vmatprep.subr.bf16.mxu0 0
        %3919 = vmatpush1.bf16.msra.mxu0 %v3870
        %3920 = vmatprep.subr.bf16.mxu0 0
        %3921 = vmatpush1.bf16.msra.mxu0 %v3871
        %3922 = vmatprep.subr.bf16.mxu0 0
        %3923 = vmatpush1.bf16.msra.mxu0 %v3872
        %3924 = vmatprep.subr.bf16.mxu0 0
        %3925 = vmatpush1.bf16.msra.mxu0 %v3873
        %3926 = vmatprep.subr.bf16.mxu0 0
        %3927 = vmatpush1.bf16.msra.mxu0 %v3874
        %3928 = vmatprep.subr.bf16.mxu0 0
        %3929 = vmatpush1.bf16.msra.mxu0 %v3875
        %3930 = vmatprep.subr.bf16.mxu0 0
        %3931 = vmatpush1.bf16.msra.mxu0 %v3876
        %3932 = vmatprep.subr.bf16.mxu0 0
        %3933 = vmatpush1.bf16.msra.mxu0 %v3877
        %3934 = vmatprep.subr.bf16.mxu0 0
        %3935 = vmatpush1.bf16.msra.mxu0 %v3878
        %3936 = vmatprep.subr.bf16.mxu0 0
        %3937 = vmatpush1.bf16.msra.mxu0 %v3879
        %3938 = vmatprep.subr.bf16.mxu0 0
        %3939 = vmatpush1.bf16.msra.mxu0 %v3880
        %3940 = vmatprep.subr.bf16.mxu0 0
        %3941 = vmatpush1.bf16.msra.mxu0 %v3881
        %3942 = vmatprep.subr.bf16.mxu0 0
        %3943 = vmatpush1.bf16.msra.mxu0 %v3882
        %3944 = vmatprep.subr.bf16.mxu0 0
        %3945 = vmatpush1.bf16.msra.mxu0 %v3883
        %3946 = vmatprep.subr.bf16.mxu0 0
        %3947 = vmatpush1.bf16.msra.mxu0 %v3884
        %3948 = vmatprep.subr.bf16.mxu0 0
        %3949 = vmatpush1.bf16.msra.mxu0 %v3885
        %3950 = vmatprep.mubr.bf16.mxu0 %v3702
        %3951 = vmatmul.mubr.bf16.gmra.mrb[0].mxu0 %v3701
        %v3952 = vpop.f32.mrb[0].mxu0
        %v3953 = vadd.f32 0.0, %v3952
        %v3954 = vpop.f32.mrb[0].mxu0
        %v3955 = vpop.f32.mrb[0].mxu0
        %v3956 = vadd.f32 0.0, %v3955
        %v3957 = vpop.f32.mrb[0].mxu0
        %3958 = vmatprep.mubr.bf16.mxu0 %v3705
        %3959 = vmatmul.mubr.bf16.gmra.mrb[0].mxu0 %v3704
        %v3960 = vpop.f32.mrb[0].mxu0
        %v3961 = vadd.f32 0.0, %v3960
        %v3962 = vpop.f32.mrb[0].mxu0
        %v3963 = vpop.f32.mrb[0].mxu0
        %v3964 = vadd.f32 0.0, %v3963
        %v3965 = vpop.f32.mrb[0].mxu0
        %3966 = vmatprep.mubr.bf16.mxu0 %v3708
        %3967 = vmatmul.mubr.bf16.gmra.mrb[0].mxu0 %v3707
        %v3968 = vpop.f32.mrb[0].mxu0
        %v3969 = vadd.f32 0.0, %v3968
        %v3970 = vpop.f32.mrb[0].mxu0
        %v3971 = vpop.f32.mrb[0].mxu0
        %v3972 = vadd.f32 0.0, %v3971
        %v3973 = vpop.f32.mrb[0].mxu0
        %3974 = vmatprep.mubr.bf16.mxu0 %v3711
        %3975 = vmatmul.mubr.bf16.gmra.mrb[0].mxu0 %v3710
        %v3976 = vpop.f32.mrb[0].mxu0
        %v3977 = vadd.f32 0.0, %v3976
        %v3978 = vpop.f32.mrb[0].mxu0
        %v3979 = vpop.f32.mrb[0].mxu0
        %v3980 = vadd.f32 0.0, %v3979
        %v3981 = vpop.f32.mrb[0].mxu0
        %3982 = vmatprep.mubr.bf16.mxu0 %v3714
        %3983 = vmatmul.mubr.bf16.gmra.mrb[0].mxu0 %v3713
        %v3984 = vpop.f32.mrb[0].mxu0
        %v3985 = vadd.f32 0.0, %v3984
        %v3986 = vpop.f32.mrb[0].mxu0
        %v3987 = vpop.f32.mrb[0].mxu0
        %v3988 = vadd.f32 0.0, %v3987
        %v3989 = vpop.f32.mrb[0].mxu0
        %3990 = vmatprep.mubr.bf16.mxu0 %v3717
        %3991 = vmatmul.mubr.bf16.gmra.mrb[0].mxu0 %v3716
        %v3992 = vpop.f32.mrb[0].mxu0
        %v3993 = vadd.f32 0.0, %v3992
        %v3994 = vpop.f32.mrb[0].mxu0
        %v3995 = vpop.f32.mrb[0].mxu0
        %v3996 = vadd.f32 0.0, %v3995
        %v3997 = vpop.f32.mrb[0].mxu0
        %3998 = vmatprep.mubr.bf16.mxu0 %v3720
        %3999 = vmatmul.mubr.bf16.gmra.mrb[0].mxu0 %v3719
        %v4000 = vpop.f32.mrb[0].mxu0
        %v4001 = vadd.f32 0.0, %v4000
        %v4002 = vpop.f32.mrb[0].mxu0
        %v4003 = vpop.f32.mrb[0].mxu0
        %v4004 = vadd.f32 0.0, %v4003
        %v4005 = vpop.f32.mrb[0].mxu0
        %4006 = vmatprep.mubr.bf16.mxu0 %v3723
        %4007 = vmatmul.mubr.bf16.gmra.mrb[0].mxu0 %v3722
        %v4008 = vpop.f32.mrb[0].mxu0
        %v4009 = vadd.f32 0.0, %v4008
        %v4010 = vpop.f32.mrb[0].mxu0
        %v4011 = vpop.f32.mrb[0].mxu0
        %v4012 = vadd.f32 0.0, %v4011
        %v4013 = vpop.f32.mrb[0].mxu0
        %4014 = vdwg.mxu0
        %4015 = vmatprep.subr.bf16.mxu0 0
        %4016 = vmatpush1.bf16.msra.mxu0 %v3886
        %4017 = vmatprep.subr.bf16.mxu0 0
        %4018 = vmatpush1.bf16.msra.mxu0 %v3887
        %4019 = vmatprep.subr.bf16.mxu0 0
        %4020 = vmatpush1.bf16.msra.mxu0 %v3888
        %4021 = vmatprep.subr.bf16.mxu0 0
        %4022 = vmatpush1.bf16.msra.mxu0 %v3889
        %4023 = vmatprep.subr.bf16.mxu0 0
        %4024 = vmatpush1.bf16.msra.mxu0 %v3890
        %4025 = vmatprep.subr.bf16.mxu0 0
        %4026 = vmatpush1.bf16.msra.mxu0 %v3891
        %4027 = vmatprep.subr.bf16.mxu0 0
        %4028 = vmatpush1.bf16.msra.mxu0 %v3892
        %4029 = vmatprep.subr.bf16.mxu0 0
        %4030 = vmatpush1.bf16.msra.mxu0 %v3893
        %4031 = vmatprep.subr.bf16.mxu0 0
        %4032 = vmatpush1.bf16.msra.mxu0 0
        %4033 = vmatprep.subr.bf16.mxu0 0
        %4034 = vmatpush1.bf16.msra.mxu0 0
        %4035 = vmatprep.subr.bf16.mxu0 0
        %4036 = vmatpush1.bf16.msra.mxu0 0
        %4037 = vmatprep.subr.bf16.mxu0 0
        %4038 = vmatpush1.bf16.msra.mxu0 0
        %4039 = vmatprep.subr.bf16.mxu0 0
        %4040 = vmatpush1.bf16.msra.mxu0 0
        %4041 = vmatprep.subr.bf16.mxu0 0
        %4042 = vmatpush1.bf16.msra.mxu0 0
        %4043 = vmatprep.subr.bf16.mxu0 0
        %4044 = vmatpush1.bf16.msra.mxu0 0
        %4045 = vmatprep.subr.bf16.mxu0 0
        %4046 = vmatpush1.bf16.msra.mxu0 0
        %4047 = vmatprep.mubr.bf16.mxu0 0
        %4048 = vmatmul.mubr.bf16.gmra.mrb[0].mxu0 %v3703
        %v4049 = vpop.f32.mrb[0].mxu0
        %v4050 = vadd.f32 %v3953, %v4049
        %v4051 = vpop.f32.mrb[0].mxu0
        %v4052 = vpop.f32.mrb[0].mxu0
        %v4053 = vadd.f32 %v3956, %v4052
        %v4054 = vpop.f32.mrb[0].mxu0
        %4055 = vmatprep.mubr.bf16.mxu0 0
        %4056 = vmatmul.mubr.bf16.gmra.mrb[0].mxu0 %v3706
        %v4057 = vpop.f32.mrb[0].mxu0
        %v4058 = vadd.f32 %v3961, %v4057
        %v4059 = vpop.f32.mrb[0].mxu0
        %v4060 = vpop.f32.mrb[0].mxu0
        %v4061 = vadd.f32 %v3964, %v4060
        %v4062 = vpop.f32.mrb[0].mxu0
        %4063 = vmatprep.mubr.bf16.mxu0 0
        %4064 = vmatmul.mubr.bf16.gmra.mrb[0].mxu0 %v3709
        %v4065 = vpop.f32.mrb[0].mxu0
        %v4066 = vadd.f32 %v3969, %v4065
        %v4067 = vpop.f32.mrb[0].mxu0
        %v4068 = vpop.f32.mrb[0].mxu0
        %v4069 = vadd.f32 %v3972, %v4068
        %v4070 = vpop.f32.mrb[0].mxu0
        %4071 = vmatprep.mubr.bf16.mxu0 0
        %4072 = vmatmul.mubr.bf16.gmra.mrb[0].mxu0 %v3712
        %v4073 = vpop.f32.mrb[0].mxu0
        %v4074 = vadd.f32 %v3977, %v4073
        %v4075 = vpop.f32.mrb[0].mxu0
        %v4076 = vpop.f32.mrb[0].mxu0
        %v4077 = vadd.f32 %v3980, %v4076
        %v4078 = vpop.f32.mrb[0].mxu0
        %4079 = vmatprep.mubr.bf16.mxu0 0
        %4080 = vmatmul.mubr.bf16.gmra.mrb[0].mxu0 %v3715
        %v4081 = vpop.f32.mrb[0].mxu0
        %v4082 = vadd.f32 %v3985, %v4081
        %v4083 = vpop.f32.mrb[0].mxu0
        %v4084 = vpop.f32.mrb[0].mxu0
        %v4085 = vadd.f32 %v3988, %v4084
        %v4086 = vpop.f32.mrb[0].mxu0
        %4087 = vmatprep.mubr.bf16.mxu0 0
        %4088 = vmatmul.mubr.bf16.gmra.mrb[0].mxu0 %v3718
        %v4089 = vpop.f32.mrb[0].mxu0
        %v4090 = vadd.f32 %v3993, %v4089
        %v4091 = vpop.f32.mrb[0].mxu0
        %v4092 = vpop.f32.mrb[0].mxu0
        %v4093 = vadd.f32 %v3996, %v4092
        %v4094 = vpop.f32.mrb[0].mxu0
        %4095 = vmatprep.mubr.bf16.mxu0 0
        %4096 = vmatmul.mubr.bf16.gmra.mrb[0].mxu0 %v3721
        %v4097 = vpop.f32.mrb[0].mxu0
        %v4098 = vadd.f32 %v4001, %v4097
        %v4099 = vpop.f32.mrb[0].mxu0
        %v4100 = vpop.f32.mrb[0].mxu0
        %v4101 = vadd.f32 %v4004, %v4100
        %v4102 = vpop.f32.mrb[0].mxu0
        %4103 = vmatprep.mubr.bf16.mxu0 0
        %4104 = vmatmul.mubr.bf16.gmra.mrb[0].mxu0 %v3724
        %v4105 = vpop.f32.mrb[0].mxu0
        %v4106 = vadd.f32 %v4009, %v4105
        %v4107 = vpop.f32.mrb[0].mxu0
        %v4108 = vpop.f32.mrb[0].mxu0
        %v4109 = vadd.f32 %v4012, %v4108
        %v4110 = vpop.f32.mrb[0].mxu0
        %4111 = vdwg.mxu0
        %v4160 = vunpack.c.l.b16 %v3653
        %v4161 = vunpack.c.l.b16 %v3654
        %v4162 = vunpack.c.l.b16 %v3655
        %v4163 = vunpack.c.l.b16 %v3656
        %v4164 = vunpack.c.l.b16 %v3657
        %v4165 = vunpack.c.l.b16 %v3658
        %v4166 = vunpack.c.l.b16 %v3659
        %v4167 = vunpack.c.l.b16 %v3660
        %v4168 = vunpack.c.l.b16 %v3661
        %v4169 = vunpack.c.l.b16 %v3662
        %v4170 = vunpack.c.l.b16 %v3663
        %v4171 = vunpack.c.l.b16 %v3664
        %v4172 = vunpack.c.l.b16 %v3665
        %v4173 = vunpack.c.l.b16 %v3666
        %v4174 = vunpack.c.l.b16 %v3667
        %v4175 = vunpack.c.l.b16 %v3668
        %v4176 = vunpack.c.l.b16 %v3669
        %v4177 = vunpack.c.l.b16 %v3670
        %v4178 = vunpack.c.l.b16 %v3671
        %v4179 = vunpack.c.l.b16 %v3672
        %v4180 = vunpack.c.l.b16 %v3673
        %v4181 = vunpack.c.l.b16 %v3674
        %v4182 = vunpack.c.l.b16 %v3675
        %v4183 = vunpack.c.l.b16 %v3676
        %v4184 = vunpack.c.l.b16 %v3677
        %v4185 = vunpack.c.l.b16 %v3678
        %v4186 = vunpack.c.l.b16 %v3679
        %v4187 = vunpack.c.l.b16 %v3680
        %v4188 = vunpack.c.l.b16 %v3681
        %v4189 = vunpack.c.l.b16 %v3682
        %v4190 = vunpack.c.l.b16 %v3683
        %v4191 = vunpack.c.l.b16 %v3684
        %v4192 = vunpack.c.l.b16 %v3685
        %v4193 = vunpack.c.l.b16 %v3686
        %v4194 = vunpack.c.l.b16 %v3687
        %v4195 = vunpack.c.l.b16 %v3688
        %v4196 = vunpack.c.l.b16 %v3689
        %v4197 = vunpack.c.l.b16 %v3690
        %v4198 = vunpack.c.l.b16 %v3691
        %v4199 = vunpack.c.l.b16 %v3692
        %v4200 = vunpack.c.l.b16 %v3693
        %v4201 = vunpack.c.l.b16 %v3694
        %v4202 = vunpack.c.l.b16 %v3695
        %v4203 = vunpack.c.l.b16 %v3696
        %v4204 = vunpack.c.l.b16 %v3697
        %v4205 = vunpack.c.l.b16 %v3698
        %v4206 = vunpack.c.l.b16 %v3699
        %v4207 = vunpack.c.l.b16 %v3700
        %v4208 = vpack.c.b16 %v4161, %v4160
        %v4209 = vpack.c.b16 %v4163, %v4162
        %v4210 = vpack.c.b16 %v4165, %v4164
        %v4211 = vpack.c.b16 %v4167, %v4166
        %v4212 = vpack.c.b16 %v4169, %v4168
        %v4213 = vpack.c.b16 %v4171, %v4170
        %v4214 = vpack.c.b16 %v4173, %v4172
        %v4215 = vpack.c.b16 %v4175, %v4174
        %v4216 = vpack.c.b16 %v4177, %v4176
        %v4217 = vpack.c.b16 %v4179, %v4178
        %v4218 = vpack.c.b16 %v4181, %v4180
        %v4219 = vpack.c.b16 %v4183, %v4182
        %v4220 = vpack.c.b16 %v4185, %v4184
        %v4221 = vpack.c.b16 %v4187, %v4186
        %v4222 = vpack.c.b16 %v4189, %v4188
        %v4223 = vpack.c.b16 %v4191, %v4190
        %v4224 = vpack.c.b16 %v4193, %v4192
        %v4225 = vpack.c.b16 %v4195, %v4194
        %v4226 = vpack.c.b16 %v4197, %v4196
        %v4227 = vpack.c.b16 %v4199, %v4198
        %v4228 = vpack.c.b16 %v4201, %v4200
        %v4229 = vpack.c.b16 %v4203, %v4202
        %v4230 = vpack.c.b16 %v4205, %v4204
        %v4231 = vpack.c.b16 %v4207, %v4206
        %4256 = vmatprep.subr.bf16.mxu0 0
        %4257 = vmatpush1.bf16.msra.mxu0 %v4208
        %4258 = vmatprep.subr.bf16.mxu0 0
        %4259 = vmatpush1.bf16.msra.mxu0 %v4209
        %4260 = vmatprep.subr.bf16.mxu0 0
        %4261 = vmatpush1.bf16.msra.mxu0 %v4210
        %4262 = vmatprep.subr.bf16.mxu0 0
        %4263 = vmatpush1.bf16.msra.mxu0 %v4211
        %4264 = vmatprep.subr.bf16.mxu0 0
        %4265 = vmatpush1.bf16.msra.mxu0 %v4212
        %4266 = vmatprep.subr.bf16.mxu0 0
        %4267 = vmatpush1.bf16.msra.mxu0 %v4213
        %4268 = vmatprep.subr.bf16.mxu0 0
        %4269 = vmatpush1.bf16.msra.mxu0 %v4214
        %4270 = vmatprep.subr.bf16.mxu0 0
        %4271 = vmatpush1.bf16.msra.mxu0 %v4215
        %4272 = vmatprep.subr.bf16.mxu0 0
        %4273 = vmatpush1.bf16.msra.mxu0 %v4216
        %4274 = vmatprep.subr.bf16.mxu0 0
        %4275 = vmatpush1.bf16.msra.mxu0 %v4217
        %4276 = vmatprep.subr.bf16.mxu0 0
        %4277 = vmatpush1.bf16.msra.mxu0 %v4218
        %4278 = vmatprep.subr.bf16.mxu0 0
        %4279 = vmatpush1.bf16.msra.mxu0 %v4219
        %4280 = vmatprep.subr.bf16.mxu0 0
        %4281 = vmatpush1.bf16.msra.mxu0 %v4220
        %4282 = vmatprep.subr.bf16.mxu0 0
        %4283 = vmatpush1.bf16.msra.mxu0 %v4221
        %4284 = vmatprep.subr.bf16.mxu0 0
        %4285 = vmatpush1.bf16.msra.mxu0 %v4222
        %4286 = vmatprep.subr.bf16.mxu0 0
        %4287 = vmatpush1.bf16.msra.mxu0 %v4223
        %4288 = vmatprep.mubr.bf16.mxu0 %v3630
        %4289 = vmatmul.mubr.bf16.gmra.mrb[0].mxu0 %v3629
        %v4290 = vpop.f32.mrb[0].mxu0
        %v4291 = vadd.f32 %v4050, %v4290
        %v4292 = vpop.f32.mrb[0].mxu0
        %v4293 = vpop.f32.mrb[0].mxu0
        %v4294 = vadd.f32 %v4053, %v4293
        %v4295 = vpop.f32.mrb[0].mxu0
        %4296 = vmatprep.mubr.bf16.mxu0 %v3633
        %4297 = vmatmul.mubr.bf16.gmra.mrb[0].mxu0 %v3632
        %v4298 = vpop.f32.mrb[0].mxu0
        %v4299 = vadd.f32 %v4058, %v4298
        %v4300 = vpop.f32.mrb[0].mxu0
        %v4301 = vpop.f32.mrb[0].mxu0
        %v4302 = vadd.f32 %v4061, %v4301
        %v4303 = vpop.f32.mrb[0].mxu0
        %4304 = vmatprep.mubr.bf16.mxu0 %v3636
        %4305 = vmatmul.mubr.bf16.gmra.mrb[0].mxu0 %v3635
        %v4306 = vpop.f32.mrb[0].mxu0
        %v4307 = vadd.f32 %v4066, %v4306
        %v4308 = vpop.f32.mrb[0].mxu0
        %v4309 = vpop.f32.mrb[0].mxu0
        %v4310 = vadd.f32 %v4069, %v4309
        %v4311 = vpop.f32.mrb[0].mxu0
        %4312 = vmatprep.mubr.bf16.mxu0 %v3639
        %4313 = vmatmul.mubr.bf16.gmra.mrb[0].mxu0 %v3638
        %v4314 = vpop.f32.mrb[0].mxu0
        %v4315 = vadd.f32 %v4074, %v4314
        %v4316 = vpop.f32.mrb[0].mxu0
        %v4317 = vpop.f32.mrb[0].mxu0
        %v4318 = vadd.f32 %v4077, %v4317
        %v4319 = vpop.f32.mrb[0].mxu0
        %4320 = vmatprep.mubr.bf16.mxu0 %v3642
        %4321 = vmatmul.mubr.bf16.gmra.mrb[0].mxu0 %v3641
        %v4322 = vpop.f32.mrb[0].mxu0
        %v4323 = vadd.f32 %v4082, %v4322
        %v4324 = vpop.f32.mrb[0].mxu0
        %v4325 = vpop.f32.mrb[0].mxu0
        %v4326 = vadd.f32 %v4085, %v4325
        %v4327 = vpop.f32.mrb[0].mxu0
        %4328 = vmatprep.mubr.bf16.mxu0 %v3645
        %4329 = vmatmul.mubr.bf16.gmra.mrb[0].mxu0 %v3644
        %v4330 = vpop.f32.mrb[0].mxu0
        %v4331 = vadd.f32 %v4090, %v4330
        %v4332 = vpop.f32.mrb[0].mxu0
        %v4333 = vpop.f32.mrb[0].mxu0
        %v4334 = vadd.f32 %v4093, %v4333
        %v4335 = vpop.f32.mrb[0].mxu0
        %4336 = vmatprep.mubr.bf16.mxu0 %v3648
        %4337 = vmatmul.mubr.bf16.gmra.mrb[0].mxu0 %v3647
        %v4338 = vpop.f32.mrb[0].mxu0
        %v4339 = vadd.f32 %v4098, %v4338
        %v4340 = vpop.f32.mrb[0].mxu0
        %v4341 = vpop.f32.mrb[0].mxu0
        %v4342 = vadd.f32 %v4101, %v4341
        %v4343 = vpop.f32.mrb[0].mxu0
        %4344 = vmatprep.mubr.bf16.mxu0 %v3651
        %4345 = vmatmul.mubr.bf16.gmra.mrb[0].mxu0 %v3650
        %v4346 = vpop.f32.mrb[0].mxu0
        %v4347 = vadd.f32 %v4106, %v4346
        %v4348 = vpop.f32.mrb[0].mxu0
        %v4349 = vpop.f32.mrb[0].mxu0
        %v4350 = vadd.f32 %v4109, %v4349
        %v4351 = vpop.f32.mrb[0].mxu0
        %4352 = vdwg.mxu0
        %4353 = vmatprep.subr.bf16.mxu0 0
        %4354 = vmatpush1.bf16.msra.mxu0 %v4224
        %4355 = vmatprep.subr.bf16.mxu0 0
        %4356 = vmatpush1.bf16.msra.mxu0 %v4225
        %4357 = vmatprep.subr.bf16.mxu0 0
        %4358 = vmatpush1.bf16.msra.mxu0 %v4226
        %4359 = vmatprep.subr.bf16.mxu0 0
        %4360 = vmatpush1.bf16.msra.mxu0 %v4227
        %4361 = vmatprep.subr.bf16.mxu0 0
        %4362 = vmatpush1.bf16.msra.mxu0 %v4228
        %4363 = vmatprep.subr.bf16.mxu0 0
        %4364 = vmatpush1.bf16.msra.mxu0 %v4229
        %4365 = vmatprep.subr.bf16.mxu0 0
        %4366 = vmatpush1.bf16.msra.mxu0 %v4230
        %4367 = vmatprep.subr.bf16.mxu0 0
        %4368 = vmatpush1.bf16.msra.mxu0 %v4231
        %4369 = vmatprep.subr.bf16.mxu0 0
        %4370 = vmatpush1.bf16.msra.mxu0 0
        %4371 = vmatprep.subr.bf16.mxu0 0
        %4372 = vmatpush1.bf16.msra.mxu0 0
        %4373 = vmatprep.subr.bf16.mxu0 0
        %4374 = vmatpush1.bf16.msra.mxu0 0
        %4375 = vmatprep.subr.bf16.mxu0 0
        %4376 = vmatpush1.bf16.msra.mxu0 0
        %4377 = vmatprep.subr.bf16.mxu0 0
        %4378 = vmatpush1.bf16.msra.mxu0 0
        %4379 = vmatprep.subr.bf16.mxu0 0
        %4380 = vmatpush1.bf16.msra.mxu0 0
        %4381 = vmatprep.subr.bf16.mxu0 0
        %4382 = vmatpush1.bf16.msra.mxu0 0
        %4383 = vmatprep.subr.bf16.mxu0 0
        %4384 = vmatpush1.bf16.msra.mxu0 0
        %4385 = vmatprep.mubr.bf16.mxu0 0
        %4386 = vmatmul.mubr.bf16.gmra.mrb[0].mxu0 %v3631
        %v4387 = vpop.f32.mrb[0].mxu0
        %v4388 = vadd.f32 %v4291, %v4387
        %v4389 = vpop.f32.mrb[0].mxu0
        %v4390 = vpop.f32.mrb[0].mxu0
        %v4391 = vadd.f32 %v4294, %v4390
        %v4392 = vpop.f32.mrb[0].mxu0
        %4393 = vmatprep.mubr.bf16.mxu0 0
        %4394 = vmatmul.mubr.bf16.gmra.mrb[0].mxu0 %v3634
        %v4395 = vpop.f32.mrb[0].mxu0
        %v4396 = vadd.f32 %v4299, %v4395
        %v4397 = vpop.f32.mrb[0].mxu0
        %v4398 = vpop.f32.mrb[0].mxu0
        %v4399 = vadd.f32 %v4302, %v4398
        %v4400 = vpop.f32.mrb[0].mxu0
        %4401 = vmatprep.mubr.bf16.mxu0 0
        %4402 = vmatmul.mubr.bf16.gmra.mrb[0].mxu0 %v3637
        %v4403 = vpop.f32.mrb[0].mxu0
        %v4404 = vadd.f32 %v4307, %v4403
        %v4405 = vpop.f32.mrb[0].mxu0
        %v4406 = vpop.f32.mrb[0].mxu0
        %v4407 = vadd.f32 %v4310, %v4406
        %v4408 = vpop.f32.mrb[0].mxu0
        %4409 = vmatprep.mubr.bf16.mxu0 0
        %4410 = vmatmul.mubr.bf16.gmra.mrb[0].mxu0 %v3640
        %v4411 = vpop.f32.mrb[0].mxu0
        %v4412 = vadd.f32 %v4315, %v4411
        %v4413 = vpop.f32.mrb[0].mxu0
        %v4414 = vpop.f32.mrb[0].mxu0
        %v4415 = vadd.f32 %v4318, %v4414
        %v4416 = vpop.f32.mrb[0].mxu0
        %4417 = vmatprep.mubr.bf16.mxu0 0
        %4418 = vmatmul.mubr.bf16.gmra.mrb[0].mxu0 %v3643
        %v4419 = vpop.f32.mrb[0].mxu0
        %v4420 = vadd.f32 %v4323, %v4419
        %v4421 = vpop.f32.mrb[0].mxu0
        %v4422 = vpop.f32.mrb[0].mxu0
        %v4423 = vadd.f32 %v4326, %v4422
        %v4424 = vpop.f32.mrb[0].mxu0
        %4425 = vmatprep.mubr.bf16.mxu0 0
        %4426 = vmatmul.mubr.bf16.gmra.mrb[0].mxu0 %v3646
        %v4427 = vpop.f32.mrb[0].mxu0
        %v4428 = vadd.f32 %v4331, %v4427
        %v4429 = vpop.f32.mrb[0].mxu0
        %v4430 = vpop.f32.mrb[0].mxu0
        %v4431 = vadd.f32 %v4334, %v4430
        %v4432 = vpop.f32.mrb[0].mxu0
        %4433 = vmatprep.mubr.bf16.mxu0 0
        %4434 = vmatmul.mubr.bf16.gmra.mrb[0].mxu0 %v3649
        %v4435 = vpop.f32.mrb[0].mxu0
        %v4436 = vadd.f32 %v4339, %v4435
        %v4437 = vpop.f32.mrb[0].mxu0
        %v4438 = vpop.f32.mrb[0].mxu0
        %v4439 = vadd.f32 %v4342, %v4438
        %v4440 = vpop.f32.mrb[0].mxu0
        %4441 = vmatprep.mubr.bf16.mxu0 0
        %4442 = vmatmul.mubr.bf16.gmra.mrb[0].mxu0 %v3652
        %v4443 = vpop.f32.mrb[0].mxu0
        %v4444 = vadd.f32 %v4347, %v4443
        %v4445 = vpop.f32.mrb[0].mxu0
        %v4446 = vpop.f32.mrb[0].mxu0
        %v4447 = vadd.f32 %v4350, %v4446
        %v4448 = vpop.f32.mrb[0].mxu0
        %4449 = vdwg.mxu0
        %s4450 = scalar_lea.vmem [#allocation3], 48
        %v4451 = vld [vmem:[%s4450] sm:$0xff]
        %v4452 = vld [vmem:[%s4450 + $0x8] sm:$0xff]
        %v4453 = vld [vmem:[%s4450 + $0x10] sm:$0xff]
        %v4454 = vld [vmem:[%s4450 + $0x18] sm:$0xff]
        %v4455 = vld [vmem:[%s4450 + $0x20] sm:$0xff]
        %v4456 = vld [vmem:[%s4450 + $0x28] sm:$0xff]
        %v4457 = vld [vmem:[%s4450 + $0x30] sm:$0xff]
        %v4458 = vld [vmem:[%s4450 + $0x38] sm:$0xff]
        %v4459 = vld [vmem:[%s4450 + $0x40] sm:$0xff]
        %v4460 = vld [vmem:[%s4450 + $0x48] sm:$0xff]
        %v4461 = vld [vmem:[%s4450 + $0x50] sm:$0xff]
        %v4462 = vld [vmem:[%s4450 + $0x58] sm:$0xff]
        %v4463 = vld [vmem:[%s4450 + $0x60] sm:$0xff]
        %v4464 = vld [vmem:[%s4450 + $0x68] sm:$0xff]
        %v4465 = vld [vmem:[%s4450 + $0x70] sm:$0xff]
        %v4466 = vld [vmem:[%s4450 + $0x78] sm:$0xff]
        %v4467 = vld [vmem:[%s4450 + $0x80] sm:$0xff]
        %v4468 = vld [vmem:[%s4450 + $0x88] sm:$0xff]
        %v4469 = vld [vmem:[%s4450 + $0x90] sm:$0xff]
        %v4470 = vld [vmem:[%s4450 + $0x98] sm:$0xff]
        %v4471 = vld [vmem:[%s4450 + $0xa0] sm:$0xff]
        %v4472 = vld [vmem:[%s4450 + $0xa8] sm:$0xff]
        %v4473 = vld [vmem:[%s4450 + $0xb0] sm:$0xff]
        %v4474 = vld [vmem:[%s4450 + $0xb8] sm:$0xff]
        %s4475 = scalar_lea.vmem [#allocation9], 384
        %v4476 = vld [vmem:[%s4475] sm:$0xf]
        %v4477 = vld [vmem:[%s4475 + $0x4] sm:$0xf]
        %v4478 = vld [vmem:[%s4475 + $0x8] sm:$0xf]
        %v4479 = vld [vmem:[%s4475 + $0xc] sm:$0xf]
        %v4480 = vld [vmem:[%s4475 + $0x10] sm:$0xf]
        %v4481 = vld [vmem:[%s4475 + $0x14] sm:$0xf]
        %v4482 = vld [vmem:[%s4475 + $0x18] sm:$0xf]
        %v4483 = vld [vmem:[%s4475 + $0x1c] sm:$0xf]
        %v4484 = vld [vmem:[%s4475 + $0x20] sm:$0xf]
        %v4485 = vld [vmem:[%s4475 + $0x24] sm:$0xf]
        %v4486 = vld [vmem:[%s4475 + $0x28] sm:$0xf]
        %v4487 = vld [vmem:[%s4475 + $0x2c] sm:$0xf]
        %v4488 = vld [vmem:[%s4475 + $0x30] sm:$0xf]
        %v4489 = vld [vmem:[%s4475 + $0x34] sm:$0xf]
        %v4490 = vld [vmem:[%s4475 + $0x38] sm:$0xf]
        %v4491 = vld [vmem:[%s4475 + $0x3c] sm:$0xf]
        %v4492 = vld [vmem:[%s4475 + $0x40] sm:$0xf]
        %v4493 = vld [vmem:[%s4475 + $0x44] sm:$0xf]
        %v4494 = vld [vmem:[%s4475 + $0x48] sm:$0xf]
        %v4495 = vld [vmem:[%s4475 + $0x4c] sm:$0xf]
        %v4496 = vld [vmem:[%s4475 + $0x50] sm:$0xf]
        %v4497 = vld [vmem:[%s4475 + $0x54] sm:$0xf]
        %v4498 = vld [vmem:[%s4475 + $0x58] sm:$0xf]
        %v4499 = vld [vmem:[%s4475 + $0x5c] sm:$0xf]
        %v4500 = vld [vmem:[%s4475 + $0x60] sm:$0xf]
        %v4501 = vld [vmem:[%s4475 + $0x64] sm:$0xf]
        %v4502 = vld [vmem:[%s4475 + $0x68] sm:$0xf]
        %v4503 = vld [vmem:[%s4475 + $0x6c] sm:$0xf]
        %v4504 = vld [vmem:[%s4475 + $0x70] sm:$0xf]
        %v4505 = vld [vmem:[%s4475 + $0x74] sm:$0xf]
        %v4506 = vld [vmem:[%s4475 + $0x78] sm:$0xf]
        %v4507 = vld [vmem:[%s4475 + $0x7c] sm:$0xf]
        %v4508 = vld [vmem:[%s4475 + $0x80] sm:$0xf]
        %v4509 = vld [vmem:[%s4475 + $0x84] sm:$0xf]
        %v4510 = vld [vmem:[%s4475 + $0x88] sm:$0xf]
        %v4511 = vld [vmem:[%s4475 + $0x8c] sm:$0xf]
        %v4512 = vld [vmem:[%s4475 + $0x90] sm:$0xf]
        %v4513 = vld [vmem:[%s4475 + $0x94] sm:$0xf]
        %v4514 = vld [vmem:[%s4475 + $0x98] sm:$0xf]
        %v4515 = vld [vmem:[%s4475 + $0x9c] sm:$0xf]
        %v4516 = vld [vmem:[%s4475 + $0xa0] sm:$0xf]
        %v4517 = vld [vmem:[%s4475 + $0xa4] sm:$0xf]
        %v4518 = vld [vmem:[%s4475 + $0xa8] sm:$0xf]
        %v4519 = vld [vmem:[%s4475 + $0xac] sm:$0xf]
        %v4520 = vld [vmem:[%s4475 + $0xb0] sm:$0xf]
        %v4521 = vld [vmem:[%s4475 + $0xb4] sm:$0xf]
        %v4522 = vld [vmem:[%s4475 + $0xb8] sm:$0xf]
        %v4523 = vld [vmem:[%s4475 + $0xbc] sm:$0xf]
        %v4572 = vunpack.c.l.b16 %v4476
        %v4573 = vunpack.c.l.b16 %v4477
        %v4574 = vunpack.c.l.b16 %v4478
        %v4575 = vunpack.c.l.b16 %v4479
        %v4576 = vunpack.c.l.b16 %v4480
        %v4577 = vunpack.c.l.b16 %v4481
        %v4578 = vunpack.c.l.b16 %v4482
        %v4579 = vunpack.c.l.b16 %v4483
        %v4580 = vunpack.c.l.b16 %v4484
        %v4581 = vunpack.c.l.b16 %v4485
        %v4582 = vunpack.c.l.b16 %v4486
        %v4583 = vunpack.c.l.b16 %v4487
        %v4584 = vunpack.c.l.b16 %v4488
        %v4585 = vunpack.c.l.b16 %v4489
        %v4586 = vunpack.c.l.b16 %v4490
        %v4587 = vunpack.c.l.b16 %v4491
        %v4588 = vunpack.c.l.b16 %v4492
        %v4589 = vunpack.c.l.b16 %v4493
        %v4590 = vunpack.c.l.b16 %v4494
        %v4591 = vunpack.c.l.b16 %v4495
        %v4592 = vunpack.c.l.b16 %v4496
        %v4593 = vunpack.c.l.b16 %v4497
        %v4594 = vunpack.c.l.b16 %v4498
        %v4595 = vunpack.c.l.b16 %v4499
        %v4596 = vunpack.c.l.b16 %v4500
        %v4597 = vunpack.c.l.b16 %v4501
        %v4598 = vunpack.c.l.b16 %v4502
        %v4599 = vunpack.c.l.b16 %v4503
        %v4600 = vunpack.c.l.b16 %v4504
        %v4601 = vunpack.c.l.b16 %v4505
        %v4602 = vunpack.c.l.b16 %v4506
        %v4603 = vunpack.c.l.b16 %v4507
        %v4604 = vunpack.c.l.b16 %v4508
        %v4605 = vunpack.c.l.b16 %v4509
        %v4606 = vunpack.c.l.b16 %v4510
        %v4607 = vunpack.c.l.b16 %v4511
        %v4608 = vunpack.c.l.b16 %v4512
        %v4609 = vunpack.c.l.b16 %v4513
        %v4610 = vunpack.c.l.b16 %v4514
        %v4611 = vunpack.c.l.b16 %v4515
        %v4612 = vunpack.c.l.b16 %v4516
        %v4613 = vunpack.c.l.b16 %v4517
        %v4614 = vunpack.c.l.b16 %v4518
        %v4615 = vunpack.c.l.b16 %v4519
        %v4616 = vunpack.c.l.b16 %v4520
        %v4617 = vunpack.c.l.b16 %v4521
        %v4618 = vunpack.c.l.b16 %v4522
        %v4619 = vunpack.c.l.b16 %v4523
        %v4620 = vpack.c.b16 %v4573, %v4572
        %v4621 = vpack.c.b16 %v4575, %v4574
        %v4622 = vpack.c.b16 %v4577, %v4576
        %v4623 = vpack.c.b16 %v4579, %v4578
        %v4624 = vpack.c.b16 %v4581, %v4580
        %v4625 = vpack.c.b16 %v4583, %v4582
        %v4626 = vpack.c.b16 %v4585, %v4584
        %v4627 = vpack.c.b16 %v4587, %v4586
        %v4628 = vpack.c.b16 %v4589, %v4588
        %v4629 = vpack.c.b16 %v4591, %v4590
        %v4630 = vpack.c.b16 %v4593, %v4592
        %v4631 = vpack.c.b16 %v4595, %v4594
        %v4632 = vpack.c.b16 %v4597, %v4596
        %v4633 = vpack.c.b16 %v4599, %v4598
        %v4634 = vpack.c.b16 %v4601, %v4600
        %v4635 = vpack.c.b16 %v4603, %v4602
        %v4636 = vpack.c.b16 %v4605, %v4604
        %v4637 = vpack.c.b16 %v4607, %v4606
        %v4638 = vpack.c.b16 %v4609, %v4608
        %v4639 = vpack.c.b16 %v4611, %v4610
        %v4640 = vpack.c.b16 %v4613, %v4612
        %v4641 = vpack.c.b16 %v4615, %v4614
        %v4642 = vpack.c.b16 %v4617, %v4616
        %v4643 = vpack.c.b16 %v4619, %v4618
        %4668 = vmatprep.subr.bf16.mxu0 0
        %4669 = vmatpush1.bf16.msra.mxu0 %v4620
        %4670 = vmatprep.subr.bf16.mxu0 0
        %4671 = vmatpush1.bf16.msra.mxu0 %v4621
        %4672 = vmatprep.subr.bf16.mxu0 0
        %4673 = vmatpush1.bf16.msra.mxu0 %v4622
        %4674 = vmatprep.subr.bf16.mxu0 0
        %4675 = vmatpush1.bf16.msra.mxu0 %v4623
        %4676 = vmatprep.subr.bf16.mxu0 0
        %4677 = vmatpush1.bf16.msra.mxu0 %v4624
        %4678 = vmatprep.subr.bf16.mxu0 0
        %4679 = vmatpush1.bf16.msra.mxu0 %v4625
        %4680 = vmatprep.subr.bf16.mxu0 0
        %4681 = vmatpush1.bf16.msra.mxu0 %v4626
        %4682 = vmatprep.subr.bf16.mxu0 0
        %4683 = vmatpush1.bf16.msra.mxu0 %v4627
        %4684 = vmatprep.subr.bf16.mxu0 0
        %4685 = vmatpush1.bf16.msra.mxu0 %v4628
        %4686 = vmatprep.subr.bf16.mxu0 0
        %4687 = vmatpush1.bf16.msra.mxu0 %v4629
        %4688 = vmatprep.subr.bf16.mxu0 0
        %4689 = vmatpush1.bf16.msra.mxu0 %v4630
        %4690 = vmatprep.subr.bf16.mxu0 0
        %4691 = vmatpush1.bf16.msra.mxu0 %v4631
        %4692 = vmatprep.subr.bf16.mxu0 0
        %4693 = vmatpush1.bf16.msra.mxu0 %v4632
        %4694 = vmatprep.subr.bf16.mxu0 0
        %4695 = vmatpush1.bf16.msra.mxu0 %v4633
        %4696 = vmatprep.subr.bf16.mxu0 0
        %4697 = vmatpush1.bf16.msra.mxu0 %v4634
        %4698 = vmatprep.subr.bf16.mxu0 0
        %4699 = vmatpush1.bf16.msra.mxu0 %v4635
        %4700 = vmatprep.mubr.bf16.mxu0 %v4452
        %4701 = vmatmul.mubr.bf16.gmra.mrb[0].mxu0 %v4451
        %v4702 = vpop.f32.mrb[0].mxu0
        %v4703 = vadd.f32 0.0, %v4702
        %v4704 = vpop.f32.mrb[0].mxu0
        %v4705 = vpop.f32.mrb[0].mxu0
        %v4706 = vadd.f32 0.0, %v4705
        %v4707 = vpop.f32.mrb[0].mxu0
        %4708 = vmatprep.mubr.bf16.mxu0 %v4455
        %4709 = vmatmul.mubr.bf16.gmra.mrb[0].mxu0 %v4454
        %v4710 = vpop.f32.mrb[0].mxu0
        %v4711 = vadd.f32 0.0, %v4710
        %v4712 = vpop.f32.mrb[0].mxu0
        %v4713 = vpop.f32.mrb[0].mxu0
        %v4714 = vadd.f32 0.0, %v4713
        %v4715 = vpop.f32.mrb[0].mxu0
        %4716 = vmatprep.mubr.bf16.mxu0 %v4458
        %4717 = vmatmul.mubr.bf16.gmra.mrb[0].mxu0 %v4457
        %v4718 = vpop.f32.mrb[0].mxu0
        %v4719 = vadd.f32 0.0, %v4718
        %v4720 = vpop.f32.mrb[0].mxu0
        %v4721 = vpop.f32.mrb[0].mxu0
        %v4722 = vadd.f32 0.0, %v4721
        %v4723 = vpop.f32.mrb[0].mxu0
        %4724 = vmatprep.mubr.bf16.mxu0 %v4461
        %4725 = vmatmul.mubr.bf16.gmra.mrb[0].mxu0 %v4460
        %v4726 = vpop.f32.mrb[0].mxu0
        %v4727 = vadd.f32 0.0, %v4726
        %v4728 = vpop.f32.mrb[0].mxu0
        %v4729 = vpop.f32.mrb[0].mxu0
        %v4730 = vadd.f32 0.0, %v4729
        %v4731 = vpop.f32.mrb[0].mxu0
        %4732 = vmatprep.mubr.bf16.mxu0 %v4464
        %4733 = vmatmul.mubr.bf16.gmra.mrb[0].mxu0 %v4463
        %v4734 = vpop.f32.mrb[0].mxu0
        %v4735 = vadd.f32 0.0, %v4734
        %v4736 = vpop.f32.mrb[0].mxu0
        %v4737 = vpop.f32.mrb[0].mxu0
        %v4738 = vadd.f32 0.0, %v4737
        %v4739 = vpop.f32.mrb[0].mxu0
        %4740 = vmatprep.mubr.bf16.mxu0 %v4467
        %4741 = vmatmul.mubr.bf16.gmra.mrb[0].mxu0 %v4466
        %v4742 = vpop.f32.mrb[0].mxu0
        %v4743 = vadd.f32 0.0, %v4742
        %v4744 = vpop.f32.mrb[0].mxu0
        %v4745 = vpop.f32.mrb[0].mxu0
        %v4746 = vadd.f32 0.0, %v4745
        %v4747 = vpop.f32.mrb[0].mxu0
        %4748 = vmatprep.mubr.bf16.mxu0 %v4470
        %4749 = vmatmul.mubr.bf16.gmra.mrb[0].mxu0 %v4469
        %v4750 = vpop.f32.mrb[0].mxu0
        %v4751 = vadd.f32 0.0, %v4750
        %v4752 = vpop.f32.mrb[0].mxu0
        %v4753 = vpop.f32.mrb[0].mxu0
        %v4754 = vadd.f32 0.0, %v4753
        %v4755 = vpop.f32.mrb[0].mxu0
        %4756 = vmatprep.mubr.bf16.mxu0 %v4473
        %4757 = vmatmul.mubr.bf16.gmra.mrb[0].mxu0 %v4472
        %v4758 = vpop.f32.mrb[0].mxu0
        %v4759 = vadd.f32 0.0, %v4758
        %v4760 = vpop.f32.mrb[0].mxu0
        %v4761 = vpop.f32.mrb[0].mxu0
        %v4762 = vadd.f32 0.0, %v4761
        %v4763 = vpop.f32.mrb[0].mxu0
        %4764 = vdwg.mxu0
        %4765 = vmatprep.subr.bf16.mxu0 0
        %4766 = vmatpush1.bf16.msra.mxu0 %v4636
        %4767 = vmatprep.subr.bf16.mxu0 0
        %4768 = vmatpush1.bf16.msra.mxu0 %v4637
        %4769 = vmatprep.subr.bf16.mxu0 0
        %4770 = vmatpush1.bf16.msra.mxu0 %v4638
        %4771 = vmatprep.subr.bf16.mxu0 0
        %4772 = vmatpush1.bf16.msra.mxu0 %v4639
        %4773 = vmatprep.subr.bf16.mxu0 0
        %4774 = vmatpush1.bf16.msra.mxu0 %v4640
        %4775 = vmatprep.subr.bf16.mxu0 0
        %4776 = vmatpush1.bf16.msra.mxu0 %v4641
        %4777 = vmatprep.subr.bf16.mxu0 0
        %4778 = vmatpush1.bf16.msra.mxu0 %v4642
        %4779 = vmatprep.subr.bf16.mxu0 0
        %4780 = vmatpush1.bf16.msra.mxu0 %v4643
        %4781 = vmatprep.subr.bf16.mxu0 0
        %4782 = vmatpush1.bf16.msra.mxu0 0
        %4783 = vmatprep.subr.bf16.mxu0 0
        %4784 = vmatpush1.bf16.msra.mxu0 0
        %4785 = vmatprep.subr.bf16.mxu0 0
        %4786 = vmatpush1.bf16.msra.mxu0 0
        %4787 = vmatprep.subr.bf16.mxu0 0
        %4788 = vmatpush1.bf16.msra.mxu0 0
        %4789 = vmatprep.subr.bf16.mxu0 0
        %4790 = vmatpush1.bf16.msra.mxu0 0
        %4791 = vmatprep.subr.bf16.mxu0 0
        %4792 = vmatpush1.bf16.msra.mxu0 0
        %4793 = vmatprep.subr.bf16.mxu0 0
        %4794 = vmatpush1.bf16.msra.mxu0 0
        %4795 = vmatprep.subr.bf16.mxu0 0
        %4796 = vmatpush1.bf16.msra.mxu0 0
        %4797 = vmatprep.mubr.bf16.mxu0 0
        %4798 = vmatmul.mubr.bf16.gmra.mrb[0].mxu0 %v4453
        %v4799 = vpop.f32.mrb[0].mxu0
        %v4800 = vadd.f32 %v4703, %v4799
        %v4801 = vpop.f32.mrb[0].mxu0
        %v4802 = vpop.f32.mrb[0].mxu0
        %v4803 = vadd.f32 %v4706, %v4802
        %v4804 = vpop.f32.mrb[0].mxu0
        %4805 = vmatprep.mubr.bf16.mxu0 0
        %4806 = vmatmul.mubr.bf16.gmra.mrb[0].mxu0 %v4456
        %v4807 = vpop.f32.mrb[0].mxu0
        %v4808 = vadd.f32 %v4711, %v4807
        %v4809 = vpop.f32.mrb[0].mxu0
        %v4810 = vpop.f32.mrb[0].mxu0
        %v4811 = vadd.f32 %v4714, %v4810
        %v4812 = vpop.f32.mrb[0].mxu0
        %4813 = vmatprep.mubr.bf16.mxu0 0
        %4814 = vmatmul.mubr.bf16.gmra.mrb[0].mxu0 %v4459
        %v4815 = vpop.f32.mrb[0].mxu0
        %v4816 = vadd.f32 %v4719, %v4815
        %v4817 = vpop.f32.mrb[0].mxu0
        %v4818 = vpop.f32.mrb[0].mxu0
        %v4819 = vadd.f32 %v4722, %v4818
        %v4820 = vpop.f32.mrb[0].mxu0
        %4821 = vmatprep.mubr.bf16.mxu0 0
        %4822 = vmatmul.mubr.bf16.gmra.mrb[0].mxu0 %v4462
        %v4823 = vpop.f32.mrb[0].mxu0
        %v4824 = vadd.f32 %v4727, %v4823
        %v4825 = vpop.f32.mrb[0].mxu0
        %v4826 = vpop.f32.mrb[0].mxu0
        %v4827 = vadd.f32 %v4730, %v4826
        %v4828 = vpop.f32.mrb[0].mxu0
        %4829 = vmatprep.mubr.bf16.mxu0 0
        %4830 = vmatmul.mubr.bf16.gmra.mrb[0].mxu0 %v4465
        %v4831 = vpop.f32.mrb[0].mxu0
        %v4832 = vadd.f32 %v4735, %v4831
        %v4833 = vpop.f32.mrb[0].mxu0
        %v4834 = vpop.f32.mrb[0].mxu0
        %v4835 = vadd.f32 %v4738, %v4834
        %v4836 = vpop.f32.mrb[0].mxu0
        %4837 = vmatprep.mubr.bf16.mxu0 0
        %4838 = vmatmul.mubr.bf16.gmra.mrb[0].mxu0 %v4468
        %v4839 = vpop.f32.mrb[0].mxu0
        %v4840 = vadd.f32 %v4743, %v4839
        %v4841 = vpop.f32.mrb[0].mxu0
        %v4842 = vpop.f32.mrb[0].mxu0
        %v4843 = vadd.f32 %v4746, %v4842
        %v4844 = vpop.f32.mrb[0].mxu0
        %4845 = vmatprep.mubr.bf16.mxu0 0
        %4846 = vmatmul.mubr.bf16.gmra.mrb[0].mxu0 %v4471
        %v4847 = vpop.f32.mrb[0].mxu0
        %v4848 = vadd.f32 %v4751, %v4847
        %v4849 = vpop.f32.mrb[0].mxu0
        %v4850 = vpop.f32.mrb[0].mxu0
        %v4851 = vadd.f32 %v4754, %v4850
        %v4852 = vpop.f32.mrb[0].mxu0
        %4853 = vmatprep.mubr.bf16.mxu0 0
        %4854 = vmatmul.mubr.bf16.gmra.mrb[0].mxu0 %v4474
        %v4855 = vpop.f32.mrb[0].mxu0
        %v4856 = vadd.f32 %v4759, %v4855
        %v4857 = vpop.f32.mrb[0].mxu0
        %v4858 = vpop.f32.mrb[0].mxu0
        %v4859 = vadd.f32 %v4762, %v4858
        %v4860 = vpop.f32.mrb[0].mxu0
        %4861 = vdwg.mxu0
        %v4862 = vadd.f32 %v4388, %v4800
        %v4863 = vadd.f32 %v4391, %v4803
        %v4864 = vadd.f32 %v4396, %v4808
        %v4865 = vadd.f32 %v4399, %v4811
        %v4866 = vadd.f32 %v4404, %v4816
        %v4867 = vadd.f32 %v4407, %v4819
        %v4868 = vadd.f32 %v4412, %v4824
        %v4869 = vadd.f32 %v4415, %v4827
        %v4870 = vadd.f32 %v4420, %v4832
        %v4871 = vadd.f32 %v4423, %v4835
        %v4872 = vadd.f32 %v4428, %v4840
        %v4873 = vadd.f32 %v4431, %v4843
        %v4874 = vadd.f32 %v4436, %v4848
        %v4875 = vadd.f32 %v4439, %v4851
        %v4876 = vadd.f32 %v4444, %v4856
        %v4877 = vadd.f32 %v4447, %v4859
        %v4878 = vld [vmem:[%s287] sm:$0xf]
        %v4879 = vld [vmem:[%s287 + $0x4] sm:$0xf]
        %v4880 = vld [vmem:[%s287 + $0x8] sm:$0xf]
        %v4881 = vld [vmem:[%s287 + $0xc] sm:$0xf]
        %v4882 = vld [vmem:[%s287 + $0x10] sm:$0xf]
        %v4883 = vld [vmem:[%s287 + $0x14] sm:$0xf]
        %v4884 = vld [vmem:[%s287 + $0x18] sm:$0xf]
        %v4885 = vld [vmem:[%s287 + $0x1c] sm:$0xf]
        %v4886 = vld [vmem:[%s287 + $0x20] sm:$0xf]
        %v4887 = vld [vmem:[%s287 + $0x24] sm:$0xf]
        %v4888 = vld [vmem:[%s287 + $0x28] sm:$0xf]
        %v4889 = vld [vmem:[%s287 + $0x2c] sm:$0xf]
        %v4890 = vld [vmem:[%s287 + $0x30] sm:$0xf]
        %v4891 = vld [vmem:[%s287 + $0x34] sm:$0xf]
        %v4892 = vld [vmem:[%s287 + $0x38] sm:$0xf]
        %v4893 = vld [vmem:[%s287 + $0x3c] sm:$0xf]
        %v4894 = vunpack.c.l.bf16 %v4878
        %v4895 = vunpack.c.l.bf16 %v4879
        %v4896 = vunpack.c.l.bf16 %v4880
        %v4897 = vunpack.c.l.bf16 %v4881
        %v4898 = vunpack.c.l.bf16 %v4882
        %v4899 = vunpack.c.l.bf16 %v4883
        %v4900 = vunpack.c.l.bf16 %v4884
        %v4901 = vunpack.c.l.bf16 %v4885
        %v4902 = vunpack.c.l.bf16 %v4886
        %v4903 = vunpack.c.l.bf16 %v4887
        %v4904 = vunpack.c.l.bf16 %v4888
        %v4905 = vunpack.c.l.bf16 %v4889
        %v4906 = vunpack.c.l.bf16 %v4890
        %v4907 = vunpack.c.l.bf16 %v4891
        %v4908 = vunpack.c.l.bf16 %v4892
        %v4909 = vunpack.c.l.bf16 %v4893
        %v4910 = vld [vmem:[%s5] sm:$0x1]
        %v4912 = vlaneseq
        %v4913 = vshrl.u32 %v4912, 7
        %v4914 = vsub.s32 0, %v4913
        %v4915 = vrot.slane %v4910, %v4914
        %v4917 = vmul.f32 %v4862, %v4915
        %v4918 = vmul.f32 %v4863, %v4915
        %v4919 = vmul.f32 %v4864, %v4915
        %v4920 = vmul.f32 %v4865, %v4915
        %v4921 = vmul.f32 %v4866, %v4915
        %v4922 = vmul.f32 %v4867, %v4915
        %v4923 = vmul.f32 %v4868, %v4915
        %v4924 = vmul.f32 %v4869, %v4915
        %v4925 = vmul.f32 %v4870, %v4915
        %v4926 = vmul.f32 %v4871, %v4915
        %v4927 = vmul.f32 %v4872, %v4915
        %v4928 = vmul.f32 %v4873, %v4915
        %v4929 = vmul.f32 %v4874, %v4915
        %v4930 = vmul.f32 %v4875, %v4915
        %v4931 = vmul.f32 %v4876, %v4915
        %v4932 = vmul.f32 %v4877, %v4915
        %v4933 = vld [vmem:[%s6] sm:$0x1]
        %v4935 = vlaneseq
        %v4936 = vshrl.u32 %v4935, 7
        %v4937 = vsub.s32 0, %v4936
        %v4938 = vrot.slane %v4933, %v4937
        %v4940 = vadd.f32 %v4917, %v4938
        %v4941 = vadd.f32 %v4918, %v4938
        %v4942 = vadd.f32 %v4919, %v4938
        %v4943 = vadd.f32 %v4920, %v4938
        %v4944 = vadd.f32 %v4921, %v4938
        %v4945 = vadd.f32 %v4922, %v4938
        %v4946 = vadd.f32 %v4923, %v4938
        %v4947 = vadd.f32 %v4924, %v4938
        %v4948 = vadd.f32 %v4925, %v4938
        %v4949 = vadd.f32 %v4926, %v4938
        %v4950 = vadd.f32 %v4927, %v4938
        %v4951 = vadd.f32 %v4928, %v4938
        %v4952 = vadd.f32 %v4929, %v4938
        %v4953 = vadd.f32 %v4930, %v4938
        %v4954 = vadd.f32 %v4931, %v4938
        %v4955 = vadd.f32 %v4932, %v4938
        %v4956 = vadd.f32 %v4940, %v4894
        %v4957 = vadd.f32 %v4941, %v4895
        %v4958 = vadd.f32 %v4942, %v4896
        %v4959 = vadd.f32 %v4943, %v4897
        %v4960 = vadd.f32 %v4944, %v4898
        %v4961 = vadd.f32 %v4945, %v4899
        %v4962 = vadd.f32 %v4946, %v4900
        %v4963 = vadd.f32 %v4947, %v4901
        %v4964 = vadd.f32 %v4948, %v4902
        %v4965 = vadd.f32 %v4949, %v4903
        %v4966 = vadd.f32 %v4950, %v4904
        %v4967 = vadd.f32 %v4951, %v4905
        %v4968 = vadd.f32 %v4952, %v4906
        %v4969 = vadd.f32 %v4953, %v4907
        %v4970 = vadd.f32 %v4954, %v4908
        %v4971 = vadd.f32 %v4955, %v4909
        %v4972 = vmax.f32 %v4956, 0.0
        %v4973 = vmax.f32 %v4957, 0.0
        %v4974 = vmax.f32 %v4958, 0.0
        %v4975 = vmax.f32 %v4959, 0.0
        %v4976 = vmax.f32 %v4960, 0.0
        %v4977 = vmax.f32 %v4961, 0.0
        %v4978 = vmax.f32 %v4962, 0.0
        %v4979 = vmax.f32 %v4963, 0.0
        %v4980 = vmax.f32 %v4964, 0.0
        %v4981 = vmax.f32 %v4965, 0.0
        %v4982 = vmax.f32 %v4966, 0.0
        %v4983 = vmax.f32 %v4967, 0.0
        %v4984 = vmax.f32 %v4968, 0.0
        %v4985 = vmax.f32 %v4969, 0.0
        %v4986 = vmax.f32 %v4970, 0.0
        %v4987 = vmax.f32 %v4971, 0.0
        %v4988 = vpack.c.bf16 %v4973, %v4972
        %v4989 = vpack.c.bf16 %v4975, %v4974
        %v4990 = vpack.c.bf16 %v4977, %v4976
        %v4991 = vpack.c.bf16 %v4979, %v4978
        %v4992 = vpack.c.bf16 %v4981, %v4980
        %v4993 = vpack.c.bf16 %v4983, %v4982
        %v4994 = vpack.c.bf16 %v4985, %v4984
        %v4995 = vpack.c.bf16 %v4987, %v4986
        %v5004 = vunpack.c.l.b16 %v4988
        %v5005 = vunpack.c.h.b16 %v4988
        %v5006 = vunpack.c.l.b16 %v4989
        %v5007 = vunpack.c.h.b16 %v4989
        %v5008 = vunpack.c.l.b16 %v4990
        %v5009 = vunpack.c.h.b16 %v4990
        %v5010 = vunpack.c.l.b16 %v4991
        %v5011 = vunpack.c.h.b16 %v4991
        %v5012 = vunpack.c.l.b16 %v4992
        %v5013 = vunpack.c.h.b16 %v4992
        %v5014 = vunpack.c.l.b16 %v4993
        %v5015 = vunpack.c.h.b16 %v4993
        %v5016 = vunpack.c.l.b16 %v4994
        %v5017 = vunpack.c.h.b16 %v4994
        %v5018 = vunpack.c.l.b16 %v4995
        %v5019 = vunpack.c.h.b16 %v4995
        %v5020 = vpack.c.b16 %v5004, %v5004
        %v5021 = vpack.c.b16 %v5005, %v5005
        %v5022 = vpack.c.b16 %v5006, %v5006
        %v5023 = vpack.c.b16 %v5007, %v5007
        %v5024 = vpack.c.b16 %v5008, %v5008
        %v5025 = vpack.c.b16 %v5009, %v5009
        %v5026 = vpack.c.b16 %v5010, %v5010
        %v5027 = vpack.c.b16 %v5011, %v5011
        %v5028 = vpack.c.b16 %v5012, %v5012
        %v5029 = vpack.c.b16 %v5013, %v5013
        %v5030 = vpack.c.b16 %v5014, %v5014
        %v5031 = vpack.c.b16 %v5015, %v5015
        %v5032 = vpack.c.b16 %v5016, %v5016
        %v5033 = vpack.c.b16 %v5017, %v5017
        %v5034 = vpack.c.b16 %v5018, %v5018
        %v5035 = vpack.c.b16 %v5019, %v5019
        %5052 = vst [vmem:[%s325] sm:$0xf] %v5020
        %5053 = vst [vmem:[%s325 + $0x4] sm:$0xf] %v5021
        %5054 = vst [vmem:[%s325 + $0x8] sm:$0xf] %v5022
        %5055 = vst [vmem:[%s325 + $0xc] sm:$0xf] %v5023
        %5056 = vst [vmem:[%s325 + $0x10] sm:$0xf] %v5024
        %5057 = vst [vmem:[%s325 + $0x14] sm:$0xf] %v5025
        %5058 = vst [vmem:[%s325 + $0x18] sm:$0xf] %v5026
        %5059 = vst [vmem:[%s325 + $0x1c] sm:$0xf] %v5027
        %5060 = vst [vmem:[%s325 + $0x20] sm:$0xf] %v5028
        %5061 = vst [vmem:[%s325 + $0x24] sm:$0xf] %v5029
        %5062 = vst [vmem:[%s325 + $0x28] sm:$0xf] %v5030
        %5063 = vst [vmem:[%s325 + $0x2c] sm:$0xf] %v5031
        %5064 = vst [vmem:[%s325 + $0x30] sm:$0xf] %v5032
        %5065 = vst [vmem:[%s325 + $0x34] sm:$0xf] %v5033
        %5066 = vst [vmem:[%s325 + $0x38] sm:$0xf] %v5034
        %5067 = vst [vmem:[%s325 + $0x3c] sm:$0xf] %v5035
        %s5068 = scalar_lea.vmem [#allocation3], 192
        %v5069 = vld [vmem:[%s5068] sm:$0xff]
        %v5070 = vld [vmem:[%s5068 + $0x8] sm:$0xff]
        %v5071 = vld [vmem:[%s5068 + $0x10] sm:$0xff]
        %v5072 = vld [vmem:[%s5068 + $0x18] sm:$0xff]
        %v5073 = vld [vmem:[%s5068 + $0x20] sm:$0xff]
        %v5074 = vld [vmem:[%s5068 + $0x28] sm:$0xff]
        %v5075 = vld [vmem:[%s5068 + $0x30] sm:$0xff]
        %v5076 = vld [vmem:[%s5068 + $0x38] sm:$0xff]
        %v5077 = vld [vmem:[%s5068 + $0x40] sm:$0xff]
        %v5078 = vld [vmem:[%s5068 + $0x48] sm:$0xff]
        %v5079 = vld [vmem:[%s5068 + $0x50] sm:$0xff]
        %v5080 = vld [vmem:[%s5068 + $0x58] sm:$0xff]
        %v5081 = vld [vmem:[%s5068 + $0x60] sm:$0xff]
        %v5082 = vld [vmem:[%s5068 + $0x68] sm:$0xff]
        %v5083 = vld [vmem:[%s5068 + $0x70] sm:$0xff]
        %v5084 = vld [vmem:[%s5068 + $0x78] sm:$0xff]
        %v5085 = vld [vmem:[%s5068 + $0x80] sm:$0xff]
        %v5086 = vld [vmem:[%s5068 + $0x88] sm:$0xff]
        %v5087 = vld [vmem:[%s5068 + $0x90] sm:$0xff]
        %v5088 = vld [vmem:[%s5068 + $0x98] sm:$0xff]
        %v5089 = vld [vmem:[%s5068 + $0xa0] sm:$0xff]
        %v5090 = vld [vmem:[%s5068 + $0xa8] sm:$0xff]
        %v5091 = vld [vmem:[%s5068 + $0xb0] sm:$0xff]
        %v5092 = vld [vmem:[%s5068 + $0xb8] sm:$0xff]
        %v5093 = vld [vmem:[#allocation9] sm:$0xf]
        %v5094 = vld [vmem:[#allocation9 + $0x4] sm:$0xf]
        %v5095 = vld [vmem:[#allocation9 + $0x8] sm:$0xf]
        %v5096 = vld [vmem:[#allocation9 + $0xc] sm:$0xf]
        %v5097 = vld [vmem:[#allocation9 + $0x10] sm:$0xf]
        %v5098 = vld [vmem:[#allocation9 + $0x14] sm:$0xf]
        %v5099 = vld [vmem:[#allocation9 + $0x18] sm:$0xf]
        %v5100 = vld [vmem:[#allocation9 + $0x1c] sm:$0xf]
        %v5101 = vld [vmem:[#allocation9 + $0x20] sm:$0xf]
        %v5102 = vld [vmem:[#allocation9 + $0x24] sm:$0xf]
        %v5103 = vld [vmem:[#allocation9 + $0x28] sm:$0xf]
        %v5104 = vld [vmem:[#allocation9 + $0x2c] sm:$0xf]
        %v5105 = vld [vmem:[#allocation9 + $0x30] sm:$0xf]
        %v5106 = vld [vmem:[#allocation9 + $0x34] sm:$0xf]
        %v5107 = vld [vmem:[#allocation9 + $0x38] sm:$0xf]
        %v5108 = vld [vmem:[#allocation9 + $0x3c] sm:$0xf]
        %v5109 = vld [vmem:[#allocation9 + $0x40] sm:$0xf]
        %v5110 = vld [vmem:[#allocation9 + $0x44] sm:$0xf]
        %v5111 = vld [vmem:[#allocation9 + $0x48] sm:$0xf]
        %v5112 = vld [vmem:[#allocation9 + $0x4c] sm:$0xf]
        %v5113 = vld [vmem:[#allocation9 + $0x50] sm:$0xf]
        %v5114 = vld [vmem:[#allocation9 + $0x54] sm:$0xf]
        %v5115 = vld [vmem:[#allocation9 + $0x58] sm:$0xf]
        %v5116 = vld [vmem:[#allocation9 + $0x5c] sm:$0xf]
        %v5117 = vld [vmem:[#allocation9 + $0x60] sm:$0xf]
        %v5118 = vld [vmem:[#allocation9 + $0x64] sm:$0xf]
        %v5119 = vld [vmem:[#allocation9 + $0x68] sm:$0xf]
        %v5120 = vld [vmem:[#allocation9 + $0x6c] sm:$0xf]
        %v5121 = vld [vmem:[#allocation9 + $0x70] sm:$0xf]
        %v5122 = vld [vmem:[#allocation9 + $0x74] sm:$0xf]
        %v5123 = vld [vmem:[#allocation9 + $0x78] sm:$0xf]
        %v5124 = vld [vmem:[#allocation9 + $0x7c] sm:$0xf]
        %v5125 = vld [vmem:[#allocation9 + $0x80] sm:$0xf]
        %v5126 = vld [vmem:[#allocation9 + $0x84] sm:$0xf]
        %v5127 = vld [vmem:[#allocation9 + $0x88] sm:$0xf]
        %v5128 = vld [vmem:[#allocation9 + $0x8c] sm:$0xf]
        %v5129 = vld [vmem:[#allocation9 + $0x90] sm:$0xf]
        %v5130 = vld [vmem:[#allocation9 + $0x94] sm:$0xf]
        %v5131 = vld [vmem:[#allocation9 + $0x98] sm:$0xf]
        %v5132 = vld [vmem:[#allocation9 + $0x9c] sm:$0xf]
        %v5133 = vld [vmem:[#allocation9 + $0xa0] sm:$0xf]
        %v5134 = vld [vmem:[#allocation9 + $0xa4] sm:$0xf]
        %v5135 = vld [vmem:[#allocation9 + $0xa8] sm:$0xf]
        %v5136 = vld [vmem:[#allocation9 + $0xac] sm:$0xf]
        %v5137 = vld [vmem:[#allocation9 + $0xb0] sm:$0xf]
        %v5138 = vld [vmem:[#allocation9 + $0xb4] sm:$0xf]
        %v5139 = vld [vmem:[#allocation9 + $0xb8] sm:$0xf]
        %v5140 = vld [vmem:[#allocation9 + $0xbc] sm:$0xf]
        %v5141 = vld [vmem:[%s3604] sm:$0xff]
        %v5142 = vld [vmem:[%s3604 + $0x8] sm:$0xff]
        %v5143 = vld [vmem:[%s3604 + $0x10] sm:$0xff]
        %v5144 = vld [vmem:[%s3604 + $0x18] sm:$0xff]
        %v5145 = vld [vmem:[%s3604 + $0x20] sm:$0xff]
        %v5146 = vld [vmem:[%s3604 + $0x28] sm:$0xff]
        %v5147 = vld [vmem:[%s3604 + $0x30] sm:$0xff]
        %v5148 = vld [vmem:[%s3604 + $0x38] sm:$0xff]
        %v5149 = vld [vmem:[%s3604 + $0x40] sm:$0xff]
        %v5150 = vld [vmem:[%s3604 + $0x48] sm:$0xff]
        %v5151 = vld [vmem:[%s3604 + $0x50] sm:$0xff]
        %v5152 = vld [vmem:[%s3604 + $0x58] sm:$0xff]
        %v5153 = vld [vmem:[%s3604 + $0x60] sm:$0xff]
        %v5154 = vld [vmem:[%s3604 + $0x68] sm:$0xff]
        %v5155 = vld [vmem:[%s3604 + $0x70] sm:$0xff]
        %v5156 = vld [vmem:[%s3604 + $0x78] sm:$0xff]
        %v5157 = vld [vmem:[%s3604 + $0x80] sm:$0xff]
        %v5158 = vld [vmem:[%s3604 + $0x88] sm:$0xff]
        %v5159 = vld [vmem:[%s3604 + $0x90] sm:$0xff]
        %v5160 = vld [vmem:[%s3604 + $0x98] sm:$0xff]
        %v5161 = vld [vmem:[%s3604 + $0xa0] sm:$0xff]
        %v5162 = vld [vmem:[%s3604 + $0xa8] sm:$0xff]
        %v5163 = vld [vmem:[%s3604 + $0xb0] sm:$0xff]
        %v5164 = vld [vmem:[%s3604 + $0xb8] sm:$0xff]
        %v5165 = vld [vmem:[%s3725] sm:$0xf]
        %v5166 = vld [vmem:[%s3725 + $0x4] sm:$0xf]
        %v5167 = vld [vmem:[%s3725 + $0x8] sm:$0xf]
        %v5168 = vld [vmem:[%s3725 + $0xc] sm:$0xf]
        %v5169 = vld [vmem:[%s3725 + $0x10] sm:$0xf]
        %v5170 = vld [vmem:[%s3725 + $0x14] sm:$0xf]
        %v5171 = vld [vmem:[%s3725 + $0x18] sm:$0xf]
        %v5172 = vld [vmem:[%s3725 + $0x1c] sm:$0xf]
        %v5173 = vld [vmem:[%s3725 + $0x20] sm:$0xf]
        %v5174 = vld [vmem:[%s3725 + $0x24] sm:$0xf]
        %v5175 = vld [vmem:[%s3725 + $0x28] sm:$0xf]
        %v5176 = vld [vmem:[%s3725 + $0x2c] sm:$0xf]
        %v5177 = vld [vmem:[%s3725 + $0x30] sm:$0xf]
        %v5178 = vld [vmem:[%s3725 + $0x34] sm:$0xf]
        %v5179 = vld [vmem:[%s3725 + $0x38] sm:$0xf]
        %v5180 = vld [vmem:[%s3725 + $0x3c] sm:$0xf]
        %v5181 = vld [vmem:[%s3725 + $0x40] sm:$0xf]
        %v5182 = vld [vmem:[%s3725 + $0x44] sm:$0xf]
        %v5183 = vld [vmem:[%s3725 + $0x48] sm:$0xf]
        %v5184 = vld [vmem:[%s3725 + $0x4c] sm:$0xf]
        %v5185 = vld [vmem:[%s3725 + $0x50] sm:$0xf]
        %v5186 = vld [vmem:[%s3725 + $0x54] sm:$0xf]
        %v5187 = vld [vmem:[%s3725 + $0x58] sm:$0xf]
        %v5188 = vld [vmem:[%s3725 + $0x5c] sm:$0xf]
        %v5189 = vld [vmem:[%s3725 + $0x60] sm:$0xf]
        %v5190 = vld [vmem:[%s3725 + $0x64] sm:$0xf]
        %v5191 = vld [vmem:[%s3725 + $0x68] sm:$0xf]
        %v5192 = vld [vmem:[%s3725 + $0x6c] sm:$0xf]
        %v5193 = vld [vmem:[%s3725 + $0x70] sm:$0xf]
        %v5194 = vld [vmem:[%s3725 + $0x74] sm:$0xf]
        %v5195 = vld [vmem:[%s3725 + $0x78] sm:$0xf]
        %v5196 = vld [vmem:[%s3725 + $0x7c] sm:$0xf]
        %v5197 = vld [vmem:[%s3725 + $0x80] sm:$0xf]
        %v5198 = vld [vmem:[%s3725 + $0x84] sm:$0xf]
        %v5199 = vld [vmem:[%s3725 + $0x88] sm:$0xf]
        %v5200 = vld [vmem:[%s3725 + $0x8c] sm:$0xf]
        %v5201 = vld [vmem:[%s3725 + $0x90] sm:$0xf]
        %v5202 = vld [vmem:[%s3725 + $0x94] sm:$0xf]
        %v5203 = vld [vmem:[%s3725 + $0x98] sm:$0xf]
        %v5204 = vld [vmem:[%s3725 + $0x9c] sm:$0xf]
        %v5205 = vld [vmem:[%s3725 + $0xa0] sm:$0xf]
        %v5206 = vld [vmem:[%s3725 + $0xa4] sm:$0xf]
        %v5207 = vld [vmem:[%s3725 + $0xa8] sm:$0xf]
        %v5208 = vld [vmem:[%s3725 + $0xac] sm:$0xf]
        %v5209 = vld [vmem:[%s3725 + $0xb0] sm:$0xf]
        %v5210 = vld [vmem:[%s3725 + $0xb4] sm:$0xf]
        %v5211 = vld [vmem:[%s3725 + $0xb8] sm:$0xf]
        %v5212 = vld [vmem:[%s3725 + $0xbc] sm:$0xf]
        %v5261 = vunpack.c.l.b16 %v5165
        %v5262 = vunpack.c.l.b16 %v5166
        %v5263 = vunpack.c.l.b16 %v5167
        %v5264 = vunpack.c.l.b16 %v5168
        %v5265 = vunpack.c.l.b16 %v5169
        %v5266 = vunpack.c.l.b16 %v5170
        %v5267 = vunpack.c.l.b16 %v5171
        %v5268 = vunpack.c.l.b16 %v5172
        %v5269 = vunpack.c.l.b16 %v5173
        %v5270 = vunpack.c.l.b16 %v5174
        %v5271 = vunpack.c.l.b16 %v5175
        %v5272 = vunpack.c.l.b16 %v5176
        %v5273 = vunpack.c.l.b16 %v5177
        %v5274 = vunpack.c.l.b16 %v5178
        %v5275 = vunpack.c.l.b16 %v5179
        %v5276 = vunpack.c.l.b16 %v5180
        %v5277 = vunpack.c.l.b16 %v5181
        %v5278 = vunpack.c.l.b16 %v5182
        %v5279 = vunpack.c.l.b16 %v5183
        %v5280 = vunpack.c.l.b16 %v5184
        %v5281 = vunpack.c.l.b16 %v5185
        %v5282 = vunpack.c.l.b16 %v5186
        %v5283 = vunpack.c.l.b16 %v5187
        %v5284 = vunpack.c.l.b16 %v5188
        %v5285 = vunpack.c.l.b16 %v5189
        %v5286 = vunpack.c.l.b16 %v5190
        %v5287 = vunpack.c.l.b16 %v5191
        %v5288 = vunpack.c.l.b16 %v5192
        %v5289 = vunpack.c.l.b16 %v5193
        %v5290 = vunpack.c.l.b16 %v5194
        %v5291 = vunpack.c.l.b16 %v5195
        %v5292 = vunpack.c.l.b16 %v5196
        %v5293 = vunpack.c.l.b16 %v5197
        %v5294 = vunpack.c.l.b16 %v5198
        %v5295 = vunpack.c.l.b16 %v5199
        %v5296 = vunpack.c.l.b16 %v5200
        %v5297 = vunpack.c.l.b16 %v5201
        %v5298 = vunpack.c.l.b16 %v5202
        %v5299 = vunpack.c.l.b16 %v5203
        %v5300 = vunpack.c.l.b16 %v5204
        %v5301 = vunpack.c.l.b16 %v5205
        %v5302 = vunpack.c.l.b16 %v5206
        %v5303 = vunpack.c.l.b16 %v5207
        %v5304 = vunpack.c.l.b16 %v5208
        %v5305 = vunpack.c.l.b16 %v5209
        %v5306 = vunpack.c.l.b16 %v5210
        %v5307 = vunpack.c.l.b16 %v5211
        %v5308 = vunpack.c.l.b16 %v5212
        %v5309 = vpack.c.b16 %v5262, %v5261
        %v5310 = vpack.c.b16 %v5264, %v5263
        %v5311 = vpack.c.b16 %v5266, %v5265
        %v5312 = vpack.c.b16 %v5268, %v5267
        %v5313 = vpack.c.b16 %v5270, %v5269
        %v5314 = vpack.c.b16 %v5272, %v5271
        %v5315 = vpack.c.b16 %v5274, %v5273
        %v5316 = vpack.c.b16 %v5276, %v5275
        %v5317 = vpack.c.b16 %v5278, %v5277
        %v5318 = vpack.c.b16 %v5280, %v5279
        %v5319 = vpack.c.b16 %v5282, %v5281
        %v5320 = vpack.c.b16 %v5284, %v5283
        %v5321 = vpack.c.b16 %v5286, %v5285
        %v5322 = vpack.c.b16 %v5288, %v5287
        %v5323 = vpack.c.b16 %v5290, %v5289
        %v5324 = vpack.c.b16 %v5292, %v5291
        %v5325 = vpack.c.b16 %v5294, %v5293
        %v5326 = vpack.c.b16 %v5296, %v5295
        %v5327 = vpack.c.b16 %v5298, %v5297
        %v5328 = vpack.c.b16 %v5300, %v5299
        %v5329 = vpack.c.b16 %v5302, %v5301
        %v5330 = vpack.c.b16 %v5304, %v5303
        %v5331 = vpack.c.b16 %v5306, %v5305
        %v5332 = vpack.c.b16 %v5308, %v5307
        %5357 = vmatprep.subr.bf16.mxu0 0
        %5358 = vmatpush1.bf16.msra.mxu0 %v5309
        %5359 = vmatprep.subr.bf16.mxu0 0
        %5360 = vmatpush1.bf16.msra.mxu0 %v5310
        %5361 = vmatprep.subr.bf16.mxu0 0
        %5362 = vmatpush1.bf16.msra.mxu0 %v5311
        %5363 = vmatprep.subr.bf16.mxu0 0
        %5364 = vmatpush1.bf16.msra.mxu0 %v5312
        %5365 = vmatprep.subr.bf16.mxu0 0
        %5366 = vmatpush1.bf16.msra.mxu0 %v5313
        %5367 = vmatprep.subr.bf16.mxu0 0
        %5368 = vmatpush1.bf16.msra.mxu0 %v5314
        %5369 = vmatprep.subr.bf16.mxu0 0
        %5370 = vmatpush1.bf16.msra.mxu0 %v5315
        %5371 = vmatprep.subr.bf16.mxu0 0
        %5372 = vmatpush1.bf16.msra.mxu0 %v5316
        %5373 = vmatprep.subr.bf16.mxu0 0
        %5374 = vmatpush1.bf16.msra.mxu0 %v5317
        %5375 = vmatprep.subr.bf16.mxu0 0
        %5376 = vmatpush1.bf16.msra.mxu0 %v5318
        %5377 = vmatprep.subr.bf16.mxu0 0
        %5378 = vmatpush1.bf16.msra.mxu0 %v5319
        %5379 = vmatprep.subr.bf16.mxu0 0
        %5380 = vmatpush1.bf16.msra.mxu0 %v5320
        %5381 = vmatprep.subr.bf16.mxu0 0
        %5382 = vmatpush1.bf16.msra.mxu0 %v5321
        %5383 = vmatprep.subr.bf16.mxu0 0
        %5384 = vmatpush1.bf16.msra.mxu0 %v5322
        %5385 = vmatprep.subr.bf16.mxu0 0
        %5386 = vmatpush1.bf16.msra.mxu0 %v5323
        %5387 = vmatprep.subr.bf16.mxu0 0
        %5388 = vmatpush1.bf16.msra.mxu0 %v5324
        %5389 = vmatprep.mubr.bf16.mxu0 %v5142
        %5390 = vmatmul.mubr.bf16.gmra.mrb[0].mxu0 %v5141
        %v5391 = vpop.f32.mrb[0].mxu0
        %v5392 = vadd.f32 0.0, %v5391
        %v5393 = vpop.f32.mrb[0].mxu0
        %v5394 = vpop.f32.mrb[0].mxu0
        %v5395 = vadd.f32 0.0, %v5394
        %v5396 = vpop.f32.mrb[0].mxu0
        %5397 = vmatprep.mubr.bf16.mxu0 %v5145
        %5398 = vmatmul.mubr.bf16.gmra.mrb[0].mxu0 %v5144
        %v5399 = vpop.f32.mrb[0].mxu0
        %v5400 = vadd.f32 0.0, %v5399
        %v5401 = vpop.f32.mrb[0].mxu0
        %v5402 = vpop.f32.mrb[0].mxu0
        %v5403 = vadd.f32 0.0, %v5402
        %v5404 = vpop.f32.mrb[0].mxu0
        %5405 = vmatprep.mubr.bf16.mxu0 %v5148
        %5406 = vmatmul.mubr.bf16.gmra.mrb[0].mxu0 %v5147
        %v5407 = vpop.f32.mrb[0].mxu0
        %v5408 = vadd.f32 0.0, %v5407
        %v5409 = vpop.f32.mrb[0].mxu0
        %v5410 = vpop.f32.mrb[0].mxu0
        %v5411 = vadd.f32 0.0, %v5410
        %v5412 = vpop.f32.mrb[0].mxu0
        %5413 = vmatprep.mubr.bf16.mxu0 %v5151
        %5414 = vmatmul.mubr.bf16.gmra.mrb[0].mxu0 %v5150
        %v5415 = vpop.f32.mrb[0].mxu0
        %v5416 = vadd.f32 0.0, %v5415
        %v5417 = vpop.f32.mrb[0].mxu0
        %v5418 = vpop.f32.mrb[0].mxu0
        %v5419 = vadd.f32 0.0, %v5418
        %v5420 = vpop.f32.mrb[0].mxu0
        %5421 = vmatprep.mubr.bf16.mxu0 %v5154
        %5422 = vmatmul.mubr.bf16.gmra.mrb[0].mxu0 %v5153
        %v5423 = vpop.f32.mrb[0].mxu0
        %v5424 = vadd.f32 0.0, %v5423
        %v5425 = vpop.f32.mrb[0].mxu0
        %v5426 = vpop.f32.mrb[0].mxu0
        %v5427 = vadd.f32 0.0, %v5426
        %v5428 = vpop.f32.mrb[0].mxu0
        %5429 = vmatprep.mubr.bf16.mxu0 %v5157
        %5430 = vmatmul.mubr.bf16.gmra.mrb[0].mxu0 %v5156
        %v5431 = vpop.f32.mrb[0].mxu0
        %v5432 = vadd.f32 0.0, %v5431
        %v5433 = vpop.f32.mrb[0].mxu0
        %v5434 = vpop.f32.mrb[0].mxu0
        %v5435 = vadd.f32 0.0, %v5434
        %v5436 = vpop.f32.mrb[0].mxu0
        %5437 = vmatprep.mubr.bf16.mxu0 %v5160
        %5438 = vmatmul.mubr.bf16.gmra.mrb[0].mxu0 %v5159
        %v5439 = vpop.f32.mrb[0].mxu0
        %v5440 = vadd.f32 0.0, %v5439
        %v5441 = vpop.f32.mrb[0].mxu0
        %v5442 = vpop.f32.mrb[0].mxu0
        %v5443 = vadd.f32 0.0, %v5442
        %v5444 = vpop.f32.mrb[0].mxu0
        %5445 = vmatprep.mubr.bf16.mxu0 %v5163
        %5446 = vmatmul.mubr.bf16.gmra.mrb[0].mxu0 %v5162
        %v5447 = vpop.f32.mrb[0].mxu0
        %v5448 = vadd.f32 0.0, %v5447
        %v5449 = vpop.f32.mrb[0].mxu0
        %v5450 = vpop.f32.mrb[0].mxu0
        %v5451 = vadd.f32 0.0, %v5450
        %v5452 = vpop.f32.mrb[0].mxu0
        %5453 = vdwg.mxu0
        %5454 = vmatprep.subr.bf16.mxu0 0
        %5455 = vmatpush1.bf16.msra.mxu0 %v5325
        %5456 = vmatprep.subr.bf16.mxu0 0
        %5457 = vmatpush1.bf16.msra.mxu0 %v5326
        %5458 = vmatprep.subr.bf16.mxu0 0
        %5459 = vmatpush1.bf16.msra.mxu0 %v5327
        %5460 = vmatprep.subr.bf16.mxu0 0
        %5461 = vmatpush1.bf16.msra.mxu0 %v5328
        %5462 = vmatprep.subr.bf16.mxu0 0
        %5463 = vmatpush1.bf16.msra.mxu0 %v5329
        %5464 = vmatprep.subr.bf16.mxu0 0
        %5465 = vmatpush1.bf16.msra.mxu0 %v5330
        %5466 = vmatprep.subr.bf16.mxu0 0
        %5467 = vmatpush1.bf16.msra.mxu0 %v5331
        %5468 = vmatprep.subr.bf16.mxu0 0
        %5469 = vmatpush1.bf16.msra.mxu0 %v5332
        %5470 = vmatprep.subr.bf16.mxu0 0
        %5471 = vmatpush1.bf16.msra.mxu0 0
        %5472 = vmatprep.subr.bf16.mxu0 0
        %5473 = vmatpush1.bf16.msra.mxu0 0
        %5474 = vmatprep.subr.bf16.mxu0 0
        %5475 = vmatpush1.bf16.msra.mxu0 0
        %5476 = vmatprep.subr.bf16.mxu0 0
        %5477 = vmatpush1.bf16.msra.mxu0 0
        %5478 = vmatprep.subr.bf16.mxu0 0
        %5479 = vmatpush1.bf16.msra.mxu0 0
        %5480 = vmatprep.subr.bf16.mxu0 0
        %5481 = vmatpush1.bf16.msra.mxu0 0
        %5482 = vmatprep.subr.bf16.mxu0 0
        %5483 = vmatpush1.bf16.msra.mxu0 0
        %5484 = vmatprep.subr.bf16.mxu0 0
        %5485 = vmatpush1.bf16.msra.mxu0 0
        %5486 = vmatprep.mubr.bf16.mxu0 0
        %5487 = vmatmul.mubr.bf16.gmra.mrb[0].mxu0 %v5143
        %v5488 = vpop.f32.mrb[0].mxu0
        %v5489 = vadd.f32 %v5392, %v5488
        %v5490 = vpop.f32.mrb[0].mxu0
        %v5491 = vpop.f32.mrb[0].mxu0
        %v5492 = vadd.f32 %v5395, %v5491
        %v5493 = vpop.f32.mrb[0].mxu0
        %5494 = vmatprep.mubr.bf16.mxu0 0
        %5495 = vmatmul.mubr.bf16.gmra.mrb[0].mxu0 %v5146
        %v5496 = vpop.f32.mrb[0].mxu0
        %v5497 = vadd.f32 %v5400, %v5496
        %v5498 = vpop.f32.mrb[0].mxu0
        %v5499 = vpop.f32.mrb[0].mxu0
        %v5500 = vadd.f32 %v5403, %v5499
        %v5501 = vpop.f32.mrb[0].mxu0
        %5502 = vmatprep.mubr.bf16.mxu0 0
        %5503 = vmatmul.mubr.bf16.gmra.mrb[0].mxu0 %v5149
        %v5504 = vpop.f32.mrb[0].mxu0
        %v5505 = vadd.f32 %v5408, %v5504
        %v5506 = vpop.f32.mrb[0].mxu0
        %v5507 = vpop.f32.mrb[0].mxu0
        %v5508 = vadd.f32 %v5411, %v5507
        %v5509 = vpop.f32.mrb[0].mxu0
        %5510 = vmatprep.mubr.bf16.mxu0 0
        %5511 = vmatmul.mubr.bf16.gmra.mrb[0].mxu0 %v5152
        %v5512 = vpop.f32.mrb[0].mxu0
        %v5513 = vadd.f32 %v5416, %v5512
        %v5514 = vpop.f32.mrb[0].mxu0
        %v5515 = vpop.f32.mrb[0].mxu0
        %v5516 = vadd.f32 %v5419, %v5515
        %v5517 = vpop.f32.mrb[0].mxu0
        %5518 = vmatprep.mubr.bf16.mxu0 0
        %5519 = vmatmul.mubr.bf16.gmra.mrb[0].mxu0 %v5155
        %v5520 = vpop.f32.mrb[0].mxu0
        %v5521 = vadd.f32 %v5424, %v5520
        %v5522 = vpop.f32.mrb[0].mxu0
        %v5523 = vpop.f32.mrb[0].mxu0
        %v5524 = vadd.f32 %v5427, %v5523
        %v5525 = vpop.f32.mrb[0].mxu0
        %5526 = vmatprep.mubr.bf16.mxu0 0
        %5527 = vmatmul.mubr.bf16.gmra.mrb[0].mxu0 %v5158
        %v5528 = vpop.f32.mrb[0].mxu0
        %v5529 = vadd.f32 %v5432, %v5528
        %v5530 = vpop.f32.mrb[0].mxu0
        %v5531 = vpop.f32.mrb[0].mxu0
        %v5532 = vadd.f32 %v5435, %v5531
        %v5533 = vpop.f32.mrb[0].mxu0
        %5534 = vmatprep.mubr.bf16.mxu0 0
        %5535 = vmatmul.mubr.bf16.gmra.mrb[0].mxu0 %v5161
        %v5536 = vpop.f32.mrb[0].mxu0
        %v5537 = vadd.f32 %v5440, %v5536
        %v5538 = vpop.f32.mrb[0].mxu0
        %v5539 = vpop.f32.mrb[0].mxu0
        %v5540 = vadd.f32 %v5443, %v5539
        %v5541 = vpop.f32.mrb[0].mxu0
        %5542 = vmatprep.mubr.bf16.mxu0 0
        %5543 = vmatmul.mubr.bf16.gmra.mrb[0].mxu0 %v5164
        %v5544 = vpop.f32.mrb[0].mxu0
        %v5545 = vadd.f32 %v5448, %v5544
        %v5546 = vpop.f32.mrb[0].mxu0
        %v5547 = vpop.f32.mrb[0].mxu0
        %v5548 = vadd.f32 %v5451, %v5547
        %v5549 = vpop.f32.mrb[0].mxu0
        %5550 = vdwg.mxu0
        %v5599 = vunpack.c.l.b16 %v5093
        %v5600 = vunpack.c.l.b16 %v5094
        %v5601 = vunpack.c.l.b16 %v5095
        %v5602 = vunpack.c.l.b16 %v5096
        %v5603 = vunpack.c.l.b16 %v5097
        %v5604 = vunpack.c.l.b16 %v5098
        %v5605 = vunpack.c.l.b16 %v5099
        %v5606 = vunpack.c.l.b16 %v5100
        %v5607 = vunpack.c.l.b16 %v5101
        %v5608 = vunpack.c.l.b16 %v5102
        %v5609 = vunpack.c.l.b16 %v5103
        %v5610 = vunpack.c.l.b16 %v5104
        %v5611 = vunpack.c.l.b16 %v5105
        %v5612 = vunpack.c.l.b16 %v5106
        %v5613 = vunpack.c.l.b16 %v5107
        %v5614 = vunpack.c.l.b16 %v5108
        %v5615 = vunpack.c.l.b16 %v5109
        %v5616 = vunpack.c.l.b16 %v5110
        %v5617 = vunpack.c.l.b16 %v5111
        %v5618 = vunpack.c.l.b16 %v5112
        %v5619 = vunpack.c.l.b16 %v5113
        %v5620 = vunpack.c.l.b16 %v5114
        %v5621 = vunpack.c.l.b16 %v5115
        %v5622 = vunpack.c.l.b16 %v5116
        %v5623 = vunpack.c.l.b16 %v5117
        %v5624 = vunpack.c.l.b16 %v5118
        %v5625 = vunpack.c.l.b16 %v5119
        %v5626 = vunpack.c.l.b16 %v5120
        %v5627 = vunpack.c.l.b16 %v5121
        %v5628 = vunpack.c.l.b16 %v5122
        %v5629 = vunpack.c.l.b16 %v5123
        %v5630 = vunpack.c.l.b16 %v5124
        %v5631 = vunpack.c.l.b16 %v5125
        %v5632 = vunpack.c.l.b16 %v5126
        %v5633 = vunpack.c.l.b16 %v5127
        %v5634 = vunpack.c.l.b16 %v5128
        %v5635 = vunpack.c.l.b16 %v5129
        %v5636 = vunpack.c.l.b16 %v5130
        %v5637 = vunpack.c.l.b16 %v5131
        %v5638 = vunpack.c.l.b16 %v5132
        %v5639 = vunpack.c.l.b16 %v5133
        %v5640 = vunpack.c.l.b16 %v5134
        %v5641 = vunpack.c.l.b16 %v5135
        %v5642 = vunpack.c.l.b16 %v5136
        %v5643 = vunpack.c.l.b16 %v5137
        %v5644 = vunpack.c.l.b16 %v5138
        %v5645 = vunpack.c.l.b16 %v5139
        %v5646 = vunpack.c.l.b16 %v5140
        %v5647 = vpack.c.b16 %v5600, %v5599
        %v5648 = vpack.c.b16 %v5602, %v5601
        %v5649 = vpack.c.b16 %v5604, %v5603
        %v5650 = vpack.c.b16 %v5606, %v5605
        %v5651 = vpack.c.b16 %v5608, %v5607
        %v5652 = vpack.c.b16 %v5610, %v5609
        %v5653 = vpack.c.b16 %v5612, %v5611
        %v5654 = vpack.c.b16 %v5614, %v5613
        %v5655 = vpack.c.b16 %v5616, %v5615
        %v5656 = vpack.c.b16 %v5618, %v5617
        %v5657 = vpack.c.b16 %v5620, %v5619
        %v5658 = vpack.c.b16 %v5622, %v5621
        %v5659 = vpack.c.b16 %v5624, %v5623
        %v5660 = vpack.c.b16 %v5626, %v5625
        %v5661 = vpack.c.b16 %v5628, %v5627
        %v5662 = vpack.c.b16 %v5630, %v5629
        %v5663 = vpack.c.b16 %v5632, %v5631
        %v5664 = vpack.c.b16 %v5634, %v5633
        %v5665 = vpack.c.b16 %v5636, %v5635
        %v5666 = vpack.c.b16 %v5638, %v5637
        %v5667 = vpack.c.b16 %v5640, %v5639
        %v5668 = vpack.c.b16 %v5642, %v5641
        %v5669 = vpack.c.b16 %v5644, %v5643
        %v5670 = vpack.c.b16 %v5646, %v5645
        %5695 = vmatprep.subr.bf16.mxu0 0
        %5696 = vmatpush1.bf16.msra.mxu0 %v5647
        %5697 = vmatprep.subr.bf16.mxu0 0
        %5698 = vmatpush1.bf16.msra.mxu0 %v5648
        %5699 = vmatprep.subr.bf16.mxu0 0
        %5700 = vmatpush1.bf16.msra.mxu0 %v5649
        %5701 = vmatprep.subr.bf16.mxu0 0
        %5702 = vmatpush1.bf16.msra.mxu0 %v5650
        %5703 = vmatprep.subr.bf16.mxu0 0
        %5704 = vmatpush1.bf16.msra.mxu0 %v5651
        %5705 = vmatprep.subr.bf16.mxu0 0
        %5706 = vmatpush1.bf16.msra.mxu0 %v5652
        %5707 = vmatprep.subr.bf16.mxu0 0
        %5708 = vmatpush1.bf16.msra.mxu0 %v5653
        %5709 = vmatprep.subr.bf16.mxu0 0
        %5710 = vmatpush1.bf16.msra.mxu0 %v5654
        %5711 = vmatprep.subr.bf16.mxu0 0
        %5712 = vmatpush1.bf16.msra.mxu0 %v5655
        %5713 = vmatprep.subr.bf16.mxu0 0
        %5714 = vmatpush1.bf16.msra.mxu0 %v5656
        %5715 = vmatprep.subr.bf16.mxu0 0
        %5716 = vmatpush1.bf16.msra.mxu0 %v5657
        %5717 = vmatprep.subr.bf16.mxu0 0
        %5718 = vmatpush1.bf16.msra.mxu0 %v5658
        %5719 = vmatprep.subr.bf16.mxu0 0
        %5720 = vmatpush1.bf16.msra.mxu0 %v5659
        %5721 = vmatprep.subr.bf16.mxu0 0
        %5722 = vmatpush1.bf16.msra.mxu0 %v5660
        %5723 = vmatprep.subr.bf16.mxu0 0
        %5724 = vmatpush1.bf16.msra.mxu0 %v5661
        %5725 = vmatprep.subr.bf16.mxu0 0
        %5726 = vmatpush1.bf16.msra.mxu0 %v5662
        %5727 = vmatprep.mubr.bf16.mxu0 %v5070
        %5728 = vmatmul.mubr.bf16.gmra.mrb[0].mxu0 %v5069
        %v5729 = vpop.f32.mrb[0].mxu0
        %v5730 = vadd.f32 %v5489, %v5729
        %v5731 = vpop.f32.mrb[0].mxu0
        %v5732 = vpop.f32.mrb[0].mxu0
        %v5733 = vadd.f32 %v5492, %v5732
        %v5734 = vpop.f32.mrb[0].mxu0
        %5735 = vmatprep.mubr.bf16.mxu0 %v5073
        %5736 = vmatmul.mubr.bf16.gmra.mrb[0].mxu0 %v5072
        %v5737 = vpop.f32.mrb[0].mxu0
        %v5738 = vadd.f32 %v5497, %v5737
        %v5739 = vpop.f32.mrb[0].mxu0
        %v5740 = vpop.f32.mrb[0].mxu0
        %v5741 = vadd.f32 %v5500, %v5740
        %v5742 = vpop.f32.mrb[0].mxu0
        %5743 = vmatprep.mubr.bf16.mxu0 %v5076
        %5744 = vmatmul.mubr.bf16.gmra.mrb[0].mxu0 %v5075
        %v5745 = vpop.f32.mrb[0].mxu0
        %v5746 = vadd.f32 %v5505, %v5745
        %v5747 = vpop.f32.mrb[0].mxu0
        %v5748 = vpop.f32.mrb[0].mxu0
        %v5749 = vadd.f32 %v5508, %v5748
        %v5750 = vpop.f32.mrb[0].mxu0
        %5751 = vmatprep.mubr.bf16.mxu0 %v5079
        %5752 = vmatmul.mubr.bf16.gmra.mrb[0].mxu0 %v5078
        %v5753 = vpop.f32.mrb[0].mxu0
        %v5754 = vadd.f32 %v5513, %v5753
        %v5755 = vpop.f32.mrb[0].mxu0
        %v5756 = vpop.f32.mrb[0].mxu0
        %v5757 = vadd.f32 %v5516, %v5756
        %v5758 = vpop.f32.mrb[0].mxu0
        %5759 = vmatprep.mubr.bf16.mxu0 %v5082
        %5760 = vmatmul.mubr.bf16.gmra.mrb[0].mxu0 %v5081
        %v5761 = vpop.f32.mrb[0].mxu0
        %v5762 = vadd.f32 %v5521, %v5761
        %v5763 = vpop.f32.mrb[0].mxu0
        %v5764 = vpop.f32.mrb[0].mxu0
        %v5765 = vadd.f32 %v5524, %v5764
        %v5766 = vpop.f32.mrb[0].mxu0
        %5767 = vmatprep.mubr.bf16.mxu0 %v5085
        %5768 = vmatmul.mubr.bf16.gmra.mrb[0].mxu0 %v5084
        %v5769 = vpop.f32.mrb[0].mxu0
        %v5770 = vadd.f32 %v5529, %v5769
        %v5771 = vpop.f32.mrb[0].mxu0
        %v5772 = vpop.f32.mrb[0].mxu0
        %v5773 = vadd.f32 %v5532, %v5772
        %v5774 = vpop.f32.mrb[0].mxu0
        %5775 = vmatprep.mubr.bf16.mxu0 %v5088
        %5776 = vmatmul.mubr.bf16.gmra.mrb[0].mxu0 %v5087
        %v5777 = vpop.f32.mrb[0].mxu0
        %v5778 = vadd.f32 %v5537, %v5777
        %v5779 = vpop.f32.mrb[0].mxu0
        %v5780 = vpop.f32.mrb[0].mxu0
        %v5781 = vadd.f32 %v5540, %v5780
        %v5782 = vpop.f32.mrb[0].mxu0
        %5783 = vmatprep.mubr.bf16.mxu0 %v5091
        %5784 = vmatmul.mubr.bf16.gmra.mrb[0].mxu0 %v5090
        %v5785 = vpop.f32.mrb[0].mxu0
        %v5786 = vadd.f32 %v5545, %v5785
        %v5787 = vpop.f32.mrb[0].mxu0
        %v5788 = vpop.f32.mrb[0].mxu0
        %v5789 = vadd.f32 %v5548, %v5788
        %v5790 = vpop.f32.mrb[0].mxu0
        %5791 = vdwg.mxu0
        %5792 = vmatprep.subr.bf16.mxu0 0
        %5793 = vmatpush1.bf16.msra.mxu0 %v5663
        %5794 = vmatprep.subr.bf16.mxu0 0
        %5795 = vmatpush1.bf16.msra.mxu0 %v5664
        %5796 = vmatprep.subr.bf16.mxu0 0
        %5797 = vmatpush1.bf16.msra.mxu0 %v5665
        %5798 = vmatprep.subr.bf16.mxu0 0
        %5799 = vmatpush1.bf16.msra.mxu0 %v5666
        %5800 = vmatprep.subr.bf16.mxu0 0
        %5801 = vmatpush1.bf16.msra.mxu0 %v5667
        %5802 = vmatprep.subr.bf16.mxu0 0
        %5803 = vmatpush1.bf16.msra.mxu0 %v5668
        %5804 = vmatprep.subr.bf16.mxu0 0
        %5805 = vmatpush1.bf16.msra.mxu0 %v5669
        %5806 = vmatprep.subr.bf16.mxu0 0
        %5807 = vmatpush1.bf16.msra.mxu0 %v5670
        %5808 = vmatprep.subr.bf16.mxu0 0
        %5809 = vmatpush1.bf16.msra.mxu0 0
        %5810 = vmatprep.subr.bf16.mxu0 0
        %5811 = vmatpush1.bf16.msra.mxu0 0
        %5812 = vmatprep.subr.bf16.mxu0 0
        %5813 = vmatpush1.bf16.msra.mxu0 0
        %5814 = vmatprep.subr.bf16.mxu0 0
        %5815 = vmatpush1.bf16.msra.mxu0 0
        %5816 = vmatprep.subr.bf16.mxu0 0
        %5817 = vmatpush1.bf16.msra.mxu0 0
        %5818 = vmatprep.subr.bf16.mxu0 0
        %5819 = vmatpush1.bf16.msra.mxu0 0
        %5820 = vmatprep.subr.bf16.mxu0 0
        %5821 = vmatpush1.bf16.msra.mxu0 0
        %5822 = vmatprep.subr.bf16.mxu0 0
        %5823 = vmatpush1.bf16.msra.mxu0 0
        %5824 = vmatprep.mubr.bf16.mxu0 0
        %5825 = vmatmul.mubr.bf16.gmra.mrb[0].mxu0 %v5071
        %v5826 = vpop.f32.mrb[0].mxu0
        %v5827 = vadd.f32 %v5730, %v5826
        %v5828 = vpop.f32.mrb[0].mxu0
        %v5829 = vpop.f32.mrb[0].mxu0
        %v5830 = vadd.f32 %v5733, %v5829
        %v5831 = vpop.f32.mrb[0].mxu0
        %5832 = vmatprep.mubr.bf16.mxu0 0
        %5833 = vmatmul.mubr.bf16.gmra.mrb[0].mxu0 %v5074
        %v5834 = vpop.f32.mrb[0].mxu0
        %v5835 = vadd.f32 %v5738, %v5834
        %v5836 = vpop.f32.mrb[0].mxu0
        %v5837 = vpop.f32.mrb[0].mxu0
        %v5838 = vadd.f32 %v5741, %v5837
        %v5839 = vpop.f32.mrb[0].mxu0
        %5840 = vmatprep.mubr.bf16.mxu0 0
        %5841 = vmatmul.mubr.bf16.gmra.mrb[0].mxu0 %v5077
        %v5842 = vpop.f32.mrb[0].mxu0
        %v5843 = vadd.f32 %v5746, %v5842
        %v5844 = vpop.f32.mrb[0].mxu0
        %v5845 = vpop.f32.mrb[0].mxu0
        %v5846 = vadd.f32 %v5749, %v5845
        %v5847 = vpop.f32.mrb[0].mxu0
        %5848 = vmatprep.mubr.bf16.mxu0 0
        %5849 = vmatmul.mubr.bf16.gmra.mrb[0].mxu0 %v5080
        %v5850 = vpop.f32.mrb[0].mxu0
        %v5851 = vadd.f32 %v5754, %v5850
        %v5852 = vpop.f32.mrb[0].mxu0
        %v5853 = vpop.f32.mrb[0].mxu0
        %v5854 = vadd.f32 %v5757, %v5853
        %v5855 = vpop.f32.mrb[0].mxu0
        %5856 = vmatprep.mubr.bf16.mxu0 0
        %5857 = vmatmul.mubr.bf16.gmra.mrb[0].mxu0 %v5083
        %v5858 = vpop.f32.mrb[0].mxu0
        %v5859 = vadd.f32 %v5762, %v5858
        %v5860 = vpop.f32.mrb[0].mxu0
        %v5861 = vpop.f32.mrb[0].mxu0
        %v5862 = vadd.f32 %v5765, %v5861
        %v5863 = vpop.f32.mrb[0].mxu0
        %5864 = vmatprep.mubr.bf16.mxu0 0
        %5865 = vmatmul.mubr.bf16.gmra.mrb[0].mxu0 %v5086
        %v5866 = vpop.f32.mrb[0].mxu0
        %v5867 = vadd.f32 %v5770, %v5866
        %v5868 = vpop.f32.mrb[0].mxu0
        %v5869 = vpop.f32.mrb[0].mxu0
        %v5870 = vadd.f32 %v5773, %v5869
        %v5871 = vpop.f32.mrb[0].mxu0
        %5872 = vmatprep.mubr.bf16.mxu0 0
        %5873 = vmatmul.mubr.bf16.gmra.mrb[0].mxu0 %v5089
        %v5874 = vpop.f32.mrb[0].mxu0
        %v5875 = vadd.f32 %v5778, %v5874
        %v5876 = vpop.f32.mrb[0].mxu0
        %v5877 = vpop.f32.mrb[0].mxu0
        %v5878 = vadd.f32 %v5781, %v5877
        %v5879 = vpop.f32.mrb[0].mxu0
        %5880 = vmatprep.mubr.bf16.mxu0 0
        %5881 = vmatmul.mubr.bf16.gmra.mrb[0].mxu0 %v5092
        %v5882 = vpop.f32.mrb[0].mxu0
        %v5883 = vadd.f32 %v5786, %v5882
        %v5884 = vpop.f32.mrb[0].mxu0
        %v5885 = vpop.f32.mrb[0].mxu0
        %v5886 = vadd.f32 %v5789, %v5885
        %v5887 = vpop.f32.mrb[0].mxu0
        %5888 = vdwg.mxu0
        %s5889 = scalar_lea.vmem [#allocation3], 240
        %v5890 = vld [vmem:[%s5889] sm:$0xff]
        %v5891 = vld [vmem:[%s5889 + $0x8] sm:$0xff]
        %v5892 = vld [vmem:[%s5889 + $0x10] sm:$0xff]
        %v5893 = vld [vmem:[%s5889 + $0x18] sm:$0xff]
        %v5894 = vld [vmem:[%s5889 + $0x20] sm:$0xff]
        %v5895 = vld [vmem:[%s5889 + $0x28] sm:$0xff]
        %v5896 = vld [vmem:[%s5889 + $0x30] sm:$0xff]
        %v5897 = vld [vmem:[%s5889 + $0x38] sm:$0xff]
        %v5898 = vld [vmem:[%s5889 + $0x40] sm:$0xff]
        %v5899 = vld [vmem:[%s5889 + $0x48] sm:$0xff]
        %v5900 = vld [vmem:[%s5889 + $0x50] sm:$0xff]
        %v5901 = vld [vmem:[%s5889 + $0x58] sm:$0xff]
        %v5902 = vld [vmem:[%s5889 + $0x60] sm:$0xff]
        %v5903 = vld [vmem:[%s5889 + $0x68] sm:$0xff]
        %v5904 = vld [vmem:[%s5889 + $0x70] sm:$0xff]
        %v5905 = vld [vmem:[%s5889 + $0x78] sm:$0xff]
        %v5906 = vld [vmem:[%s5889 + $0x80] sm:$0xff]
        %v5907 = vld [vmem:[%s5889 + $0x88] sm:$0xff]
        %v5908 = vld [vmem:[%s5889 + $0x90] sm:$0xff]
        %v5909 = vld [vmem:[%s5889 + $0x98] sm:$0xff]
        %v5910 = vld [vmem:[%s5889 + $0xa0] sm:$0xff]
        %v5911 = vld [vmem:[%s5889 + $0xa8] sm:$0xff]
        %v5912 = vld [vmem:[%s5889 + $0xb0] sm:$0xff]
        %v5913 = vld [vmem:[%s5889 + $0xb8] sm:$0xff]
        %v5914 = vld [vmem:[%s4475] sm:$0xf]
        %v5915 = vld [vmem:[%s4475 + $0x4] sm:$0xf]
        %v5916 = vld [vmem:[%s4475 + $0x8] sm:$0xf]
        %v5917 = vld [vmem:[%s4475 + $0xc] sm:$0xf]
        %v5918 = vld [vmem:[%s4475 + $0x10] sm:$0xf]
        %v5919 = vld [vmem:[%s4475 + $0x14] sm:$0xf]
        %v5920 = vld [vmem:[%s4475 + $0x18] sm:$0xf]
        %v5921 = vld [vmem:[%s4475 + $0x1c] sm:$0xf]
        %v5922 = vld [vmem:[%s4475 + $0x20] sm:$0xf]
        %v5923 = vld [vmem:[%s4475 + $0x24] sm:$0xf]
        %v5924 = vld [vmem:[%s4475 + $0x28] sm:$0xf]
        %v5925 = vld [vmem:[%s4475 + $0x2c] sm:$0xf]
        %v5926 = vld [vmem:[%s4475 + $0x30] sm:$0xf]
        %v5927 = vld [vmem:[%s4475 + $0x34] sm:$0xf]
        %v5928 = vld [vmem:[%s4475 + $0x38] sm:$0xf]
        %v5929 = vld [vmem:[%s4475 + $0x3c] sm:$0xf]
        %v5930 = vld [vmem:[%s4475 + $0x40] sm:$0xf]
        %v5931 = vld [vmem:[%s4475 + $0x44] sm:$0xf]
        %v5932 = vld [vmem:[%s4475 + $0x48] sm:$0xf]
        %v5933 = vld [vmem:[%s4475 + $0x4c] sm:$0xf]
        %v5934 = vld [vmem:[%s4475 + $0x50] sm:$0xf]
        %v5935 = vld [vmem:[%s4475 + $0x54] sm:$0xf]
        %v5936 = vld [vmem:[%s4475 + $0x58] sm:$0xf]
        %v5937 = vld [vmem:[%s4475 + $0x5c] sm:$0xf]
        %v5938 = vld [vmem:[%s4475 + $0x60] sm:$0xf]
        %v5939 = vld [vmem:[%s4475 + $0x64] sm:$0xf]
        %v5940 = vld [vmem:[%s4475 + $0x68] sm:$0xf]
        %v5941 = vld [vmem:[%s4475 + $0x6c] sm:$0xf]
        %v5942 = vld [vmem:[%s4475 + $0x70] sm:$0xf]
        %v5943 = vld [vmem:[%s4475 + $0x74] sm:$0xf]
        %v5944 = vld [vmem:[%s4475 + $0x78] sm:$0xf]
        %v5945 = vld [vmem:[%s4475 + $0x7c] sm:$0xf]
        %v5946 = vld [vmem:[%s4475 + $0x80] sm:$0xf]
        %v5947 = vld [vmem:[%s4475 + $0x84] sm:$0xf]
        %v5948 = vld [vmem:[%s4475 + $0x88] sm:$0xf]
        %v5949 = vld [vmem:[%s4475 + $0x8c] sm:$0xf]
        %v5950 = vld [vmem:[%s4475 + $0x90] sm:$0xf]
        %v5951 = vld [vmem:[%s4475 + $0x94] sm:$0xf]
        %v5952 = vld [vmem:[%s4475 + $0x98] sm:$0xf]
        %v5953 = vld [vmem:[%s4475 + $0x9c] sm:$0xf]
        %v5954 = vld [vmem:[%s4475 + $0xa0] sm:$0xf]
        %v5955 = vld [vmem:[%s4475 + $0xa4] sm:$0xf]
        %v5956 = vld [vmem:[%s4475 + $0xa8] sm:$0xf]
        %v5957 = vld [vmem:[%s4475 + $0xac] sm:$0xf]
        %v5958 = vld [vmem:[%s4475 + $0xb0] sm:$0xf]
        %v5959 = vld [vmem:[%s4475 + $0xb4] sm:$0xf]
        %v5960 = vld [vmem:[%s4475 + $0xb8] sm:$0xf]
        %v5961 = vld [vmem:[%s4475 + $0xbc] sm:$0xf]
        %v6010 = vunpack.c.l.b16 %v5914
        %v6011 = vunpack.c.l.b16 %v5915
        %v6012 = vunpack.c.l.b16 %v5916
        %v6013 = vunpack.c.l.b16 %v5917
        %v6014 = vunpack.c.l.b16 %v5918
        %v6015 = vunpack.c.l.b16 %v5919
        %v6016 = vunpack.c.l.b16 %v5920
        %v6017 = vunpack.c.l.b16 %v5921
        %v6018 = vunpack.c.l.b16 %v5922
        %v6019 = vunpack.c.l.b16 %v5923
        %v6020 = vunpack.c.l.b16 %v5924
        %v6021 = vunpack.c.l.b16 %v5925
        %v6022 = vunpack.c.l.b16 %v5926
        %v6023 = vunpack.c.l.b16 %v5927
        %v6024 = vunpack.c.l.b16 %v5928
        %v6025 = vunpack.c.l.b16 %v5929
        %v6026 = vunpack.c.l.b16 %v5930
        %v6027 = vunpack.c.l.b16 %v5931
        %v6028 = vunpack.c.l.b16 %v5932
        %v6029 = vunpack.c.l.b16 %v5933
        %v6030 = vunpack.c.l.b16 %v5934
        %v6031 = vunpack.c.l.b16 %v5935
        %v6032 = vunpack.c.l.b16 %v5936
        %v6033 = vunpack.c.l.b16 %v5937
        %v6034 = vunpack.c.l.b16 %v5938
        %v6035 = vunpack.c.l.b16 %v5939
        %v6036 = vunpack.c.l.b16 %v5940
        %v6037 = vunpack.c.l.b16 %v5941
        %v6038 = vunpack.c.l.b16 %v5942
        %v6039 = vunpack.c.l.b16 %v5943
        %v6040 = vunpack.c.l.b16 %v5944
        %v6041 = vunpack.c.l.b16 %v5945
        %v6042 = vunpack.c.l.b16 %v5946
        %v6043 = vunpack.c.l.b16 %v5947
        %v6044 = vunpack.c.l.b16 %v5948
        %v6045 = vunpack.c.l.b16 %v5949
        %v6046 = vunpack.c.l.b16 %v5950
        %v6047 = vunpack.c.l.b16 %v5951
        %v6048 = vunpack.c.l.b16 %v5952
        %v6049 = vunpack.c.l.b16 %v5953
        %v6050 = vunpack.c.l.b16 %v5954
        %v6051 = vunpack.c.l.b16 %v5955
        %v6052 = vunpack.c.l.b16 %v5956
        %v6053 = vunpack.c.l.b16 %v5957
        %v6054 = vunpack.c.l.b16 %v5958
        %v6055 = vunpack.c.l.b16 %v5959
        %v6056 = vunpack.c.l.b16 %v5960
        %v6057 = vunpack.c.l.b16 %v5961
        %v6058 = vpack.c.b16 %v6011, %v6010
        %v6059 = vpack.c.b16 %v6013, %v6012
        %v6060 = vpack.c.b16 %v6015, %v6014
        %v6061 = vpack.c.b16 %v6017, %v6016
        %v6062 = vpack.c.b16 %v6019, %v6018
        %v6063 = vpack.c.b16 %v6021, %v6020
        %v6064 = vpack.c.b16 %v6023, %v6022
        %v6065 = vpack.c.b16 %v6025, %v6024
        %v6066 = vpack.c.b16 %v6027, %v6026
        %v6067 = vpack.c.b16 %v6029, %v6028
        %v6068 = vpack.c.b16 %v6031, %v6030
        %v6069 = vpack.c.b16 %v6033, %v6032
        %v6070 = vpack.c.b16 %v6035, %v6034
        %v6071 = vpack.c.b16 %v6037, %v6036
        %v6072 = vpack.c.b16 %v6039, %v6038
        %v6073 = vpack.c.b16 %v6041, %v6040
        %v6074 = vpack.c.b16 %v6043, %v6042
        %v6075 = vpack.c.b16 %v6045, %v6044
        %v6076 = vpack.c.b16 %v6047, %v6046
        %v6077 = vpack.c.b16 %v6049, %v6048
        %v6078 = vpack.c.b16 %v6051, %v6050
        %v6079 = vpack.c.b16 %v6053, %v6052
        %v6080 = vpack.c.b16 %v6055, %v6054
        %v6081 = vpack.c.b16 %v6057, %v6056
        %6106 = vmatprep.subr.bf16.mxu0 0
        %6107 = vmatpush1.bf16.msra.mxu0 %v6058
        %6108 = vmatprep.subr.bf16.mxu0 0
        %6109 = vmatpush1.bf16.msra.mxu0 %v6059
        %6110 = vmatprep.subr.bf16.mxu0 0
        %6111 = vmatpush1.bf16.msra.mxu0 %v6060
        %6112 = vmatprep.subr.bf16.mxu0 0
        %6113 = vmatpush1.bf16.msra.mxu0 %v6061
        %6114 = vmatprep.subr.bf16.mxu0 0
        %6115 = vmatpush1.bf16.msra.mxu0 %v6062
        %6116 = vmatprep.subr.bf16.mxu0 0
        %6117 = vmatpush1.bf16.msra.mxu0 %v6063
        %6118 = vmatprep.subr.bf16.mxu0 0
        %6119 = vmatpush1.bf16.msra.mxu0 %v6064
        %6120 = vmatprep.subr.bf16.mxu0 0
        %6121 = vmatpush1.bf16.msra.mxu0 %v6065
        %6122 = vmatprep.subr.bf16.mxu0 0
        %6123 = vmatpush1.bf16.msra.mxu0 %v6066
        %6124 = vmatprep.subr.bf16.mxu0 0
        %6125 = vmatpush1.bf16.msra.mxu0 %v6067
        %6126 = vmatprep.subr.bf16.mxu0 0
        %6127 = vmatpush1.bf16.msra.mxu0 %v6068
        %6128 = vmatprep.subr.bf16.mxu0 0
        %6129 = vmatpush1.bf16.msra.mxu0 %v6069
        %6130 = vmatprep.subr.bf16.mxu0 0
        %6131 = vmatpush1.bf16.msra.mxu0 %v6070
        %6132 = vmatprep.subr.bf16.mxu0 0
        %6133 = vmatpush1.bf16.msra.mxu0 %v6071
        %6134 = vmatprep.subr.bf16.mxu0 0
        %6135 = vmatpush1.bf16.msra.mxu0 %v6072
        %6136 = vmatprep.subr.bf16.mxu0 0
        %6137 = vmatpush1.bf16.msra.mxu0 %v6073
        %6138 = vmatprep.mubr.bf16.mxu0 %v5891
        %6139 = vmatmul.mubr.bf16.gmra.mrb[0].mxu0 %v5890
        %v6140 = vpop.f32.mrb[0].mxu0
        %v6141 = vadd.f32 0.0, %v6140
        %v6142 = vpop.f32.mrb[0].mxu0
        %v6143 = vpop.f32.mrb[0].mxu0
        %v6144 = vadd.f32 0.0, %v6143
        %v6145 = vpop.f32.mrb[0].mxu0
        %6146 = vmatprep.mubr.bf16.mxu0 %v5894
        %6147 = vmatmul.mubr.bf16.gmra.mrb[0].mxu0 %v5893
        %v6148 = vpop.f32.mrb[0].mxu0
        %v6149 = vadd.f32 0.0, %v6148
        %v6150 = vpop.f32.mrb[0].mxu0
        %v6151 = vpop.f32.mrb[0].mxu0
        %v6152 = vadd.f32 0.0, %v6151
        %v6153 = vpop.f32.mrb[0].mxu0
        %6154 = vmatprep.mubr.bf16.mxu0 %v5897
        %6155 = vmatmul.mubr.bf16.gmra.mrb[0].mxu0 %v5896
        %v6156 = vpop.f32.mrb[0].mxu0
        %v6157 = vadd.f32 0.0, %v6156
        %v6158 = vpop.f32.mrb[0].mxu0
        %v6159 = vpop.f32.mrb[0].mxu0
        %v6160 = vadd.f32 0.0, %v6159
        %v6161 = vpop.f32.mrb[0].mxu0
        %6162 = vmatprep.mubr.bf16.mxu0 %v5900
        %6163 = vmatmul.mubr.bf16.gmra.mrb[0].mxu0 %v5899
        %v6164 = vpop.f32.mrb[0].mxu0
        %v6165 = vadd.f32 0.0, %v6164
        %v6166 = vpop.f32.mrb[0].mxu0
        %v6167 = vpop.f32.mrb[0].mxu0
        %v6168 = vadd.f32 0.0, %v6167
        %v6169 = vpop.f32.mrb[0].mxu0
        %6170 = vmatprep.mubr.bf16.mxu0 %v5903
        %6171 = vmatmul.mubr.bf16.gmra.mrb[0].mxu0 %v5902
        %v6172 = vpop.f32.mrb[0].mxu0
        %v6173 = vadd.f32 0.0, %v6172
        %v6174 = vpop.f32.mrb[0].mxu0
        %v6175 = vpop.f32.mrb[0].mxu0
        %v6176 = vadd.f32 0.0, %v6175
        %v6177 = vpop.f32.mrb[0].mxu0
        %6178 = vmatprep.mubr.bf16.mxu0 %v5906
        %6179 = vmatmul.mubr.bf16.gmra.mrb[0].mxu0 %v5905
        %v6180 = vpop.f32.mrb[0].mxu0
        %v6181 = vadd.f32 0.0, %v6180
        %v6182 = vpop.f32.mrb[0].mxu0
        %v6183 = vpop.f32.mrb[0].mxu0
        %v6184 = vadd.f32 0.0, %v6183
        %v6185 = vpop.f32.mrb[0].mxu0
        %6186 = vmatprep.mubr.bf16.mxu0 %v5909
        %6187 = vmatmul.mubr.bf16.gmra.mrb[0].mxu0 %v5908
        %v6188 = vpop.f32.mrb[0].mxu0
        %v6189 = vadd.f32 0.0, %v6188
        %v6190 = vpop.f32.mrb[0].mxu0
        %v6191 = vpop.f32.mrb[0].mxu0
        %v6192 = vadd.f32 0.0, %v6191
        %v6193 = vpop.f32.mrb[0].mxu0
        %6194 = vmatprep.mubr.bf16.mxu0 %v5912
        %6195 = vmatmul.mubr.bf16.gmra.mrb[0].mxu0 %v5911
        %v6196 = vpop.f32.mrb[0].mxu0
        %v6197 = vadd.f32 0.0, %v6196
        %v6198 = vpop.f32.mrb[0].mxu0
        %v6199 = vpop.f32.mrb[0].mxu0
        %v6200 = vadd.f32 0.0, %v6199
        %v6201 = vpop.f32.mrb[0].mxu0
        %6202 = vdwg.mxu0
        %6203 = vmatprep.subr.bf16.mxu0 0
        %6204 = vmatpush1.bf16.msra.mxu0 %v6074
        %6205 = vmatprep.subr.bf16.mxu0 0
        %6206 = vmatpush1.bf16.msra.mxu0 %v6075
        %6207 = vmatprep.subr.bf16.mxu0 0
        %6208 = vmatpush1.bf16.msra.mxu0 %v6076
        %6209 = vmatprep.subr.bf16.mxu0 0
        %6210 = vmatpush1.bf16.msra.mxu0 %v6077
        %6211 = vmatprep.subr.bf16.mxu0 0
        %6212 = vmatpush1.bf16.msra.mxu0 %v6078
        %6213 = vmatprep.subr.bf16.mxu0 0
        %6214 = vmatpush1.bf16.msra.mxu0 %v6079
        %6215 = vmatprep.subr.bf16.mxu0 0
        %6216 = vmatpush1.bf16.msra.mxu0 %v6080
        %6217 = vmatprep.subr.bf16.mxu0 0
        %6218 = vmatpush1.bf16.msra.mxu0 %v6081
        %6219 = vmatprep.subr.bf16.mxu0 0
        %6220 = vmatpush1.bf16.msra.mxu0 0
        %6221 = vmatprep.subr.bf16.mxu0 0
        %6222 = vmatpush1.bf16.msra.mxu0 0
        %6223 = vmatprep.subr.bf16.mxu0 0
        %6224 = vmatpush1.bf16.msra.mxu0 0
        %6225 = vmatprep.subr.bf16.mxu0 0
        %6226 = vmatpush1.bf16.msra.mxu0 0
        %6227 = vmatprep.subr.bf16.mxu0 0
        %6228 = vmatpush1.bf16.msra.mxu0 0
        %6229 = vmatprep.subr.bf16.mxu0 0
        %6230 = vmatpush1.bf16.msra.mxu0 0
        %6231 = vmatprep.subr.bf16.mxu0 0
        %6232 = vmatpush1.bf16.msra.mxu0 0
        %6233 = vmatprep.subr.bf16.mxu0 0
        %6234 = vmatpush1.bf16.msra.mxu0 0
        %6235 = vmatprep.mubr.bf16.mxu0 0
        %6236 = vmatmul.mubr.bf16.gmra.mrb[0].mxu0 %v5892
        %v6237 = vpop.f32.mrb[0].mxu0
        %v6238 = vadd.f32 %v6141, %v6237
        %v6239 = vpop.f32.mrb[0].mxu0
        %v6240 = vpop.f32.mrb[0].mxu0
        %v6241 = vadd.f32 %v6144, %v6240
        %v6242 = vpop.f32.mrb[0].mxu0
        %6243 = vmatprep.mubr.bf16.mxu0 0
        %6244 = vmatmul.mubr.bf16.gmra.mrb[0].mxu0 %v5895
        %v6245 = vpop.f32.mrb[0].mxu0
        %v6246 = vadd.f32 %v6149, %v6245
        %v6247 = vpop.f32.mrb[0].mxu0
        %v6248 = vpop.f32.mrb[0].mxu0
        %v6249 = vadd.f32 %v6152, %v6248
        %v6250 = vpop.f32.mrb[0].mxu0
        %6251 = vmatprep.mubr.bf16.mxu0 0
        %6252 = vmatmul.mubr.bf16.gmra.mrb[0].mxu0 %v5898
        %v6253 = vpop.f32.mrb[0].mxu0
        %v6254 = vadd.f32 %v6157, %v6253
        %v6255 = vpop.f32.mrb[0].mxu0
        %v6256 = vpop.f32.mrb[0].mxu0
        %v6257 = vadd.f32 %v6160, %v6256
        %v6258 = vpop.f32.mrb[0].mxu0
        %6259 = vmatprep.mubr.bf16.mxu0 0
        %6260 = vmatmul.mubr.bf16.gmra.mrb[0].mxu0 %v5901
        %v6261 = vpop.f32.mrb[0].mxu0
        %v6262 = vadd.f32 %v6165, %v6261
        %v6263 = vpop.f32.mrb[0].mxu0
        %v6264 = vpop.f32.mrb[0].mxu0
        %v6265 = vadd.f32 %v6168, %v6264
        %v6266 = vpop.f32.mrb[0].mxu0
        %6267 = vmatprep.mubr.bf16.mxu0 0
        %6268 = vmatmul.mubr.bf16.gmra.mrb[0].mxu0 %v5904
        %v6269 = vpop.f32.mrb[0].mxu0
        %v6270 = vadd.f32 %v6173, %v6269
        %v6271 = vpop.f32.mrb[0].mxu0
        %v6272 = vpop.f32.mrb[0].mxu0
        %v6273 = vadd.f32 %v6176, %v6272
        %v6274 = vpop.f32.mrb[0].mxu0
        %6275 = vmatprep.mubr.bf16.mxu0 0
        %6276 = vmatmul.mubr.bf16.gmra.mrb[0].mxu0 %v5907
        %v6277 = vpop.f32.mrb[0].mxu0
        %v6278 = vadd.f32 %v6181, %v6277
        %v6279 = vpop.f32.mrb[0].mxu0
        %v6280 = vpop.f32.mrb[0].mxu0
        %v6281 = vadd.f32 %v6184, %v6280
        %v6282 = vpop.f32.mrb[0].mxu0
        %6283 = vmatprep.mubr.bf16.mxu0 0
        %6284 = vmatmul.mubr.bf16.gmra.mrb[0].mxu0 %v5910
        %v6285 = vpop.f32.mrb[0].mxu0
        %v6286 = vadd.f32 %v6189, %v6285
        %v6287 = vpop.f32.mrb[0].mxu0
        %v6288 = vpop.f32.mrb[0].mxu0
        %v6289 = vadd.f32 %v6192, %v6288
        %v6290 = vpop.f32.mrb[0].mxu0
        %6291 = vmatprep.mubr.bf16.mxu0 0
        %6292 = vmatmul.mubr.bf16.gmra.mrb[0].mxu0 %v5913
        %v6293 = vpop.f32.mrb[0].mxu0
        %v6294 = vadd.f32 %v6197, %v6293
        %v6295 = vpop.f32.mrb[0].mxu0
        %v6296 = vpop.f32.mrb[0].mxu0
        %v6297 = vadd.f32 %v6200, %v6296
        %v6298 = vpop.f32.mrb[0].mxu0
        %6299 = vdwg.mxu0
        %v6300 = vadd.f32 %v5827, %v6238
        %v6301 = vadd.f32 %v5830, %v6241
        %v6302 = vadd.f32 %v5835, %v6246
        %v6303 = vadd.f32 %v5838, %v6249
        %v6304 = vadd.f32 %v5843, %v6254
        %v6305 = vadd.f32 %v5846, %v6257
        %v6306 = vadd.f32 %v5851, %v6262
        %v6307 = vadd.f32 %v5854, %v6265
        %v6308 = vadd.f32 %v5859, %v6270
        %v6309 = vadd.f32 %v5862, %v6273
        %v6310 = vadd.f32 %v5867, %v6278
        %v6311 = vadd.f32 %v5870, %v6281
        %v6312 = vadd.f32 %v5875, %v6286
        %v6313 = vadd.f32 %v5878, %v6289
        %v6314 = vadd.f32 %v5883, %v6294
        %v6315 = vadd.f32 %v5886, %v6297
        %v6316 = vld [vmem:[%s540] sm:$0xf]
        %v6317 = vld [vmem:[%s540 + $0x4] sm:$0xf]
        %v6318 = vld [vmem:[%s540 + $0x8] sm:$0xf]
        %v6319 = vld [vmem:[%s540 + $0xc] sm:$0xf]
        %v6320 = vld [vmem:[%s540 + $0x10] sm:$0xf]
        %v6321 = vld [vmem:[%s540 + $0x14] sm:$0xf]
        %v6322 = vld [vmem:[%s540 + $0x18] sm:$0xf]
        %v6323 = vld [vmem:[%s540 + $0x1c] sm:$0xf]
        %v6324 = vld [vmem:[%s540 + $0x20] sm:$0xf]
        %v6325 = vld [vmem:[%s540 + $0x24] sm:$0xf]
        %v6326 = vld [vmem:[%s540 + $0x28] sm:$0xf]
        %v6327 = vld [vmem:[%s540 + $0x2c] sm:$0xf]
        %v6328 = vld [vmem:[%s540 + $0x30] sm:$0xf]
        %v6329 = vld [vmem:[%s540 + $0x34] sm:$0xf]
        %v6330 = vld [vmem:[%s540 + $0x38] sm:$0xf]
        %v6331 = vld [vmem:[%s540 + $0x3c] sm:$0xf]
        %v6332 = vunpack.c.l.bf16 %v6316
        %v6333 = vunpack.c.l.bf16 %v6317
        %v6334 = vunpack.c.l.bf16 %v6318
        %v6335 = vunpack.c.l.bf16 %v6319
        %v6336 = vunpack.c.l.bf16 %v6320
        %v6337 = vunpack.c.l.bf16 %v6321
        %v6338 = vunpack.c.l.bf16 %v6322
        %v6339 = vunpack.c.l.bf16 %v6323
        %v6340 = vunpack.c.l.bf16 %v6324
        %v6341 = vunpack.c.l.bf16 %v6325
        %v6342 = vunpack.c.l.bf16 %v6326
        %v6343 = vunpack.c.l.bf16 %v6327
        %v6344 = vunpack.c.l.bf16 %v6328
        %v6345 = vunpack.c.l.bf16 %v6329
        %v6346 = vunpack.c.l.bf16 %v6330
        %v6347 = vunpack.c.l.bf16 %v6331
        %v6348 = vld [vmem:[%s5] sm:$0x1]
        %v6350 = vlaneseq
        %v6351 = vshrl.u32 %v6350, 7
        %v6352 = vsub.s32 0, %v6351
        %v6353 = vrot.slane %v6348, %v6352
        %v6355 = vmul.f32 %v6300, %v6353
        %v6356 = vmul.f32 %v6301, %v6353
        %v6357 = vmul.f32 %v6302, %v6353
        %v6358 = vmul.f32 %v6303, %v6353
        %v6359 = vmul.f32 %v6304, %v6353
        %v6360 = vmul.f32 %v6305, %v6353
        %v6361 = vmul.f32 %v6306, %v6353
        %v6362 = vmul.f32 %v6307, %v6353
        %v6363 = vmul.f32 %v6308, %v6353
        %v6364 = vmul.f32 %v6309, %v6353
        %v6365 = vmul.f32 %v6310, %v6353
        %v6366 = vmul.f32 %v6311, %v6353
        %v6367 = vmul.f32 %v6312, %v6353
        %v6368 = vmul.f32 %v6313, %v6353
        %v6369 = vmul.f32 %v6314, %v6353
        %v6370 = vmul.f32 %v6315, %v6353
        %v6371 = vld [vmem:[%s6] sm:$0x1]
        %v6373 = vlaneseq
        %v6374 = vshrl.u32 %v6373, 7
        %v6375 = vsub.s32 0, %v6374
        %v6376 = vrot.slane %v6371, %v6375
        %v6378 = vadd.f32 %v6355, %v6376
        %v6379 = vadd.f32 %v6356, %v6376
        %v6380 = vadd.f32 %v6357, %v6376
        %v6381 = vadd.f32 %v6358, %v6376
        %v6382 = vadd.f32 %v6359, %v6376
        %v6383 = vadd.f32 %v6360, %v6376
        %v6384 = vadd.f32 %v6361, %v6376
        %v6385 = vadd.f32 %v6362, %v6376
        %v6386 = vadd.f32 %v6363, %v6376
        %v6387 = vadd.f32 %v6364, %v6376
        %v6388 = vadd.f32 %v6365, %v6376
        %v6389 = vadd.f32 %v6366, %v6376
        %v6390 = vadd.f32 %v6367, %v6376
        %v6391 = vadd.f32 %v6368, %v6376
        %v6392 = vadd.f32 %v6369, %v6376
        %v6393 = vadd.f32 %v6370, %v6376
        %v6394 = vadd.f32 %v6378, %v6332
        %v6395 = vadd.f32 %v6379, %v6333
        %v6396 = vadd.f32 %v6380, %v6334
        %v6397 = vadd.f32 %v6381, %v6335
        %v6398 = vadd.f32 %v6382, %v6336
        %v6399 = vadd.f32 %v6383, %v6337
        %v6400 = vadd.f32 %v6384, %v6338
        %v6401 = vadd.f32 %v6385, %v6339
        %v6402 = vadd.f32 %v6386, %v6340
        %v6403 = vadd.f32 %v6387, %v6341
        %v6404 = vadd.f32 %v6388, %v6342
        %v6405 = vadd.f32 %v6389, %v6343
        %v6406 = vadd.f32 %v6390, %v6344
        %v6407 = vadd.f32 %v6391, %v6345
        %v6408 = vadd.f32 %v6392, %v6346
        %v6409 = vadd.f32 %v6393, %v6347
        %v6410 = vmax.f32 %v6394, 0.0
        %v6411 = vmax.f32 %v6395, 0.0
        %v6412 = vmax.f32 %v6396, 0.0
        %v6413 = vmax.f32 %v6397, 0.0
        %v6414 = vmax.f32 %v6398, 0.0
        %v6415 = vmax.f32 %v6399, 0.0
        %v6416 = vmax.f32 %v6400, 0.0
        %v6417 = vmax.f32 %v6401, 0.0
        %v6418 = vmax.f32 %v6402, 0.0
        %v6419 = vmax.f32 %v6403, 0.0
        %v6420 = vmax.f32 %v6404, 0.0
        %v6421 = vmax.f32 %v6405, 0.0
        %v6422 = vmax.f32 %v6406, 0.0
        %v6423 = vmax.f32 %v6407, 0.0
        %v6424 = vmax.f32 %v6408, 0.0
        %v6425 = vmax.f32 %v6409, 0.0
        %v6426 = vpack.c.bf16 %v6411, %v6410
        %v6427 = vpack.c.bf16 %v6413, %v6412
        %v6428 = vpack.c.bf16 %v6415, %v6414
        %v6429 = vpack.c.bf16 %v6417, %v6416
        %v6430 = vpack.c.bf16 %v6419, %v6418
        %v6431 = vpack.c.bf16 %v6421, %v6420
        %v6432 = vpack.c.bf16 %v6423, %v6422
        %v6433 = vpack.c.bf16 %v6425, %v6424
        %v6442 = vunpack.c.l.b16 %v6426
        %v6443 = vunpack.c.h.b16 %v6426
        %v6444 = vunpack.c.l.b16 %v6427
        %v6445 = vunpack.c.h.b16 %v6427
        %v6446 = vunpack.c.l.b16 %v6428
        %v6447 = vunpack.c.h.b16 %v6428
        %v6448 = vunpack.c.l.b16 %v6429
        %v6449 = vunpack.c.h.b16 %v6429
        %v6450 = vunpack.c.l.b16 %v6430
        %v6451 = vunpack.c.h.b16 %v6430
        %v6452 = vunpack.c.l.b16 %v6431
        %v6453 = vunpack.c.h.b16 %v6431
        %v6454 = vunpack.c.l.b16 %v6432
        %v6455 = vunpack.c.h.b16 %v6432
        %v6456 = vunpack.c.l.b16 %v6433
        %v6457 = vunpack.c.h.b16 %v6433
        %v6458 = vpack.c.b16 %v6442, %v6442
        %v6459 = vpack.c.b16 %v6443, %v6443
        %v6460 = vpack.c.b16 %v6444, %v6444
        %v6461 = vpack.c.b16 %v6445, %v6445
        %v6462 = vpack.c.b16 %v6446, %v6446
        %v6463 = vpack.c.b16 %v6447, %v6447
        %v6464 = vpack.c.b16 %v6448, %v6448
        %v6465 = vpack.c.b16 %v6449, %v6449
        %v6466 = vpack.c.b16 %v6450, %v6450
        %v6467 = vpack.c.b16 %v6451, %v6451
        %v6468 = vpack.c.b16 %v6452, %v6452
        %v6469 = vpack.c.b16 %v6453, %v6453
        %v6470 = vpack.c.b16 %v6454, %v6454
        %v6471 = vpack.c.b16 %v6455, %v6455
        %v6472 = vpack.c.b16 %v6456, %v6456
        %v6473 = vpack.c.b16 %v6457, %v6457
        %s6490 = scalar_lea.vmem %s325, 64 [#allocation10]
        %6491 = vst [vmem:[%s6490] sm:$0xf] %v6458
        %6492 = vst [vmem:[%s6490 + $0x4] sm:$0xf] %v6459
        %6493 = vst [vmem:[%s6490 + $0x8] sm:$0xf] %v6460
        %6494 = vst [vmem:[%s6490 + $0xc] sm:$0xf] %v6461
        %6495 = vst [vmem:[%s6490 + $0x10] sm:$0xf] %v6462
        %6496 = vst [vmem:[%s6490 + $0x14] sm:$0xf] %v6463
        %6497 = vst [vmem:[%s6490 + $0x18] sm:$0xf] %v6464
        %6498 = vst [vmem:[%s6490 + $0x1c] sm:$0xf] %v6465
        %6499 = vst [vmem:[%s6490 + $0x20] sm:$0xf] %v6466
        %6500 = vst [vmem:[%s6490 + $0x24] sm:$0xf] %v6467
        %6501 = vst [vmem:[%s6490 + $0x28] sm:$0xf] %v6468
        %6502 = vst [vmem:[%s6490 + $0x2c] sm:$0xf] %v6469
        %6503 = vst [vmem:[%s6490 + $0x30] sm:$0xf] %v6470
        %6504 = vst [vmem:[%s6490 + $0x34] sm:$0xf] %v6471
        %6505 = vst [vmem:[%s6490 + $0x38] sm:$0xf] %v6472
        %6506 = vst [vmem:[%s6490 + $0x3c] sm:$0xf] %v6473
        %s6507 = sand.u32 %s185, 1
        %s6508 = scalar_lea.sflag [#allocation6], %s6507
        %s6509 = sand.u32 %s185, 1
        %s6510 = smul.addr %s6509, 128
        %s6511 = scalar_lea.vmem [#allocation10], %s6510
        // Predicated region
        $region61: #{tpu_custom_call.1} parent=47 // pred_check
          %p6512 = pneg %p195
        $region62: #{tpu_custom_call.1} parent=47 // pred_check_branch
          %6514 = sbr.rel (%p6512) target = $region64
        $region63: #{tpu_custom_call.1} parent=47 // pred_region
          %s6516 = ssub.s32 2048, 2048
          %6517 = vsyncadd %s6508, %s6516
          %s6518 = smul.addr %s25, 32
          %s6519 = smul.addr %s6518, 64
          %s6520 = scalar_lea.hbm %s7, %s6519
          %s6521 = sshll.u32 %s6511, 4
          %s6522 = int_to_ptr.vmem [resolvable:$true] %s6521
          %6527 = dma.vmem_to_hbm [thread:$0]  %s6522, 2048, %s6520, %s6508, 64, 64, 4
        $region64: #{tpu_custom_call.1} parent=47 // pred_fallthru
          _
      $region48: #{tpu_custom_call.1} parent=5 // pred_fallthru
        _
      %p6528 = scmp.le.s32.totalorder 2, %s20
      // Predicated region
      $region65: #{tpu_custom_call.1} parent=5 // pred_check
        %p6529 = pneg %p6528
      $region66: #{tpu_custom_call.1} parent=5 // pred_check_branch
        %6531 = sbr.rel (%p6529) target = $region68
      $region67: #{tpu_custom_call.1} parent=5 // pred_region
        %s6532 = ssub.s32 %s20, 2
        // Predicated region
        $region69: #{tpu_custom_call.1} parent=67 // pred_check
          %p6533 = pneg %p201
        $region70: #{tpu_custom_call.1} parent=67 // pred_check_branch
          %6535 = sbr.rel (%p6533) target = $region72
        $region71: #{tpu_custom_call.1} parent=67 // pred_region
          %s6536 = sand.u32 %s186, 1
          %s6537 = scalar_lea.sflag [#allocation6], %s6536
          %s6538 = sand.u32 %s186, 1
          %s6539 = smul.addr %s6538, 128
          %s6540 = scalar_lea.vmem [#allocation10], %s6539
          %6541 = dma.done %s6537, 2048
        $region72: #{tpu_custom_call.1} parent=67 // pred_fallthru
          _
      $region68: #{tpu_custom_call.1} parent=5 // pred_fallthru
        _
    $region6: #{tpu_custom_call.1} parent=1 // loop_footer
      %s24 = sadd.s32 1, %s20
    $region7: #{tpu_custom_call.1} parent=1 // loop_footer_branch
      %19 = sbr.rel target = $region3
    $region8: #{tpu_custom_call.1} parent=1 // loop_exit
      _
    %6542 = vsyncpa [#allocation5], 1
    %s6543 = scalar_lea.sflag [#allocation5], 1
    %6544 = vsyncpa %s6543, 1
    %6545 = vsyncpa [#allocation8], 1
    %6546 = vsyncpa [#allocation6], 1
    %s6547 = scalar_lea.sflag [#allocation6], 1
    %6548 = vsyncpa %s6547, 1

</llo_original>
